<compile_context>
chip_gen: v7x
topology: tpu7x:2x2x1
jax: 0.10.0
libtpu: 0.0.40
codegen_flags: <defaults>
</compile_context>

<pallas_src>
import jax
import jax.numpy as jnp
from jax.experimental import pallas as pl
from jax.experimental.pallas import tpu as pltpu

INPUT_SHAPE = (1, 84, 84)   # (C, H, W) as in the PyTorch module
NUM_ACTIONS = 3             # CarRacing-v2 action space is Box(3,)

_N_HALVES = 2               # fc hidden split -> megacore sharding on v7x
_VMEM_LIMIT = 32 << 20


# ----------------------------------------------------------------------------
# Pallas kernel: fused GEMM + bias + ReLU (bf16 operands, f32 accumulate).
# ----------------------------------------------------------------------------
def _gemm_bias_relu_kernel(x_ref, w_ref, b_ref, o_ref):
    acc = jnp.dot(x_ref[...], w_ref[...], preferred_element_type=jnp.float32)
    acc = jnp.maximum(acc + b_ref[...], 0.0)
    o_ref[...] = acc.astype(o_ref.dtype)


def conv_gemm_relu_pallas(patches, w_gemm, b_row):
    """relu(patches @ w + b): patches (M,K) bf16, w (K,N) bf16, b (1,N) f32 -> (M,N) bf16."""
    M, K = patches.shape
    K2, N = w_gemm.shape
    assert K == K2, (K, K2)
    return pl.pallas_call(
        _gemm_bias_relu_kernel,
        out_shape=jax.ShapeDtypeStruct((M, N), jnp.bfloat16),
        grid=(1,),
        in_specs=[
            pl.BlockSpec((M, K), lambda i: (0, 0)),
            pl.BlockSpec((K, N), lambda i: (0, 0)),
            pl.BlockSpec((1, N), lambda i: (0, 0)),
        ],
        out_specs=pl.BlockSpec((M, N), lambda i: (0, 0)),
        compiler_params=pltpu.CompilerParams(
            dimension_semantics=("arbitrary",),
            vmem_limit_bytes=_VMEM_LIMIT,
        ),
    )(patches, w_gemm, b_row)


# ----------------------------------------------------------------------------
# Pallas kernel: fused fc (ReLU) + out head, one hidden-dim half per grid step.
# ----------------------------------------------------------------------------
def _fc_head_kernel(x_ref, wfc_ref, bfc_ref, wout_ref, o_ref):
    h = jnp.dot(x_ref[...], wfc_ref[...], preferred_element_type=jnp.float32)
    h = jnp.maximum(h + bfc_ref[...], 0.0)                       # (B, Hh) f32
    part = jnp.dot(h.astype(jnp.bfloat16), wout_ref[...],
                   preferred_element_type=jnp.float32)           # (B, A) partial
    o_ref[...] = part[None, :, :].astype(o_ref.dtype)


def fc_head_pallas(x, wfc, bfc_row, wout, bout):
    """out = relu(x @ wfc + bfc) @ wout + bout, hidden dim split across the grid."""
    B, K = x.shape
    K2, H = wfc.shape
    H2, A = wout.shape
    assert K == K2 and H == H2 and H % _N_HALVES == 0
    Hh = H // _N_HALVES
    partials = pl.pallas_call(
        _fc_head_kernel,
        out_shape=jax.ShapeDtypeStruct((_N_HALVES, B, A), jnp.float32),
        grid=(_N_HALVES,),
        in_specs=[
            pl.BlockSpec((B, K), lambda n: (0, 0)),
            pl.BlockSpec((K, Hh), lambda n: (0, n)),
            pl.BlockSpec((1, Hh), lambda n: (0, n)),
            pl.BlockSpec((Hh, A), lambda n: (n, 0)),
        ],
        out_specs=pl.BlockSpec((1, B, A), lambda n: (n, 0, 0)),
        compiler_params=pltpu.CompilerParams(
            dimension_semantics=("parallel",),
            vmem_limit_bytes=_VMEM_LIMIT,
        ),
    )(x, wfc, bfc_row, wout)
    # Tiny (B, A) reduction over the two hidden halves + output bias.
    return partials.sum(axis=0) + bout[None, :]


# ----------------------------------------------------------------------------
# im2col glue (plain JAX, tiny arrays): NHWC -> (B*HO*WO, Cin*KH*KW).
# Column order is (cin, dy, dx), matching torch's weight.reshape(Cout, -1).
# ----------------------------------------------------------------------------
def _im2col_nhwc(x, kh, kw, stride):
    B, H, W, C = x.shape
    ho = (H - kh) // stride + 1
    wo = (W - kw) // stride + 1
    cols = []
    for dy in range(kh):
        for dx in range(kw):
            patch = x[:, dy:dy + stride * (ho - 1) + 1:stride,
                         dx:dx + stride * (wo - 1) + 1:stride, :]
            cols.append(patch)                       # (B, HO, WO, C)
    p = jnp.stack(cols, axis=-1)                     # (B, HO, WO, C, KH*KW)
    p = p.reshape(B * ho * wo, C * kh * kw)
    return p, ho, wo


# ----------------------------------------------------------------------------
# One-time param preparation (hoists every reshape/transpose out of forward).
# ----------------------------------------------------------------------------
def prepare_kernel_params(params):
    def conv_w(w_oihw):
        cout = w_oihw.shape[0]
        return jnp.transpose(w_oihw.reshape(cout, -1)).astype(jnp.bfloat16)   # (K, Cout)

    def b_row(b):
        return b.reshape(1, -1).astype(jnp.float32)

    # fc weight: permute its input (row) order from torch's NCHW flatten (c,h,w)
    # to the NHWC flatten (h,w,c) produced by the conv pipeline.
    wfc = params["wfc"]                                                      # (512, 3136)
    wfc = wfc.reshape(512, 64, 7, 7).transpose(0, 2, 3, 1).reshape(512, 3136)
    return {
        "w1": conv_w(params["w1"]), "b1": b_row(params["b1"]),
        "w2": conv_w(params["w2"]), "b2": b_row(params["b2"]),
        "w3": conv_w(params["w3"]), "b3": b_row(params["b3"]),
        "wfc": jnp.transpose(wfc).astype(jnp.bfloat16),                      # (3136, 512)
        "bfc": b_row(params["bfc"]),                                         # (1, 512)
        "wout": jnp.transpose(params["wout"]).astype(jnp.bfloat16),          # (512, A)
        "bout": params["bout"].astype(jnp.float32),                          # (A,)
    }


# ----------------------------------------------------------------------------
# Full DQNNetwork forward (kernel-layout params).
# ----------------------------------------------------------------------------
def dqn_forward(x_nchw, kp):
    B = x_nchw.shape[0]
    # NCHW -> NHWC, bf16 activations.
    x = jnp.transpose(x_nchw.astype(jnp.float32), (0, 2, 3, 1)).astype(jnp.bfloat16)
    # conv1: 8x8 stride 4 -> (B, 20, 20, 32)
    p, ho, wo = _im2col_nhwc(x, 8, 8, 4)
    x = conv_gemm_relu_pallas(p, kp["w1"], kp["b1"]).reshape(B, ho, wo, 32)
    # conv2: 4x4 stride 2 -> (B, 9, 9, 64)
    p, ho, wo = _im2col_nhwc(x, 4, 4, 2)
    x = conv_gemm_relu_pallas(p, kp["w2"], kp["b2"]).reshape(B, ho, wo, 64)
    # conv3: 3x3 stride 1 -> (B*49, 64)
    p, ho, wo = _im2col_nhwc(x, 3, 3, 1)
    x = conv_gemm_relu_pallas(p, kp["w3"], kp["b3"])
    # NHWC flatten; the row-permuted fc weight makes this match torch's NCHW view.
    x = x.reshape(B, ho * wo * 64)                                           # (B, 3136)
    # Fused fc (ReLU) + out head.
    return fc_head_pallas(x, kp["wfc"], kp["bfc"], kp["wout"], kp["bout"])


# ----------------------------------------------------------------------------
# Deterministic synthetic parameters (PyTorch-shaped: OIHW conv, (out,in) fc).
# ----------------------------------------------------------------------------
def init_params(key):
    ks = jax.random.split(key, 10)

    def u(k, shape, fan_in):
        bound = 1.0 / float(fan_in) ** 0.5
        return jax.random.uniform(k, shape, jnp.float32, -bound, bound)

    return {
        "w1": u(ks[0], (32, INPUT_SHAPE[0], 8, 8), INPUT_SHAPE[0] * 8 * 8),
        "b1": u(ks[1], (32,), INPUT_SHAPE[0] * 8 * 8),
        "w2": u(ks[2], (64, 32, 4, 4), 32 * 4 * 4),
        "b2": u(ks[3], (64,), 32 * 4 * 4),
        "w3": u(ks[4], (64, 64, 3, 3), 64 * 3 * 3),
        "b3": u(ks[5], (64,), 64 * 3 * 3),
        "wfc": u(ks[6], (512, 3136), 3136),
        "bfc": u(ks[7], (512,), 3136),
        "wout": u(ks[8], (NUM_ACTIONS, 512), 512),
        "bout": u(ks[9], (NUM_ACTIONS,), 512),
    }


# ----------------------------------------------------------------------------
# Pure-JAX f32 reference (lax.conv) for a semantics check.
# ----------------------------------------------------------------------------
def dqn_forward_ref(x_nchw, params):
    x = x_nchw.astype(jnp.float32)

    def conv(x, w, b, s):
        y = jax.lax.conv_general_dilated(
            x, w, window_strides=(s, s), padding="VALID",
            dimension_numbers=("NCHW", "OIHW", "NCHW"))
        return jax.nn.relu(y + b[None, :, None, None])

    x = conv(x, params["w1"], params["b1"], 4)
    x = conv(x, params["w2"], params["b2"], 2)
    x = conv(x, params["w3"], params["b3"], 1)
    x = x.reshape(x.shape[0], -1)
    x = jax.nn.relu(x @ params["wfc"].T + params["bfc"])
    return x @ params["wout"].T + params["bout"]


if __name__ == "__main__":
    key = jax.random.PRNGKey(0)
    kx, kp_key = jax.random.split(key)
    # Batch of 2 grayscale 84x84 frames (NCHW) — spatial size fixed by fc=3136.
    x = jax.random.uniform(kx, (2, INPUT_SHAPE[0], 84, 84), jnp.float32)
    params = init_params(kp_key)
    kparams = prepare_kernel_params(params)      # one-time layout/dtype prep

    out = jax.jit(dqn_forward)(x, kparams)
    out = jax.block_until_ready(out)
    assert out.shape == (2, NUM_ACTIONS), out.shape

    ref = jax.block_until_ready(jax.jit(dqn_forward_ref)(x, params))
    assert jnp.allclose(out, ref, rtol=1e-2, atol=1e-2), (out, ref)

    print("KERNEL_OK")
</pallas_src>

<mosaic_0001>
module attributes {stable_mosaic.version = 11 : i64} {
  func.func @_gemm_bias_relu_kernel(%arg0: i32, %arg1: memref<800x64xbf16, #tpu.memory_space<vmem>>, %arg2: memref<64x32xbf16, #tpu.memory_space<vmem>>, %arg3: memref<1x32xf32, #tpu.memory_space<vmem>>, %arg4: memref<800x32xbf16, #tpu.memory_space<vmem>>) attributes {dimension_semantics = [#tpu.dimension_semantics<arbitrary>], iteration_bounds = array<i64: 1>, scalar_prefetch = 0 : i64, scratch_operands = 0 : i64, tpu.core_type = #tpu.core_type<tc>, window_params = [{pipeline_mode = #tpu.pipeline_mode<synchronous>, transform_indices = @transform_0, window_bounds = array<i64: 800, 64>}, {pipeline_mode = #tpu.pipeline_mode<synchronous>, transform_indices = @transform_1, window_bounds = array<i64: 64, 32>}, {pipeline_mode = #tpu.pipeline_mode<synchronous>, transform_indices = @transform_2, window_bounds = array<i64: 1, 32>}, {pipeline_mode = #tpu.pipeline_mode<synchronous>, transform_indices = @transform_3, window_bounds = array<i64: 800, 32>}]} {
    %c0 = arith.constant 0 : index
    %c0_0 = arith.constant 0 : index
    %0 = vector.load %arg1[%c0, %c0_0] : memref<800x64xbf16, #tpu.memory_space<vmem>>, vector<800x64xbf16>
    %c0_1 = arith.constant 0 : index
    %c0_2 = arith.constant 0 : index
    %1 = vector.load %arg2[%c0_1, %c0_2] : memref<64x32xbf16, #tpu.memory_space<vmem>>, vector<64x32xbf16>
    %cst = arith.constant dense<0.000000e+00> : vector<800x32xf32>
    %2 = tpu.matmul %0, %1, %cst {dimension_numbers = #tpu.dot_dimension_numbers<[1], [0], [0], [1], [0, 0, 1, 1], [], []>} : vector<800x64xbf16>, vector<64x32xbf16>, vector<800x32xf32> -> vector<800x32xf32>
    %c0_3 = arith.constant 0 : index
    %c0_4 = arith.constant 0 : index
    %3 = vector.load %arg3[%c0_3, %c0_4] : memref<1x32xf32, #tpu.memory_space<vmem>>, vector<1x32xf32>
    %4 = vector.broadcast %3 : vector<1x32xf32> to vector<800x32xf32>
    %5 = arith.addf %2, %4 : vector<800x32xf32>
    %cst_5 = arith.constant 0.000000e+00 : f32
    %6 = vector.broadcast %cst_5 : f32 to vector<800x32xf32>
    %7 = arith.maximumf %5, %6 : vector<800x32xf32>
    %8 = arith.truncf %7 : vector<800x32xf32> to vector<800x32xbf16>
    %c0_6 = arith.constant 0 : index
    %c0_7 = arith.constant 0 : index
    %9 = vector.load %arg4[%c0_6, %c0_7] : memref<800x32xbf16, #tpu.memory_space<vmem>>, vector<800x32xbf16>
    tpu.vector_store %arg4[%c0_6, %c0_7], %8 {strides = array<i32>} : memref<800x32xbf16, #tpu.memory_space<vmem>>, vector<800x32xbf16>,
    return
  }
  func.func @transform_0(%arg0: i32) -> (i32, i32) {
    %c0_i32 = arith.constant 0 : i32
    %c0_i32_0 = arith.constant 0 : i32
    %c0_i32_1 = arith.constant 0 : i32
    return %c0_i32, %c0_i32_0 : i32, i32
  }
  func.func @transform_1(%arg0: i32) -> (i32, i32) {
    %c0_i32 = arith.constant 0 : i32
    %c0_i32_0 = arith.constant 0 : i32
    %c0_i32_1 = arith.constant 0 : i32
    return %c0_i32, %c0_i32_0 : i32, i32
  }
  func.func @transform_2(%arg0: i32) -> (i32, i32) {
    %c0_i32 = arith.constant 0 : i32
    %c0_i32_0 = arith.constant 0 : i32
    %c0_i32_1 = arith.constant 0 : i32
    return %c0_i32, %c0_i32_0 : i32, i32
  }
  func.func @transform_3(%arg0: i32) -> (i32, i32) {
    %c0_i32 = arith.constant 0 : i32
    %c0_i32_0 = arith.constant 0 : i32
    %c0_i32_1 = arith.constant 0 : i32
    return %c0_i32, %c0_i32_0 : i32, i32
  }
}

module attributes {stable_mosaic.version = 11 : i64} {
  func.func @_gemm_bias_relu_kernel(%arg0: i32, %arg1: memref<162x512xbf16, #tpu.memory_space<vmem>>, %arg2: memref<512x64xbf16, #tpu.memory_space<vmem>>, %arg3: memref<1x64xf32, #tpu.memory_space<vmem>>, %arg4: memref<162x64xbf16, #tpu.memory_space<vmem>>) attributes {dimension_semantics = [#tpu.dimension_semantics<arbitrary>], iteration_bounds = array<i64: 1>, scalar_prefetch = 0 : i64, scratch_operands = 0 : i64, tpu.core_type = #tpu.core_type<tc>, window_params = [{pipeline_mode = #tpu.pipeline_mode<synchronous>, transform_indices = @transform_0, window_bounds = array<i64: 162, 512>}, {pipeline_mode = #tpu.pipeline_mode<synchronous>, transform_indices = @transform_1, window_bounds = array<i64: 512, 64>}, {pipeline_mode = #tpu.pipeline_mode<synchronous>, transform_indices = @transform_2, window_bounds = array<i64: 1, 64>}, {pipeline_mode = #tpu.pipeline_mode<synchronous>, transform_indices = @transform_3, window_bounds = array<i64: 162, 64>}]} {
    %c0 = arith.constant 0 : index
    %c0_0 = arith.constant 0 : index
    %0 = vector.load %arg1[%c0, %c0_0] : memref<162x512xbf16, #tpu.memory_space<vmem>>, vector<162x512xbf16>
    %c0_1 = arith.constant 0 : index
    %c0_2 = arith.constant 0 : index
    %1 = vector.load %arg2[%c0_1, %c0_2] : memref<512x64xbf16, #tpu.memory_space<vmem>>, vector<512x64xbf16>
    %cst = arith.constant dense<0.000000e+00> : vector<162x64xf32>
    %2 = tpu.matmul %0, %1, %cst {dimension_numbers = #tpu.dot_dimension_numbers<[1], [0], [0], [1], [0, 0, 1, 1], [], []>} : vector<162x512xbf16>, vector<512x64xbf16>, vector<162x64xf32> -> vector<162x64xf32>
    %c0_3 = arith.constant 0 : index
    %c0_4 = arith.constant 0 : index
    %3 = vector.load %arg3[%c0_3, %c0_4] : memref<1x64xf32, #tpu.memory_space<vmem>>, vector<1x64xf32>
    %4 = vector.broadcast %3 : vector<1x64xf32> to vector<162x64xf32>
    %5 = arith.addf %2, %4 : vector<162x64xf32>
    %cst_5 = arith.constant 0.000000e+00 : f32
    %6 = vector.broadcast %cst_5 : f32 to vector<162x64xf32>
    %7 = arith.maximumf %5, %6 : vector<162x64xf32>
    %8 = arith.truncf %7 : vector<162x64xf32> to vector<162x64xbf16>
    %c0_6 = arith.constant 0 : index
    %c0_7 = arith.constant 0 : index
    %9 = vector.load %arg4[%c0_6, %c0_7] : memref<162x64xbf16, #tpu.memory_space<vmem>>, vector<162x64xbf16>
    tpu.vector_store %arg4[%c0_6, %c0_7], %8 {strides = array<i32>} : memref<162x64xbf16, #tpu.memory_space<vmem>>, vector<162x64xbf16>,
    return
  }
  func.func @transform_0(%arg0: i32) -> (i32, i32) {
    %c0_i32 = arith.constant 0 : i32
    %c0_i32_0 = arith.constant 0 : i32
    %c0_i32_1 = arith.constant 0 : i32
    return %c0_i32, %c0_i32_0 : i32, i32
  }
  func.func @transform_1(%arg0: i32) -> (i32, i32) {
    %c0_i32 = arith.constant 0 : i32
    %c0_i32_0 = arith.constant 0 : i32
    %c0_i32_1 = arith.constant 0 : i32
    return %c0_i32, %c0_i32_0 : i32, i32
  }
  func.func @transform_2(%arg0: i32) -> (i32, i32) {
    %c0_i32 = arith.constant 0 : i32
    %c0_i32_0 = arith.constant 0 : i32
    %c0_i32_1 = arith.constant 0 : i32
    return %c0_i32, %c0_i32_0 : i32, i32
  }
  func.func @transform_3(%arg0: i32) -> (i32, i32) {
    %c0_i32 = arith.constant 0 : i32
    %c0_i32_0 = arith.constant 0 : i32
    %c0_i32_1 = arith.constant 0 : i32
    return %c0_i32, %c0_i32_0 : i32, i32
  }
}

module attributes {stable_mosaic.version = 11 : i64} {
  func.func @_gemm_bias_relu_kernel(%arg0: i32, %arg1: memref<98x576xbf16, #tpu.memory_space<vmem>>, %arg2: memref<576x64xbf16, #tpu.memory_space<vmem>>, %arg3: memref<1x64xf32, #tpu.memory_space<vmem>>, %arg4: memref<98x64xbf16, #tpu.memory_space<vmem>>) attributes {dimension_semantics = [#tpu.dimension_semantics<arbitrary>], iteration_bounds = array<i64: 1>, scalar_prefetch = 0 : i64, scratch_operands = 0 : i64, tpu.core_type = #tpu.core_type<tc>, window_params = [{pipeline_mode = #tpu.pipeline_mode<synchronous>, transform_indices = @transform_0, window_bounds = array<i64: 98, 576>}, {pipeline_mode = #tpu.pipeline_mode<synchronous>, transform_indices = @transform_1, window_bounds = array<i64: 576, 64>}, {pipeline_mode = #tpu.pipeline_mode<synchronous>, transform_indices = @transform_2, window_bounds = array<i64: 1, 64>}, {pipeline_mode = #tpu.pipeline_mode<synchronous>, transform_indices = @transform_3, window_bounds = array<i64: 98, 64>}]} {
    %c0 = arith.constant 0 : index
    %c0_0 = arith.constant 0 : index
    %0 = vector.load %arg1[%c0, %c0_0] : memref<98x576xbf16, #tpu.memory_space<vmem>>, vector<98x576xbf16>
    %c0_1 = arith.constant 0 : index
    %c0_2 = arith.constant 0 : index
    %1 = vector.load %arg2[%c0_1, %c0_2] : memref<576x64xbf16, #tpu.memory_space<vmem>>, vector<576x64xbf16>
    %cst = arith.constant dense<0.000000e+00> : vector<98x64xf32>
    %2 = tpu.matmul %0, %1, %cst {dimension_numbers = #tpu.dot_dimension_numbers<[1], [0], [0], [1], [0, 0, 1, 1], [], []>} : vector<98x576xbf16>, vector<576x64xbf16>, vector<98x64xf32> -> vector<98x64xf32>
    %c0_3 = arith.constant 0 : index
    %c0_4 = arith.constant 0 : index
    %3 = vector.load %arg3[%c0_3, %c0_4] : memref<1x64xf32, #tpu.memory_space<vmem>>, vector<1x64xf32>
    %4 = vector.broadcast %3 : vector<1x64xf32> to vector<98x64xf32>
    %5 = arith.addf %2, %4 : vector<98x64xf32>
    %cst_5 = arith.constant 0.000000e+00 : f32
    %6 = vector.broadcast %cst_5 : f32 to vector<98x64xf32>
    %7 = arith.maximumf %5, %6 : vector<98x64xf32>
    %8 = arith.truncf %7 : vector<98x64xf32> to vector<98x64xbf16>
    %c0_6 = arith.constant 0 : index
    %c0_7 = arith.constant 0 : index
    %9 = vector.load %arg4[%c0_6, %c0_7] : memref<98x64xbf16, #tpu.memory_space<vmem>>, vector<98x64xbf16>
    tpu.vector_store %arg4[%c0_6, %c0_7], %8 {strides = array<i32>} : memref<98x64xbf16, #tpu.memory_space<vmem>>, vector<98x64xbf16>,
    return
  }
  func.func @transform_0(%arg0: i32) -> (i32, i32) {
    %c0_i32 = arith.constant 0 : i32
    %c0_i32_0 = arith.constant 0 : i32
    %c0_i32_1 = arith.constant 0 : i32
    return %c0_i32, %c0_i32_0 : i32, i32
  }
  func.func @transform_1(%arg0: i32) -> (i32, i32) {
    %c0_i32 = arith.constant 0 : i32
    %c0_i32_0 = arith.constant 0 : i32
    %c0_i32_1 = arith.constant 0 : i32
    return %c0_i32, %c0_i32_0 : i32, i32
  }
  func.func @transform_2(%arg0: i32) -> (i32, i32) {
    %c0_i32 = arith.constant 0 : i32
    %c0_i32_0 = arith.constant 0 : i32
    %c0_i32_1 = arith.constant 0 : i32
    return %c0_i32, %c0_i32_0 : i32, i32
  }
  func.func @transform_3(%arg0: i32) -> (i32, i32) {
    %c0_i32 = arith.constant 0 : i32
    %c0_i32_0 = arith.constant 0 : i32
    %c0_i32_1 = arith.constant 0 : i32
    return %c0_i32, %c0_i32_0 : i32, i32
  }
}

module attributes {stable_mosaic.version = 11 : i64} {
  func.func @_fc_head_kernel(%arg0: i32, %arg1: memref<2x3136xbf16, #tpu.memory_space<vmem>>, %arg2: memref<3136x256xbf16, #tpu.memory_space<vmem>>, %arg3: memref<1x256xf32, #tpu.memory_space<vmem>>, %arg4: memref<256x3xbf16, #tpu.memory_space<vmem>>, %arg5: memref<1x2x3xf32, #tpu.memory_space<vmem>>) attributes {dimension_semantics = [#tpu.dimension_semantics<parallel>], iteration_bounds = array<i64: 2>, scalar_prefetch = 0 : i64, scratch_operands = 0 : i64, tpu.core_type = #tpu.core_type<tc>, window_params = [{pipeline_mode = #tpu.pipeline_mode<synchronous>, transform_indices = @transform_0, window_bounds = array<i64: 2, 3136>}, {transform_indices = @transform_1, window_bounds = array<i64: 3136, 256>}, {transform_indices = @transform_2, window_bounds = array<i64: 1, 256>}, {transform_indices = @transform_3, window_bounds = array<i64: 256, 3>}, {transform_indices = @transform_4, window_bounds = array<i64: 1, 2, 3>}]} {
    %c0 = arith.constant 0 : index
    %c0_0 = arith.constant 0 : index
    %0 = vector.load %arg1[%c0, %c0_0] : memref<2x3136xbf16, #tpu.memory_space<vmem>>, vector<2x3136xbf16>
    %c0_1 = arith.constant 0 : index
    %c0_2 = arith.constant 0 : index
    %1 = vector.load %arg2[%c0_1, %c0_2] : memref<3136x256xbf16, #tpu.memory_space<vmem>>, vector<3136x256xbf16>
    %cst = arith.constant dense<0.000000e+00> : vector<2x256xf32>
    %2 = tpu.matmul %0, %1, %cst {dimension_numbers = #tpu.dot_dimension_numbers<[1], [0], [0], [1], [0, 0, 1, 1], [], []>} : vector<2x3136xbf16>, vector<3136x256xbf16>, vector<2x256xf32> -> vector<2x256xf32>
    %c0_3 = arith.constant 0 : index
    %c0_4 = arith.constant 0 : index
    %3 = vector.load %arg3[%c0_3, %c0_4] : memref<1x256xf32, #tpu.memory_space<vmem>>, vector<1x256xf32>
    %4 = vector.broadcast %3 : vector<1x256xf32> to vector<2x256xf32>
    %5 = arith.addf %2, %4 : vector<2x256xf32>
    %cst_5 = arith.constant 0.000000e+00 : f32
    %6 = vector.broadcast %cst_5 : f32 to vector<2x256xf32>
    %7 = arith.maximumf %5, %6 : vector<2x256xf32>
    %8 = arith.truncf %7 : vector<2x256xf32> to vector<2x256xbf16>
    %c0_6 = arith.constant 0 : index
    %c0_7 = arith.constant 0 : index
    %9 = vector.load %arg4[%c0_6, %c0_7] : memref<256x3xbf16, #tpu.memory_space<vmem>>, vector<256x3xbf16>
    %cst_8 = arith.constant dense<0.000000e+00> : vector<2x3xf32>
    %10 = tpu.matmul %8, %9, %cst_8 {dimension_numbers = #tpu.dot_dimension_numbers<[1], [0], [0], [1], [0, 0, 1, 1], [], []>} : vector<2x256xbf16>, vector<256x3xbf16>, vector<2x3xf32> -> vector<2x3xf32>
    %11 = vector.shape_cast %10 : vector<2x3xf32> to vector<1x2x3xf32>
    %c0_9 = arith.constant 0 : index
    %c0_10 = arith.constant 0 : index
    %c0_11 = arith.constant 0 : index
    %12 = vector.load %arg5[%c0_9, %c0_10, %c0_11] : memref<1x2x3xf32, #tpu.memory_space<vmem>>, vector<1x2x3xf32>
    tpu.vector_store %arg5[%c0_9, %c0_10, %c0_11], %11 {strides = array<i32>} : memref<1x2x3xf32, #tpu.memory_space<vmem>>, vector<1x2x3xf32>,
    return
  }
  func.func @transform_0(%arg0: i32) -> (i32, i32) {
    %c0_i32 = arith.constant 0 : i32
    %c0_i32_0 = arith.constant 0 : i32
    %c0_i32_1 = arith.constant 0 : i32
    return %c0_i32, %c0_i32_0 : i32, i32
  }
  func.func @transform_1(%arg0: i32) -> (i32, i32) {
    %c0_i32 = arith.constant 0 : i32
    %c0_i32_0 = arith.constant 0 : i32
    return %c0_i32, %arg0 : i32, i32
  }
  func.func @transform_2(%arg0: i32) -> (i32, i32) {
    %c0_i32 = arith.constant 0 : i32
    %c0_i32_0 = arith.constant 0 : i32
    return %c0_i32, %arg0 : i32, i32
  }
  func.func @transform_3(%arg0: i32) -> (i32, i32) {
    %c0_i32 = arith.constant 0 : i32
    %c0_i32_0 = arith.constant 0 : i32
    return %arg0, %c0_i32 : i32, i32
  }
  func.func @transform_4(%arg0: i32) -> (i32, i32, i32) {
    %c0_i32 = arith.constant 0 : i32
    %c0_i32_0 = arith.constant 0 : i32
    %c0_i32_1 = arith.constant 0 : i32
    return %arg0, %c0_i32, %c0_i32_0 : i32, i32, i32
  }
}

</mosaic_0001>

<llo_original>
// kernel: dqn_forward.4
$region0: #{dqn_forward.4}
  #allocation0 [shape = 'u32[]', space=smem, size = 0x4, offset = 0x4, fixed_abs, tag = 'smem constant byte address 0x4 - core index']
  #allocation1 [shape = 'u32[144,128]{1,0:T(1,128)}', space=vmem, size = 0x12000, scoped, tag = 'internal scratch']
  %s0 = inlined_call_operand.vmem [shape: bf16[800,64], index: 0, kind: input, shape index: {}]
  %s1 = inlined_call_operand.vmem [shape: bf16[64,32], index: 1, kind: input, shape index: {}]
  %s2 = inlined_call_operand.vmem [shape: f32[1,32], index: 2, kind: input, shape index: {}]
  %s3 = inlined_call_operand.vmem [shape: bf16[800,32], index: 3, kind: output, shape index: {}]
  %s4 = sld [smem:[#allocation0]]
  $region22: #{dqn_forward.4} parent=0
    _
  %s6 = ssub.s32 1, %s4
  %s7 = scalar_select 0, %s6, %s4
  // Predicated region
  $region2: #{dqn_forward.4} parent=0 // pred_check
    _
  $region3: #{dqn_forward.4} parent=0 // pred_check_branch
    %9 = sbr.rel (0) target = $region5
  $region4: #{dqn_forward.4} parent=0 // pred_region
    _
  $region5: #{dqn_forward.4} parent=0 // pred_fallthru
    _
  // Predicated region
  $region6: #{dqn_forward.4} parent=0 // pred_check
    _
  $region7: #{dqn_forward.4} parent=0 // pred_check_branch
    %11 = sbr.rel (0) target = $region9
  $region8: #{dqn_forward.4} parent=0 // pred_region
    _
  $region9: #{dqn_forward.4} parent=0 // pred_fallthru
    _
  // Predicated region
  $region10: #{dqn_forward.4} parent=0 // pred_check
    _
  $region11: #{dqn_forward.4} parent=0 // pred_check_branch
    %13 = sbr.rel (0) target = $region13
  $region12: #{dqn_forward.4} parent=0 // pred_region
    _
  $region13: #{dqn_forward.4} parent=0 // pred_fallthru
    _
  %v15 = vld [vmem:[%s0] sm:$0xf]
  %v16 = vld [vmem:[%s0 + $0x4] sm:$0xf]
  %v17 = vld [vmem:[%s0 + $0x8] sm:$0xf]
  %v18 = vld [vmem:[%s0 + $0xc] sm:$0xf]
  %v19 = vld [vmem:[%s0 + $0x10] sm:$0xf]
  %v20 = vld [vmem:[%s0 + $0x14] sm:$0xf]
  %v21 = vld [vmem:[%s0 + $0x18] sm:$0xf]
  %v22 = vld [vmem:[%s0 + $0x1c] sm:$0xf]
  %v23 = vld [vmem:[%s0 + $0x20] sm:$0xf]
  %v24 = vld [vmem:[%s0 + $0x24] sm:$0xf]
  %v25 = vld [vmem:[%s0 + $0x28] sm:$0xf]
  %v26 = vld [vmem:[%s0 + $0x2c] sm:$0xf]
  %v27 = vld [vmem:[%s0 + $0x30] sm:$0xf]
  %v28 = vld [vmem:[%s0 + $0x34] sm:$0xf]
  %v29 = vld [vmem:[%s0 + $0x38] sm:$0xf]
  %v30 = vld [vmem:[%s0 + $0x3c] sm:$0xf]
  %v31 = vld [vmem:[%s0 + $0x40] sm:$0xf]
  %v32 = vld [vmem:[%s0 + $0x44] sm:$0xf]
  %v33 = vld [vmem:[%s0 + $0x48] sm:$0xf]
  %v34 = vld [vmem:[%s0 + $0x4c] sm:$0xf]
  %v35 = vld [vmem:[%s0 + $0x50] sm:$0xf]
  %v36 = vld [vmem:[%s0 + $0x54] sm:$0xf]
  %v37 = vld [vmem:[%s0 + $0x58] sm:$0xf]
  %v38 = vld [vmem:[%s0 + $0x5c] sm:$0xf]
  %v39 = vld [vmem:[%s0 + $0x60] sm:$0xf]
  %v40 = vld [vmem:[%s0 + $0x64] sm:$0xf]
  %v41 = vld [vmem:[%s0 + $0x68] sm:$0xf]
  %v42 = vld [vmem:[%s0 + $0x6c] sm:$0xf]
  %v43 = vld [vmem:[%s0 + $0x70] sm:$0xf]
  %v44 = vld [vmem:[%s0 + $0x74] sm:$0xf]
  %v45 = vld [vmem:[%s0 + $0x78] sm:$0xf]
  %v46 = vld [vmem:[%s0 + $0x7c] sm:$0xf]
  %v47 = vld [vmem:[%s0 + $0x80] sm:$0xf]
  %v48 = vld [vmem:[%s0 + $0x84] sm:$0xf]
  %v49 = vld [vmem:[%s0 + $0x88] sm:$0xf]
  %v50 = vld [vmem:[%s0 + $0x8c] sm:$0xf]
  %v51 = vld [vmem:[%s0 + $0x90] sm:$0xf]
  %v52 = vld [vmem:[%s0 + $0x94] sm:$0xf]
  %v53 = vld [vmem:[%s0 + $0x98] sm:$0xf]
  %v54 = vld [vmem:[%s0 + $0x9c] sm:$0xf]
  %v55 = vld [vmem:[%s0 + $0xa0] sm:$0xf]
  %v56 = vld [vmem:[%s0 + $0xa4] sm:$0xf]
  %v57 = vld [vmem:[%s0 + $0xa8] sm:$0xf]
  %v58 = vld [vmem:[%s0 + $0xac] sm:$0xf]
  %v59 = vld [vmem:[%s0 + $0xb0] sm:$0xf]
  %v60 = vld [vmem:[%s0 + $0xb4] sm:$0xf]
  %v61 = vld [vmem:[%s0 + $0xb8] sm:$0xf]
  %v62 = vld [vmem:[%s0 + $0xbc] sm:$0xf]
  %v63 = vld [vmem:[%s0 + $0xc0] sm:$0xf]
  %v64 = vld [vmem:[%s0 + $0xc4] sm:$0xf]
  %v65 = vld [vmem:[%s0 + $0xc8] sm:$0xf]
  %v66 = vld [vmem:[%s0 + $0xcc] sm:$0xf]
  %v67 = vld [vmem:[%s0 + $0xd0] sm:$0xf]
  %v68 = vld [vmem:[%s0 + $0xd4] sm:$0xf]
  %v69 = vld [vmem:[%s0 + $0xd8] sm:$0xf]
  %v70 = vld [vmem:[%s0 + $0xdc] sm:$0xf]
  %v71 = vld [vmem:[%s0 + $0xe0] sm:$0xf]
  %v72 = vld [vmem:[%s0 + $0xe4] sm:$0xf]
  %v73 = vld [vmem:[%s0 + $0xe8] sm:$0xf]
  %v74 = vld [vmem:[%s0 + $0xec] sm:$0xf]
  %v75 = vld [vmem:[%s0 + $0xf0] sm:$0xf]
  %v76 = vld [vmem:[%s0 + $0xf4] sm:$0xf]
  %v77 = vld [vmem:[%s0 + $0xf8] sm:$0xf]
  %v78 = vld [vmem:[%s0 + $0xfc] sm:$0xf]
  %v79 = vld [vmem:[%s0 + $0x100] sm:$0xf]
  %v80 = vld [vmem:[%s0 + $0x104] sm:$0xf]
  %v81 = vld [vmem:[%s0 + $0x108] sm:$0xf]
  %v82 = vld [vmem:[%s0 + $0x10c] sm:$0xf]
  %v83 = vld [vmem:[%s0 + $0x110] sm:$0xf]
  %v84 = vld [vmem:[%s0 + $0x114] sm:$0xf]
  %v85 = vld [vmem:[%s0 + $0x118] sm:$0xf]
  %v86 = vld [vmem:[%s0 + $0x11c] sm:$0xf]
  %v87 = vld [vmem:[%s0 + $0x120] sm:$0xf]
  %v88 = vld [vmem:[%s0 + $0x124] sm:$0xf]
  %v89 = vld [vmem:[%s0 + $0x128] sm:$0xf]
  %v90 = vld [vmem:[%s0 + $0x12c] sm:$0xf]
  %v91 = vld [vmem:[%s0 + $0x130] sm:$0xf]
  %v92 = vld [vmem:[%s0 + $0x134] sm:$0xf]
  %v93 = vld [vmem:[%s0 + $0x138] sm:$0xf]
  %v94 = vld [vmem:[%s0 + $0x13c] sm:$0xf]
  %v95 = vld [vmem:[%s0 + $0x140] sm:$0xf]
  %v96 = vld [vmem:[%s0 + $0x144] sm:$0xf]
  %v97 = vld [vmem:[%s0 + $0x148] sm:$0xf]
  %v98 = vld [vmem:[%s0 + $0x14c] sm:$0xf]
  %v99 = vld [vmem:[%s0 + $0x150] sm:$0xf]
  %v100 = vld [vmem:[%s0 + $0x154] sm:$0xf]
  %v101 = vld [vmem:[%s0 + $0x158] sm:$0xf]
  %v102 = vld [vmem:[%s0 + $0x15c] sm:$0xf]
  %v103 = vld [vmem:[%s0 + $0x160] sm:$0xf]
  %v104 = vld [vmem:[%s0 + $0x164] sm:$0xf]
  %v105 = vld [vmem:[%s0 + $0x168] sm:$0xf]
  %v106 = vld [vmem:[%s0 + $0x16c] sm:$0xf]
  %v107 = vld [vmem:[%s0 + $0x170] sm:$0xf]
  %v108 = vld [vmem:[%s0 + $0x174] sm:$0xf]
  %v109 = vld [vmem:[%s0 + $0x178] sm:$0xf]
  %v110 = vld [vmem:[%s0 + $0x17c] sm:$0xf]
  %v111 = vld [vmem:[%s0 + $0x180] sm:$0xf]
  %v112 = vld [vmem:[%s0 + $0x184] sm:$0xf]
  %v113 = vld [vmem:[%s0 + $0x188] sm:$0xf]
  %v114 = vld [vmem:[%s0 + $0x18c] sm:$0xf]
  %v115 = vld [vmem:[%s1] sm:$0xf]
  %v116 = vld [vmem:[%s1 + $0x4] sm:$0xf]
  %v117 = vld [vmem:[%s1 + $0x8] sm:$0xf]
  %v118 = vld [vmem:[%s1 + $0xc] sm:$0xf]
  %v119 = vld [vmem:[%s1 + $0x10] sm:$0xf]
  %v120 = vld [vmem:[%s1 + $0x14] sm:$0xf]
  %v121 = vld [vmem:[%s1 + $0x18] sm:$0xf]
  %v122 = vld [vmem:[%s1 + $0x1c] sm:$0xf]
  %v123 = vld [vmem:[%s2] sm:$0x1]
  %v125 = vlaneseq
  %v126 = vshrl.u32 %v125, 7
  %v127 = vsub.s32 0, %v126
  %v128 = vrot.slane %v123, %v127
  %v230 = vunpack.c.l.b16 %v15
  %v231 = vunpack.c.l.b16 %v16
  %v232 = vunpack.c.l.b16 %v17
  %v233 = vunpack.c.l.b16 %v18
  %v234 = vunpack.c.l.b16 %v19
  %v235 = vunpack.c.l.b16 %v20
  %v236 = vunpack.c.l.b16 %v21
  %v237 = vunpack.c.l.b16 %v22
  %v238 = vunpack.c.l.b16 %v23
  %v239 = vunpack.c.l.b16 %v24
  %v240 = vunpack.c.l.b16 %v25
  %v241 = vunpack.c.l.b16 %v26
  %v242 = vunpack.c.l.b16 %v27
  %v243 = vunpack.c.l.b16 %v28
  %v244 = vunpack.c.l.b16 %v29
  %v245 = vunpack.c.l.b16 %v30
  %v246 = vunpack.c.l.b16 %v31
  %v247 = vunpack.c.l.b16 %v32
  %v248 = vunpack.c.l.b16 %v33
  %v249 = vunpack.c.l.b16 %v34
  %v250 = vunpack.c.l.b16 %v35
  %v251 = vunpack.c.l.b16 %v36
  %v252 = vunpack.c.l.b16 %v37
  %v253 = vunpack.c.l.b16 %v38
  %v254 = vunpack.c.l.b16 %v39
  %v255 = vunpack.c.l.b16 %v40
  %v256 = vunpack.c.l.b16 %v41
  %v257 = vunpack.c.l.b16 %v42
  %v258 = vunpack.c.l.b16 %v43
  %v259 = vunpack.c.l.b16 %v44
  %v260 = vunpack.c.l.b16 %v45
  %v261 = vunpack.c.l.b16 %v46
  %v262 = vunpack.c.l.b16 %v47
  %v263 = vunpack.c.l.b16 %v48
  %v264 = vunpack.c.l.b16 %v49
  %v265 = vunpack.c.l.b16 %v50
  %v266 = vunpack.c.l.b16 %v51
  %v267 = vunpack.c.l.b16 %v52
  %v268 = vunpack.c.l.b16 %v53
  %v269 = vunpack.c.l.b16 %v54
  %v270 = vunpack.c.l.b16 %v55
  %v271 = vunpack.c.l.b16 %v56
  %v272 = vunpack.c.l.b16 %v57
  %v273 = vunpack.c.l.b16 %v58
  %v274 = vunpack.c.l.b16 %v59
  %v275 = vunpack.c.l.b16 %v60
  %v276 = vunpack.c.l.b16 %v61
  %v277 = vunpack.c.l.b16 %v62
  %v278 = vunpack.c.l.b16 %v63
  %v279 = vunpack.c.l.b16 %v64
  %v280 = vunpack.c.l.b16 %v65
  %v281 = vunpack.c.l.b16 %v66
  %v282 = vunpack.c.l.b16 %v67
  %v283 = vunpack.c.l.b16 %v68
  %v284 = vunpack.c.l.b16 %v69
  %v285 = vunpack.c.l.b16 %v70
  %v286 = vunpack.c.l.b16 %v71
  %v287 = vunpack.c.l.b16 %v72
  %v288 = vunpack.c.l.b16 %v73
  %v289 = vunpack.c.l.b16 %v74
  %v290 = vunpack.c.l.b16 %v75
  %v291 = vunpack.c.l.b16 %v76
  %v292 = vunpack.c.l.b16 %v77
  %v293 = vunpack.c.l.b16 %v78
  %v294 = vunpack.c.l.b16 %v79
  %v295 = vunpack.c.l.b16 %v80
  %v296 = vunpack.c.l.b16 %v81
  %v297 = vunpack.c.l.b16 %v82
  %v298 = vunpack.c.l.b16 %v83
  %v299 = vunpack.c.l.b16 %v84
  %v300 = vunpack.c.l.b16 %v85
  %v301 = vunpack.c.l.b16 %v86
  %v302 = vunpack.c.l.b16 %v87
  %v303 = vunpack.c.l.b16 %v88
  %v304 = vunpack.c.l.b16 %v89
  %v305 = vunpack.c.l.b16 %v90
  %v306 = vunpack.c.l.b16 %v91
  %v307 = vunpack.c.l.b16 %v92
  %v308 = vunpack.c.l.b16 %v93
  %v309 = vunpack.c.l.b16 %v94
  %v310 = vunpack.c.l.b16 %v95
  %v311 = vunpack.c.l.b16 %v96
  %v312 = vunpack.c.l.b16 %v97
  %v313 = vunpack.c.l.b16 %v98
  %v314 = vunpack.c.l.b16 %v99
  %v315 = vunpack.c.l.b16 %v100
  %v316 = vunpack.c.l.b16 %v101
  %v317 = vunpack.c.l.b16 %v102
  %v318 = vunpack.c.l.b16 %v103
  %v319 = vunpack.c.l.b16 %v104
  %v320 = vunpack.c.l.b16 %v105
  %v321 = vunpack.c.l.b16 %v106
  %v322 = vunpack.c.l.b16 %v107
  %v323 = vunpack.c.l.b16 %v108
  %v324 = vunpack.c.l.b16 %v109
  %v325 = vunpack.c.l.b16 %v110
  %v326 = vunpack.c.l.b16 %v111
  %v327 = vunpack.c.l.b16 %v112
  %v328 = vunpack.c.l.b16 %v113
  %v329 = vunpack.c.l.b16 %v114
  %v330 = vpack.c.b16 %v231, %v230
  %v331 = vpack.c.b16 %v233, %v232
  %v332 = vpack.c.b16 %v235, %v234
  %v333 = vpack.c.b16 %v237, %v236
  %v334 = vpack.c.b16 %v239, %v238
  %v335 = vpack.c.b16 %v241, %v240
  %v336 = vpack.c.b16 %v243, %v242
  %v337 = vpack.c.b16 %v245, %v244
  %v338 = vpack.c.b16 %v247, %v246
  %v339 = vpack.c.b16 %v249, %v248
  %v340 = vpack.c.b16 %v251, %v250
  %v341 = vpack.c.b16 %v253, %v252
  %v342 = vpack.c.b16 %v255, %v254
  %v343 = vpack.c.b16 %v257, %v256
  %v344 = vpack.c.b16 %v259, %v258
  %v345 = vpack.c.b16 %v261, %v260
  %v346 = vpack.c.b16 %v263, %v262
  %v347 = vpack.c.b16 %v265, %v264
  %v348 = vpack.c.b16 %v267, %v266
  %v349 = vpack.c.b16 %v269, %v268
  %v350 = vpack.c.b16 %v271, %v270
  %v351 = vpack.c.b16 %v273, %v272
  %v352 = vpack.c.b16 %v275, %v274
  %v353 = vpack.c.b16 %v277, %v276
  %v354 = vpack.c.b16 %v279, %v278
  %v355 = vpack.c.b16 %v281, %v280
  %v356 = vpack.c.b16 %v283, %v282
  %v357 = vpack.c.b16 %v285, %v284
  %v358 = vpack.c.b16 %v287, %v286
  %v359 = vpack.c.b16 %v289, %v288
  %v360 = vpack.c.b16 %v291, %v290
  %v361 = vpack.c.b16 %v293, %v292
  %v362 = vpack.c.b16 %v295, %v294
  %v363 = vpack.c.b16 %v297, %v296
  %v364 = vpack.c.b16 %v299, %v298
  %v365 = vpack.c.b16 %v301, %v300
  %v366 = vpack.c.b16 %v303, %v302
  %v367 = vpack.c.b16 %v305, %v304
  %v368 = vpack.c.b16 %v307, %v306
  %v369 = vpack.c.b16 %v309, %v308
  %v370 = vpack.c.b16 %v311, %v310
  %v371 = vpack.c.b16 %v313, %v312
  %v372 = vpack.c.b16 %v315, %v314
  %v373 = vpack.c.b16 %v317, %v316
  %v374 = vpack.c.b16 %v319, %v318
  %v375 = vpack.c.b16 %v321, %v320
  %v376 = vpack.c.b16 %v323, %v322
  %v377 = vpack.c.b16 %v325, %v324
  %v378 = vpack.c.b16 %v327, %v326
  %v379 = vpack.c.b16 %v329, %v328
  %v388 = vunpack.c.l.b16 %v115
  %v389 = vunpack.c.l.b16 %v116
  %v390 = vunpack.c.l.b16 %v117
  %v391 = vunpack.c.l.b16 %v118
  %v392 = vunpack.c.l.b16 %v119
  %v393 = vunpack.c.l.b16 %v120
  %v394 = vunpack.c.l.b16 %v121
  %v395 = vunpack.c.l.b16 %v122
  %v396 = vpack.c.b16 %v389, %v388
  %v397 = vpack.c.b16 %v391, %v390
  %v398 = vpack.c.b16 %v393, %v392
  %v399 = vpack.c.b16 %v395, %v394
  %vm404 = vcmask 523264
  %v406 = vsel %vm404, %v330, 0
  %v409 = vsel %vm404, %v331, 0
  %v412 = vsel %vm404, %v332, 0
  %v415 = vsel %vm404, %v333, 0
  %v418 = vsel %vm404, %v334, 0
  %v421 = vsel %vm404, %v335, 0
  %v424 = vsel %vm404, %v336, 0
  %v427 = vsel %vm404, %v337, 0
  %v430 = vsel %vm404, %v338, 0
  %v433 = vsel %vm404, %v339, 0
  %v436 = vsel %vm404, %v340, 0
  %v439 = vsel %vm404, %v341, 0
  %v442 = vsel %vm404, %v342, 0
  %v445 = vsel %vm404, %v343, 0
  %v448 = vsel %vm404, %v344, 0
  %v451 = vsel %vm404, %v345, 0
  %v454 = vsel %vm404, %v346, 0
  %v457 = vsel %vm404, %v347, 0
  %v460 = vsel %vm404, %v348, 0
  %v463 = vsel %vm404, %v349, 0
  %v466 = vsel %vm404, %v350, 0
  %v469 = vsel %vm404, %v351, 0
  %v472 = vsel %vm404, %v352, 0
  %v475 = vsel %vm404, %v353, 0
  %v478 = vsel %vm404, %v354, 0
  %v481 = vsel %vm404, %v355, 0
  %v484 = vsel %vm404, %v356, 0
  %v487 = vsel %vm404, %v357, 0
  %v490 = vsel %vm404, %v358, 0
  %v493 = vsel %vm404, %v359, 0
  %v496 = vsel %vm404, %v360, 0
  %v499 = vsel %vm404, %v361, 0
  %v502 = vsel %vm404, %v362, 0
  %v505 = vsel %vm404, %v363, 0
  %v508 = vsel %vm404, %v364, 0
  %v511 = vsel %vm404, %v365, 0
  %v514 = vsel %vm404, %v366, 0
  %v517 = vsel %vm404, %v367, 0
  %v520 = vsel %vm404, %v368, 0
  %v523 = vsel %vm404, %v369, 0
  %v526 = vsel %vm404, %v370, 0
  %v529 = vsel %vm404, %v371, 0
  %v532 = vsel %vm404, %v372, 0
  %v535 = vsel %vm404, %v373, 0
  %v538 = vsel %vm404, %v374, 0
  %v541 = vsel %vm404, %v375, 0
  %v544 = vsel %vm404, %v376, 0
  %v547 = vsel %vm404, %v377, 0
  %v550 = vsel %vm404, %v378, 0
  %v553 = vsel %vm404, %v379, 0
  %555 = vmatprep.subr.bf16.mxu0 0
  %556 = vmatpush1.bf16.msra.mxu0 %v396
  %557 = vmatprep.subr.bf16.mxu0 0
  %558 = vmatpush1.bf16.msra.mxu0 %v397
  %559 = vmatprep.subr.bf16.mxu0 0
  %560 = vmatpush1.bf16.msra.mxu0 %v398
  %561 = vmatprep.subr.bf16.mxu0 0
  %562 = vmatpush1.bf16.msra.mxu0 %v399
  %563 = vmatprep.subr.bf16.mxu0 0
  %564 = vmatpush1.bf16.msra.mxu0 0
  %565 = vmatprep.subr.bf16.mxu0 0
  %566 = vmatpush1.bf16.msra.mxu0 0
  %567 = vmatprep.subr.bf16.mxu0 0
  %568 = vmatpush1.bf16.msra.mxu0 0
  %569 = vmatprep.subr.bf16.mxu0 0
  %570 = vmatpush1.bf16.msra.mxu0 0
  %571 = vmatprep.subr.bf16.mxu0 0
  %572 = vmatpush1.bf16.msra.mxu0 0
  %573 = vmatprep.subr.bf16.mxu0 0
  %574 = vmatpush1.bf16.msra.mxu0 0
  %575 = vmatprep.subr.bf16.mxu0 0
  %576 = vmatpush1.bf16.msra.mxu0 0
  %577 = vmatprep.subr.bf16.mxu0 0
  %578 = vmatpush1.bf16.msra.mxu0 0
  %579 = vmatprep.subr.bf16.mxu0 0
  %580 = vmatpush1.bf16.msra.mxu0 0
  %581 = vmatprep.subr.bf16.mxu0 0
  %582 = vmatpush1.bf16.msra.mxu0 0
  %583 = vmatprep.subr.bf16.mxu0 0
  %584 = vmatpush1.bf16.msra.mxu0 0
  %585 = vmatprep.subr.bf16.mxu0 0
  %586 = vmatpush1.bf16.msra.mxu0 0
  %587 = vmatprep.mubr.bf16.mxu0 0
  %588 = vmatmul.mubr.bf16.gmra.mrb[0].mxu0 %v406
  %v589 = vpop.f32.mrb[0].mxu0
  %v590 = vadd.f32 %v128, %v589
  %v591 = vpop.f32.mrb[0].mxu0
  %v592 = vpop.f32.mrb[0].mxu0
  %v593 = vadd.f32 %v128, %v592
  %v594 = vpop.f32.mrb[0].mxu0
  %595 = vmatprep.mubr.bf16.mxu0 0
  %596 = vmatmul.mubr.bf16.gmra.mrb[0].mxu0 %v409
  %v597 = vpop.f32.mrb[0].mxu0
  %v598 = vadd.f32 %v128, %v597
  %v599 = vpop.f32.mrb[0].mxu0
  %v600 = vpop.f32.mrb[0].mxu0
  %v601 = vadd.f32 %v128, %v600
  %v602 = vpop.f32.mrb[0].mxu0
  %603 = vmatprep.mubr.bf16.mxu0 0
  %604 = vmatmul.mubr.bf16.gmra.mrb[0].mxu0 %v412
  %v605 = vpop.f32.mrb[0].mxu0
  %v606 = vadd.f32 %v128, %v605
  %v607 = vpop.f32.mrb[0].mxu0
  %v608 = vpop.f32.mrb[0].mxu0
  %v609 = vadd.f32 %v128, %v608
  %v610 = vpop.f32.mrb[0].mxu0
  %611 = vmatprep.mubr.bf16.mxu0 0
  %612 = vmatmul.mubr.bf16.gmra.mrb[0].mxu0 %v415
  %v613 = vpop.f32.mrb[0].mxu0
  %v614 = vadd.f32 %v128, %v613
  %v615 = vpop.f32.mrb[0].mxu0
  %v616 = vpop.f32.mrb[0].mxu0
  %v617 = vadd.f32 %v128, %v616
  %v618 = vpop.f32.mrb[0].mxu0
  %619 = vmatprep.mubr.bf16.mxu0 0
  %620 = vmatmul.mubr.bf16.gmra.mrb[0].mxu0 %v418
  %v621 = vpop.f32.mrb[0].mxu0
  %v622 = vadd.f32 %v128, %v621
  %v623 = vpop.f32.mrb[0].mxu0
  %v624 = vpop.f32.mrb[0].mxu0
  %v625 = vadd.f32 %v128, %v624
  %v626 = vpop.f32.mrb[0].mxu0
  %627 = vmatprep.mubr.bf16.mxu0 0
  %628 = vmatmul.mubr.bf16.gmra.mrb[0].mxu0 %v421
  %v629 = vpop.f32.mrb[0].mxu0
  %v630 = vadd.f32 %v128, %v629
  %v631 = vpop.f32.mrb[0].mxu0
  %v632 = vpop.f32.mrb[0].mxu0
  %v633 = vadd.f32 %v128, %v632
  %v634 = vpop.f32.mrb[0].mxu0
  %635 = vmatprep.mubr.bf16.mxu0 0
  %636 = vmatmul.mubr.bf16.gmra.mrb[0].mxu0 %v424
  %v637 = vpop.f32.mrb[0].mxu0
  %v638 = vadd.f32 %v128, %v637
  %v639 = vpop.f32.mrb[0].mxu0
  %v640 = vpop.f32.mrb[0].mxu0
  %v641 = vadd.f32 %v128, %v640
  %v642 = vpop.f32.mrb[0].mxu0
  %643 = vmatprep.mubr.bf16.mxu0 0
  %644 = vmatmul.mubr.bf16.gmra.mrb[0].mxu0 %v427
  %v645 = vpop.f32.mrb[0].mxu0
  %v646 = vadd.f32 %v128, %v645
  %v647 = vpop.f32.mrb[0].mxu0
  %v648 = vpop.f32.mrb[0].mxu0
  %v649 = vadd.f32 %v128, %v648
  %v650 = vpop.f32.mrb[0].mxu0
  %651 = vmatprep.mubr.bf16.mxu0 0
  %652 = vmatmul.mubr.bf16.gmra.mrb[0].mxu0 %v430
  %v653 = vpop.f32.mrb[0].mxu0
  %v654 = vadd.f32 %v128, %v653
  %v655 = vpop.f32.mrb[0].mxu0
  %v656 = vpop.f32.mrb[0].mxu0
  %v657 = vadd.f32 %v128, %v656
  %v658 = vpop.f32.mrb[0].mxu0
  %659 = vmatprep.mubr.bf16.mxu0 0
  %660 = vmatmul.mubr.bf16.gmra.mrb[0].mxu0 %v433
  %v661 = vpop.f32.mrb[0].mxu0
  %v662 = vadd.f32 %v128, %v661
  %v663 = vpop.f32.mrb[0].mxu0
  %v664 = vpop.f32.mrb[0].mxu0
  %v665 = vadd.f32 %v128, %v664
  %v666 = vpop.f32.mrb[0].mxu0
  %667 = vmatprep.mubr.bf16.mxu0 0
  %668 = vmatmul.mubr.bf16.gmra.mrb[0].mxu0 %v436
  %v669 = vpop.f32.mrb[0].mxu0
  %v670 = vadd.f32 %v128, %v669
  %v671 = vpop.f32.mrb[0].mxu0
  %v672 = vpop.f32.mrb[0].mxu0
  %v673 = vadd.f32 %v128, %v672
  %v674 = vpop.f32.mrb[0].mxu0
  %675 = vmatprep.mubr.bf16.mxu0 0
  %676 = vmatmul.mubr.bf16.gmra.mrb[0].mxu0 %v439
  %v677 = vpop.f32.mrb[0].mxu0
  %v678 = vadd.f32 %v128, %v677
  %v679 = vpop.f32.mrb[0].mxu0
  %v680 = vpop.f32.mrb[0].mxu0
  %v681 = vadd.f32 %v128, %v680
  %v682 = vpop.f32.mrb[0].mxu0
  %683 = vmatprep.mubr.bf16.mxu0 0
  %684 = vmatmul.mubr.bf16.gmra.mrb[0].mxu0 %v442
  %v685 = vpop.f32.mrb[0].mxu0
  %v686 = vadd.f32 %v128, %v685
  %v687 = vpop.f32.mrb[0].mxu0
  %v688 = vpop.f32.mrb[0].mxu0
  %v689 = vadd.f32 %v128, %v688
  %v690 = vpop.f32.mrb[0].mxu0
  %691 = vmatprep.mubr.bf16.mxu0 0
  %692 = vmatmul.mubr.bf16.gmra.mrb[0].mxu0 %v445
  %v693 = vpop.f32.mrb[0].mxu0
  %v694 = vadd.f32 %v128, %v693
  %v695 = vpop.f32.mrb[0].mxu0
  %v696 = vpop.f32.mrb[0].mxu0
  %v697 = vadd.f32 %v128, %v696
  %v698 = vpop.f32.mrb[0].mxu0
  %699 = vmatprep.mubr.bf16.mxu0 0
  %700 = vmatmul.mubr.bf16.gmra.mrb[0].mxu0 %v448
  %v701 = vpop.f32.mrb[0].mxu0
  %v702 = vadd.f32 %v128, %v701
  %v703 = vpop.f32.mrb[0].mxu0
  %v704 = vpop.f32.mrb[0].mxu0
  %v705 = vadd.f32 %v128, %v704
  %v706 = vpop.f32.mrb[0].mxu0
  %707 = vmatprep.mubr.bf16.mxu0 0
  %708 = vmatmul.mubr.bf16.gmra.mrb[0].mxu0 %v451
  %v709 = vpop.f32.mrb[0].mxu0
  %v710 = vadd.f32 %v128, %v709
  %v711 = vpop.f32.mrb[0].mxu0
  %v712 = vpop.f32.mrb[0].mxu0
  %v713 = vadd.f32 %v128, %v712
  %v714 = vpop.f32.mrb[0].mxu0
  %715 = vmatprep.mubr.bf16.mxu0 0
  %716 = vmatmul.mubr.bf16.gmra.mrb[0].mxu0 %v454
  %v717 = vpop.f32.mrb[0].mxu0
  %v718 = vadd.f32 %v128, %v717
  %v719 = vpop.f32.mrb[0].mxu0
  %v720 = vpop.f32.mrb[0].mxu0
  %v721 = vadd.f32 %v128, %v720
  %v722 = vpop.f32.mrb[0].mxu0
  %723 = vmatprep.mubr.bf16.mxu0 0
  %724 = vmatmul.mubr.bf16.gmra.mrb[0].mxu0 %v457
  %v725 = vpop.f32.mrb[0].mxu0
  %v726 = vadd.f32 %v128, %v725
  %v727 = vpop.f32.mrb[0].mxu0
  %v728 = vpop.f32.mrb[0].mxu0
  %v729 = vadd.f32 %v128, %v728
  %v730 = vpop.f32.mrb[0].mxu0
  %731 = vmatprep.mubr.bf16.mxu0 0
  %732 = vmatmul.mubr.bf16.gmra.mrb[0].mxu0 %v460
  %v733 = vpop.f32.mrb[0].mxu0
  %v734 = vadd.f32 %v128, %v733
  %v735 = vpop.f32.mrb[0].mxu0
  %v736 = vpop.f32.mrb[0].mxu0
  %v737 = vadd.f32 %v128, %v736
  %v738 = vpop.f32.mrb[0].mxu0
  %739 = vmatprep.mubr.bf16.mxu0 0
  %740 = vmatmul.mubr.bf16.gmra.mrb[0].mxu0 %v463
  %v741 = vpop.f32.mrb[0].mxu0
  %v742 = vadd.f32 %v128, %v741
  %v743 = vpop.f32.mrb[0].mxu0
  %v744 = vpop.f32.mrb[0].mxu0
  %v745 = vadd.f32 %v128, %v744
  %v746 = vpop.f32.mrb[0].mxu0
  %747 = vmatprep.mubr.bf16.mxu0 0
  %748 = vmatmul.mubr.bf16.gmra.mrb[0].mxu0 %v466
  %v749 = vpop.f32.mrb[0].mxu0
  %v750 = vadd.f32 %v128, %v749
  %v751 = vpop.f32.mrb[0].mxu0
  %v752 = vpop.f32.mrb[0].mxu0
  %v753 = vadd.f32 %v128, %v752
  %v754 = vpop.f32.mrb[0].mxu0
  %755 = vmatprep.mubr.bf16.mxu0 0
  %756 = vmatmul.mubr.bf16.gmra.mrb[0].mxu0 %v469
  %v757 = vpop.f32.mrb[0].mxu0
  %v758 = vadd.f32 %v128, %v757
  %v759 = vpop.f32.mrb[0].mxu0
  %v760 = vpop.f32.mrb[0].mxu0
  %v761 = vadd.f32 %v128, %v760
  %v762 = vpop.f32.mrb[0].mxu0
  %763 = vmatprep.mubr.bf16.mxu0 0
  %764 = vmatmul.mubr.bf16.gmra.mrb[0].mxu0 %v472
  %v765 = vpop.f32.mrb[0].mxu0
  %v766 = vadd.f32 %v128, %v765
  %v767 = vpop.f32.mrb[0].mxu0
  %v768 = vpop.f32.mrb[0].mxu0
  %v769 = vadd.f32 %v128, %v768
  %v770 = vpop.f32.mrb[0].mxu0
  %771 = vmatprep.mubr.bf16.mxu0 0
  %772 = vmatmul.mubr.bf16.gmra.mrb[0].mxu0 %v475
  %v773 = vpop.f32.mrb[0].mxu0
  %v774 = vadd.f32 %v128, %v773
  %v775 = vpop.f32.mrb[0].mxu0
  %v776 = vpop.f32.mrb[0].mxu0
  %v777 = vadd.f32 %v128, %v776
  %v778 = vpop.f32.mrb[0].mxu0
  %779 = vmatprep.mubr.bf16.mxu0 0
  %780 = vmatmul.mubr.bf16.gmra.mrb[0].mxu0 %v478
  %v781 = vpop.f32.mrb[0].mxu0
  %v782 = vadd.f32 %v128, %v781
  %v783 = vpop.f32.mrb[0].mxu0
  %v784 = vpop.f32.mrb[0].mxu0
  %v785 = vadd.f32 %v128, %v784
  %v786 = vpop.f32.mrb[0].mxu0
  %787 = vmatprep.mubr.bf16.mxu0 0
  %788 = vmatmul.mubr.bf16.gmra.mrb[0].mxu0 %v481
  %v789 = vpop.f32.mrb[0].mxu0
  %v790 = vadd.f32 %v128, %v789
  %v791 = vpop.f32.mrb[0].mxu0
  %v792 = vpop.f32.mrb[0].mxu0
  %v793 = vadd.f32 %v128, %v792
  %v794 = vpop.f32.mrb[0].mxu0
  %795 = vmatprep.mubr.bf16.mxu0 0
  %796 = vmatmul.mubr.bf16.gmra.mrb[0].mxu0 %v484
  %v797 = vpop.f32.mrb[0].mxu0
  %v798 = vadd.f32 %v128, %v797
  %v799 = vpop.f32.mrb[0].mxu0
  %v800 = vpop.f32.mrb[0].mxu0
  %v801 = vadd.f32 %v128, %v800
  %v802 = vpop.f32.mrb[0].mxu0
  %803 = vmatprep.mubr.bf16.mxu0 0
  %804 = vmatmul.mubr.bf16.gmra.mrb[0].mxu0 %v487
  %v805 = vpop.f32.mrb[0].mxu0
  %v806 = vadd.f32 %v128, %v805
  %v807 = vpop.f32.mrb[0].mxu0
  %v808 = vpop.f32.mrb[0].mxu0
  %v809 = vadd.f32 %v128, %v808
  %v810 = vpop.f32.mrb[0].mxu0
  %811 = vmatprep.mubr.bf16.mxu0 0
  %812 = vmatmul.mubr.bf16.gmra.mrb[0].mxu0 %v490
  %v813 = vpop.f32.mrb[0].mxu0
  %v814 = vadd.f32 %v128, %v813
  %v815 = vpop.f32.mrb[0].mxu0
  %v816 = vpop.f32.mrb[0].mxu0
  %v817 = vadd.f32 %v128, %v816
  %v818 = vpop.f32.mrb[0].mxu0
  %819 = vmatprep.mubr.bf16.mxu0 0
  %820 = vmatmul.mubr.bf16.gmra.mrb[0].mxu0 %v493
  %v821 = vpop.f32.mrb[0].mxu0
  %v822 = vadd.f32 %v128, %v821
  %v823 = vpop.f32.mrb[0].mxu0
  %v824 = vpop.f32.mrb[0].mxu0
  %v825 = vadd.f32 %v128, %v824
  %v826 = vpop.f32.mrb[0].mxu0
  %827 = vmatprep.mubr.bf16.mxu0 0
  %828 = vmatmul.mubr.bf16.gmra.mrb[0].mxu0 %v496
  %v829 = vpop.f32.mrb[0].mxu0
  %v830 = vadd.f32 %v128, %v829
  %v831 = vpop.f32.mrb[0].mxu0
  %v832 = vpop.f32.mrb[0].mxu0
  %v833 = vadd.f32 %v128, %v832
  %v834 = vpop.f32.mrb[0].mxu0
  %835 = vmatprep.mubr.bf16.mxu0 0
  %836 = vmatmul.mubr.bf16.gmra.mrb[0].mxu0 %v499
  %v837 = vpop.f32.mrb[0].mxu0
  %v838 = vadd.f32 %v128, %v837
  %v839 = vpop.f32.mrb[0].mxu0
  %v840 = vpop.f32.mrb[0].mxu0
  %v841 = vadd.f32 %v128, %v840
  %v842 = vpop.f32.mrb[0].mxu0
  %843 = vmatprep.mubr.bf16.mxu0 0
  %844 = vmatmul.mubr.bf16.gmra.mrb[0].mxu0 %v502
  %v845 = vpop.f32.mrb[0].mxu0
  %v846 = vadd.f32 %v128, %v845
  %v847 = vpop.f32.mrb[0].mxu0
  %v848 = vpop.f32.mrb[0].mxu0
  %v849 = vadd.f32 %v128, %v848
  %v850 = vpop.f32.mrb[0].mxu0
  %851 = vmatprep.mubr.bf16.mxu0 0
  %852 = vmatmul.mubr.bf16.gmra.mrb[0].mxu0 %v505
  %v853 = vpop.f32.mrb[0].mxu0
  %v854 = vadd.f32 %v128, %v853
  %v855 = vpop.f32.mrb[0].mxu0
  %v856 = vpop.f32.mrb[0].mxu0
  %v857 = vadd.f32 %v128, %v856
  %v858 = vpop.f32.mrb[0].mxu0
  %859 = vmatprep.mubr.bf16.mxu0 0
  %860 = vmatmul.mubr.bf16.gmra.mrb[0].mxu0 %v508
  %v861 = vpop.f32.mrb[0].mxu0
  %v862 = vadd.f32 %v128, %v861
  %v863 = vpop.f32.mrb[0].mxu0
  %v864 = vpop.f32.mrb[0].mxu0
  %v865 = vadd.f32 %v128, %v864
  %v866 = vpop.f32.mrb[0].mxu0
  %867 = vmatprep.mubr.bf16.mxu0 0
  %868 = vmatmul.mubr.bf16.gmra.mrb[0].mxu0 %v511
  %v869 = vpop.f32.mrb[0].mxu0
  %v870 = vadd.f32 %v128, %v869
  %v871 = vpop.f32.mrb[0].mxu0
  %v872 = vpop.f32.mrb[0].mxu0
  %v873 = vadd.f32 %v128, %v872
  %v874 = vpop.f32.mrb[0].mxu0
  %875 = vmatprep.mubr.bf16.mxu0 0
  %876 = vmatmul.mubr.bf16.gmra.mrb[0].mxu0 %v514
  %v877 = vpop.f32.mrb[0].mxu0
  %v878 = vadd.f32 %v128, %v877
  %v879 = vpop.f32.mrb[0].mxu0
  %v880 = vpop.f32.mrb[0].mxu0
  %v881 = vadd.f32 %v128, %v880
  %v882 = vpop.f32.mrb[0].mxu0
  %883 = vmatprep.mubr.bf16.mxu0 0
  %884 = vmatmul.mubr.bf16.gmra.mrb[0].mxu0 %v517
  %v885 = vpop.f32.mrb[0].mxu0
  %v886 = vadd.f32 %v128, %v885
  %v887 = vpop.f32.mrb[0].mxu0
  %v888 = vpop.f32.mrb[0].mxu0
  %v889 = vadd.f32 %v128, %v888
  %v890 = vpop.f32.mrb[0].mxu0
  %891 = vmatprep.mubr.bf16.mxu0 0
  %892 = vmatmul.mubr.bf16.gmra.mrb[0].mxu0 %v520
  %v893 = vpop.f32.mrb[0].mxu0
  %v894 = vadd.f32 %v128, %v893
  %v895 = vpop.f32.mrb[0].mxu0
  %v896 = vpop.f32.mrb[0].mxu0
  %v897 = vadd.f32 %v128, %v896
  %v898 = vpop.f32.mrb[0].mxu0
  %899 = vmatprep.mubr.bf16.mxu0 0
  %900 = vmatmul.mubr.bf16.gmra.mrb[0].mxu0 %v523
  %v901 = vpop.f32.mrb[0].mxu0
  %v902 = vadd.f32 %v128, %v901
  %v903 = vpop.f32.mrb[0].mxu0
  %v904 = vpop.f32.mrb[0].mxu0
  %v905 = vadd.f32 %v128, %v904
  %v906 = vpop.f32.mrb[0].mxu0
  %907 = vmatprep.mubr.bf16.mxu0 0
  %908 = vmatmul.mubr.bf16.gmra.mrb[0].mxu0 %v526
  %v909 = vpop.f32.mrb[0].mxu0
  %v910 = vadd.f32 %v128, %v909
  %v911 = vpop.f32.mrb[0].mxu0
  %v912 = vpop.f32.mrb[0].mxu0
  %v913 = vadd.f32 %v128, %v912
  %v914 = vpop.f32.mrb[0].mxu0
  %915 = vmatprep.mubr.bf16.mxu0 0
  %916 = vmatmul.mubr.bf16.gmra.mrb[0].mxu0 %v529
  %v917 = vpop.f32.mrb[0].mxu0
  %v918 = vadd.f32 %v128, %v917
  %v919 = vpop.f32.mrb[0].mxu0
  %v920 = vpop.f32.mrb[0].mxu0
  %v921 = vadd.f32 %v128, %v920
  %v922 = vpop.f32.mrb[0].mxu0
  %923 = vmatprep.mubr.bf16.mxu0 0
  %924 = vmatmul.mubr.bf16.gmra.mrb[0].mxu0 %v532
  %v925 = vpop.f32.mrb[0].mxu0
  %v926 = vadd.f32 %v128, %v925
  %v927 = vpop.f32.mrb[0].mxu0
  %v928 = vpop.f32.mrb[0].mxu0
  %v929 = vadd.f32 %v128, %v928
  %v930 = vpop.f32.mrb[0].mxu0
  %931 = vmatprep.mubr.bf16.mxu0 0
  %932 = vmatmul.mubr.bf16.gmra.mrb[0].mxu0 %v535
  %v933 = vpop.f32.mrb[0].mxu0
  %v934 = vadd.f32 %v128, %v933
  %v935 = vpop.f32.mrb[0].mxu0
  %v936 = vpop.f32.mrb[0].mxu0
  %v937 = vadd.f32 %v128, %v936
  %v938 = vpop.f32.mrb[0].mxu0
  %939 = vmatprep.mubr.bf16.mxu0 0
  %940 = vmatmul.mubr.bf16.gmra.mrb[0].mxu0 %v538
  %v941 = vpop.f32.mrb[0].mxu0
  %v942 = vadd.f32 %v128, %v941
  %v943 = vpop.f32.mrb[0].mxu0
  %v944 = vpop.f32.mrb[0].mxu0
  %v945 = vadd.f32 %v128, %v944
  %v946 = vpop.f32.mrb[0].mxu0
  %947 = vmatprep.mubr.bf16.mxu0 0
  %948 = vmatmul.mubr.bf16.gmra.mrb[0].mxu0 %v541
  %v949 = vpop.f32.mrb[0].mxu0
  %v950 = vadd.f32 %v128, %v949
  %v951 = vpop.f32.mrb[0].mxu0
  %v952 = vpop.f32.mrb[0].mxu0
  %v953 = vadd.f32 %v128, %v952
  %v954 = vpop.f32.mrb[0].mxu0
  %955 = vmatprep.mubr.bf16.mxu0 0
  %956 = vmatmul.mubr.bf16.gmra.mrb[0].mxu0 %v544
  %v957 = vpop.f32.mrb[0].mxu0
  %v958 = vadd.f32 %v128, %v957
  %v959 = vpop.f32.mrb[0].mxu0
  %v960 = vpop.f32.mrb[0].mxu0
  %v961 = vadd.f32 %v128, %v960
  %v962 = vpop.f32.mrb[0].mxu0
  %963 = vmatprep.mubr.bf16.mxu0 0
  %964 = vmatmul.mubr.bf16.gmra.mrb[0].mxu0 %v547
  %v965 = vpop.f32.mrb[0].mxu0
  %v966 = vadd.f32 %v128, %v965
  %v967 = vpop.f32.mrb[0].mxu0
  %v968 = vpop.f32.mrb[0].mxu0
  %v969 = vadd.f32 %v128, %v968
  %v970 = vpop.f32.mrb[0].mxu0
  %971 = vmatprep.mubr.bf16.mxu0 0
  %972 = vmatmul.mubr.bf16.gmra.mrb[0].mxu0 %v550
  %v973 = vpop.f32.mrb[0].mxu0
  %v974 = vadd.f32 %v128, %v973
  %v975 = vpop.f32.mrb[0].mxu0
  %v976 = vpop.f32.mrb[0].mxu0
  %v977 = vadd.f32 %v128, %v976
  %v978 = vpop.f32.mrb[0].mxu0
  %979 = vmatprep.mubr.bf16.mxu0 0
  %980 = vmatmul.mubr.bf16.gmra.mrb[0].mxu0 %v553
  %v981 = vpop.f32.mrb[0].mxu0
  %v982 = vadd.f32 %v128, %v981
  %v983 = vpop.f32.mrb[0].mxu0
  %v984 = vpop.f32.mrb[0].mxu0
  %v985 = vadd.f32 %v128, %v984
  %v986 = vpop.f32.mrb[0].mxu0
  %987 = vdwg.mxu0
  %v988 = vmax.f32 %v590, 0.0
  %v989 = vmax.f32 %v593, 0.0
  %v990 = vmax.f32 %v598, 0.0
  %v991 = vmax.f32 %v601, 0.0
  %v992 = vmax.f32 %v606, 0.0
  %v993 = vmax.f32 %v609, 0.0
  %v994 = vmax.f32 %v614, 0.0
  %v995 = vmax.f32 %v617, 0.0
  %v996 = vmax.f32 %v622, 0.0
  %v997 = vmax.f32 %v625, 0.0
  %v998 = vmax.f32 %v630, 0.0
  %v999 = vmax.f32 %v633, 0.0
  %v1000 = vmax.f32 %v638, 0.0
  %v1001 = vmax.f32 %v641, 0.0
  %v1002 = vmax.f32 %v646, 0.0
  %v1003 = vmax.f32 %v649, 0.0
  %v1004 = vmax.f32 %v654, 0.0
  %v1005 = vmax.f32 %v657, 0.0
  %v1006 = vmax.f32 %v662, 0.0
  %v1007 = vmax.f32 %v665, 0.0
  %v1008 = vmax.f32 %v670, 0.0
  %v1009 = vmax.f32 %v673, 0.0
  %v1010 = vmax.f32 %v678, 0.0
  %v1011 = vmax.f32 %v681, 0.0
  %v1012 = vmax.f32 %v686, 0.0
  %v1013 = vmax.f32 %v689, 0.0
  %v1014 = vmax.f32 %v694, 0.0
  %v1015 = vmax.f32 %v697, 0.0
  %v1016 = vmax.f32 %v702, 0.0
  %v1017 = vmax.f32 %v705, 0.0
  %v1018 = vmax.f32 %v710, 0.0
  %v1019 = vmax.f32 %v713, 0.0
  %v1020 = vmax.f32 %v718, 0.0
  %v1021 = vmax.f32 %v721, 0.0
  %v1022 = vmax.f32 %v726, 0.0
  %v1023 = vmax.f32 %v729, 0.0
  %v1024 = vmax.f32 %v734, 0.0
  %v1025 = vmax.f32 %v737, 0.0
  %v1026 = vmax.f32 %v742, 0.0
  %v1027 = vmax.f32 %v745, 0.0
  %v1028 = vmax.f32 %v750, 0.0
  %v1029 = vmax.f32 %v753, 0.0
  %v1030 = vmax.f32 %v758, 0.0
  %v1031 = vmax.f32 %v761, 0.0
  %v1032 = vmax.f32 %v766, 0.0
  %v1033 = vmax.f32 %v769, 0.0
  %v1034 = vmax.f32 %v774, 0.0
  %v1035 = vmax.f32 %v777, 0.0
  %v1036 = vmax.f32 %v782, 0.0
  %v1037 = vmax.f32 %v785, 0.0
  %v1038 = vmax.f32 %v790, 0.0
  %v1039 = vmax.f32 %v793, 0.0
  %v1040 = vmax.f32 %v798, 0.0
  %v1041 = vmax.f32 %v801, 0.0
  %v1042 = vmax.f32 %v806, 0.0
  %v1043 = vmax.f32 %v809, 0.0
  %v1044 = vmax.f32 %v814, 0.0
  %v1045 = vmax.f32 %v817, 0.0
  %v1046 = vmax.f32 %v822, 0.0
  %v1047 = vmax.f32 %v825, 0.0
  %v1048 = vmax.f32 %v830, 0.0
  %v1049 = vmax.f32 %v833, 0.0
  %v1050 = vmax.f32 %v838, 0.0
  %v1051 = vmax.f32 %v841, 0.0
  %v1052 = vmax.f32 %v846, 0.0
  %v1053 = vmax.f32 %v849, 0.0
  %v1054 = vmax.f32 %v854, 0.0
  %v1055 = vmax.f32 %v857, 0.0
  %v1056 = vmax.f32 %v862, 0.0
  %v1057 = vmax.f32 %v865, 0.0
  %v1058 = vmax.f32 %v870, 0.0
  %v1059 = vmax.f32 %v873, 0.0
  %v1060 = vmax.f32 %v878, 0.0
  %v1061 = vmax.f32 %v881, 0.0
  %v1062 = vmax.f32 %v886, 0.0
  %v1063 = vmax.f32 %v889, 0.0
  %v1064 = vmax.f32 %v894, 0.0
  %v1065 = vmax.f32 %v897, 0.0
  %v1066 = vmax.f32 %v902, 0.0
  %v1067 = vmax.f32 %v905, 0.0
  %v1068 = vmax.f32 %v910, 0.0
  %v1069 = vmax.f32 %v913, 0.0
  %v1070 = vmax.f32 %v918, 0.0
  %v1071 = vmax.f32 %v921, 0.0
  %v1072 = vmax.f32 %v926, 0.0
  %v1073 = vmax.f32 %v929, 0.0
  %v1074 = vmax.f32 %v934, 0.0
  %v1075 = vmax.f32 %v937, 0.0
  %v1076 = vmax.f32 %v942, 0.0
  %v1077 = vmax.f32 %v945, 0.0
  %v1078 = vmax.f32 %v950, 0.0
  %v1079 = vmax.f32 %v953, 0.0
  %v1080 = vmax.f32 %v958, 0.0
  %v1081 = vmax.f32 %v961, 0.0
  %v1082 = vmax.f32 %v966, 0.0
  %v1083 = vmax.f32 %v969, 0.0
  %v1084 = vmax.f32 %v974, 0.0
  %v1085 = vmax.f32 %v977, 0.0
  %v1086 = vmax.f32 %v982, 0.0
  %v1087 = vmax.f32 %v985, 0.0
  %v1088 = vpack.c.bf16 %v989, %v988
  %v1089 = vpack.c.bf16 %v991, %v990
  %v1090 = vpack.c.bf16 %v993, %v992
  %v1091 = vpack.c.bf16 %v995, %v994
  %v1092 = vpack.c.bf16 %v997, %v996
  %v1093 = vpack.c.bf16 %v999, %v998
  %v1094 = vpack.c.bf16 %v1001, %v1000
  %v1095 = vpack.c.bf16 %v1003, %v1002
  %v1096 = vpack.c.bf16 %v1005, %v1004
  %v1097 = vpack.c.bf16 %v1007, %v1006
  %v1098 = vpack.c.bf16 %v1009, %v1008
  %v1099 = vpack.c.bf16 %v1011, %v1010
  %v1100 = vpack.c.bf16 %v1013, %v1012
  %v1101 = vpack.c.bf16 %v1015, %v1014
  %v1102 = vpack.c.bf16 %v1017, %v1016
  %v1103 = vpack.c.bf16 %v1019, %v1018
  %v1104 = vpack.c.bf16 %v1021, %v1020
  %v1105 = vpack.c.bf16 %v1023, %v1022
  %v1106 = vpack.c.bf16 %v1025, %v1024
  %v1107 = vpack.c.bf16 %v1027, %v1026
  %v1108 = vpack.c.bf16 %v1029, %v1028
  %v1109 = vpack.c.bf16 %v1031, %v1030
  %v1110 = vpack.c.bf16 %v1033, %v1032
  %v1111 = vpack.c.bf16 %v1035, %v1034
  %v1112 = vpack.c.bf16 %v1037, %v1036
  %v1113 = vpack.c.bf16 %v1039, %v1038
  %v1114 = vpack.c.bf16 %v1041, %v1040
  %v1115 = vpack.c.bf16 %v1043, %v1042
  %v1116 = vpack.c.bf16 %v1045, %v1044
  %v1117 = vpack.c.bf16 %v1047, %v1046
  %v1118 = vpack.c.bf16 %v1049, %v1048
  %v1119 = vpack.c.bf16 %v1051, %v1050
  %v1120 = vpack.c.bf16 %v1053, %v1052
  %v1121 = vpack.c.bf16 %v1055, %v1054
  %v1122 = vpack.c.bf16 %v1057, %v1056
  %v1123 = vpack.c.bf16 %v1059, %v1058
  %v1124 = vpack.c.bf16 %v1061, %v1060
  %v1125 = vpack.c.bf16 %v1063, %v1062
  %v1126 = vpack.c.bf16 %v1065, %v1064
  %v1127 = vpack.c.bf16 %v1067, %v1066
  %v1128 = vpack.c.bf16 %v1069, %v1068
  %v1129 = vpack.c.bf16 %v1071, %v1070
  %v1130 = vpack.c.bf16 %v1073, %v1072
  %v1131 = vpack.c.bf16 %v1075, %v1074
  %v1132 = vpack.c.bf16 %v1077, %v1076
  %v1133 = vpack.c.bf16 %v1079, %v1078
  %v1134 = vpack.c.bf16 %v1081, %v1080
  %v1135 = vpack.c.bf16 %v1083, %v1082
  %v1136 = vpack.c.bf16 %v1085, %v1084
  %v1137 = vpack.c.bf16 %v1087, %v1086
  %v1188 = vunpack.c.l.b16 %v1088
  %v1189 = vunpack.c.h.b16 %v1088
  %v1190 = vunpack.c.l.b16 %v1089
  %v1191 = vunpack.c.h.b16 %v1089
  %v1192 = vunpack.c.l.b16 %v1090
  %v1193 = vunpack.c.h.b16 %v1090
  %v1194 = vunpack.c.l.b16 %v1091
  %v1195 = vunpack.c.h.b16 %v1091
  %v1196 = vunpack.c.l.b16 %v1092
  %v1197 = vunpack.c.h.b16 %v1092
  %v1198 = vunpack.c.l.b16 %v1093
  %v1199 = vunpack.c.h.b16 %v1093
  %v1200 = vunpack.c.l.b16 %v1094
  %v1201 = vunpack.c.h.b16 %v1094
  %v1202 = vunpack.c.l.b16 %v1095
  %v1203 = vunpack.c.h.b16 %v1095
  %v1204 = vunpack.c.l.b16 %v1096
  %v1205 = vunpack.c.h.b16 %v1096
  %v1206 = vunpack.c.l.b16 %v1097
  %v1207 = vunpack.c.h.b16 %v1097
  %v1208 = vunpack.c.l.b16 %v1098
  %v1209 = vunpack.c.h.b16 %v1098
  %v1210 = vunpack.c.l.b16 %v1099
  %v1211 = vunpack.c.h.b16 %v1099
  %v1212 = vunpack.c.l.b16 %v1100
  %v1213 = vunpack.c.h.b16 %v1100
  %v1214 = vunpack.c.l.b16 %v1101
  %v1215 = vunpack.c.h.b16 %v1101
  %v1216 = vunpack.c.l.b16 %v1102
  %v1217 = vunpack.c.h.b16 %v1102
  %v1218 = vunpack.c.l.b16 %v1103
  %v1219 = vunpack.c.h.b16 %v1103
  %v1220 = vunpack.c.l.b16 %v1104
  %v1221 = vunpack.c.h.b16 %v1104
  %v1222 = vunpack.c.l.b16 %v1105
  %v1223 = vunpack.c.h.b16 %v1105
  %v1224 = vunpack.c.l.b16 %v1106
  %v1225 = vunpack.c.h.b16 %v1106
  %v1226 = vunpack.c.l.b16 %v1107
  %v1227 = vunpack.c.h.b16 %v1107
  %v1228 = vunpack.c.l.b16 %v1108
  %v1229 = vunpack.c.h.b16 %v1108
  %v1230 = vunpack.c.l.b16 %v1109
  %v1231 = vunpack.c.h.b16 %v1109
  %v1232 = vunpack.c.l.b16 %v1110
  %v1233 = vunpack.c.h.b16 %v1110
  %v1234 = vunpack.c.l.b16 %v1111
  %v1235 = vunpack.c.h.b16 %v1111
  %v1236 = vunpack.c.l.b16 %v1112
  %v1237 = vunpack.c.h.b16 %v1112
  %v1238 = vunpack.c.l.b16 %v1113
  %v1239 = vunpack.c.h.b16 %v1113
  %v1240 = vunpack.c.l.b16 %v1114
  %v1241 = vunpack.c.h.b16 %v1114
  %v1242 = vunpack.c.l.b16 %v1115
  %v1243 = vunpack.c.h.b16 %v1115
  %v1244 = vunpack.c.l.b16 %v1116
  %v1245 = vunpack.c.h.b16 %v1116
  %v1246 = vunpack.c.l.b16 %v1117
  %v1247 = vunpack.c.h.b16 %v1117
  %v1248 = vunpack.c.l.b16 %v1118
  %v1249 = vunpack.c.h.b16 %v1118
  %v1250 = vunpack.c.l.b16 %v1119
  %v1251 = vunpack.c.h.b16 %v1119
  %v1252 = vunpack.c.l.b16 %v1120
  %v1253 = vunpack.c.h.b16 %v1120
  %v1254 = vunpack.c.l.b16 %v1121
  %v1255 = vunpack.c.h.b16 %v1121
  %v1256 = vunpack.c.l.b16 %v1122
  %v1257 = vunpack.c.h.b16 %v1122
  %v1258 = vunpack.c.l.b16 %v1123
  %v1259 = vunpack.c.h.b16 %v1123
  %v1260 = vunpack.c.l.b16 %v1124
  %v1261 = vunpack.c.h.b16 %v1124
  %v1262 = vunpack.c.l.b16 %v1125
  %v1263 = vunpack.c.h.b16 %v1125
  %v1264 = vunpack.c.l.b16 %v1126
  %v1265 = vunpack.c.h.b16 %v1126
  %v1266 = vunpack.c.l.b16 %v1127
  %v1267 = vunpack.c.h.b16 %v1127
  %v1268 = vunpack.c.l.b16 %v1128
  %v1269 = vunpack.c.h.b16 %v1128
  %v1270 = vunpack.c.l.b16 %v1129
  %v1271 = vunpack.c.h.b16 %v1129
  %v1272 = vunpack.c.l.b16 %v1130
  %v1273 = vunpack.c.h.b16 %v1130
  %v1274 = vunpack.c.l.b16 %v1131
  %v1275 = vunpack.c.h.b16 %v1131
  %v1276 = vunpack.c.l.b16 %v1132
  %v1277 = vunpack.c.h.b16 %v1132
  %v1278 = vunpack.c.l.b16 %v1133
  %v1279 = vunpack.c.h.b16 %v1133
  %v1280 = vunpack.c.l.b16 %v1134
  %v1281 = vunpack.c.h.b16 %v1134
  %v1282 = vunpack.c.l.b16 %v1135
  %v1283 = vunpack.c.h.b16 %v1135
  %v1284 = vunpack.c.l.b16 %v1136
  %v1285 = vunpack.c.h.b16 %v1136
  %v1286 = vunpack.c.l.b16 %v1137
  %v1287 = vunpack.c.h.b16 %v1137
  %v1288 = vpack.c.b16 %v1188, %v1188
  %v1289 = vpack.c.b16 %v1189, %v1189
  %v1290 = vpack.c.b16 %v1190, %v1190
  %v1291 = vpack.c.b16 %v1191, %v1191
  %v1292 = vpack.c.b16 %v1192, %v1192
  %v1293 = vpack.c.b16 %v1193, %v1193
  %v1294 = vpack.c.b16 %v1194, %v1194
  %v1295 = vpack.c.b16 %v1195, %v1195
  %v1296 = vpack.c.b16 %v1196, %v1196
  %v1297 = vpack.c.b16 %v1197, %v1197
  %v1298 = vpack.c.b16 %v1198, %v1198
  %v1299 = vpack.c.b16 %v1199, %v1199
  %v1300 = vpack.c.b16 %v1200, %v1200
  %v1301 = vpack.c.b16 %v1201, %v1201
  %v1302 = vpack.c.b16 %v1202, %v1202
  %v1303 = vpack.c.b16 %v1203, %v1203
  %v1304 = vpack.c.b16 %v1204, %v1204
  %v1305 = vpack.c.b16 %v1205, %v1205
  %v1306 = vpack.c.b16 %v1206, %v1206
  %v1307 = vpack.c.b16 %v1207, %v1207
  %v1308 = vpack.c.b16 %v1208, %v1208
  %v1309 = vpack.c.b16 %v1209, %v1209
  %v1310 = vpack.c.b16 %v1210, %v1210
  %v1311 = vpack.c.b16 %v1211, %v1211
  %v1312 = vpack.c.b16 %v1212, %v1212
  %v1313 = vpack.c.b16 %v1213, %v1213
  %v1314 = vpack.c.b16 %v1214, %v1214
  %v1315 = vpack.c.b16 %v1215, %v1215
  %v1316 = vpack.c.b16 %v1216, %v1216
  %v1317 = vpack.c.b16 %v1217, %v1217
  %v1318 = vpack.c.b16 %v1218, %v1218
  %v1319 = vpack.c.b16 %v1219, %v1219
  %v1320 = vpack.c.b16 %v1220, %v1220
  %v1321 = vpack.c.b16 %v1221, %v1221
  %v1322 = vpack.c.b16 %v1222, %v1222
  %v1323 = vpack.c.b16 %v1223, %v1223
  %v1324 = vpack.c.b16 %v1224, %v1224
  %v1325 = vpack.c.b16 %v1225, %v1225
  %v1326 = vpack.c.b16 %v1226, %v1226
  %v1327 = vpack.c.b16 %v1227, %v1227
  %v1328 = vpack.c.b16 %v1228, %v1228
  %v1329 = vpack.c.b16 %v1229, %v1229
  %v1330 = vpack.c.b16 %v1230, %v1230
  %v1331 = vpack.c.b16 %v1231, %v1231
  %v1332 = vpack.c.b16 %v1232, %v1232
  %v1333 = vpack.c.b16 %v1233, %v1233
  %v1334 = vpack.c.b16 %v1234, %v1234
  %v1335 = vpack.c.b16 %v1235, %v1235
  %v1336 = vpack.c.b16 %v1236, %v1236
  %v1337 = vpack.c.b16 %v1237, %v1237
  %v1338 = vpack.c.b16 %v1238, %v1238
  %v1339 = vpack.c.b16 %v1239, %v1239
  %v1340 = vpack.c.b16 %v1240, %v1240
  %v1341 = vpack.c.b16 %v1241, %v1241
  %v1342 = vpack.c.b16 %v1242, %v1242
  %v1343 = vpack.c.b16 %v1243, %v1243
  %v1344 = vpack.c.b16 %v1244, %v1244
  %v1345 = vpack.c.b16 %v1245, %v1245
  %v1346 = vpack.c.b16 %v1246, %v1246
  %v1347 = vpack.c.b16 %v1247, %v1247
  %v1348 = vpack.c.b16 %v1248, %v1248
  %v1349 = vpack.c.b16 %v1249, %v1249
  %v1350 = vpack.c.b16 %v1250, %v1250
  %v1351 = vpack.c.b16 %v1251, %v1251
  %v1352 = vpack.c.b16 %v1252, %v1252
  %v1353 = vpack.c.b16 %v1253, %v1253
  %v1354 = vpack.c.b16 %v1254, %v1254
  %v1355 = vpack.c.b16 %v1255, %v1255
  %v1356 = vpack.c.b16 %v1256, %v1256
  %v1357 = vpack.c.b16 %v1257, %v1257
  %v1358 = vpack.c.b16 %v1258, %v1258
  %v1359 = vpack.c.b16 %v1259, %v1259
  %v1360 = vpack.c.b16 %v1260, %v1260
  %v1361 = vpack.c.b16 %v1261, %v1261
  %v1362 = vpack.c.b16 %v1262, %v1262
  %v1363 = vpack.c.b16 %v1263, %v1263
  %v1364 = vpack.c.b16 %v1264, %v1264
  %v1365 = vpack.c.b16 %v1265, %v1265
  %v1366 = vpack.c.b16 %v1266, %v1266
  %v1367 = vpack.c.b16 %v1267, %v1267
  %v1368 = vpack.c.b16 %v1268, %v1268
  %v1369 = vpack.c.b16 %v1269, %v1269
  %v1370 = vpack.c.b16 %v1270, %v1270
  %v1371 = vpack.c.b16 %v1271, %v1271
  %v1372 = vpack.c.b16 %v1272, %v1272
  %v1373 = vpack.c.b16 %v1273, %v1273
  %v1374 = vpack.c.b16 %v1274, %v1274
  %v1375 = vpack.c.b16 %v1275, %v1275
  %v1376 = vpack.c.b16 %v1276, %v1276
  %v1377 = vpack.c.b16 %v1277, %v1277
  %v1378 = vpack.c.b16 %v1278, %v1278
  %v1379 = vpack.c.b16 %v1279, %v1279
  %v1380 = vpack.c.b16 %v1280, %v1280
  %v1381 = vpack.c.b16 %v1281, %v1281
  %v1382 = vpack.c.b16 %v1282, %v1282
  %v1383 = vpack.c.b16 %v1283, %v1283
  %v1384 = vpack.c.b16 %v1284, %v1284
  %v1385 = vpack.c.b16 %v1285, %v1285
  %v1386 = vpack.c.b16 %v1286, %v1286
  %v1387 = vpack.c.b16 %v1287, %v1287
  %vm1488 = vcmask 257024
  %1489 = vst.msk [vmem:[%s3] sm:$0xf] %vm1488, %v1288
  %1490 = vst.msk [vmem:[%s3 + $0x4] sm:$0xf] %vm1488, %v1289
  %1491 = vst.msk [vmem:[%s3 + $0x8] sm:$0xf] %vm1488, %v1290
  %1492 = vst.msk [vmem:[%s3 + $0xc] sm:$0xf] %vm1488, %v1291
  %1493 = vst.msk [vmem:[%s3 + $0x10] sm:$0xf] %vm1488, %v1292
  %1494 = vst.msk [vmem:[%s3 + $0x14] sm:$0xf] %vm1488, %v1293
  %1495 = vst.msk [vmem:[%s3 + $0x18] sm:$0xf] %vm1488, %v1294
  %1496 = vst.msk [vmem:[%s3 + $0x1c] sm:$0xf] %vm1488, %v1295
  %1497 = vst.msk [vmem:[%s3 + $0x20] sm:$0xf] %vm1488, %v1296
  %1498 = vst.msk [vmem:[%s3 + $0x24] sm:$0xf] %vm1488, %v1297
  %1499 = vst.msk [vmem:[%s3 + $0x28] sm:$0xf] %vm1488, %v1298
  %1500 = vst.msk [vmem:[%s3 + $0x2c] sm:$0xf] %vm1488, %v1299
  %1501 = vst.msk [vmem:[%s3 + $0x30] sm:$0xf] %vm1488, %v1300
  %1502 = vst.msk [vmem:[%s3 + $0x34] sm:$0xf] %vm1488, %v1301
  %1503 = vst.msk [vmem:[%s3 + $0x38] sm:$0xf] %vm1488, %v1302
  %1504 = vst.msk [vmem:[%s3 + $0x3c] sm:$0xf] %vm1488, %v1303
  %1505 = vst.msk [vmem:[%s3 + $0x40] sm:$0xf] %vm1488, %v1304
  %1506 = vst.msk [vmem:[%s3 + $0x44] sm:$0xf] %vm1488, %v1305
  %1507 = vst.msk [vmem:[%s3 + $0x48] sm:$0xf] %vm1488, %v1306
  %1508 = vst.msk [vmem:[%s3 + $0x4c] sm:$0xf] %vm1488, %v1307
  %1509 = vst.msk [vmem:[%s3 + $0x50] sm:$0xf] %vm1488, %v1308
  %1510 = vst.msk [vmem:[%s3 + $0x54] sm:$0xf] %vm1488, %v1309
  %1511 = vst.msk [vmem:[%s3 + $0x58] sm:$0xf] %vm1488, %v1310
  %1512 = vst.msk [vmem:[%s3 + $0x5c] sm:$0xf] %vm1488, %v1311
  %1513 = vst.msk [vmem:[%s3 + $0x60] sm:$0xf] %vm1488, %v1312
  %1514 = vst.msk [vmem:[%s3 + $0x64] sm:$0xf] %vm1488, %v1313
  %1515 = vst.msk [vmem:[%s3 + $0x68] sm:$0xf] %vm1488, %v1314
  %1516 = vst.msk [vmem:[%s3 + $0x6c] sm:$0xf] %vm1488, %v1315
  %1517 = vst.msk [vmem:[%s3 + $0x70] sm:$0xf] %vm1488, %v1316
  %1518 = vst.msk [vmem:[%s3 + $0x74] sm:$0xf] %vm1488, %v1317
  %1519 = vst.msk [vmem:[%s3 + $0x78] sm:$0xf] %vm1488, %v1318
  %1520 = vst.msk [vmem:[%s3 + $0x7c] sm:$0xf] %vm1488, %v1319
  %1521 = vst.msk [vmem:[%s3 + $0x80] sm:$0xf] %vm1488, %v1320
  %1522 = vst.msk [vmem:[%s3 + $0x84] sm:$0xf] %vm1488, %v1321
  %1523 = vst.msk [vmem:[%s3 + $0x88] sm:$0xf] %vm1488, %v1322
  %1524 = vst.msk [vmem:[%s3 + $0x8c] sm:$0xf] %vm1488, %v1323
  %1525 = vst.msk [vmem:[%s3 + $0x90] sm:$0xf] %vm1488, %v1324
  %1526 = vst.msk [vmem:[%s3 + $0x94] sm:$0xf] %vm1488, %v1325
  %1527 = vst.msk [vmem:[%s3 + $0x98] sm:$0xf] %vm1488, %v1326
  %1528 = vst.msk [vmem:[%s3 + $0x9c] sm:$0xf] %vm1488, %v1327
  %1529 = vst.msk [vmem:[%s3 + $0xa0] sm:$0xf] %vm1488, %v1328
  %1530 = vst.msk [vmem:[%s3 + $0xa4] sm:$0xf] %vm1488, %v1329
  %1531 = vst.msk [vmem:[%s3 + $0xa8] sm:$0xf] %vm1488, %v1330
  %1532 = vst.msk [vmem:[%s3 + $0xac] sm:$0xf] %vm1488, %v1331
  %1533 = vst.msk [vmem:[%s3 + $0xb0] sm:$0xf] %vm1488, %v1332
  %1534 = vst.msk [vmem:[%s3 + $0xb4] sm:$0xf] %vm1488, %v1333
  %1535 = vst.msk [vmem:[%s3 + $0xb8] sm:$0xf] %vm1488, %v1334
  %1536 = vst.msk [vmem:[%s3 + $0xbc] sm:$0xf] %vm1488, %v1335
  %1537 = vst.msk [vmem:[%s3 + $0xc0] sm:$0xf] %vm1488, %v1336
  %1538 = vst.msk [vmem:[%s3 + $0xc4] sm:$0xf] %vm1488, %v1337
  %1539 = vst.msk [vmem:[%s3 + $0xc8] sm:$0xf] %vm1488, %v1338
  %1540 = vst.msk [vmem:[%s3 + $0xcc] sm:$0xf] %vm1488, %v1339
  %1541 = vst.msk [vmem:[%s3 + $0xd0] sm:$0xf] %vm1488, %v1340
  %1542 = vst.msk [vmem:[%s3 + $0xd4] sm:$0xf] %vm1488, %v1341
  %1543 = vst.msk [vmem:[%s3 + $0xd8] sm:$0xf] %vm1488, %v1342
  %1544 = vst.msk [vmem:[%s3 + $0xdc] sm:$0xf] %vm1488, %v1343
  %1545 = vst.msk [vmem:[%s3 + $0xe0] sm:$0xf] %vm1488, %v1344
  %1546 = vst.msk [vmem:[%s3 + $0xe4] sm:$0xf] %vm1488, %v1345
  %1547 = vst.msk [vmem:[%s3 + $0xe8] sm:$0xf] %vm1488, %v1346
  %1548 = vst.msk [vmem:[%s3 + $0xec] sm:$0xf] %vm1488, %v1347
  %1549 = vst.msk [vmem:[%s3 + $0xf0] sm:$0xf] %vm1488, %v1348
  %1550 = vst.msk [vmem:[%s3 + $0xf4] sm:$0xf] %vm1488, %v1349
  %1551 = vst.msk [vmem:[%s3 + $0xf8] sm:$0xf] %vm1488, %v1350
  %1552 = vst.msk [vmem:[%s3 + $0xfc] sm:$0xf] %vm1488, %v1351
  %1553 = vst.msk [vmem:[%s3 + $0x100] sm:$0xf] %vm1488, %v1352
  %1554 = vst.msk [vmem:[%s3 + $0x104] sm:$0xf] %vm1488, %v1353
  %1555 = vst.msk [vmem:[%s3 + $0x108] sm:$0xf] %vm1488, %v1354
  %1556 = vst.msk [vmem:[%s3 + $0x10c] sm:$0xf] %vm1488, %v1355
  %1557 = vst.msk [vmem:[%s3 + $0x110] sm:$0xf] %vm1488, %v1356
  %1558 = vst.msk [vmem:[%s3 + $0x114] sm:$0xf] %vm1488, %v1357
  %1559 = vst.msk [vmem:[%s3 + $0x118] sm:$0xf] %vm1488, %v1358
  %1560 = vst.msk [vmem:[%s3 + $0x11c] sm:$0xf] %vm1488, %v1359
  %1561 = vst.msk [vmem:[%s3 + $0x120] sm:$0xf] %vm1488, %v1360
  %1562 = vst.msk [vmem:[%s3 + $0x124] sm:$0xf] %vm1488, %v1361
  %1563 = vst.msk [vmem:[%s3 + $0x128] sm:$0xf] %vm1488, %v1362
  %1564 = vst.msk [vmem:[%s3 + $0x12c] sm:$0xf] %vm1488, %v1363
  %1565 = vst.msk [vmem:[%s3 + $0x130] sm:$0xf] %vm1488, %v1364
  %1566 = vst.msk [vmem:[%s3 + $0x134] sm:$0xf] %vm1488, %v1365
  %1567 = vst.msk [vmem:[%s3 + $0x138] sm:$0xf] %vm1488, %v1366
  %1568 = vst.msk [vmem:[%s3 + $0x13c] sm:$0xf] %vm1488, %v1367
  %1569 = vst.msk [vmem:[%s3 + $0x140] sm:$0xf] %vm1488, %v1368
  %1570 = vst.msk [vmem:[%s3 + $0x144] sm:$0xf] %vm1488, %v1369
  %1571 = vst.msk [vmem:[%s3 + $0x148] sm:$0xf] %vm1488, %v1370
  %1572 = vst.msk [vmem:[%s3 + $0x14c] sm:$0xf] %vm1488, %v1371
  %1573 = vst.msk [vmem:[%s3 + $0x150] sm:$0xf] %vm1488, %v1372
  %1574 = vst.msk [vmem:[%s3 + $0x154] sm:$0xf] %vm1488, %v1373
  %1575 = vst.msk [vmem:[%s3 + $0x158] sm:$0xf] %vm1488, %v1374
  %1576 = vst.msk [vmem:[%s3 + $0x15c] sm:$0xf] %vm1488, %v1375
  %1577 = vst.msk [vmem:[%s3 + $0x160] sm:$0xf] %vm1488, %v1376
  %1578 = vst.msk [vmem:[%s3 + $0x164] sm:$0xf] %vm1488, %v1377
  %1579 = vst.msk [vmem:[%s3 + $0x168] sm:$0xf] %vm1488, %v1378
  %1580 = vst.msk [vmem:[%s3 + $0x16c] sm:$0xf] %vm1488, %v1379
  %1581 = vst.msk [vmem:[%s3 + $0x170] sm:$0xf] %vm1488, %v1380
  %1582 = vst.msk [vmem:[%s3 + $0x174] sm:$0xf] %vm1488, %v1381
  %1583 = vst.msk [vmem:[%s3 + $0x178] sm:$0xf] %vm1488, %v1382
  %1584 = vst.msk [vmem:[%s3 + $0x17c] sm:$0xf] %vm1488, %v1383
  %1585 = vst.msk [vmem:[%s3 + $0x180] sm:$0xf] %vm1488, %v1384
  %1586 = vst.msk [vmem:[%s3 + $0x184] sm:$0xf] %vm1488, %v1385
  %1587 = vst.msk [vmem:[%s3 + $0x188] sm:$0xf] %vm1488, %v1386
  %1588 = vst.msk [vmem:[%s3 + $0x18c] sm:$0xf] %vm1488, %v1387
  // Predicated region
  $region14: #{dqn_forward.4} parent=0 // pred_check
    _
  $region15: #{dqn_forward.4} parent=0 // pred_check_branch
    %1590 = sbr.rel (0) target = $region17
  $region16: #{dqn_forward.4} parent=0 // pred_region
    _
  $region17: #{dqn_forward.4} parent=0 // pred_fallthru
    _
  // Predicated region
  $region18: #{dqn_forward.4} parent=0 // pred_check
    _
  $region19: #{dqn_forward.4} parent=0 // pred_check_branch
    %1592 = sbr.rel (0) target = $region21
  $region20: #{dqn_forward.4} parent=0 // pred_region
    _
  $region21: #{dqn_forward.4} parent=0 // pred_fallthru
    _

// kernel: dqn_forward.5
$region0: #{dqn_forward.5}
  #allocation0 [shape = 'u32[]', space=smem, size = 0x4, offset = 0x4, fixed_abs, tag = 'smem constant byte address 0x4 - core index']
  #allocation1 [shape = 'u32[144,128]{1,0:T(1,128)}', space=vmem, size = 0x12000, scoped, tag = 'internal scratch']
  %s0 = inlined_call_operand.vmem [shape: bf16[162,512], index: 0, kind: input, shape index: {}]
  %s1 = inlined_call_operand.vmem [shape: bf16[512,64], index: 1, kind: input, shape index: {}]
  %s2 = inlined_call_operand.vmem [shape: f32[1,64], index: 2, kind: input, shape index: {}]
  %s3 = inlined_call_operand.vmem [shape: bf16[162,64], index: 3, kind: output, shape index: {}]
  %s4 = sld [smem:[#allocation0]]
  $region22: #{dqn_forward.5} parent=0
    _
  %s6 = ssub.s32 1, %s4
  %s7 = scalar_select 0, %s6, %s4
  // Predicated region
  $region2: #{dqn_forward.5} parent=0 // pred_check
    _
  $region3: #{dqn_forward.5} parent=0 // pred_check_branch
    %9 = sbr.rel (0) target = $region5
  $region4: #{dqn_forward.5} parent=0 // pred_region
    _
  $region5: #{dqn_forward.5} parent=0 // pred_fallthru
    _
  // Predicated region
  $region6: #{dqn_forward.5} parent=0 // pred_check
    _
  $region7: #{dqn_forward.5} parent=0 // pred_check_branch
    %11 = sbr.rel (0) target = $region9
  $region8: #{dqn_forward.5} parent=0 // pred_region
    _
  $region9: #{dqn_forward.5} parent=0 // pred_fallthru
    _
  // Predicated region
  $region10: #{dqn_forward.5} parent=0 // pred_check
    _
  $region11: #{dqn_forward.5} parent=0 // pred_check_branch
    %13 = sbr.rel (0) target = $region13
  $region12: #{dqn_forward.5} parent=0 // pred_region
    _
  $region13: #{dqn_forward.5} parent=0 // pred_fallthru
    _
  %v15 = vld [vmem:[%s0] sm:$0xff]
  %v16 = vld [vmem:[%s0 + $0x8] sm:$0xff]
  %v17 = vld [vmem:[%s0 + $0x10] sm:$0xff]
  %v18 = vld [vmem:[%s0 + $0x18] sm:$0xff]
  %v19 = vld [vmem:[%s0 + $0x20] sm:$0xff]
  %v20 = vld [vmem:[%s0 + $0x28] sm:$0xff]
  %v21 = vld [vmem:[%s0 + $0x30] sm:$0xff]
  %v22 = vld [vmem:[%s0 + $0x38] sm:$0xff]
  %v23 = vld [vmem:[%s0 + $0x40] sm:$0xff]
  %v24 = vld [vmem:[%s0 + $0x48] sm:$0xff]
  %v25 = vld [vmem:[%s0 + $0x50] sm:$0xff]
  %v26 = vld [vmem:[%s0 + $0x58] sm:$0xff]
  %v27 = vld [vmem:[%s0 + $0x60] sm:$0xff]
  %v28 = vld [vmem:[%s0 + $0x68] sm:$0xff]
  %v29 = vld [vmem:[%s0 + $0x70] sm:$0xff]
  %v30 = vld [vmem:[%s0 + $0x78] sm:$0xff]
  %v31 = vld [vmem:[%s0 + $0x80] sm:$0xff]
  %v32 = vld [vmem:[%s0 + $0x88] sm:$0xff]
  %v33 = vld [vmem:[%s0 + $0x90] sm:$0xff]
  %v34 = vld [vmem:[%s0 + $0x98] sm:$0xff]
  %v35 = vld [vmem:[%s0 + $0xa0] sm:$0xff]
  %v36 = vld [vmem:[%s0 + $0xa8] sm:$0xff]
  %v37 = vld [vmem:[%s0 + $0xb0] sm:$0xff]
  %v38 = vld [vmem:[%s0 + $0xb8] sm:$0xff]
  %v39 = vld [vmem:[%s0 + $0xc0] sm:$0xff]
  %v40 = vld [vmem:[%s0 + $0xc8] sm:$0xff]
  %v41 = vld [vmem:[%s0 + $0xd0] sm:$0xff]
  %v42 = vld [vmem:[%s0 + $0xd8] sm:$0xff]
  %v43 = vld [vmem:[%s0 + $0xe0] sm:$0xff]
  %v44 = vld [vmem:[%s0 + $0xe8] sm:$0xff]
  %v45 = vld [vmem:[%s0 + $0xf0] sm:$0xff]
  %v46 = vld [vmem:[%s0 + $0xf8] sm:$0xff]
  %v47 = vld [vmem:[%s0 + $0x100] sm:$0xff]
  %v48 = vld [vmem:[%s0 + $0x108] sm:$0xff]
  %v49 = vld [vmem:[%s0 + $0x110] sm:$0xff]
  %v50 = vld [vmem:[%s0 + $0x118] sm:$0xff]
  %v51 = vld [vmem:[%s0 + $0x120] sm:$0xff]
  %v52 = vld [vmem:[%s0 + $0x128] sm:$0xff]
  %v53 = vld [vmem:[%s0 + $0x130] sm:$0xff]
  %v54 = vld [vmem:[%s0 + $0x138] sm:$0xff]
  %v55 = vld [vmem:[%s0 + $0x140] sm:$0x11]
  %v56 = vld [vmem:[%s0 + $0x148] sm:$0x11]
  %v57 = vld [vmem:[%s1] sm:$0xf]
  %v58 = vld [vmem:[%s1 + $0x4] sm:$0xf]
  %v59 = vld [vmem:[%s1 + $0x8] sm:$0xf]
  %v60 = vld [vmem:[%s1 + $0xc] sm:$0xf]
  %v61 = vld [vmem:[%s1 + $0x10] sm:$0xf]
  %v62 = vld [vmem:[%s1 + $0x14] sm:$0xf]
  %v63 = vld [vmem:[%s1 + $0x18] sm:$0xf]
  %v64 = vld [vmem:[%s1 + $0x1c] sm:$0xf]
  %v65 = vld [vmem:[%s1 + $0x20] sm:$0xf]
  %v66 = vld [vmem:[%s1 + $0x24] sm:$0xf]
  %v67 = vld [vmem:[%s1 + $0x28] sm:$0xf]
  %v68 = vld [vmem:[%s1 + $0x2c] sm:$0xf]
  %v69 = vld [vmem:[%s1 + $0x30] sm:$0xf]
  %v70 = vld [vmem:[%s1 + $0x34] sm:$0xf]
  %v71 = vld [vmem:[%s1 + $0x38] sm:$0xf]
  %v72 = vld [vmem:[%s1 + $0x3c] sm:$0xf]
  %v73 = vld [vmem:[%s1 + $0x40] sm:$0xf]
  %v74 = vld [vmem:[%s1 + $0x44] sm:$0xf]
  %v75 = vld [vmem:[%s1 + $0x48] sm:$0xf]
  %v76 = vld [vmem:[%s1 + $0x4c] sm:$0xf]
  %v77 = vld [vmem:[%s1 + $0x50] sm:$0xf]
  %v78 = vld [vmem:[%s1 + $0x54] sm:$0xf]
  %v79 = vld [vmem:[%s1 + $0x58] sm:$0xf]
  %v80 = vld [vmem:[%s1 + $0x5c] sm:$0xf]
  %v81 = vld [vmem:[%s1 + $0x60] sm:$0xf]
  %v82 = vld [vmem:[%s1 + $0x64] sm:$0xf]
  %v83 = vld [vmem:[%s1 + $0x68] sm:$0xf]
  %v84 = vld [vmem:[%s1 + $0x6c] sm:$0xf]
  %v85 = vld [vmem:[%s1 + $0x70] sm:$0xf]
  %v86 = vld [vmem:[%s1 + $0x74] sm:$0xf]
  %v87 = vld [vmem:[%s1 + $0x78] sm:$0xf]
  %v88 = vld [vmem:[%s1 + $0x7c] sm:$0xf]
  %v89 = vld [vmem:[%s1 + $0x80] sm:$0xf]
  %v90 = vld [vmem:[%s1 + $0x84] sm:$0xf]
  %v91 = vld [vmem:[%s1 + $0x88] sm:$0xf]
  %v92 = vld [vmem:[%s1 + $0x8c] sm:$0xf]
  %v93 = vld [vmem:[%s1 + $0x90] sm:$0xf]
  %v94 = vld [vmem:[%s1 + $0x94] sm:$0xf]
  %v95 = vld [vmem:[%s1 + $0x98] sm:$0xf]
  %v96 = vld [vmem:[%s1 + $0x9c] sm:$0xf]
  %v97 = vld [vmem:[%s1 + $0xa0] sm:$0xf]
  %v98 = vld [vmem:[%s1 + $0xa4] sm:$0xf]
  %v99 = vld [vmem:[%s1 + $0xa8] sm:$0xf]
  %v100 = vld [vmem:[%s1 + $0xac] sm:$0xf]
  %v101 = vld [vmem:[%s1 + $0xb0] sm:$0xf]
  %v102 = vld [vmem:[%s1 + $0xb4] sm:$0xf]
  %v103 = vld [vmem:[%s1 + $0xb8] sm:$0xf]
  %v104 = vld [vmem:[%s1 + $0xbc] sm:$0xf]
  %v105 = vld [vmem:[%s1 + $0xc0] sm:$0xf]
  %v106 = vld [vmem:[%s1 + $0xc4] sm:$0xf]
  %v107 = vld [vmem:[%s1 + $0xc8] sm:$0xf]
  %v108 = vld [vmem:[%s1 + $0xcc] sm:$0xf]
  %v109 = vld [vmem:[%s1 + $0xd0] sm:$0xf]
  %v110 = vld [vmem:[%s1 + $0xd4] sm:$0xf]
  %v111 = vld [vmem:[%s1 + $0xd8] sm:$0xf]
  %v112 = vld [vmem:[%s1 + $0xdc] sm:$0xf]
  %v113 = vld [vmem:[%s1 + $0xe0] sm:$0xf]
  %v114 = vld [vmem:[%s1 + $0xe4] sm:$0xf]
  %v115 = vld [vmem:[%s1 + $0xe8] sm:$0xf]
  %v116 = vld [vmem:[%s1 + $0xec] sm:$0xf]
  %v117 = vld [vmem:[%s1 + $0xf0] sm:$0xf]
  %v118 = vld [vmem:[%s1 + $0xf4] sm:$0xf]
  %v119 = vld [vmem:[%s1 + $0xf8] sm:$0xf]
  %v120 = vld [vmem:[%s1 + $0xfc] sm:$0xf]
  %v121 = vld [vmem:[%s2] sm:$0x1]
  %v123 = vlaneseq
  %v124 = vshrl.u32 %v123, 7
  %v125 = vsub.s32 0, %v124
  %v126 = vrot.slane %v121, %v125
  %v170 = vunpack.c.l.b16 %v15
  %v171 = vunpack.c.h.b16 %v15
  %v172 = vunpack.c.l.b16 %v16
  %v173 = vunpack.c.h.b16 %v16
  %v174 = vunpack.c.l.b16 %v17
  %v175 = vunpack.c.h.b16 %v17
  %v176 = vunpack.c.l.b16 %v18
  %v177 = vunpack.c.h.b16 %v18
  %v178 = vunpack.c.l.b16 %v19
  %v179 = vunpack.c.h.b16 %v19
  %v180 = vunpack.c.l.b16 %v20
  %v181 = vunpack.c.h.b16 %v20
  %v182 = vunpack.c.l.b16 %v21
  %v183 = vunpack.c.h.b16 %v21
  %v184 = vunpack.c.l.b16 %v22
  %v185 = vunpack.c.h.b16 %v22
  %v186 = vunpack.c.l.b16 %v23
  %v187 = vunpack.c.h.b16 %v23
  %v188 = vunpack.c.l.b16 %v24
  %v189 = vunpack.c.h.b16 %v24
  %v190 = vunpack.c.l.b16 %v25
  %v191 = vunpack.c.h.b16 %v25
  %v192 = vunpack.c.l.b16 %v26
  %v193 = vunpack.c.h.b16 %v26
  %v194 = vunpack.c.l.b16 %v27
  %v195 = vunpack.c.h.b16 %v27
  %v196 = vunpack.c.l.b16 %v28
  %v197 = vunpack.c.h.b16 %v28
  %v198 = vunpack.c.l.b16 %v29
  %v199 = vunpack.c.h.b16 %v29
  %v200 = vunpack.c.l.b16 %v30
  %v201 = vunpack.c.h.b16 %v30
  %v202 = vunpack.c.l.b16 %v31
  %v203 = vunpack.c.h.b16 %v31
  %v204 = vunpack.c.l.b16 %v32
  %v205 = vunpack.c.h.b16 %v32
  %v206 = vunpack.c.l.b16 %v33
  %v207 = vunpack.c.h.b16 %v33
  %v208 = vunpack.c.l.b16 %v34
  %v209 = vunpack.c.h.b16 %v34
  %v210 = vunpack.c.l.b16 %v35
  %v211 = vunpack.c.h.b16 %v35
  %v212 = vunpack.c.l.b16 %v36
  %v213 = vunpack.c.h.b16 %v36
  %v214 = vunpack.c.l.b16 %v37
  %v215 = vunpack.c.h.b16 %v37
  %v216 = vunpack.c.l.b16 %v38
  %v217 = vunpack.c.h.b16 %v38
  %v218 = vunpack.c.l.b16 %v39
  %v219 = vunpack.c.h.b16 %v39
  %v220 = vunpack.c.l.b16 %v40
  %v221 = vunpack.c.h.b16 %v40
  %v222 = vunpack.c.l.b16 %v41
  %v223 = vunpack.c.h.b16 %v41
  %v224 = vunpack.c.l.b16 %v42
  %v225 = vunpack.c.h.b16 %v42
  %v226 = vunpack.c.l.b16 %v43
  %v227 = vunpack.c.h.b16 %v43
  %v228 = vunpack.c.l.b16 %v44
  %v229 = vunpack.c.h.b16 %v44
  %v230 = vunpack.c.l.b16 %v45
  %v231 = vunpack.c.h.b16 %v45
  %v232 = vunpack.c.l.b16 %v46
  %v233 = vunpack.c.h.b16 %v46
  %v234 = vunpack.c.l.b16 %v47
  %v235 = vunpack.c.h.b16 %v47
  %v236 = vunpack.c.l.b16 %v48
  %v237 = vunpack.c.h.b16 %v48
  %v238 = vunpack.c.l.b16 %v49
  %v239 = vunpack.c.h.b16 %v49
  %v240 = vunpack.c.l.b16 %v50
  %v241 = vunpack.c.h.b16 %v50
  %v242 = vunpack.c.l.b16 %v51
  %v243 = vunpack.c.h.b16 %v51
  %v244 = vunpack.c.l.b16 %v52
  %v245 = vunpack.c.h.b16 %v52
  %v246 = vunpack.c.l.b16 %v53
  %v247 = vunpack.c.h.b16 %v53
  %v248 = vunpack.c.l.b16 %v54
  %v249 = vunpack.c.h.b16 %v54
  %v250 = vunpack.c.l.b16 %v55
  %v251 = vunpack.c.h.b16 %v55
  %v252 = vunpack.c.l.b16 %v56
  %v253 = vunpack.c.h.b16 %v56
  %v254 = vpack.c.b16 %v174, %v170
  %v255 = vpack.c.b16 %v175, %v171
  %v256 = vpack.c.b16 %v176, %v172
  %v257 = vpack.c.b16 %v177, %v173
  %v258 = vpack.c.b16 %v182, %v178
  %v259 = vpack.c.b16 %v183, %v179
  %v260 = vpack.c.b16 %v184, %v180
  %v261 = vpack.c.b16 %v185, %v181
  %v262 = vpack.c.b16 %v190, %v186
  %v263 = vpack.c.b16 %v191, %v187
  %v264 = vpack.c.b16 %v192, %v188
  %v265 = vpack.c.b16 %v193, %v189
  %v266 = vpack.c.b16 %v198, %v194
  %v267 = vpack.c.b16 %v199, %v195
  %v268 = vpack.c.b16 %v200, %v196
  %v269 = vpack.c.b16 %v201, %v197
  %v270 = vpack.c.b16 %v206, %v202
  %v271 = vpack.c.b16 %v207, %v203
  %v272 = vpack.c.b16 %v208, %v204
  %v273 = vpack.c.b16 %v209, %v205
  %v274 = vpack.c.b16 %v214, %v210
  %v275 = vpack.c.b16 %v215, %v211
  %v276 = vpack.c.b16 %v216, %v212
  %v277 = vpack.c.b16 %v217, %v213
  %v278 = vpack.c.b16 %v222, %v218
  %v279 = vpack.c.b16 %v223, %v219
  %v280 = vpack.c.b16 %v224, %v220
  %v281 = vpack.c.b16 %v225, %v221
  %v282 = vpack.c.b16 %v230, %v226
  %v283 = vpack.c.b16 %v231, %v227
  %v284 = vpack.c.b16 %v232, %v228
  %v285 = vpack.c.b16 %v233, %v229
  %v286 = vpack.c.b16 %v238, %v234
  %v287 = vpack.c.b16 %v239, %v235
  %v288 = vpack.c.b16 %v240, %v236
  %v289 = vpack.c.b16 %v241, %v237
  %v290 = vpack.c.b16 %v246, %v242
  %v291 = vpack.c.b16 %v247, %v243
  %v292 = vpack.c.b16 %v248, %v244
  %v293 = vpack.c.b16 %v249, %v245
  %v294 = vpack.c.b16 %v250, %v250
  %v295 = vpack.c.b16 %v251, %v251
  %v296 = vpack.c.b16 %v252, %v252
  %v297 = vpack.c.b16 %v253, %v253
  %v406 = vunpack.c.l.b16 %v57
  %v407 = vunpack.c.l.b16 %v58
  %v408 = vunpack.c.l.b16 %v59
  %v409 = vunpack.c.l.b16 %v60
  %v410 = vunpack.c.l.b16 %v61
  %v411 = vunpack.c.l.b16 %v62
  %v412 = vunpack.c.l.b16 %v63
  %v413 = vunpack.c.l.b16 %v64
  %v414 = vunpack.c.l.b16 %v65
  %v415 = vunpack.c.l.b16 %v66
  %v416 = vunpack.c.l.b16 %v67
  %v417 = vunpack.c.l.b16 %v68
  %v418 = vunpack.c.l.b16 %v69
  %v419 = vunpack.c.l.b16 %v70
  %v420 = vunpack.c.l.b16 %v71
  %v421 = vunpack.c.l.b16 %v72
  %v422 = vunpack.c.l.b16 %v73
  %v423 = vunpack.c.l.b16 %v74
  %v424 = vunpack.c.l.b16 %v75
  %v425 = vunpack.c.l.b16 %v76
  %v426 = vunpack.c.l.b16 %v77
  %v427 = vunpack.c.l.b16 %v78
  %v428 = vunpack.c.l.b16 %v79
  %v429 = vunpack.c.l.b16 %v80
  %v430 = vunpack.c.l.b16 %v81
  %v431 = vunpack.c.l.b16 %v82
  %v432 = vunpack.c.l.b16 %v83
  %v433 = vunpack.c.l.b16 %v84
  %v434 = vunpack.c.l.b16 %v85
  %v435 = vunpack.c.l.b16 %v86
  %v436 = vunpack.c.l.b16 %v87
  %v437 = vunpack.c.l.b16 %v88
  %v438 = vunpack.c.l.b16 %v89
  %v439 = vunpack.c.l.b16 %v90
  %v440 = vunpack.c.l.b16 %v91
  %v441 = vunpack.c.l.b16 %v92
  %v442 = vunpack.c.l.b16 %v93
  %v443 = vunpack.c.l.b16 %v94
  %v444 = vunpack.c.l.b16 %v95
  %v445 = vunpack.c.l.b16 %v96
  %v446 = vunpack.c.l.b16 %v97
  %v447 = vunpack.c.l.b16 %v98
  %v448 = vunpack.c.l.b16 %v99
  %v449 = vunpack.c.l.b16 %v100
  %v450 = vunpack.c.l.b16 %v101
  %v451 = vunpack.c.l.b16 %v102
  %v452 = vunpack.c.l.b16 %v103
  %v453 = vunpack.c.l.b16 %v104
  %v454 = vunpack.c.l.b16 %v105
  %v455 = vunpack.c.l.b16 %v106
  %v456 = vunpack.c.l.b16 %v107
  %v457 = vunpack.c.l.b16 %v108
  %v458 = vunpack.c.l.b16 %v109
  %v459 = vunpack.c.l.b16 %v110
  %v460 = vunpack.c.l.b16 %v111
  %v461 = vunpack.c.l.b16 %v112
  %v462 = vunpack.c.l.b16 %v113
  %v463 = vunpack.c.l.b16 %v114
  %v464 = vunpack.c.l.b16 %v115
  %v465 = vunpack.c.l.b16 %v116
  %v466 = vunpack.c.l.b16 %v117
  %v467 = vunpack.c.l.b16 %v118
  %v468 = vunpack.c.l.b16 %v119
  %v469 = vunpack.c.l.b16 %v120
  %v470 = vpack.c.b16 %v407, %v406
  %v471 = vpack.c.b16 %v409, %v408
  %v472 = vpack.c.b16 %v411, %v410
  %v473 = vpack.c.b16 %v413, %v412
  %v474 = vpack.c.b16 %v415, %v414
  %v475 = vpack.c.b16 %v417, %v416
  %v476 = vpack.c.b16 %v419, %v418
  %v477 = vpack.c.b16 %v421, %v420
  %v478 = vpack.c.b16 %v423, %v422
  %v479 = vpack.c.b16 %v425, %v424
  %v480 = vpack.c.b16 %v427, %v426
  %v481 = vpack.c.b16 %v429, %v428
  %v482 = vpack.c.b16 %v431, %v430
  %v483 = vpack.c.b16 %v433, %v432
  %v484 = vpack.c.b16 %v435, %v434
  %v485 = vpack.c.b16 %v437, %v436
  %v486 = vpack.c.b16 %v439, %v438
  %v487 = vpack.c.b16 %v441, %v440
  %v488 = vpack.c.b16 %v443, %v442
  %v489 = vpack.c.b16 %v445, %v444
  %v490 = vpack.c.b16 %v447, %v446
  %v491 = vpack.c.b16 %v449, %v448
  %v492 = vpack.c.b16 %v451, %v450
  %v493 = vpack.c.b16 %v453, %v452
  %v494 = vpack.c.b16 %v455, %v454
  %v495 = vpack.c.b16 %v457, %v456
  %v496 = vpack.c.b16 %v459, %v458
  %v497 = vpack.c.b16 %v461, %v460
  %v498 = vpack.c.b16 %v463, %v462
  %v499 = vpack.c.b16 %v465, %v464
  %v500 = vpack.c.b16 %v467, %v466
  %v501 = vpack.c.b16 %v469, %v468
  %534 = vmatprep.subr.bf16.mxu0 0
  %535 = vmatpush1.bf16.msra.mxu0 %v470
  %536 = vmatprep.subr.bf16.mxu0 0
  %537 = vmatpush1.bf16.msra.mxu0 %v471
  %538 = vmatprep.subr.bf16.mxu0 0
  %539 = vmatpush1.bf16.msra.mxu0 %v472
  %540 = vmatprep.subr.bf16.mxu0 0
  %541 = vmatpush1.bf16.msra.mxu0 %v473
  %542 = vmatprep.subr.bf16.mxu0 0
  %543 = vmatpush1.bf16.msra.mxu0 %v474
  %544 = vmatprep.subr.bf16.mxu0 0
  %545 = vmatpush1.bf16.msra.mxu0 %v475
  %546 = vmatprep.subr.bf16.mxu0 0
  %547 = vmatpush1.bf16.msra.mxu0 %v476
  %548 = vmatprep.subr.bf16.mxu0 0
  %549 = vmatpush1.bf16.msra.mxu0 %v477
  %550 = vmatprep.subr.bf16.mxu0 0
  %551 = vmatpush1.bf16.msra.mxu0 %v478
  %552 = vmatprep.subr.bf16.mxu0 0
  %553 = vmatpush1.bf16.msra.mxu0 %v479
  %554 = vmatprep.subr.bf16.mxu0 0
  %555 = vmatpush1.bf16.msra.mxu0 %v480
  %556 = vmatprep.subr.bf16.mxu0 0
  %557 = vmatpush1.bf16.msra.mxu0 %v481
  %558 = vmatprep.subr.bf16.mxu0 0
  %559 = vmatpush1.bf16.msra.mxu0 %v482
  %560 = vmatprep.subr.bf16.mxu0 0
  %561 = vmatpush1.bf16.msra.mxu0 %v483
  %562 = vmatprep.subr.bf16.mxu0 0
  %563 = vmatpush1.bf16.msra.mxu0 %v484
  %564 = vmatprep.subr.bf16.mxu0 0
  %565 = vmatpush1.bf16.msra.mxu0 %v485
  %566 = vmatprep.mubr.bf16.mxu0 %v255
  %567 = vmatmul.mubr.bf16.gmra.mrb[0].mxu0 %v254
  %v568 = vpop.f32.mrb[0].mxu0
  %v569 = vadd.f32 %v126, %v568
  %v570 = vpop.f32.mrb[0].mxu0
  %v571 = vpop.f32.mrb[0].mxu0
  %v572 = vadd.f32 %v126, %v571
  %v573 = vpop.f32.mrb[0].mxu0
  %574 = vmatprep.mubr.bf16.mxu0 %v259
  %575 = vmatmul.mubr.bf16.gmra.mrb[0].mxu0 %v258
  %v576 = vpop.f32.mrb[0].mxu0
  %v577 = vadd.f32 %v126, %v576
  %v578 = vpop.f32.mrb[0].mxu0
  %v579 = vpop.f32.mrb[0].mxu0
  %v580 = vadd.f32 %v126, %v579
  %v581 = vpop.f32.mrb[0].mxu0
  %582 = vmatprep.mubr.bf16.mxu0 %v263
  %583 = vmatmul.mubr.bf16.gmra.mrb[0].mxu0 %v262
  %v584 = vpop.f32.mrb[0].mxu0
  %v585 = vadd.f32 %v126, %v584
  %v586 = vpop.f32.mrb[0].mxu0
  %v587 = vpop.f32.mrb[0].mxu0
  %v588 = vadd.f32 %v126, %v587
  %v589 = vpop.f32.mrb[0].mxu0
  %590 = vmatprep.mubr.bf16.mxu0 %v267
  %591 = vmatmul.mubr.bf16.gmra.mrb[0].mxu0 %v266
  %v592 = vpop.f32.mrb[0].mxu0
  %v593 = vadd.f32 %v126, %v592
  %v594 = vpop.f32.mrb[0].mxu0
  %v595 = vpop.f32.mrb[0].mxu0
  %v596 = vadd.f32 %v126, %v595
  %v597 = vpop.f32.mrb[0].mxu0
  %598 = vmatprep.mubr.bf16.mxu0 %v271
  %599 = vmatmul.mubr.bf16.gmra.mrb[0].mxu0 %v270
  %v600 = vpop.f32.mrb[0].mxu0
  %v601 = vadd.f32 %v126, %v600
  %v602 = vpop.f32.mrb[0].mxu0
  %v603 = vpop.f32.mrb[0].mxu0
  %v604 = vadd.f32 %v126, %v603
  %v605 = vpop.f32.mrb[0].mxu0
  %606 = vmatprep.mubr.bf16.mxu0 %v275
  %607 = vmatmul.mubr.bf16.gmra.mrb[0].mxu0 %v274
  %v608 = vpop.f32.mrb[0].mxu0
  %v609 = vadd.f32 %v126, %v608
  %v610 = vpop.f32.mrb[0].mxu0
  %v611 = vpop.f32.mrb[0].mxu0
  %v612 = vadd.f32 %v126, %v611
  %v613 = vpop.f32.mrb[0].mxu0
  %614 = vmatprep.mubr.bf16.mxu0 %v279
  %615 = vmatmul.mubr.bf16.gmra.mrb[0].mxu0 %v278
  %v616 = vpop.f32.mrb[0].mxu0
  %v617 = vadd.f32 %v126, %v616
  %v618 = vpop.f32.mrb[0].mxu0
  %v619 = vpop.f32.mrb[0].mxu0
  %v620 = vadd.f32 %v126, %v619
  %v621 = vpop.f32.mrb[0].mxu0
  %622 = vmatprep.mubr.bf16.mxu0 %v283
  %623 = vmatmul.mubr.bf16.gmra.mrb[0].mxu0 %v282
  %v624 = vpop.f32.mrb[0].mxu0
  %v625 = vadd.f32 %v126, %v624
  %v626 = vpop.f32.mrb[0].mxu0
  %v627 = vpop.f32.mrb[0].mxu0
  %v628 = vadd.f32 %v126, %v627
  %v629 = vpop.f32.mrb[0].mxu0
  %630 = vmatprep.mubr.bf16.mxu0 %v287
  %631 = vmatmul.mubr.bf16.gmra.mrb[0].mxu0 %v286
  %v632 = vpop.f32.mrb[0].mxu0
  %v633 = vadd.f32 %v126, %v632
  %v634 = vpop.f32.mrb[0].mxu0
  %v635 = vpop.f32.mrb[0].mxu0
  %v636 = vadd.f32 %v126, %v635
  %v637 = vpop.f32.mrb[0].mxu0
  %638 = vmatprep.mubr.bf16.mxu0 %v291
  %639 = vmatmul.mubr.bf16.gmra.mrb[0].mxu0 %v290
  %v640 = vpop.f32.mrb[0].mxu0
  %v641 = vadd.f32 %v126, %v640
  %v642 = vpop.f32.mrb[0].mxu0
  %v643 = vpop.f32.mrb[0].mxu0
  %v644 = vadd.f32 %v126, %v643
  %v645 = vpop.f32.mrb[0].mxu0
  %646 = vmatprep.mubr.bf16.mxu0 %v295
  %647 = vmatmul.mubr.bf16.gmra.mrb[0].mxu0 %v294
  %v648 = vpop.f32.mrb[0].mxu0
  %v649 = vadd.f32 %v126, %v648
  %v650 = vpop.f32.mrb[0].mxu0
  %v651 = vpop.f32.mrb[0].mxu0
  %v652 = vpop.f32.mrb[0].mxu0
  %653 = vdwg.mxu0
  %654 = vmatprep.subr.bf16.mxu0 0
  %655 = vmatpush1.bf16.msra.mxu0 %v486
  %656 = vmatprep.subr.bf16.mxu0 0
  %657 = vmatpush1.bf16.msra.mxu0 %v487
  %658 = vmatprep.subr.bf16.mxu0 0
  %659 = vmatpush1.bf16.msra.mxu0 %v488
  %660 = vmatprep.subr.bf16.mxu0 0
  %661 = vmatpush1.bf16.msra.mxu0 %v489
  %662 = vmatprep.subr.bf16.mxu0 0
  %663 = vmatpush1.bf16.msra.mxu0 %v490
  %664 = vmatprep.subr.bf16.mxu0 0
  %665 = vmatpush1.bf16.msra.mxu0 %v491
  %666 = vmatprep.subr.bf16.mxu0 0
  %667 = vmatpush1.bf16.msra.mxu0 %v492
  %668 = vmatprep.subr.bf16.mxu0 0
  %669 = vmatpush1.bf16.msra.mxu0 %v493
  %670 = vmatprep.subr.bf16.mxu0 0
  %671 = vmatpush1.bf16.msra.mxu0 %v494
  %672 = vmatprep.subr.bf16.mxu0 0
  %673 = vmatpush1.bf16.msra.mxu0 %v495
  %674 = vmatprep.subr.bf16.mxu0 0
  %675 = vmatpush1.bf16.msra.mxu0 %v496
  %676 = vmatprep.subr.bf16.mxu0 0
  %677 = vmatpush1.bf16.msra.mxu0 %v497
  %678 = vmatprep.subr.bf16.mxu0 0
  %679 = vmatpush1.bf16.msra.mxu0 %v498
  %680 = vmatprep.subr.bf16.mxu0 0
  %681 = vmatpush1.bf16.msra.mxu0 %v499
  %682 = vmatprep.subr.bf16.mxu0 0
  %683 = vmatpush1.bf16.msra.mxu0 %v500
  %684 = vmatprep.subr.bf16.mxu0 0
  %685 = vmatpush1.bf16.msra.mxu0 %v501
  %686 = vmatprep.mubr.bf16.mxu0 %v257
  %687 = vmatmul.mubr.bf16.gmra.mrb[0].mxu0 %v256
  %v688 = vpop.f32.mrb[0].mxu0
  %v689 = vadd.f32 %v569, %v688
  %v690 = vpop.f32.mrb[0].mxu0
  %v691 = vpop.f32.mrb[0].mxu0
  %v692 = vadd.f32 %v572, %v691
  %v693 = vpop.f32.mrb[0].mxu0
  %694 = vmatprep.mubr.bf16.mxu0 %v261
  %695 = vmatmul.mubr.bf16.gmra.mrb[0].mxu0 %v260
  %v696 = vpop.f32.mrb[0].mxu0
  %v697 = vadd.f32 %v577, %v696
  %v698 = vpop.f32.mrb[0].mxu0
  %v699 = vpop.f32.mrb[0].mxu0
  %v700 = vadd.f32 %v580, %v699
  %v701 = vpop.f32.mrb[0].mxu0
  %702 = vmatprep.mubr.bf16.mxu0 %v265
  %703 = vmatmul.mubr.bf16.gmra.mrb[0].mxu0 %v264
  %v704 = vpop.f32.mrb[0].mxu0
  %v705 = vadd.f32 %v585, %v704
  %v706 = vpop.f32.mrb[0].mxu0
  %v707 = vpop.f32.mrb[0].mxu0
  %v708 = vadd.f32 %v588, %v707
  %v709 = vpop.f32.mrb[0].mxu0
  %710 = vmatprep.mubr.bf16.mxu0 %v269
  %711 = vmatmul.mubr.bf16.gmra.mrb[0].mxu0 %v268
  %v712 = vpop.f32.mrb[0].mxu0
  %v713 = vadd.f32 %v593, %v712
  %v714 = vpop.f32.mrb[0].mxu0
  %v715 = vpop.f32.mrb[0].mxu0
  %v716 = vadd.f32 %v596, %v715
  %v717 = vpop.f32.mrb[0].mxu0
  %718 = vmatprep.mubr.bf16.mxu0 %v273
  %719 = vmatmul.mubr.bf16.gmra.mrb[0].mxu0 %v272
  %v720 = vpop.f32.mrb[0].mxu0
  %v721 = vadd.f32 %v601, %v720
  %v722 = vpop.f32.mrb[0].mxu0
  %v723 = vpop.f32.mrb[0].mxu0
  %v724 = vadd.f32 %v604, %v723
  %v725 = vpop.f32.mrb[0].mxu0
  %726 = vmatprep.mubr.bf16.mxu0 %v277
  %727 = vmatmul.mubr.bf16.gmra.mrb[0].mxu0 %v276
  %v728 = vpop.f32.mrb[0].mxu0
  %v729 = vadd.f32 %v609, %v728
  %v730 = vpop.f32.mrb[0].mxu0
  %v731 = vpop.f32.mrb[0].mxu0
  %v732 = vadd.f32 %v612, %v731
  %v733 = vpop.f32.mrb[0].mxu0
  %734 = vmatprep.mubr.bf16.mxu0 %v281
  %735 = vmatmul.mubr.bf16.gmra.mrb[0].mxu0 %v280
  %v736 = vpop.f32.mrb[0].mxu0
  %v737 = vadd.f32 %v617, %v736
  %v738 = vpop.f32.mrb[0].mxu0
  %v739 = vpop.f32.mrb[0].mxu0
  %v740 = vadd.f32 %v620, %v739
  %v741 = vpop.f32.mrb[0].mxu0
  %742 = vmatprep.mubr.bf16.mxu0 %v285
  %743 = vmatmul.mubr.bf16.gmra.mrb[0].mxu0 %v284
  %v744 = vpop.f32.mrb[0].mxu0
  %v745 = vadd.f32 %v625, %v744
  %v746 = vpop.f32.mrb[0].mxu0
  %v747 = vpop.f32.mrb[0].mxu0
  %v748 = vadd.f32 %v628, %v747
  %v749 = vpop.f32.mrb[0].mxu0
  %750 = vmatprep.mubr.bf16.mxu0 %v289
  %751 = vmatmul.mubr.bf16.gmra.mrb[0].mxu0 %v288
  %v752 = vpop.f32.mrb[0].mxu0
  %v753 = vadd.f32 %v633, %v752
  %v754 = vpop.f32.mrb[0].mxu0
  %v755 = vpop.f32.mrb[0].mxu0
  %v756 = vadd.f32 %v636, %v755
  %v757 = vpop.f32.mrb[0].mxu0
  %758 = vmatprep.mubr.bf16.mxu0 %v293
  %759 = vmatmul.mubr.bf16.gmra.mrb[0].mxu0 %v292
  %v760 = vpop.f32.mrb[0].mxu0
  %v761 = vadd.f32 %v641, %v760
  %v762 = vpop.f32.mrb[0].mxu0
  %v763 = vpop.f32.mrb[0].mxu0
  %v764 = vadd.f32 %v644, %v763
  %v765 = vpop.f32.mrb[0].mxu0
  %766 = vmatprep.mubr.bf16.mxu0 %v297
  %767 = vmatmul.mubr.bf16.gmra.mrb[0].mxu0 %v296
  %v768 = vpop.f32.mrb[0].mxu0
  %v769 = vadd.f32 %v649, %v768
  %v770 = vpop.f32.mrb[0].mxu0
  %v771 = vpop.f32.mrb[0].mxu0
  %v772 = vpop.f32.mrb[0].mxu0
  %773 = vdwg.mxu0
  %v774 = vmax.f32 %v689, 0.0
  %v775 = vmax.f32 %v692, 0.0
  %v776 = vmax.f32 %v697, 0.0
  %v777 = vmax.f32 %v700, 0.0
  %v778 = vmax.f32 %v705, 0.0
  %v779 = vmax.f32 %v708, 0.0
  %v780 = vmax.f32 %v713, 0.0
  %v781 = vmax.f32 %v716, 0.0
  %v782 = vmax.f32 %v721, 0.0
  %v783 = vmax.f32 %v724, 0.0
  %v784 = vmax.f32 %v729, 0.0
  %v785 = vmax.f32 %v732, 0.0
  %v786 = vmax.f32 %v737, 0.0
  %v787 = vmax.f32 %v740, 0.0
  %v788 = vmax.f32 %v745, 0.0
  %v789 = vmax.f32 %v748, 0.0
  %v790 = vmax.f32 %v753, 0.0
  %v791 = vmax.f32 %v756, 0.0
  %v792 = vmax.f32 %v761, 0.0
  %v793 = vmax.f32 %v764, 0.0
  %v794 = vmax.f32 %v769, 0.0
  %v795 = vpack.c.bf16 %v775, %v774
  %v796 = vpack.c.bf16 %v777, %v776
  %v797 = vpack.c.bf16 %v779, %v778
  %v798 = vpack.c.bf16 %v781, %v780
  %v799 = vpack.c.bf16 %v783, %v782
  %v800 = vpack.c.bf16 %v785, %v784
  %v801 = vpack.c.bf16 %v787, %v786
  %v802 = vpack.c.bf16 %v789, %v788
  %v803 = vpack.c.bf16 %v791, %v790
  %v804 = vpack.c.bf16 %v793, %v792
  %v805 = vpack.c.bf16 %v794, %v794
  %v817 = vunpack.c.l.b16 %v795
  %v818 = vunpack.c.h.b16 %v795
  %v819 = vunpack.c.l.b16 %v796
  %v820 = vunpack.c.h.b16 %v796
  %v821 = vunpack.c.l.b16 %v797
  %v822 = vunpack.c.h.b16 %v797
  %v823 = vunpack.c.l.b16 %v798
  %v824 = vunpack.c.h.b16 %v798
  %v825 = vunpack.c.l.b16 %v799
  %v826 = vunpack.c.h.b16 %v799
  %v827 = vunpack.c.l.b16 %v800
  %v828 = vunpack.c.h.b16 %v800
  %v829 = vunpack.c.l.b16 %v801
  %v830 = vunpack.c.h.b16 %v801
  %v831 = vunpack.c.l.b16 %v802
  %v832 = vunpack.c.h.b16 %v802
  %v833 = vunpack.c.l.b16 %v803
  %v834 = vunpack.c.h.b16 %v803
  %v835 = vunpack.c.l.b16 %v804
  %v836 = vunpack.c.h.b16 %v804
  %v837 = vunpack.c.l.b16 %v805
  %v838 = vpack.c.b16 %v817, %v817
  %v839 = vpack.c.b16 %v818, %v818
  %v840 = vpack.c.b16 %v819, %v819
  %v841 = vpack.c.b16 %v820, %v820
  %v842 = vpack.c.b16 %v821, %v821
  %v843 = vpack.c.b16 %v822, %v822
  %v844 = vpack.c.b16 %v823, %v823
  %v845 = vpack.c.b16 %v824, %v824
  %v846 = vpack.c.b16 %v825, %v825
  %v847 = vpack.c.b16 %v826, %v826
  %v848 = vpack.c.b16 %v827, %v827
  %v849 = vpack.c.b16 %v828, %v828
  %v850 = vpack.c.b16 %v829, %v829
  %v851 = vpack.c.b16 %v830, %v830
  %v852 = vpack.c.b16 %v831, %v831
  %v853 = vpack.c.b16 %v832, %v832
  %v854 = vpack.c.b16 %v833, %v833
  %v855 = vpack.c.b16 %v834, %v834
  %v856 = vpack.c.b16 %v835, %v835
  %v857 = vpack.c.b16 %v836, %v836
  %v858 = vpack.c.b16 %v837, %v837
  %vm880 = vcmask 519168
  %881 = vst.msk [vmem:[%s3] sm:$0xf] %vm880, %v838
  %882 = vst.msk [vmem:[%s3 + $0x4] sm:$0xf] %vm880, %v839
  %883 = vst.msk [vmem:[%s3 + $0x8] sm:$0xf] %vm880, %v840
  %884 = vst.msk [vmem:[%s3 + $0xc] sm:$0xf] %vm880, %v841
  %885 = vst.msk [vmem:[%s3 + $0x10] sm:$0xf] %vm880, %v842
  %886 = vst.msk [vmem:[%s3 + $0x14] sm:$0xf] %vm880, %v843
  %887 = vst.msk [vmem:[%s3 + $0x18] sm:$0xf] %vm880, %v844
  %888 = vst.msk [vmem:[%s3 + $0x1c] sm:$0xf] %vm880, %v845
  %889 = vst.msk [vmem:[%s3 + $0x20] sm:$0xf] %vm880, %v846
  %890 = vst.msk [vmem:[%s3 + $0x24] sm:$0xf] %vm880, %v847
  %891 = vst.msk [vmem:[%s3 + $0x28] sm:$0xf] %vm880, %v848
  %892 = vst.msk [vmem:[%s3 + $0x2c] sm:$0xf] %vm880, %v849
  %893 = vst.msk [vmem:[%s3 + $0x30] sm:$0xf] %vm880, %v850
  %894 = vst.msk [vmem:[%s3 + $0x34] sm:$0xf] %vm880, %v851
  %895 = vst.msk [vmem:[%s3 + $0x38] sm:$0xf] %vm880, %v852
  %896 = vst.msk [vmem:[%s3 + $0x3c] sm:$0xf] %vm880, %v853
  %897 = vst.msk [vmem:[%s3 + $0x40] sm:$0xf] %vm880, %v854
  %898 = vst.msk [vmem:[%s3 + $0x44] sm:$0xf] %vm880, %v855
  %899 = vst.msk [vmem:[%s3 + $0x48] sm:$0xf] %vm880, %v856
  %900 = vst.msk [vmem:[%s3 + $0x4c] sm:$0xf] %vm880, %v857
  %vm901 = vcmask 516096
  %902 = vst.msk [vmem:[%s3 + $0x50] sm:$0x1] %vm901, %v858
  // Predicated region
  $region14: #{dqn_forward.5} parent=0 // pred_check
    _
  $region15: #{dqn_forward.5} parent=0 // pred_check_branch
    %904 = sbr.rel (0) target = $region17
  $region16: #{dqn_forward.5} parent=0 // pred_region
    _
  $region17: #{dqn_forward.5} parent=0 // pred_fallthru
    _
  // Predicated region
  $region18: #{dqn_forward.5} parent=0 // pred_check
    _
  $region19: #{dqn_forward.5} parent=0 // pred_check_branch
    %906 = sbr.rel (0) target = $region21
  $region20: #{dqn_forward.5} parent=0 // pred_region
    _
  $region21: #{dqn_forward.5} parent=0 // pred_fallthru
    _

// kernel: dqn_forward.6
$region0: #{dqn_forward.6}
  #allocation0 [shape = 'u32[]', space=smem, size = 0x4, offset = 0x4, fixed_abs, tag = 'smem constant byte address 0x4 - core index']
  #allocation1 [shape = 'u32[144,128]{1,0:T(1,128)}', space=vmem, size = 0x12000, scoped, tag = 'internal scratch']
  %s0 = inlined_call_operand.vmem [shape: bf16[98,576], index: 0, kind: input, shape index: {}]
  %s1 = inlined_call_operand.vmem [shape: bf16[576,64], index: 1, kind: input, shape index: {}]
  %s2 = inlined_call_operand.vmem [shape: f32[1,64], index: 2, kind: input, shape index: {}]
  %s3 = inlined_call_operand.vmem [shape: bf16[98,64], index: 3, kind: output, shape index: {}]
  %s4 = sld [smem:[#allocation0]]
  $region22: #{dqn_forward.6} parent=0
    _
  %s6 = ssub.s32 1, %s4
  %s7 = scalar_select 0, %s6, %s4
  // Predicated region
  $region2: #{dqn_forward.6} parent=0 // pred_check
    _
  $region3: #{dqn_forward.6} parent=0 // pred_check_branch
    %9 = sbr.rel (0) target = $region5
  $region4: #{dqn_forward.6} parent=0 // pred_region
    _
  $region5: #{dqn_forward.6} parent=0 // pred_fallthru
    _
  // Predicated region
  $region6: #{dqn_forward.6} parent=0 // pred_check
    _
  $region7: #{dqn_forward.6} parent=0 // pred_check_branch
    %11 = sbr.rel (0) target = $region9
  $region8: #{dqn_forward.6} parent=0 // pred_region
    _
  $region9: #{dqn_forward.6} parent=0 // pred_fallthru
    _
  // Predicated region
  $region10: #{dqn_forward.6} parent=0 // pred_check
    _
  $region11: #{dqn_forward.6} parent=0 // pred_check_branch
    %13 = sbr.rel (0) target = $region13
  $region12: #{dqn_forward.6} parent=0 // pred_region
    _
  $region13: #{dqn_forward.6} parent=0 // pred_fallthru
    _
  %v15 = vld [vmem:[%s0] sm:$0xff]
  %v16 = vld [vmem:[%s0 + $0x8] sm:$0xff]
  %v17 = vld [vmem:[%s0 + $0x10] sm:$0xf]
  %v18 = vld [vmem:[%s0 + $0x14] sm:$0xff]
  %v19 = vld [vmem:[%s0 + $0x1c] sm:$0xff]
  %v20 = vld [vmem:[%s0 + $0x24] sm:$0xf]
  %v21 = vld [vmem:[%s0 + $0x28] sm:$0xff]
  %v22 = vld [vmem:[%s0 + $0x30] sm:$0xff]
  %v23 = vld [vmem:[%s0 + $0x38] sm:$0xf]
  %v24 = vld [vmem:[%s0 + $0x3c] sm:$0xff]
  %v25 = vld [vmem:[%s0 + $0x44] sm:$0xff]
  %v26 = vld [vmem:[%s0 + $0x4c] sm:$0xf]
  %v27 = vld [vmem:[%s0 + $0x50] sm:$0xff]
  %v28 = vld [vmem:[%s0 + $0x58] sm:$0xff]
  %v29 = vld [vmem:[%s0 + $0x60] sm:$0xf]
  %v30 = vld [vmem:[%s0 + $0x64] sm:$0xff]
  %v31 = vld [vmem:[%s0 + $0x6c] sm:$0xff]
  %v32 = vld [vmem:[%s0 + $0x74] sm:$0xf]
  %v33 = vld [vmem:[%s0 + $0x78] sm:$0xff]
  %v34 = vld [vmem:[%s0 + $0x80] sm:$0xff]
  %v35 = vld [vmem:[%s0 + $0x88] sm:$0xf]
  %v36 = vld [vmem:[%s0 + $0x8c] sm:$0xff]
  %v37 = vld [vmem:[%s0 + $0x94] sm:$0xff]
  %v38 = vld [vmem:[%s0 + $0x9c] sm:$0xf]
  %v39 = vld [vmem:[%s0 + $0xa0] sm:$0xff]
  %v40 = vld [vmem:[%s0 + $0xa8] sm:$0xff]
  %v41 = vld [vmem:[%s0 + $0xb0] sm:$0xf]
  %v42 = vld [vmem:[%s0 + $0xb4] sm:$0xff]
  %v43 = vld [vmem:[%s0 + $0xbc] sm:$0xff]
  %v44 = vld [vmem:[%s0 + $0xc4] sm:$0xf]
  %v45 = vld [vmem:[%s0 + $0xc8] sm:$0xff]
  %v46 = vld [vmem:[%s0 + $0xd0] sm:$0xff]
  %v47 = vld [vmem:[%s0 + $0xd8] sm:$0xf]
  %v48 = vld [vmem:[%s0 + $0xdc] sm:$0xff]
  %v49 = vld [vmem:[%s0 + $0xe4] sm:$0xff]
  %v50 = vld [vmem:[%s0 + $0xec] sm:$0xf]
  %v51 = vld [vmem:[%s0 + $0xf0] sm:$0x11]
  %v52 = vld [vmem:[%s0 + $0xf8] sm:$0x11]
  %v53 = vld [vmem:[%s0 + $0x100] sm:$0x1]
  %v54 = vld [vmem:[%s1] sm:$0xf]
  %v55 = vld [vmem:[%s1 + $0x4] sm:$0xf]
  %v56 = vld [vmem:[%s1 + $0x8] sm:$0xf]
  %v57 = vld [vmem:[%s1 + $0xc] sm:$0xf]
  %v58 = vld [vmem:[%s1 + $0x10] sm:$0xf]
  %v59 = vld [vmem:[%s1 + $0x14] sm:$0xf]
  %v60 = vld [vmem:[%s1 + $0x18] sm:$0xf]
  %v61 = vld [vmem:[%s1 + $0x1c] sm:$0xf]
  %v62 = vld [vmem:[%s1 + $0x20] sm:$0xf]
  %v63 = vld [vmem:[%s1 + $0x24] sm:$0xf]
  %v64 = vld [vmem:[%s1 + $0x28] sm:$0xf]
  %v65 = vld [vmem:[%s1 + $0x2c] sm:$0xf]
  %v66 = vld [vmem:[%s1 + $0x30] sm:$0xf]
  %v67 = vld [vmem:[%s1 + $0x34] sm:$0xf]
  %v68 = vld [vmem:[%s1 + $0x38] sm:$0xf]
  %v69 = vld [vmem:[%s1 + $0x3c] sm:$0xf]
  %v70 = vld [vmem:[%s1 + $0x40] sm:$0xf]
  %v71 = vld [vmem:[%s1 + $0x44] sm:$0xf]
  %v72 = vld [vmem:[%s1 + $0x48] sm:$0xf]
  %v73 = vld [vmem:[%s1 + $0x4c] sm:$0xf]
  %v74 = vld [vmem:[%s1 + $0x50] sm:$0xf]
  %v75 = vld [vmem:[%s1 + $0x54] sm:$0xf]
  %v76 = vld [vmem:[%s1 + $0x58] sm:$0xf]
  %v77 = vld [vmem:[%s1 + $0x5c] sm:$0xf]
  %v78 = vld [vmem:[%s1 + $0x60] sm:$0xf]
  %v79 = vld [vmem:[%s1 + $0x64] sm:$0xf]
  %v80 = vld [vmem:[%s1 + $0x68] sm:$0xf]
  %v81 = vld [vmem:[%s1 + $0x6c] sm:$0xf]
  %v82 = vld [vmem:[%s1 + $0x70] sm:$0xf]
  %v83 = vld [vmem:[%s1 + $0x74] sm:$0xf]
  %v84 = vld [vmem:[%s1 + $0x78] sm:$0xf]
  %v85 = vld [vmem:[%s1 + $0x7c] sm:$0xf]
  %v86 = vld [vmem:[%s1 + $0x80] sm:$0xf]
  %v87 = vld [vmem:[%s1 + $0x84] sm:$0xf]
  %v88 = vld [vmem:[%s1 + $0x88] sm:$0xf]
  %v89 = vld [vmem:[%s1 + $0x8c] sm:$0xf]
  %v90 = vld [vmem:[%s1 + $0x90] sm:$0xf]
  %v91 = vld [vmem:[%s1 + $0x94] sm:$0xf]
  %v92 = vld [vmem:[%s1 + $0x98] sm:$0xf]
  %v93 = vld [vmem:[%s1 + $0x9c] sm:$0xf]
  %v94 = vld [vmem:[%s1 + $0xa0] sm:$0xf]
  %v95 = vld [vmem:[%s1 + $0xa4] sm:$0xf]
  %v96 = vld [vmem:[%s1 + $0xa8] sm:$0xf]
  %v97 = vld [vmem:[%s1 + $0xac] sm:$0xf]
  %v98 = vld [vmem:[%s1 + $0xb0] sm:$0xf]
  %v99 = vld [vmem:[%s1 + $0xb4] sm:$0xf]
  %v100 = vld [vmem:[%s1 + $0xb8] sm:$0xf]
  %v101 = vld [vmem:[%s1 + $0xbc] sm:$0xf]
  %v102 = vld [vmem:[%s1 + $0xc0] sm:$0xf]
  %v103 = vld [vmem:[%s1 + $0xc4] sm:$0xf]
  %v104 = vld [vmem:[%s1 + $0xc8] sm:$0xf]
  %v105 = vld [vmem:[%s1 + $0xcc] sm:$0xf]
  %v106 = vld [vmem:[%s1 + $0xd0] sm:$0xf]
  %v107 = vld [vmem:[%s1 + $0xd4] sm:$0xf]
  %v108 = vld [vmem:[%s1 + $0xd8] sm:$0xf]
  %v109 = vld [vmem:[%s1 + $0xdc] sm:$0xf]
  %v110 = vld [vmem:[%s1 + $0xe0] sm:$0xf]
  %v111 = vld [vmem:[%s1 + $0xe4] sm:$0xf]
  %v112 = vld [vmem:[%s1 + $0xe8] sm:$0xf]
  %v113 = vld [vmem:[%s1 + $0xec] sm:$0xf]
  %v114 = vld [vmem:[%s1 + $0xf0] sm:$0xf]
  %v115 = vld [vmem:[%s1 + $0xf4] sm:$0xf]
  %v116 = vld [vmem:[%s1 + $0xf8] sm:$0xf]
  %v117 = vld [vmem:[%s1 + $0xfc] sm:$0xf]
  %v118 = vld [vmem:[%s1 + $0x100] sm:$0xf]
  %v119 = vld [vmem:[%s1 + $0x104] sm:$0xf]
  %v120 = vld [vmem:[%s1 + $0x108] sm:$0xf]
  %v121 = vld [vmem:[%s1 + $0x10c] sm:$0xf]
  %v122 = vld [vmem:[%s1 + $0x110] sm:$0xf]
  %v123 = vld [vmem:[%s1 + $0x114] sm:$0xf]
  %v124 = vld [vmem:[%s1 + $0x118] sm:$0xf]
  %v125 = vld [vmem:[%s1 + $0x11c] sm:$0xf]
  %v126 = vld [vmem:[%s2] sm:$0x1]
  %v128 = vlaneseq
  %v129 = vshrl.u32 %v128, 7
  %v130 = vsub.s32 0, %v129
  %v131 = vrot.slane %v126, %v130
  %v172 = vunpack.c.l.b16 %v15
  %v173 = vunpack.c.h.b16 %v15
  %v174 = vunpack.c.l.b16 %v16
  %v175 = vunpack.c.h.b16 %v16
  %v176 = vunpack.c.l.b16 %v17
  %v177 = vunpack.c.l.b16 %v18
  %v178 = vunpack.c.h.b16 %v18
  %v179 = vunpack.c.l.b16 %v19
  %v180 = vunpack.c.h.b16 %v19
  %v181 = vunpack.c.l.b16 %v20
  %v182 = vunpack.c.l.b16 %v21
  %v183 = vunpack.c.h.b16 %v21
  %v184 = vunpack.c.l.b16 %v22
  %v185 = vunpack.c.h.b16 %v22
  %v186 = vunpack.c.l.b16 %v23
  %v187 = vunpack.c.l.b16 %v24
  %v188 = vunpack.c.h.b16 %v24
  %v189 = vunpack.c.l.b16 %v25
  %v190 = vunpack.c.h.b16 %v25
  %v191 = vunpack.c.l.b16 %v26
  %v192 = vunpack.c.l.b16 %v27
  %v193 = vunpack.c.h.b16 %v27
  %v194 = vunpack.c.l.b16 %v28
  %v195 = vunpack.c.h.b16 %v28
  %v196 = vunpack.c.l.b16 %v29
  %v197 = vunpack.c.l.b16 %v30
  %v198 = vunpack.c.h.b16 %v30
  %v199 = vunpack.c.l.b16 %v31
  %v200 = vunpack.c.h.b16 %v31
  %v201 = vunpack.c.l.b16 %v32
  %v202 = vunpack.c.l.b16 %v33
  %v203 = vunpack.c.h.b16 %v33
  %v204 = vunpack.c.l.b16 %v34
  %v205 = vunpack.c.h.b16 %v34
  %v206 = vunpack.c.l.b16 %v35
  %v207 = vunpack.c.l.b16 %v36
  %v208 = vunpack.c.h.b16 %v36
  %v209 = vunpack.c.l.b16 %v37
  %v210 = vunpack.c.h.b16 %v37
  %v211 = vunpack.c.l.b16 %v38
  %v212 = vunpack.c.l.b16 %v39
  %v213 = vunpack.c.h.b16 %v39
  %v214 = vunpack.c.l.b16 %v40
  %v215 = vunpack.c.h.b16 %v40
  %v216 = vunpack.c.l.b16 %v41
  %v217 = vunpack.c.l.b16 %v42
  %v218 = vunpack.c.h.b16 %v42
  %v219 = vunpack.c.l.b16 %v43
  %v220 = vunpack.c.h.b16 %v43
  %v221 = vunpack.c.l.b16 %v44
  %v222 = vunpack.c.l.b16 %v45
  %v223 = vunpack.c.h.b16 %v45
  %v224 = vunpack.c.l.b16 %v46
  %v225 = vunpack.c.h.b16 %v46
  %v226 = vunpack.c.l.b16 %v47
  %v227 = vunpack.c.l.b16 %v48
  %v228 = vunpack.c.h.b16 %v48
  %v229 = vunpack.c.l.b16 %v49
  %v230 = vunpack.c.h.b16 %v49
  %v231 = vunpack.c.l.b16 %v50
  %v232 = vunpack.c.l.b16 %v51
  %v233 = vunpack.c.h.b16 %v51
  %v234 = vunpack.c.l.b16 %v52
  %v235 = vunpack.c.h.b16 %v52
  %v236 = vunpack.c.l.b16 %v53
  %v237 = vpack.c.b16 %v177, %v172
  %v238 = vpack.c.b16 %v178, %v173
  %v239 = vpack.c.b16 %v179, %v174
  %v240 = vpack.c.b16 %v180, %v175
  %v241 = vpack.c.b16 %v181, %v176
  %v242 = vpack.c.b16 %v187, %v182
  %v243 = vpack.c.b16 %v188, %v183
  %v244 = vpack.c.b16 %v189, %v184
  %v245 = vpack.c.b16 %v190, %v185
  %v246 = vpack.c.b16 %v191, %v186
  %v247 = vpack.c.b16 %v197, %v192
  %v248 = vpack.c.b16 %v198, %v193
  %v249 = vpack.c.b16 %v199, %v194
  %v250 = vpack.c.b16 %v200, %v195
  %v251 = vpack.c.b16 %v201, %v196
  %v252 = vpack.c.b16 %v207, %v202
  %v253 = vpack.c.b16 %v208, %v203
  %v254 = vpack.c.b16 %v209, %v204
  %v255 = vpack.c.b16 %v210, %v205
  %v256 = vpack.c.b16 %v211, %v206
  %v257 = vpack.c.b16 %v217, %v212
  %v258 = vpack.c.b16 %v218, %v213
  %v259 = vpack.c.b16 %v219, %v214
  %v260 = vpack.c.b16 %v220, %v215
  %v261 = vpack.c.b16 %v221, %v216
  %v262 = vpack.c.b16 %v227, %v222
  %v263 = vpack.c.b16 %v228, %v223
  %v264 = vpack.c.b16 %v229, %v224
  %v265 = vpack.c.b16 %v230, %v225
  %v266 = vpack.c.b16 %v231, %v226
  %v267 = vpack.c.b16 %v232, %v232
  %v268 = vpack.c.b16 %v233, %v233
  %v269 = vpack.c.b16 %v234, %v234
  %v270 = vpack.c.b16 %v235, %v235
  %v271 = vpack.c.b16 %v236, %v236
  %v372 = vunpack.c.l.b16 %v54
  %v373 = vunpack.c.l.b16 %v55
  %v374 = vunpack.c.l.b16 %v56
  %v375 = vunpack.c.l.b16 %v57
  %v376 = vunpack.c.l.b16 %v58
  %v377 = vunpack.c.l.b16 %v59
  %v378 = vunpack.c.l.b16 %v60
  %v379 = vunpack.c.l.b16 %v61
  %v380 = vunpack.c.l.b16 %v62
  %v381 = vunpack.c.l.b16 %v63
  %v382 = vunpack.c.l.b16 %v64
  %v383 = vunpack.c.l.b16 %v65
  %v384 = vunpack.c.l.b16 %v66
  %v385 = vunpack.c.l.b16 %v67
  %v386 = vunpack.c.l.b16 %v68
  %v387 = vunpack.c.l.b16 %v69
  %v388 = vunpack.c.l.b16 %v70
  %v389 = vunpack.c.l.b16 %v71
  %v390 = vunpack.c.l.b16 %v72
  %v391 = vunpack.c.l.b16 %v73
  %v392 = vunpack.c.l.b16 %v74
  %v393 = vunpack.c.l.b16 %v75
  %v394 = vunpack.c.l.b16 %v76
  %v395 = vunpack.c.l.b16 %v77
  %v396 = vunpack.c.l.b16 %v78
  %v397 = vunpack.c.l.b16 %v79
  %v398 = vunpack.c.l.b16 %v80
  %v399 = vunpack.c.l.b16 %v81
  %v400 = vunpack.c.l.b16 %v82
  %v401 = vunpack.c.l.b16 %v83
  %v402 = vunpack.c.l.b16 %v84
  %v403 = vunpack.c.l.b16 %v85
  %v404 = vunpack.c.l.b16 %v86
  %v405 = vunpack.c.l.b16 %v87
  %v406 = vunpack.c.l.b16 %v88
  %v407 = vunpack.c.l.b16 %v89
  %v408 = vunpack.c.l.b16 %v90
  %v409 = vunpack.c.l.b16 %v91
  %v410 = vunpack.c.l.b16 %v92
  %v411 = vunpack.c.l.b16 %v93
  %v412 = vunpack.c.l.b16 %v94
  %v413 = vunpack.c.l.b16 %v95
  %v414 = vunpack.c.l.b16 %v96
  %v415 = vunpack.c.l.b16 %v97
  %v416 = vunpack.c.l.b16 %v98
  %v417 = vunpack.c.l.b16 %v99
  %v418 = vunpack.c.l.b16 %v100
  %v419 = vunpack.c.l.b16 %v101
  %v420 = vunpack.c.l.b16 %v102
  %v421 = vunpack.c.l.b16 %v103
  %v422 = vunpack.c.l.b16 %v104
  %v423 = vunpack.c.l.b16 %v105
  %v424 = vunpack.c.l.b16 %v106
  %v425 = vunpack.c.l.b16 %v107
  %v426 = vunpack.c.l.b16 %v108
  %v427 = vunpack.c.l.b16 %v109
  %v428 = vunpack.c.l.b16 %v110
  %v429 = vunpack.c.l.b16 %v111
  %v430 = vunpack.c.l.b16 %v112
  %v431 = vunpack.c.l.b16 %v113
  %v432 = vunpack.c.l.b16 %v114
  %v433 = vunpack.c.l.b16 %v115
  %v434 = vunpack.c.l.b16 %v116
  %v435 = vunpack.c.l.b16 %v117
  %v436 = vunpack.c.l.b16 %v118
  %v437 = vunpack.c.l.b16 %v119
  %v438 = vunpack.c.l.b16 %v120
  %v439 = vunpack.c.l.b16 %v121
  %v440 = vunpack.c.l.b16 %v122
  %v441 = vunpack.c.l.b16 %v123
  %v442 = vunpack.c.l.b16 %v124
  %v443 = vunpack.c.l.b16 %v125
  %v444 = vpack.c.b16 %v373, %v372
  %v445 = vpack.c.b16 %v375, %v374
  %v446 = vpack.c.b16 %v377, %v376
  %v447 = vpack.c.b16 %v379, %v378
  %v448 = vpack.c.b16 %v381, %v380
  %v449 = vpack.c.b16 %v383, %v382
  %v450 = vpack.c.b16 %v385, %v384
  %v451 = vpack.c.b16 %v387, %v386
  %v452 = vpack.c.b16 %v389, %v388
  %v453 = vpack.c.b16 %v391, %v390
  %v454 = vpack.c.b16 %v393, %v392
  %v455 = vpack.c.b16 %v395, %v394
  %v456 = vpack.c.b16 %v397, %v396
  %v457 = vpack.c.b16 %v399, %v398
  %v458 = vpack.c.b16 %v401, %v400
  %v459 = vpack.c.b16 %v403, %v402
  %v460 = vpack.c.b16 %v405, %v404
  %v461 = vpack.c.b16 %v407, %v406
  %v462 = vpack.c.b16 %v409, %v408
  %v463 = vpack.c.b16 %v411, %v410
  %v464 = vpack.c.b16 %v413, %v412
  %v465 = vpack.c.b16 %v415, %v414
  %v466 = vpack.c.b16 %v417, %v416
  %v467 = vpack.c.b16 %v419, %v418
  %v468 = vpack.c.b16 %v421, %v420
  %v469 = vpack.c.b16 %v423, %v422
  %v470 = vpack.c.b16 %v425, %v424
  %v471 = vpack.c.b16 %v427, %v426
  %v472 = vpack.c.b16 %v429, %v428
  %v473 = vpack.c.b16 %v431, %v430
  %v474 = vpack.c.b16 %v433, %v432
  %v475 = vpack.c.b16 %v435, %v434
  %v476 = vpack.c.b16 %v437, %v436
  %v477 = vpack.c.b16 %v439, %v438
  %v478 = vpack.c.b16 %v441, %v440
  %v479 = vpack.c.b16 %v443, %v442
  %vm516 = vcmask 523264
  %v518 = vsel %vm516, %v241, 0
  %v521 = vsel %vm516, %v246, 0
  %v524 = vsel %vm516, %v251, 0
  %v527 = vsel %vm516, %v256, 0
  %v530 = vsel %vm516, %v261, 0
  %v533 = vsel %vm516, %v266, 0
  %v536 = vsel %vm516, %v271, 0
  %538 = vmatprep.subr.bf16.mxu0 0
  %539 = vmatpush1.bf16.msra.mxu0 %v444
  %540 = vmatprep.subr.bf16.mxu0 0
  %541 = vmatpush1.bf16.msra.mxu0 %v445
  %542 = vmatprep.subr.bf16.mxu0 0
  %543 = vmatpush1.bf16.msra.mxu0 %v446
  %544 = vmatprep.subr.bf16.mxu0 0
  %545 = vmatpush1.bf16.msra.mxu0 %v447
  %546 = vmatprep.subr.bf16.mxu0 0
  %547 = vmatpush1.bf16.msra.mxu0 %v448
  %548 = vmatprep.subr.bf16.mxu0 0
  %549 = vmatpush1.bf16.msra.mxu0 %v449
  %550 = vmatprep.subr.bf16.mxu0 0
  %551 = vmatpush1.bf16.msra.mxu0 %v450
  %552 = vmatprep.subr.bf16.mxu0 0
  %553 = vmatpush1.bf16.msra.mxu0 %v451
  %554 = vmatprep.subr.bf16.mxu0 0
  %555 = vmatpush1.bf16.msra.mxu0 %v452
  %556 = vmatprep.subr.bf16.mxu0 0
  %557 = vmatpush1.bf16.msra.mxu0 %v453
  %558 = vmatprep.subr.bf16.mxu0 0
  %559 = vmatpush1.bf16.msra.mxu0 %v454
  %560 = vmatprep.subr.bf16.mxu0 0
  %561 = vmatpush1.bf16.msra.mxu0 %v455
  %562 = vmatprep.subr.bf16.mxu0 0
  %563 = vmatpush1.bf16.msra.mxu0 %v456
  %564 = vmatprep.subr.bf16.mxu0 0
  %565 = vmatpush1.bf16.msra.mxu0 %v457
  %566 = vmatprep.subr.bf16.mxu0 0
  %567 = vmatpush1.bf16.msra.mxu0 %v458
  %568 = vmatprep.subr.bf16.mxu0 0
  %569 = vmatpush1.bf16.msra.mxu0 %v459
  %570 = vmatprep.mubr.bf16.mxu0 %v238
  %571 = vmatmul.mubr.bf16.gmra.mrb[0].mxu0 %v237
  %v572 = vpop.f32.mrb[0].mxu0
  %v573 = vadd.f32 %v131, %v572
  %v574 = vpop.f32.mrb[0].mxu0
  %v575 = vpop.f32.mrb[0].mxu0
  %v576 = vadd.f32 %v131, %v575
  %v577 = vpop.f32.mrb[0].mxu0
  %578 = vmatprep.mubr.bf16.mxu0 %v243
  %579 = vmatmul.mubr.bf16.gmra.mrb[0].mxu0 %v242
  %v580 = vpop.f32.mrb[0].mxu0
  %v581 = vadd.f32 %v131, %v580
  %v582 = vpop.f32.mrb[0].mxu0
  %v583 = vpop.f32.mrb[0].mxu0
  %v584 = vadd.f32 %v131, %v583
  %v585 = vpop.f32.mrb[0].mxu0
  %586 = vmatprep.mubr.bf16.mxu0 %v248
  %587 = vmatmul.mubr.bf16.gmra.mrb[0].mxu0 %v247
  %v588 = vpop.f32.mrb[0].mxu0
  %v589 = vadd.f32 %v131, %v588
  %v590 = vpop.f32.mrb[0].mxu0
  %v591 = vpop.f32.mrb[0].mxu0
  %v592 = vadd.f32 %v131, %v591
  %v593 = vpop.f32.mrb[0].mxu0
  %594 = vmatprep.mubr.bf16.mxu0 %v253
  %595 = vmatmul.mubr.bf16.gmra.mrb[0].mxu0 %v252
  %v596 = vpop.f32.mrb[0].mxu0
  %v597 = vadd.f32 %v131, %v596
  %v598 = vpop.f32.mrb[0].mxu0
  %v599 = vpop.f32.mrb[0].mxu0
  %v600 = vadd.f32 %v131, %v599
  %v601 = vpop.f32.mrb[0].mxu0
  %602 = vmatprep.mubr.bf16.mxu0 %v258
  %603 = vmatmul.mubr.bf16.gmra.mrb[0].mxu0 %v257
  %v604 = vpop.f32.mrb[0].mxu0
  %v605 = vadd.f32 %v131, %v604
  %v606 = vpop.f32.mrb[0].mxu0
  %v607 = vpop.f32.mrb[0].mxu0
  %v608 = vadd.f32 %v131, %v607
  %v609 = vpop.f32.mrb[0].mxu0
  %610 = vmatprep.mubr.bf16.mxu0 %v263
  %611 = vmatmul.mubr.bf16.gmra.mrb[0].mxu0 %v262
  %v612 = vpop.f32.mrb[0].mxu0
  %v613 = vadd.f32 %v131, %v612
  %v614 = vpop.f32.mrb[0].mxu0
  %v615 = vpop.f32.mrb[0].mxu0
  %v616 = vadd.f32 %v131, %v615
  %v617 = vpop.f32.mrb[0].mxu0
  %618 = vmatprep.mubr.bf16.mxu0 %v268
  %619 = vmatmul.mubr.bf16.gmra.mrb[0].mxu0 %v267
  %v620 = vpop.f32.mrb[0].mxu0
  %v621 = vadd.f32 %v131, %v620
  %v622 = vpop.f32.mrb[0].mxu0
  %v623 = vpop.f32.mrb[0].mxu0
  %v624 = vpop.f32.mrb[0].mxu0
  %625 = vdwg.mxu0
  %626 = vmatprep.subr.bf16.mxu0 0
  %627 = vmatpush1.bf16.msra.mxu0 %v460
  %628 = vmatprep.subr.bf16.mxu0 0
  %629 = vmatpush1.bf16.msra.mxu0 %v461
  %630 = vmatprep.subr.bf16.mxu0 0
  %631 = vmatpush1.bf16.msra.mxu0 %v462
  %632 = vmatprep.subr.bf16.mxu0 0
  %633 = vmatpush1.bf16.msra.mxu0 %v463
  %634 = vmatprep.subr.bf16.mxu0 0
  %635 = vmatpush1.bf16.msra.mxu0 %v464
  %636 = vmatprep.subr.bf16.mxu0 0
  %637 = vmatpush1.bf16.msra.mxu0 %v465
  %638 = vmatprep.subr.bf16.mxu0 0
  %639 = vmatpush1.bf16.msra.mxu0 %v466
  %640 = vmatprep.subr.bf16.mxu0 0
  %641 = vmatpush1.bf16.msra.mxu0 %v467
  %642 = vmatprep.subr.bf16.mxu0 0
  %643 = vmatpush1.bf16.msra.mxu0 %v468
  %644 = vmatprep.subr.bf16.mxu0 0
  %645 = vmatpush1.bf16.msra.mxu0 %v469
  %646 = vmatprep.subr.bf16.mxu0 0
  %647 = vmatpush1.bf16.msra.mxu0 %v470
  %648 = vmatprep.subr.bf16.mxu0 0
  %649 = vmatpush1.bf16.msra.mxu0 %v471
  %650 = vmatprep.subr.bf16.mxu0 0
  %651 = vmatpush1.bf16.msra.mxu0 %v472
  %652 = vmatprep.subr.bf16.mxu0 0
  %653 = vmatpush1.bf16.msra.mxu0 %v473
  %654 = vmatprep.subr.bf16.mxu0 0
  %655 = vmatpush1.bf16.msra.mxu0 %v474
  %656 = vmatprep.subr.bf16.mxu0 0
  %657 = vmatpush1.bf16.msra.mxu0 %v475
  %658 = vmatprep.mubr.bf16.mxu0 %v240
  %659 = vmatmul.mubr.bf16.gmra.mrb[0].mxu0 %v239
  %v660 = vpop.f32.mrb[0].mxu0
  %v661 = vadd.f32 %v573, %v660
  %v662 = vpop.f32.mrb[0].mxu0
  %v663 = vpop.f32.mrb[0].mxu0
  %v664 = vadd.f32 %v576, %v663
  %v665 = vpop.f32.mrb[0].mxu0
  %666 = vmatprep.mubr.bf16.mxu0 %v245
  %667 = vmatmul.mubr.bf16.gmra.mrb[0].mxu0 %v244
  %v668 = vpop.f32.mrb[0].mxu0
  %v669 = vadd.f32 %v581, %v668
  %v670 = vpop.f32.mrb[0].mxu0
  %v671 = vpop.f32.mrb[0].mxu0
  %v672 = vadd.f32 %v584, %v671
  %v673 = vpop.f32.mrb[0].mxu0
  %674 = vmatprep.mubr.bf16.mxu0 %v250
  %675 = vmatmul.mubr.bf16.gmra.mrb[0].mxu0 %v249
  %v676 = vpop.f32.mrb[0].mxu0
  %v677 = vadd.f32 %v589, %v676
  %v678 = vpop.f32.mrb[0].mxu0
  %v679 = vpop.f32.mrb[0].mxu0
  %v680 = vadd.f32 %v592, %v679
  %v681 = vpop.f32.mrb[0].mxu0
  %682 = vmatprep.mubr.bf16.mxu0 %v255
  %683 = vmatmul.mubr.bf16.gmra.mrb[0].mxu0 %v254
  %v684 = vpop.f32.mrb[0].mxu0
  %v685 = vadd.f32 %v597, %v684
  %v686 = vpop.f32.mrb[0].mxu0
  %v687 = vpop.f32.mrb[0].mxu0
  %v688 = vadd.f32 %v600, %v687
  %v689 = vpop.f32.mrb[0].mxu0
  %690 = vmatprep.mubr.bf16.mxu0 %v260
  %691 = vmatmul.mubr.bf16.gmra.mrb[0].mxu0 %v259
  %v692 = vpop.f32.mrb[0].mxu0
  %v693 = vadd.f32 %v605, %v692
  %v694 = vpop.f32.mrb[0].mxu0
  %v695 = vpop.f32.mrb[0].mxu0
  %v696 = vadd.f32 %v608, %v695
  %v697 = vpop.f32.mrb[0].mxu0
  %698 = vmatprep.mubr.bf16.mxu0 %v265
  %699 = vmatmul.mubr.bf16.gmra.mrb[0].mxu0 %v264
  %v700 = vpop.f32.mrb[0].mxu0
  %v701 = vadd.f32 %v613, %v700
  %v702 = vpop.f32.mrb[0].mxu0
  %v703 = vpop.f32.mrb[0].mxu0
  %v704 = vadd.f32 %v616, %v703
  %v705 = vpop.f32.mrb[0].mxu0
  %706 = vmatprep.mubr.bf16.mxu0 %v270
  %707 = vmatmul.mubr.bf16.gmra.mrb[0].mxu0 %v269
  %v708 = vpop.f32.mrb[0].mxu0
  %v709 = vadd.f32 %v621, %v708
  %v710 = vpop.f32.mrb[0].mxu0
  %v711 = vpop.f32.mrb[0].mxu0
  %v712 = vpop.f32.mrb[0].mxu0
  %713 = vdwg.mxu0
  %714 = vmatprep.subr.bf16.mxu0 0
  %715 = vmatpush1.bf16.msra.mxu0 %v476
  %716 = vmatprep.subr.bf16.mxu0 0
  %717 = vmatpush1.bf16.msra.mxu0 %v477
  %718 = vmatprep.subr.bf16.mxu0 0
  %719 = vmatpush1.bf16.msra.mxu0 %v478
  %720 = vmatprep.subr.bf16.mxu0 0
  %721 = vmatpush1.bf16.msra.mxu0 %v479
  %722 = vmatprep.subr.bf16.mxu0 0
  %723 = vmatpush1.bf16.msra.mxu0 0
  %724 = vmatprep.subr.bf16.mxu0 0
  %725 = vmatpush1.bf16.msra.mxu0 0
  %726 = vmatprep.subr.bf16.mxu0 0
  %727 = vmatpush1.bf16.msra.mxu0 0
  %728 = vmatprep.subr.bf16.mxu0 0
  %729 = vmatpush1.bf16.msra.mxu0 0
  %730 = vmatprep.subr.bf16.mxu0 0
  %731 = vmatpush1.bf16.msra.mxu0 0
  %732 = vmatprep.subr.bf16.mxu0 0
  %733 = vmatpush1.bf16.msra.mxu0 0
  %734 = vmatprep.subr.bf16.mxu0 0
  %735 = vmatpush1.bf16.msra.mxu0 0
  %736 = vmatprep.subr.bf16.mxu0 0
  %737 = vmatpush1.bf16.msra.mxu0 0
  %738 = vmatprep.subr.bf16.mxu0 0
  %739 = vmatpush1.bf16.msra.mxu0 0
  %740 = vmatprep.subr.bf16.mxu0 0
  %741 = vmatpush1.bf16.msra.mxu0 0
  %742 = vmatprep.subr.bf16.mxu0 0
  %743 = vmatpush1.bf16.msra.mxu0 0
  %744 = vmatprep.subr.bf16.mxu0 0
  %745 = vmatpush1.bf16.msra.mxu0 0
  %746 = vmatprep.mubr.bf16.mxu0 0
  %747 = vmatmul.mubr.bf16.gmra.mrb[0].mxu0 %v518
  %v748 = vpop.f32.mrb[0].mxu0
  %v749 = vadd.f32 %v661, %v748
  %v750 = vpop.f32.mrb[0].mxu0
  %v751 = vpop.f32.mrb[0].mxu0
  %v752 = vadd.f32 %v664, %v751
  %v753 = vpop.f32.mrb[0].mxu0
  %754 = vmatprep.mubr.bf16.mxu0 0
  %755 = vmatmul.mubr.bf16.gmra.mrb[0].mxu0 %v521
  %v756 = vpop.f32.mrb[0].mxu0
  %v757 = vadd.f32 %v669, %v756
  %v758 = vpop.f32.mrb[0].mxu0
  %v759 = vpop.f32.mrb[0].mxu0
  %v760 = vadd.f32 %v672, %v759
  %v761 = vpop.f32.mrb[0].mxu0
  %762 = vmatprep.mubr.bf16.mxu0 0
  %763 = vmatmul.mubr.bf16.gmra.mrb[0].mxu0 %v524
  %v764 = vpop.f32.mrb[0].mxu0
  %v765 = vadd.f32 %v677, %v764
  %v766 = vpop.f32.mrb[0].mxu0
  %v767 = vpop.f32.mrb[0].mxu0
  %v768 = vadd.f32 %v680, %v767
  %v769 = vpop.f32.mrb[0].mxu0
  %770 = vmatprep.mubr.bf16.mxu0 0
  %771 = vmatmul.mubr.bf16.gmra.mrb[0].mxu0 %v527
  %v772 = vpop.f32.mrb[0].mxu0
  %v773 = vadd.f32 %v685, %v772
  %v774 = vpop.f32.mrb[0].mxu0
  %v775 = vpop.f32.mrb[0].mxu0
  %v776 = vadd.f32 %v688, %v775
  %v777 = vpop.f32.mrb[0].mxu0
  %778 = vmatprep.mubr.bf16.mxu0 0
  %779 = vmatmul.mubr.bf16.gmra.mrb[0].mxu0 %v530
  %v780 = vpop.f32.mrb[0].mxu0
  %v781 = vadd.f32 %v693, %v780
  %v782 = vpop.f32.mrb[0].mxu0
  %v783 = vpop.f32.mrb[0].mxu0
  %v784 = vadd.f32 %v696, %v783
  %v785 = vpop.f32.mrb[0].mxu0
  %786 = vmatprep.mubr.bf16.mxu0 0
  %787 = vmatmul.mubr.bf16.gmra.mrb[0].mxu0 %v533
  %v788 = vpop.f32.mrb[0].mxu0
  %v789 = vadd.f32 %v701, %v788
  %v790 = vpop.f32.mrb[0].mxu0
  %v791 = vpop.f32.mrb[0].mxu0
  %v792 = vadd.f32 %v704, %v791
  %v793 = vpop.f32.mrb[0].mxu0
  %794 = vmatprep.mubr.bf16.mxu0 0
  %795 = vmatmul.mubr.bf16.gmra.mrb[0].mxu0 %v536
  %v796 = vpop.f32.mrb[0].mxu0
  %v797 = vadd.f32 %v709, %v796
  %v798 = vpop.f32.mrb[0].mxu0
  %v799 = vpop.f32.mrb[0].mxu0
  %v800 = vpop.f32.mrb[0].mxu0
  %801 = vdwg.mxu0
  %v802 = vmax.f32 %v749, 0.0
  %v803 = vmax.f32 %v752, 0.0
  %v804 = vmax.f32 %v757, 0.0
  %v805 = vmax.f32 %v760, 0.0
  %v806 = vmax.f32 %v765, 0.0
  %v807 = vmax.f32 %v768, 0.0
  %v808 = vmax.f32 %v773, 0.0
  %v809 = vmax.f32 %v776, 0.0
  %v810 = vmax.f32 %v781, 0.0
  %v811 = vmax.f32 %v784, 0.0
  %v812 = vmax.f32 %v789, 0.0
  %v813 = vmax.f32 %v792, 0.0
  %v814 = vmax.f32 %v797, 0.0
  %v815 = vpack.c.bf16 %v803, %v802
  %v816 = vpack.c.bf16 %v805, %v804
  %v817 = vpack.c.bf16 %v807, %v806
  %v818 = vpack.c.bf16 %v809, %v808
  %v819 = vpack.c.bf16 %v811, %v810
  %v820 = vpack.c.bf16 %v813, %v812
  %v821 = vpack.c.bf16 %v814, %v814
  %v829 = vunpack.c.l.b16 %v815
  %v830 = vunpack.c.h.b16 %v815
  %v831 = vunpack.c.l.b16 %v816
  %v832 = vunpack.c.h.b16 %v816
  %v833 = vunpack.c.l.b16 %v817
  %v834 = vunpack.c.h.b16 %v817
  %v835 = vunpack.c.l.b16 %v818
  %v836 = vunpack.c.h.b16 %v818
  %v837 = vunpack.c.l.b16 %v819
  %v838 = vunpack.c.h.b16 %v819
  %v839 = vunpack.c.l.b16 %v820
  %v840 = vunpack.c.h.b16 %v820
  %v841 = vunpack.c.l.b16 %v821
  %v842 = vpack.c.b16 %v829, %v829
  %v843 = vpack.c.b16 %v830, %v830
  %v844 = vpack.c.b16 %v831, %v831
  %v845 = vpack.c.b16 %v832, %v832
  %v846 = vpack.c.b16 %v833, %v833
  %v847 = vpack.c.b16 %v834, %v834
  %v848 = vpack.c.b16 %v835, %v835
  %v849 = vpack.c.b16 %v836, %v836
  %v850 = vpack.c.b16 %v837, %v837
  %v851 = vpack.c.b16 %v838, %v838
  %v852 = vpack.c.b16 %v839, %v839
  %v853 = vpack.c.b16 %v840, %v840
  %v854 = vpack.c.b16 %v841, %v841
  %vm868 = vcmask 519168
  %869 = vst.msk [vmem:[%s3] sm:$0xf] %vm868, %v842
  %870 = vst.msk [vmem:[%s3 + $0x4] sm:$0xf] %vm868, %v843
  %871 = vst.msk [vmem:[%s3 + $0x8] sm:$0xf] %vm868, %v844
  %872 = vst.msk [vmem:[%s3 + $0xc] sm:$0xf] %vm868, %v845
  %873 = vst.msk [vmem:[%s3 + $0x10] sm:$0xf] %vm868, %v846
  %874 = vst.msk [vmem:[%s3 + $0x14] sm:$0xf] %vm868, %v847
  %875 = vst.msk [vmem:[%s3 + $0x18] sm:$0xf] %vm868, %v848
  %876 = vst.msk [vmem:[%s3 + $0x1c] sm:$0xf] %vm868, %v849
  %877 = vst.msk [vmem:[%s3 + $0x20] sm:$0xf] %vm868, %v850
  %878 = vst.msk [vmem:[%s3 + $0x24] sm:$0xf] %vm868, %v851
  %879 = vst.msk [vmem:[%s3 + $0x28] sm:$0xf] %vm868, %v852
  %880 = vst.msk [vmem:[%s3 + $0x2c] sm:$0xf] %vm868, %v853
  %vm881 = vcmask 516096
  %882 = vst.msk [vmem:[%s3 + $0x30] sm:$0x1] %vm881, %v854
  // Predicated region
  $region14: #{dqn_forward.6} parent=0 // pred_check
    _
  $region15: #{dqn_forward.6} parent=0 // pred_check_branch
    %884 = sbr.rel (0) target = $region17
  $region16: #{dqn_forward.6} parent=0 // pred_region
    _
  $region17: #{dqn_forward.6} parent=0 // pred_fallthru
    _
  // Predicated region
  $region18: #{dqn_forward.6} parent=0 // pred_check
    _
  $region19: #{dqn_forward.6} parent=0 // pred_check_branch
    %886 = sbr.rel (0) target = $region21
  $region20: #{dqn_forward.6} parent=0 // pred_region
    _
  $region21: #{dqn_forward.6} parent=0 // pred_fallthru
    _

// kernel: dqn_forward.7
$region0: #{dqn_forward.7}
  #allocation0 [shape = 'u32[]', space=smem, size = 0x4, offset = 0x4, fixed_abs, tag = 'smem constant byte address 0x4 - core index']
  #allocation1 [shape = 'u32[144,128]{1,0:T(1,128)}', space=vmem, size = 0x12000, scoped, tag = 'internal scratch']
  %s0 = inlined_call_operand.vmem [shape: bf16[2,3136], index: 0, kind: input, shape index: {}]
  %s1 = inlined_call_operand.vmem [shape: bf16[3136,512], index: 1, kind: input, shape index: {}]
  %s2 = inlined_call_operand.vmem [shape: f32[1,512], index: 2, kind: input, shape index: {}]
  %s3 = inlined_call_operand.vmem [shape: bf16[512,3], index: 3, kind: input, shape index: {}]
  %s4 = inlined_call_operand.vmem [shape: f32[2,2,3], index: 4, kind: output, shape index: {}]
  %s5 = sld [smem:[#allocation0]]
  $region87: #{dqn_forward.7} parent=0
    _
  %s7 = ssub.s32 1, %s5
  %s8 = scalar_select 0, %s7, %s5
  $region1: #{dqn_forward.7} parent=0
    #allocation2 [shape = 'u8[3211264]{0}', space=vmem, size = 0x310000, scoped, tag = 'input window, operand 1']
    loop: start=0, step=1, limit=4
    $region2: #{dqn_forward.7} parent=1 // loop_pre_header
      _
    $region3: #{dqn_forward.7} parent=1 // loop_header
      %s10 = sphi 0, %s14
      %p11 = scmp.ge.s32.totalorder %s10, 4
      %s18 = sphi 0, %s18
      %s20 = sphi 0, %s18
      %s21 = sphi 0, %s20
      %s35 = sphi 0, %s21
      %s41 = sphi 0, %s43
      %s44 = sphi 0, %s41
      %s45 = sphi 0, %s44
      %s61 = sphi 0, %s45
      %s67 = sphi 0, %s69
      %s70 = sphi 0, %s67
      %s71 = sphi 0, %s70
      %s87 = sphi 0, %s71
      %s93 = sphi 0, %s95
      %s96 = sphi 0, %s93
      %s97 = sphi 0, %s96
      %s113 = sphi 0, %s97
      %s119 = sphi 0, %s121
      %s122 = sphi 0, %s119
      %s123 = sphi 0, %s122
      %s139 = sphi 0, %s123
    $region4: #{dqn_forward.7} parent=1 // loop_header_branch
      %13 = sbr.rel (%p11) target = $region8
    $region5: #{dqn_forward.7} parent=1 // loop_body
      %s15 = ssub.s32 %s10, 1
      %s16 = ssub.s32 %s10, 2
      %s17 = sadd.s32 %s10, 1
      %s19 = sadd.s32 %s18, 1
      %p22 = scmp.eq.s32.totalorder %s10, 1
      %p23 = scmp.ne.s32.totalorder %s18, %s20
      %p24 = scmp.eq.s32.totalorder %s10, 0
      %p25 = por %p23, %p24
      %p26 = scmp.ne.s32.totalorder %s18, %s20
      %p27 = scmp.eq.s32.totalorder %s15, 1
      %p28 = por %p26, %p27
      %p29 = scmp.ne.s32.totalorder %s20, %s21
      %p30 = scmp.eq.s32.totalorder %s15, 0
      %p31 = por %p29, %p30
      %p32 = scmp.ne.s32.totalorder %s20, %s21
      %p33 = scmp.eq.s32.totalorder %s16, 1
      %p34 = por %p32, %p33
      %p36 = scmp.ne.s32.totalorder %s21, %s35
      %p37 = scmp.eq.s32.totalorder %s16, 0
      %p38 = por %p36, %p37
      %s39 = ssub.s32 %s10, %s17
      %p40 = scmp.eq.s32.totalorder %s39, 0
      %s42 = sadd.s32 %s41, 1
      %s43 = scalar_select %p40, %s41, %s42
      %p46 = pneg %p40
      %p47 = scmp.eq.s32.totalorder %s10, 1
      %p48 = por %p46, %p47
      %p49 = scmp.ne.s32.totalorder %s41, %s44
      %p50 = scmp.eq.s32.totalorder %s10, 0
      %p51 = por %p49, %p50
      %p52 = scmp.ne.s32.totalorder %s41, %s44
      %p53 = scmp.eq.s32.totalorder %s15, 1
      %p54 = por %p52, %p53
      %p55 = scmp.ne.s32.totalorder %s44, %s45
      %p56 = scmp.eq.s32.totalorder %s15, 0
      %p57 = por %p55, %p56
      %p58 = scmp.ne.s32.totalorder %s44, %s45
      %p59 = scmp.eq.s32.totalorder %s16, 1
      %p60 = por %p58, %p59
      %p62 = scmp.ne.s32.totalorder %s45, %s61
      %p63 = scmp.eq.s32.totalorder %s16, 0
      %p64 = por %p62, %p63
      %s65 = ssub.s32 %s10, %s17
      %p66 = scmp.eq.s32.totalorder %s65, 0
      %s68 = sadd.s32 %s67, 1
      %s69 = scalar_select %p66, %s67, %s68
      %p72 = pneg %p66
      %p73 = scmp.eq.s32.totalorder %s10, 1
      %p74 = por %p72, %p73
      %p75 = scmp.ne.s32.totalorder %s67, %s70
      %p76 = scmp.eq.s32.totalorder %s10, 0
      %p77 = por %p75, %p76
      %p78 = scmp.ne.s32.totalorder %s67, %s70
      %p79 = scmp.eq.s32.totalorder %s15, 1
      %p80 = por %p78, %p79
      %p81 = scmp.ne.s32.totalorder %s70, %s71
      %p82 = scmp.eq.s32.totalorder %s15, 0
      %p83 = por %p81, %p82
      %p84 = scmp.ne.s32.totalorder %s70, %s71
      %p85 = scmp.eq.s32.totalorder %s16, 1
      %p86 = por %p84, %p85
      %p88 = scmp.ne.s32.totalorder %s71, %s87
      %p89 = scmp.eq.s32.totalorder %s16, 0
      %p90 = por %p88, %p89
      %s91 = ssub.s32 %s10, %s17
      %p92 = scmp.eq.s32.totalorder %s91, 0
      %s94 = sadd.s32 %s93, 1
      %s95 = scalar_select %p92, %s93, %s94
      %p98 = pneg %p92
      %p99 = scmp.eq.s32.totalorder %s10, 1
      %p100 = por %p98, %p99
      %p101 = scmp.ne.s32.totalorder %s93, %s96
      %p102 = scmp.eq.s32.totalorder %s10, 0
      %p103 = por %p101, %p102
      %p104 = scmp.ne.s32.totalorder %s93, %s96
      %p105 = scmp.eq.s32.totalorder %s15, 1
      %p106 = por %p104, %p105
      %p107 = scmp.ne.s32.totalorder %s96, %s97
      %p108 = scmp.eq.s32.totalorder %s15, 0
      %p109 = por %p107, %p108
      %p110 = scmp.ne.s32.totalorder %s96, %s97
      %p111 = scmp.eq.s32.totalorder %s16, 1
      %p112 = por %p110, %p111
      %p114 = scmp.ne.s32.totalorder %s97, %s113
      %p115 = scmp.eq.s32.totalorder %s16, 0
      %p116 = por %p114, %p115
      %s117 = ssub.s32 %s10, %s17
      %p118 = scmp.eq.s32.totalorder %s117, 0
      %s120 = sadd.s32 %s119, 1
      %s121 = scalar_select %p118, %s119, %s120
      %p124 = pneg %p118
      %p125 = scmp.eq.s32.totalorder %s10, 1
      %p126 = por %p124, %p125
      %p127 = scmp.ne.s32.totalorder %s119, %s122
      %p128 = scmp.eq.s32.totalorder %s10, 0
      %p129 = por %p127, %p128
      %p130 = scmp.ne.s32.totalorder %s119, %s122
      %p131 = scmp.eq.s32.totalorder %s15, 1
      %p132 = por %p130, %p131
      %p133 = scmp.ne.s32.totalorder %s122, %s123
      %p134 = scmp.eq.s32.totalorder %s15, 0
      %p135 = por %p133, %p134
      %p136 = scmp.ne.s32.totalorder %s122, %s123
      %p137 = scmp.eq.s32.totalorder %s16, 1
      %p138 = por %p136, %p137
      %p140 = scmp.ne.s32.totalorder %s123, %s139
      %p141 = scmp.eq.s32.totalorder %s16, 0
      %p142 = por %p140, %p141
      %p143 = scmp.le.s32.totalorder 1, %s10
      %p144 = scmp.lt.s32.totalorder %s10, 3
      %p145 = pnand %p143, %p144
      %p146 = pneg %p145
      // Predicated region
      $region9: #{dqn_forward.7} parent=5 // pred_check
        _
      $region10: #{dqn_forward.7} parent=5 // pred_check_branch
        %148 = sbr.rel (%p145) target = $region12
      $region11: #{dqn_forward.7} parent=5 // pred_region
        %s149 = ssub.s32 %s10, 1
        // Predicated region
        $region13: #{dqn_forward.7} parent=11 // pred_check
          %p150 = pneg %p31
        $region14: #{dqn_forward.7} parent=11 // pred_check_branch
          %152 = sbr.rel (%p150) target = $region16
        $region15: #{dqn_forward.7} parent=11 // pred_region
          _
        $region16: #{dqn_forward.7} parent=11 // pred_fallthru
          _
      $region12: #{dqn_forward.7} parent=5 // pred_fallthru
        _
      %p153 = scmp.lt.s32.totalorder %s10, 2
      // Predicated region
      $region17: #{dqn_forward.7} parent=5 // pred_check
        %p154 = pneg %p153
      $region18: #{dqn_forward.7} parent=5 // pred_check_branch
        %156 = sbr.rel (%p154) target = $region20
      $region19: #{dqn_forward.7} parent=5 // pred_region
        // Predicated region
        $region21: #{dqn_forward.7} parent=19 // pred_check
          %p157 = pneg %p51
        $region22: #{dqn_forward.7} parent=19 // pred_check_branch
          %159 = sbr.rel (%p157) target = $region24
        $region23: #{dqn_forward.7} parent=19 // pred_region
          %s160 = sand.u32 %s41, 1
          %s161 = sand.u32 %s41, 1
          %s162 = smul.addr %s161, 3136
          %s163 = scalar_lea.vmem [#allocation2], %s162
          %s164 = smul.u32 2, %s10
          %s165 = smul.addr %s164, 4
          %s166 = scalar_lea.vmem %s1, %s165
          // Predicated region
          $region25: #{dqn_forward.7} parent=23 // pred_check
            _
          $region26: #{dqn_forward.7} parent=23 // pred_check_branch
            %168 = sbr.rel (0) target = $region28
          $region27: #{dqn_forward.7} parent=23 // pred_region
            // Predicated region
            $region29: #{dqn_forward.7} parent=27 // pred_check
              _
            $region30: #{dqn_forward.7} parent=27 // pred_check_branch
              %170 = sbr.rel (0) target = $region32
            $region31: #{dqn_forward.7} parent=27 // pred_region
              // Predicated region
              $region44: #{dqn_forward.7} parent=31 // pred_check
                _
              $region45: #{dqn_forward.7} parent=31 // pred_check_branch
                %967 = sbr.rel (0) target = $region47
              $region46: #{dqn_forward.7} parent=31 // pred_region
                loop: start=0, step=1, limit=1
                $region48: #{dqn_forward.7} parent=46 // loop_pre_header
                  _
                $region49: #{dqn_forward.7} parent=46 // loop_header
                  %s969 = sphi 0, %s973
                  %p970 = scmp.ge.s32.totalorder %s969, 1
                  %s974 = sphi %s166, %s166
                  %s975 = sphi %s163, %s163
                $region50: #{dqn_forward.7} parent=46 // loop_header_branch
                  %972 = sbr.rel (%p970) target = $region54
                $region51: #{dqn_forward.7} parent=46 // loop_body
                  %v976 = vld [vmem:[%s974] sm:$0xff]
                  %977 = vst [vmem:[%s975] sm:$0xff] %v976
                  %v978 = vld [vmem:[%s974 + $0x10] sm:$0xff]
                  %979 = vst [vmem:[%s975 + $0x8] sm:$0xff] %v978
                  %v980 = vld [vmem:[%s974 + $0x20] sm:$0xff]
                  %981 = vst [vmem:[%s975 + $0x10] sm:$0xff] %v980
                  %v982 = vld [vmem:[%s974 + $0x30] sm:$0xff]
                  %983 = vst [vmem:[%s975 + $0x18] sm:$0xff] %v982
                  %v984 = vld [vmem:[%s974 + $0x40] sm:$0xff]
                  %985 = vst [vmem:[%s975 + $0x20] sm:$0xff] %v984
                  %v986 = vld [vmem:[%s974 + $0x50] sm:$0xff]
                  %987 = vst [vmem:[%s975 + $0x28] sm:$0xff] %v986
                  %v988 = vld [vmem:[%s974 + $0x60] sm:$0xff]
                  %989 = vst [vmem:[%s975 + $0x30] sm:$0xff] %v988
                  %v990 = vld [vmem:[%s974 + $0x70] sm:$0xff]
                  %991 = vst [vmem:[%s975 + $0x38] sm:$0xff] %v990
                  %v992 = vld [vmem:[%s974 + $0x80] sm:$0xff]
                  %993 = vst [vmem:[%s975 + $0x40] sm:$0xff] %v992
                  %v994 = vld [vmem:[%s974 + $0x90] sm:$0xff]
                  %995 = vst [vmem:[%s975 + $0x48] sm:$0xff] %v994
                  %v996 = vld [vmem:[%s974 + $0xa0] sm:$0xff]
                  %997 = vst [vmem:[%s975 + $0x50] sm:$0xff] %v996
                  %v998 = vld [vmem:[%s974 + $0xb0] sm:$0xff]
                  %999 = vst [vmem:[%s975 + $0x58] sm:$0xff] %v998
                  %v1000 = vld [vmem:[%s974 + $0xc0] sm:$0xff]
                  %1001 = vst [vmem:[%s975 + $0x60] sm:$0xff] %v1000
                  %v1002 = vld [vmem:[%s974 + $0xd0] sm:$0xff]
                  %1003 = vst [vmem:[%s975 + $0x68] sm:$0xff] %v1002
                  %v1004 = vld [vmem:[%s974 + $0xe0] sm:$0xff]
                  %1005 = vst [vmem:[%s975 + $0x70] sm:$0xff] %v1004
                  %v1006 = vld [vmem:[%s974 + $0xf0] sm:$0xff]
                  %1007 = vst [vmem:[%s975 + $0x78] sm:$0xff] %v1006
                  %v1008 = vld [vmem:[%s974 + $0x100] sm:$0xff]
                  %1009 = vst [vmem:[%s975 + $0x80] sm:$0xff] %v1008
                  %v1010 = vld [vmem:[%s974 + $0x110] sm:$0xff]
                  %1011 = vst [vmem:[%s975 + $0x88] sm:$0xff] %v1010
                  %v1012 = vld [vmem:[%s974 + $0x120] sm:$0xff]
                  %1013 = vst [vmem:[%s975 + $0x90] sm:$0xff] %v1012
                  %v1014 = vld [vmem:[%s974 + $0x130] sm:$0xff]
                  %1015 = vst [vmem:[%s975 + $0x98] sm:$0xff] %v1014
                  %v1016 = vld [vmem:[%s974 + $0x140] sm:$0xff]
                  %1017 = vst [vmem:[%s975 + $0xa0] sm:$0xff] %v1016
                  %v1018 = vld [vmem:[%s974 + $0x150] sm:$0xff]
                  %1019 = vst [vmem:[%s975 + $0xa8] sm:$0xff] %v1018
                  %v1020 = vld [vmem:[%s974 + $0x160] sm:$0xff]
                  %1021 = vst [vmem:[%s975 + $0xb0] sm:$0xff] %v1020
                  %v1022 = vld [vmem:[%s974 + $0x170] sm:$0xff]
                  %1023 = vst [vmem:[%s975 + $0xb8] sm:$0xff] %v1022
                  %v1024 = vld [vmem:[%s974 + $0x180] sm:$0xff]
                  %1025 = vst [vmem:[%s975 + $0xc0] sm:$0xff] %v1024
                  %v1026 = vld [vmem:[%s974 + $0x190] sm:$0xff]
                  %1027 = vst [vmem:[%s975 + $0xc8] sm:$0xff] %v1026
                  %v1028 = vld [vmem:[%s974 + $0x1a0] sm:$0xff]
                  %1029 = vst [vmem:[%s975 + $0xd0] sm:$0xff] %v1028
                  %v1030 = vld [vmem:[%s974 + $0x1b0] sm:$0xff]
                  %1031 = vst [vmem:[%s975 + $0xd8] sm:$0xff] %v1030
                  %v1032 = vld [vmem:[%s974 + $0x1c0] sm:$0xff]
                  %1033 = vst [vmem:[%s975 + $0xe0] sm:$0xff] %v1032
                  %v1034 = vld [vmem:[%s974 + $0x1d0] sm:$0xff]
                  %1035 = vst [vmem:[%s975 + $0xe8] sm:$0xff] %v1034
                  %v1036 = vld [vmem:[%s974 + $0x1e0] sm:$0xff]
                  %1037 = vst [vmem:[%s975 + $0xf0] sm:$0xff] %v1036
                  %v1038 = vld [vmem:[%s974 + $0x1f0] sm:$0xff]
                  %1039 = vst [vmem:[%s975 + $0xf8] sm:$0xff] %v1038
                  %v1040 = vld [vmem:[%s974 + $0x200] sm:$0xff]
                  %1041 = vst [vmem:[%s975 + $0x100] sm:$0xff] %v1040
                  %v1042 = vld [vmem:[%s974 + $0x210] sm:$0xff]
                  %1043 = vst [vmem:[%s975 + $0x108] sm:$0xff] %v1042
                  %v1044 = vld [vmem:[%s974 + $0x220] sm:$0xff]
                  %1045 = vst [vmem:[%s975 + $0x110] sm:$0xff] %v1044
                  %v1046 = vld [vmem:[%s974 + $0x230] sm:$0xff]
                  %1047 = vst [vmem:[%s975 + $0x118] sm:$0xff] %v1046
                  %v1048 = vld [vmem:[%s974 + $0x240] sm:$0xff]
                  %1049 = vst [vmem:[%s975 + $0x120] sm:$0xff] %v1048
                  %v1050 = vld [vmem:[%s974 + $0x250] sm:$0xff]
                  %1051 = vst [vmem:[%s975 + $0x128] sm:$0xff] %v1050
                  %v1052 = vld [vmem:[%s974 + $0x260] sm:$0xff]
                  %1053 = vst [vmem:[%s975 + $0x130] sm:$0xff] %v1052
                  %v1054 = vld [vmem:[%s974 + $0x270] sm:$0xff]
                  %1055 = vst [vmem:[%s975 + $0x138] sm:$0xff] %v1054
                  %v1056 = vld [vmem:[%s974 + $0x280] sm:$0xff]
                  %1057 = vst [vmem:[%s975 + $0x140] sm:$0xff] %v1056
                  %v1058 = vld [vmem:[%s974 + $0x290] sm:$0xff]
                  %1059 = vst [vmem:[%s975 + $0x148] sm:$0xff] %v1058
                  %v1060 = vld [vmem:[%s974 + $0x2a0] sm:$0xff]
                  %1061 = vst [vmem:[%s975 + $0x150] sm:$0xff] %v1060
                  %v1062 = vld [vmem:[%s974 + $0x2b0] sm:$0xff]
                  %1063 = vst [vmem:[%s975 + $0x158] sm:$0xff] %v1062
                  %v1064 = vld [vmem:[%s974 + $0x2c0] sm:$0xff]
                  %1065 = vst [vmem:[%s975 + $0x160] sm:$0xff] %v1064
                  %v1066 = vld [vmem:[%s974 + $0x2d0] sm:$0xff]
                  %1067 = vst [vmem:[%s975 + $0x168] sm:$0xff] %v1066
                  %v1068 = vld [vmem:[%s974 + $0x2e0] sm:$0xff]
                  %1069 = vst [vmem:[%s975 + $0x170] sm:$0xff] %v1068
                  %v1070 = vld [vmem:[%s974 + $0x2f0] sm:$0xff]
                  %1071 = vst [vmem:[%s975 + $0x178] sm:$0xff] %v1070
                  %v1072 = vld [vmem:[%s974 + $0x300] sm:$0xff]
                  %1073 = vst [vmem:[%s975 + $0x180] sm:$0xff] %v1072
                  %v1074 = vld [vmem:[%s974 + $0x310] sm:$0xff]
                  %1075 = vst [vmem:[%s975 + $0x188] sm:$0xff] %v1074
                  %v1076 = vld [vmem:[%s974 + $0x320] sm:$0xff]
                  %1077 = vst [vmem:[%s975 + $0x190] sm:$0xff] %v1076
                  %v1078 = vld [vmem:[%s974 + $0x330] sm:$0xff]
                  %1079 = vst [vmem:[%s975 + $0x198] sm:$0xff] %v1078
                  %v1080 = vld [vmem:[%s974 + $0x340] sm:$0xff]
                  %1081 = vst [vmem:[%s975 + $0x1a0] sm:$0xff] %v1080
                  %v1082 = vld [vmem:[%s974 + $0x350] sm:$0xff]
                  %1083 = vst [vmem:[%s975 + $0x1a8] sm:$0xff] %v1082
                  %v1084 = vld [vmem:[%s974 + $0x360] sm:$0xff]
                  %1085 = vst [vmem:[%s975 + $0x1b0] sm:$0xff] %v1084
                  %v1086 = vld [vmem:[%s974 + $0x370] sm:$0xff]
                  %1087 = vst [vmem:[%s975 + $0x1b8] sm:$0xff] %v1086
                  %v1088 = vld [vmem:[%s974 + $0x380] sm:$0xff]
                  %1089 = vst [vmem:[%s975 + $0x1c0] sm:$0xff] %v1088
                  %v1090 = vld [vmem:[%s974 + $0x390] sm:$0xff]
                  %1091 = vst [vmem:[%s975 + $0x1c8] sm:$0xff] %v1090
                  %v1092 = vld [vmem:[%s974 + $0x3a0] sm:$0xff]
                  %1093 = vst [vmem:[%s975 + $0x1d0] sm:$0xff] %v1092
                  %v1094 = vld [vmem:[%s974 + $0x3b0] sm:$0xff]
                  %1095 = vst [vmem:[%s975 + $0x1d8] sm:$0xff] %v1094
                  %v1096 = vld [vmem:[%s974 + $0x3c0] sm:$0xff]
                  %1097 = vst [vmem:[%s975 + $0x1e0] sm:$0xff] %v1096
                  %v1098 = vld [vmem:[%s974 + $0x3d0] sm:$0xff]
                  %1099 = vst [vmem:[%s975 + $0x1e8] sm:$0xff] %v1098
                  %v1100 = vld [vmem:[%s974 + $0x3e0] sm:$0xff]
                  %1101 = vst [vmem:[%s975 + $0x1f0] sm:$0xff] %v1100
                  %v1102 = vld [vmem:[%s974 + $0x3f0] sm:$0xff]
                  %1103 = vst [vmem:[%s975 + $0x1f8] sm:$0xff] %v1102
                  %v1104 = vld [vmem:[%s974 + $0x400] sm:$0xff]
                  %1105 = vst [vmem:[%s975 + $0x200] sm:$0xff] %v1104
                  %v1106 = vld [vmem:[%s974 + $0x410] sm:$0xff]
                  %1107 = vst [vmem:[%s975 + $0x208] sm:$0xff] %v1106
                  %v1108 = vld [vmem:[%s974 + $0x420] sm:$0xff]
                  %1109 = vst [vmem:[%s975 + $0x210] sm:$0xff] %v1108
                  %v1110 = vld [vmem:[%s974 + $0x430] sm:$0xff]
                  %1111 = vst [vmem:[%s975 + $0x218] sm:$0xff] %v1110
                  %v1112 = vld [vmem:[%s974 + $0x440] sm:$0xff]
                  %1113 = vst [vmem:[%s975 + $0x220] sm:$0xff] %v1112
                  %v1114 = vld [vmem:[%s974 + $0x450] sm:$0xff]
                  %1115 = vst [vmem:[%s975 + $0x228] sm:$0xff] %v1114
                  %v1116 = vld [vmem:[%s974 + $0x460] sm:$0xff]
                  %1117 = vst [vmem:[%s975 + $0x230] sm:$0xff] %v1116
                  %v1118 = vld [vmem:[%s974 + $0x470] sm:$0xff]
                  %1119 = vst [vmem:[%s975 + $0x238] sm:$0xff] %v1118
                  %v1120 = vld [vmem:[%s974 + $0x480] sm:$0xff]
                  %1121 = vst [vmem:[%s975 + $0x240] sm:$0xff] %v1120
                  %v1122 = vld [vmem:[%s974 + $0x490] sm:$0xff]
                  %1123 = vst [vmem:[%s975 + $0x248] sm:$0xff] %v1122
                  %v1124 = vld [vmem:[%s974 + $0x4a0] sm:$0xff]
                  %1125 = vst [vmem:[%s975 + $0x250] sm:$0xff] %v1124
                  %v1126 = vld [vmem:[%s974 + $0x4b0] sm:$0xff]
                  %1127 = vst [vmem:[%s975 + $0x258] sm:$0xff] %v1126
                  %v1128 = vld [vmem:[%s974 + $0x4c0] sm:$0xff]
                  %1129 = vst [vmem:[%s975 + $0x260] sm:$0xff] %v1128
                  %v1130 = vld [vmem:[%s974 + $0x4d0] sm:$0xff]
                  %1131 = vst [vmem:[%s975 + $0x268] sm:$0xff] %v1130
                  %v1132 = vld [vmem:[%s974 + $0x4e0] sm:$0xff]
                  %1133 = vst [vmem:[%s975 + $0x270] sm:$0xff] %v1132
                  %v1134 = vld [vmem:[%s974 + $0x4f0] sm:$0xff]
                  %1135 = vst [vmem:[%s975 + $0x278] sm:$0xff] %v1134
                  %v1136 = vld [vmem:[%s974 + $0x500] sm:$0xff]
                  %1137 = vst [vmem:[%s975 + $0x280] sm:$0xff] %v1136
                  %v1138 = vld [vmem:[%s974 + $0x510] sm:$0xff]
                  %1139 = vst [vmem:[%s975 + $0x288] sm:$0xff] %v1138
                  %v1140 = vld [vmem:[%s974 + $0x520] sm:$0xff]
                  %1141 = vst [vmem:[%s975 + $0x290] sm:$0xff] %v1140
                  %v1142 = vld [vmem:[%s974 + $0x530] sm:$0xff]
                  %1143 = vst [vmem:[%s975 + $0x298] sm:$0xff] %v1142
                  %v1144 = vld [vmem:[%s974 + $0x540] sm:$0xff]
                  %1145 = vst [vmem:[%s975 + $0x2a0] sm:$0xff] %v1144
                  %v1146 = vld [vmem:[%s974 + $0x550] sm:$0xff]
                  %1147 = vst [vmem:[%s975 + $0x2a8] sm:$0xff] %v1146
                  %v1148 = vld [vmem:[%s974 + $0x560] sm:$0xff]
                  %1149 = vst [vmem:[%s975 + $0x2b0] sm:$0xff] %v1148
                  %v1150 = vld [vmem:[%s974 + $0x570] sm:$0xff]
                  %1151 = vst [vmem:[%s975 + $0x2b8] sm:$0xff] %v1150
                  %v1152 = vld [vmem:[%s974 + $0x580] sm:$0xff]
                  %1153 = vst [vmem:[%s975 + $0x2c0] sm:$0xff] %v1152
                  %v1154 = vld [vmem:[%s974 + $0x590] sm:$0xff]
                  %1155 = vst [vmem:[%s975 + $0x2c8] sm:$0xff] %v1154
                  %v1156 = vld [vmem:[%s974 + $0x5a0] sm:$0xff]
                  %1157 = vst [vmem:[%s975 + $0x2d0] sm:$0xff] %v1156
                  %v1158 = vld [vmem:[%s974 + $0x5b0] sm:$0xff]
                  %1159 = vst [vmem:[%s975 + $0x2d8] sm:$0xff] %v1158
                  %v1160 = vld [vmem:[%s974 + $0x5c0] sm:$0xff]
                  %1161 = vst [vmem:[%s975 + $0x2e0] sm:$0xff] %v1160
                  %v1162 = vld [vmem:[%s974 + $0x5d0] sm:$0xff]
                  %1163 = vst [vmem:[%s975 + $0x2e8] sm:$0xff] %v1162
                  %v1164 = vld [vmem:[%s974 + $0x5e0] sm:$0xff]
                  %1165 = vst [vmem:[%s975 + $0x2f0] sm:$0xff] %v1164
                  %v1166 = vld [vmem:[%s974 + $0x5f0] sm:$0xff]
                  %1167 = vst [vmem:[%s975 + $0x2f8] sm:$0xff] %v1166
                  %v1168 = vld [vmem:[%s974 + $0x600] sm:$0xff]
                  %1169 = vst [vmem:[%s975 + $0x300] sm:$0xff] %v1168
                  %v1170 = vld [vmem:[%s974 + $0x610] sm:$0xff]
                  %1171 = vst [vmem:[%s975 + $0x308] sm:$0xff] %v1170
                  %v1172 = vld [vmem:[%s974 + $0x620] sm:$0xff]
                  %1173 = vst [vmem:[%s975 + $0x310] sm:$0xff] %v1172
                  %v1174 = vld [vmem:[%s974 + $0x630] sm:$0xff]
                  %1175 = vst [vmem:[%s975 + $0x318] sm:$0xff] %v1174
                  %v1176 = vld [vmem:[%s974 + $0x640] sm:$0xff]
                  %1177 = vst [vmem:[%s975 + $0x320] sm:$0xff] %v1176
                  %v1178 = vld [vmem:[%s974 + $0x650] sm:$0xff]
                  %1179 = vst [vmem:[%s975 + $0x328] sm:$0xff] %v1178
                  %v1180 = vld [vmem:[%s974 + $0x660] sm:$0xff]
                  %1181 = vst [vmem:[%s975 + $0x330] sm:$0xff] %v1180
                  %v1182 = vld [vmem:[%s974 + $0x670] sm:$0xff]
                  %1183 = vst [vmem:[%s975 + $0x338] sm:$0xff] %v1182
                  %v1184 = vld [vmem:[%s974 + $0x680] sm:$0xff]
                  %1185 = vst [vmem:[%s975 + $0x340] sm:$0xff] %v1184
                  %v1186 = vld [vmem:[%s974 + $0x690] sm:$0xff]
                  %1187 = vst [vmem:[%s975 + $0x348] sm:$0xff] %v1186
                  %v1188 = vld [vmem:[%s974 + $0x6a0] sm:$0xff]
                  %1189 = vst [vmem:[%s975 + $0x350] sm:$0xff] %v1188
                  %v1190 = vld [vmem:[%s974 + $0x6b0] sm:$0xff]
                  %1191 = vst [vmem:[%s975 + $0x358] sm:$0xff] %v1190
                  %v1192 = vld [vmem:[%s974 + $0x6c0] sm:$0xff]
                  %1193 = vst [vmem:[%s975 + $0x360] sm:$0xff] %v1192
                  %v1194 = vld [vmem:[%s974 + $0x6d0] sm:$0xff]
                  %1195 = vst [vmem:[%s975 + $0x368] sm:$0xff] %v1194
                  %v1196 = vld [vmem:[%s974 + $0x6e0] sm:$0xff]
                  %1197 = vst [vmem:[%s975 + $0x370] sm:$0xff] %v1196
                  %v1198 = vld [vmem:[%s974 + $0x6f0] sm:$0xff]
                  %1199 = vst [vmem:[%s975 + $0x378] sm:$0xff] %v1198
                  %v1200 = vld [vmem:[%s974 + $0x700] sm:$0xff]
                  %1201 = vst [vmem:[%s975 + $0x380] sm:$0xff] %v1200
                  %v1202 = vld [vmem:[%s974 + $0x710] sm:$0xff]
                  %1203 = vst [vmem:[%s975 + $0x388] sm:$0xff] %v1202
                  %v1204 = vld [vmem:[%s974 + $0x720] sm:$0xff]
                  %1205 = vst [vmem:[%s975 + $0x390] sm:$0xff] %v1204
                  %v1206 = vld [vmem:[%s974 + $0x730] sm:$0xff]
                  %1207 = vst [vmem:[%s975 + $0x398] sm:$0xff] %v1206
                  %v1208 = vld [vmem:[%s974 + $0x740] sm:$0xff]
                  %1209 = vst [vmem:[%s975 + $0x3a0] sm:$0xff] %v1208
                  %v1210 = vld [vmem:[%s974 + $0x750] sm:$0xff]
                  %1211 = vst [vmem:[%s975 + $0x3a8] sm:$0xff] %v1210
                  %v1212 = vld [vmem:[%s974 + $0x760] sm:$0xff]
                  %1213 = vst [vmem:[%s975 + $0x3b0] sm:$0xff] %v1212
                  %v1214 = vld [vmem:[%s974 + $0x770] sm:$0xff]
                  %1215 = vst [vmem:[%s975 + $0x3b8] sm:$0xff] %v1214
                  %v1216 = vld [vmem:[%s974 + $0x780] sm:$0xff]
                  %1217 = vst [vmem:[%s975 + $0x3c0] sm:$0xff] %v1216
                  %v1218 = vld [vmem:[%s974 + $0x790] sm:$0xff]
                  %1219 = vst [vmem:[%s975 + $0x3c8] sm:$0xff] %v1218
                  %v1220 = vld [vmem:[%s974 + $0x7a0] sm:$0xff]
                  %1221 = vst [vmem:[%s975 + $0x3d0] sm:$0xff] %v1220
                  %v1222 = vld [vmem:[%s974 + $0x7b0] sm:$0xff]
                  %1223 = vst [vmem:[%s975 + $0x3d8] sm:$0xff] %v1222
                  %v1224 = vld [vmem:[%s974 + $0x7c0] sm:$0xff]
                  %1225 = vst [vmem:[%s975 + $0x3e0] sm:$0xff] %v1224
                  %v1226 = vld [vmem:[%s974 + $0x7d0] sm:$0xff]
                  %1227 = vst [vmem:[%s975 + $0x3e8] sm:$0xff] %v1226
                  %v1228 = vld [vmem:[%s974 + $0x7e0] sm:$0xff]
                  %1229 = vst [vmem:[%s975 + $0x3f0] sm:$0xff] %v1228
                  %v1230 = vld [vmem:[%s974 + $0x7f0] sm:$0xff]
                  %1231 = vst [vmem:[%s975 + $0x3f8] sm:$0xff] %v1230
                  %v1232 = vld [vmem:[%s974 + $0x800] sm:$0xff]
                  %1233 = vst [vmem:[%s975 + $0x400] sm:$0xff] %v1232
                  %v1234 = vld [vmem:[%s974 + $0x810] sm:$0xff]
                  %1235 = vst [vmem:[%s975 + $0x408] sm:$0xff] %v1234
                  %v1236 = vld [vmem:[%s974 + $0x820] sm:$0xff]
                  %1237 = vst [vmem:[%s975 + $0x410] sm:$0xff] %v1236
                  %v1238 = vld [vmem:[%s974 + $0x830] sm:$0xff]
                  %1239 = vst [vmem:[%s975 + $0x418] sm:$0xff] %v1238
                  %v1240 = vld [vmem:[%s974 + $0x840] sm:$0xff]
                  %1241 = vst [vmem:[%s975 + $0x420] sm:$0xff] %v1240
                  %v1242 = vld [vmem:[%s974 + $0x850] sm:$0xff]
                  %1243 = vst [vmem:[%s975 + $0x428] sm:$0xff] %v1242
                  %v1244 = vld [vmem:[%s974 + $0x860] sm:$0xff]
                  %1245 = vst [vmem:[%s975 + $0x430] sm:$0xff] %v1244
                  %v1246 = vld [vmem:[%s974 + $0x870] sm:$0xff]
                  %1247 = vst [vmem:[%s975 + $0x438] sm:$0xff] %v1246
                  %v1248 = vld [vmem:[%s974 + $0x880] sm:$0xff]
                  %1249 = vst [vmem:[%s975 + $0x440] sm:$0xff] %v1248
                  %v1250 = vld [vmem:[%s974 + $0x890] sm:$0xff]
                  %1251 = vst [vmem:[%s975 + $0x448] sm:$0xff] %v1250
                  %v1252 = vld [vmem:[%s974 + $0x8a0] sm:$0xff]
                  %1253 = vst [vmem:[%s975 + $0x450] sm:$0xff] %v1252
                  %v1254 = vld [vmem:[%s974 + $0x8b0] sm:$0xff]
                  %1255 = vst [vmem:[%s975 + $0x458] sm:$0xff] %v1254
                  %v1256 = vld [vmem:[%s974 + $0x8c0] sm:$0xff]
                  %1257 = vst [vmem:[%s975 + $0x460] sm:$0xff] %v1256
                  %v1258 = vld [vmem:[%s974 + $0x8d0] sm:$0xff]
                  %1259 = vst [vmem:[%s975 + $0x468] sm:$0xff] %v1258
                  %v1260 = vld [vmem:[%s974 + $0x8e0] sm:$0xff]
                  %1261 = vst [vmem:[%s975 + $0x470] sm:$0xff] %v1260
                  %v1262 = vld [vmem:[%s974 + $0x8f0] sm:$0xff]
                  %1263 = vst [vmem:[%s975 + $0x478] sm:$0xff] %v1262
                  %v1264 = vld [vmem:[%s974 + $0x900] sm:$0xff]
                  %1265 = vst [vmem:[%s975 + $0x480] sm:$0xff] %v1264
                  %v1266 = vld [vmem:[%s974 + $0x910] sm:$0xff]
                  %1267 = vst [vmem:[%s975 + $0x488] sm:$0xff] %v1266
                  %v1268 = vld [vmem:[%s974 + $0x920] sm:$0xff]
                  %1269 = vst [vmem:[%s975 + $0x490] sm:$0xff] %v1268
                  %v1270 = vld [vmem:[%s974 + $0x930] sm:$0xff]
                  %1271 = vst [vmem:[%s975 + $0x498] sm:$0xff] %v1270
                  %v1272 = vld [vmem:[%s974 + $0x940] sm:$0xff]
                  %1273 = vst [vmem:[%s975 + $0x4a0] sm:$0xff] %v1272
                  %v1274 = vld [vmem:[%s974 + $0x950] sm:$0xff]
                  %1275 = vst [vmem:[%s975 + $0x4a8] sm:$0xff] %v1274
                  %v1276 = vld [vmem:[%s974 + $0x960] sm:$0xff]
                  %1277 = vst [vmem:[%s975 + $0x4b0] sm:$0xff] %v1276
                  %v1278 = vld [vmem:[%s974 + $0x970] sm:$0xff]
                  %1279 = vst [vmem:[%s975 + $0x4b8] sm:$0xff] %v1278
                  %v1280 = vld [vmem:[%s974 + $0x980] sm:$0xff]
                  %1281 = vst [vmem:[%s975 + $0x4c0] sm:$0xff] %v1280
                  %v1282 = vld [vmem:[%s974 + $0x990] sm:$0xff]
                  %1283 = vst [vmem:[%s975 + $0x4c8] sm:$0xff] %v1282
                  %v1284 = vld [vmem:[%s974 + $0x9a0] sm:$0xff]
                  %1285 = vst [vmem:[%s975 + $0x4d0] sm:$0xff] %v1284
                  %v1286 = vld [vmem:[%s974 + $0x9b0] sm:$0xff]
                  %1287 = vst [vmem:[%s975 + $0x4d8] sm:$0xff] %v1286
                  %v1288 = vld [vmem:[%s974 + $0x9c0] sm:$0xff]
                  %1289 = vst [vmem:[%s975 + $0x4e0] sm:$0xff] %v1288
                  %v1290 = vld [vmem:[%s974 + $0x9d0] sm:$0xff]
                  %1291 = vst [vmem:[%s975 + $0x4e8] sm:$0xff] %v1290
                  %v1292 = vld [vmem:[%s974 + $0x9e0] sm:$0xff]
                  %1293 = vst [vmem:[%s975 + $0x4f0] sm:$0xff] %v1292
                  %v1294 = vld [vmem:[%s974 + $0x9f0] sm:$0xff]
                  %1295 = vst [vmem:[%s975 + $0x4f8] sm:$0xff] %v1294
                  %v1296 = vld [vmem:[%s974 + $0xa00] sm:$0xff]
                  %1297 = vst [vmem:[%s975 + $0x500] sm:$0xff] %v1296
                  %v1298 = vld [vmem:[%s974 + $0xa10] sm:$0xff]
                  %1299 = vst [vmem:[%s975 + $0x508] sm:$0xff] %v1298
                  %v1300 = vld [vmem:[%s974 + $0xa20] sm:$0xff]
                  %1301 = vst [vmem:[%s975 + $0x510] sm:$0xff] %v1300
                  %v1302 = vld [vmem:[%s974 + $0xa30] sm:$0xff]
                  %1303 = vst [vmem:[%s975 + $0x518] sm:$0xff] %v1302
                  %v1304 = vld [vmem:[%s974 + $0xa40] sm:$0xff]
                  %1305 = vst [vmem:[%s975 + $0x520] sm:$0xff] %v1304
                  %v1306 = vld [vmem:[%s974 + $0xa50] sm:$0xff]
                  %1307 = vst [vmem:[%s975 + $0x528] sm:$0xff] %v1306
                  %v1308 = vld [vmem:[%s974 + $0xa60] sm:$0xff]
                  %1309 = vst [vmem:[%s975 + $0x530] sm:$0xff] %v1308
                  %v1310 = vld [vmem:[%s974 + $0xa70] sm:$0xff]
                  %1311 = vst [vmem:[%s975 + $0x538] sm:$0xff] %v1310
                  %v1312 = vld [vmem:[%s974 + $0xa80] sm:$0xff]
                  %1313 = vst [vmem:[%s975 + $0x540] sm:$0xff] %v1312
                  %v1314 = vld [vmem:[%s974 + $0xa90] sm:$0xff]
                  %1315 = vst [vmem:[%s975 + $0x548] sm:$0xff] %v1314
                  %v1316 = vld [vmem:[%s974 + $0xaa0] sm:$0xff]
                  %1317 = vst [vmem:[%s975 + $0x550] sm:$0xff] %v1316
                  %v1318 = vld [vmem:[%s974 + $0xab0] sm:$0xff]
                  %1319 = vst [vmem:[%s975 + $0x558] sm:$0xff] %v1318
                  %v1320 = vld [vmem:[%s974 + $0xac0] sm:$0xff]
                  %1321 = vst [vmem:[%s975 + $0x560] sm:$0xff] %v1320
                  %v1322 = vld [vmem:[%s974 + $0xad0] sm:$0xff]
                  %1323 = vst [vmem:[%s975 + $0x568] sm:$0xff] %v1322
                  %v1324 = vld [vmem:[%s974 + $0xae0] sm:$0xff]
                  %1325 = vst [vmem:[%s975 + $0x570] sm:$0xff] %v1324
                  %v1326 = vld [vmem:[%s974 + $0xaf0] sm:$0xff]
                  %1327 = vst [vmem:[%s975 + $0x578] sm:$0xff] %v1326
                  %v1328 = vld [vmem:[%s974 + $0xb00] sm:$0xff]
                  %1329 = vst [vmem:[%s975 + $0x580] sm:$0xff] %v1328
                  %v1330 = vld [vmem:[%s974 + $0xb10] sm:$0xff]
                  %1331 = vst [vmem:[%s975 + $0x588] sm:$0xff] %v1330
                  %v1332 = vld [vmem:[%s974 + $0xb20] sm:$0xff]
                  %1333 = vst [vmem:[%s975 + $0x590] sm:$0xff] %v1332
                  %v1334 = vld [vmem:[%s974 + $0xb30] sm:$0xff]
                  %1335 = vst [vmem:[%s975 + $0x598] sm:$0xff] %v1334
                  %v1336 = vld [vmem:[%s974 + $0xb40] sm:$0xff]
                  %1337 = vst [vmem:[%s975 + $0x5a0] sm:$0xff] %v1336
                  %v1338 = vld [vmem:[%s974 + $0xb50] sm:$0xff]
                  %1339 = vst [vmem:[%s975 + $0x5a8] sm:$0xff] %v1338
                  %v1340 = vld [vmem:[%s974 + $0xb60] sm:$0xff]
                  %1341 = vst [vmem:[%s975 + $0x5b0] sm:$0xff] %v1340
                  %v1342 = vld [vmem:[%s974 + $0xb70] sm:$0xff]
                  %1343 = vst [vmem:[%s975 + $0x5b8] sm:$0xff] %v1342
                  %v1344 = vld [vmem:[%s974 + $0xb80] sm:$0xff]
                  %1345 = vst [vmem:[%s975 + $0x5c0] sm:$0xff] %v1344
                  %v1346 = vld [vmem:[%s974 + $0xb90] sm:$0xff]
                  %1347 = vst [vmem:[%s975 + $0x5c8] sm:$0xff] %v1346
                  %v1348 = vld [vmem:[%s974 + $0xba0] sm:$0xff]
                  %1349 = vst [vmem:[%s975 + $0x5d0] sm:$0xff] %v1348
                  %v1350 = vld [vmem:[%s974 + $0xbb0] sm:$0xff]
                  %1351 = vst [vmem:[%s975 + $0x5d8] sm:$0xff] %v1350
                  %v1352 = vld [vmem:[%s974 + $0xbc0] sm:$0xff]
                  %1353 = vst [vmem:[%s975 + $0x5e0] sm:$0xff] %v1352
                  %v1354 = vld [vmem:[%s974 + $0xbd0] sm:$0xff]
                  %1355 = vst [vmem:[%s975 + $0x5e8] sm:$0xff] %v1354
                  %v1356 = vld [vmem:[%s974 + $0xbe0] sm:$0xff]
                  %1357 = vst [vmem:[%s975 + $0x5f0] sm:$0xff] %v1356
                  %v1358 = vld [vmem:[%s974 + $0xbf0] sm:$0xff]
                  %1359 = vst [vmem:[%s975 + $0x5f8] sm:$0xff] %v1358
                  %v1360 = vld [vmem:[%s974 + $0xc00] sm:$0xff]
                  %1361 = vst [vmem:[%s975 + $0x600] sm:$0xff] %v1360
                  %v1362 = vld [vmem:[%s974 + $0xc10] sm:$0xff]
                  %1363 = vst [vmem:[%s975 + $0x608] sm:$0xff] %v1362
                  %v1364 = vld [vmem:[%s974 + $0xc20] sm:$0xff]
                  %1365 = vst [vmem:[%s975 + $0x610] sm:$0xff] %v1364
                  %v1366 = vld [vmem:[%s974 + $0xc30] sm:$0xff]
                  %1367 = vst [vmem:[%s975 + $0x618] sm:$0xff] %v1366
                  %v1368 = vld [vmem:[%s974 + $0xc40] sm:$0xff]
                  %1369 = vst [vmem:[%s975 + $0x620] sm:$0xff] %v1368
                  %v1370 = vld [vmem:[%s974 + $0xc50] sm:$0xff]
                  %1371 = vst [vmem:[%s975 + $0x628] sm:$0xff] %v1370
                  %v1372 = vld [vmem:[%s974 + $0xc60] sm:$0xff]
                  %1373 = vst [vmem:[%s975 + $0x630] sm:$0xff] %v1372
                  %v1374 = vld [vmem:[%s974 + $0xc70] sm:$0xff]
                  %1375 = vst [vmem:[%s975 + $0x638] sm:$0xff] %v1374
                  %v1376 = vld [vmem:[%s974 + $0xc80] sm:$0xff]
                  %1377 = vst [vmem:[%s975 + $0x640] sm:$0xff] %v1376
                  %v1378 = vld [vmem:[%s974 + $0xc90] sm:$0xff]
                  %1379 = vst [vmem:[%s975 + $0x648] sm:$0xff] %v1378
                  %v1380 = vld [vmem:[%s974 + $0xca0] sm:$0xff]
                  %1381 = vst [vmem:[%s975 + $0x650] sm:$0xff] %v1380
                  %v1382 = vld [vmem:[%s974 + $0xcb0] sm:$0xff]
                  %1383 = vst [vmem:[%s975 + $0x658] sm:$0xff] %v1382
                  %v1384 = vld [vmem:[%s974 + $0xcc0] sm:$0xff]
                  %1385 = vst [vmem:[%s975 + $0x660] sm:$0xff] %v1384
                  %v1386 = vld [vmem:[%s974 + $0xcd0] sm:$0xff]
                  %1387 = vst [vmem:[%s975 + $0x668] sm:$0xff] %v1386
                  %v1388 = vld [vmem:[%s974 + $0xce0] sm:$0xff]
                  %1389 = vst [vmem:[%s975 + $0x670] sm:$0xff] %v1388
                  %v1390 = vld [vmem:[%s974 + $0xcf0] sm:$0xff]
                  %1391 = vst [vmem:[%s975 + $0x678] sm:$0xff] %v1390
                  %v1392 = vld [vmem:[%s974 + $0xd00] sm:$0xff]
                  %1393 = vst [vmem:[%s975 + $0x680] sm:$0xff] %v1392
                  %v1394 = vld [vmem:[%s974 + $0xd10] sm:$0xff]
                  %1395 = vst [vmem:[%s975 + $0x688] sm:$0xff] %v1394
                  %v1396 = vld [vmem:[%s974 + $0xd20] sm:$0xff]
                  %1397 = vst [vmem:[%s975 + $0x690] sm:$0xff] %v1396
                  %v1398 = vld [vmem:[%s974 + $0xd30] sm:$0xff]
                  %1399 = vst [vmem:[%s975 + $0x698] sm:$0xff] %v1398
                  %v1400 = vld [vmem:[%s974 + $0xd40] sm:$0xff]
                  %1401 = vst [vmem:[%s975 + $0x6a0] sm:$0xff] %v1400
                  %v1402 = vld [vmem:[%s974 + $0xd50] sm:$0xff]
                  %1403 = vst [vmem:[%s975 + $0x6a8] sm:$0xff] %v1402
                  %v1404 = vld [vmem:[%s974 + $0xd60] sm:$0xff]
                  %1405 = vst [vmem:[%s975 + $0x6b0] sm:$0xff] %v1404
                  %v1406 = vld [vmem:[%s974 + $0xd70] sm:$0xff]
                  %1407 = vst [vmem:[%s975 + $0x6b8] sm:$0xff] %v1406
                  %v1408 = vld [vmem:[%s974 + $0xd80] sm:$0xff]
                  %1409 = vst [vmem:[%s975 + $0x6c0] sm:$0xff] %v1408
                  %v1410 = vld [vmem:[%s974 + $0xd90] sm:$0xff]
                  %1411 = vst [vmem:[%s975 + $0x6c8] sm:$0xff] %v1410
                  %v1412 = vld [vmem:[%s974 + $0xda0] sm:$0xff]
                  %1413 = vst [vmem:[%s975 + $0x6d0] sm:$0xff] %v1412
                  %v1414 = vld [vmem:[%s974 + $0xdb0] sm:$0xff]
                  %1415 = vst [vmem:[%s975 + $0x6d8] sm:$0xff] %v1414
                  %v1416 = vld [vmem:[%s974 + $0xdc0] sm:$0xff]
                  %1417 = vst [vmem:[%s975 + $0x6e0] sm:$0xff] %v1416
                  %v1418 = vld [vmem:[%s974 + $0xdd0] sm:$0xff]
                  %1419 = vst [vmem:[%s975 + $0x6e8] sm:$0xff] %v1418
                  %v1420 = vld [vmem:[%s974 + $0xde0] sm:$0xff]
                  %1421 = vst [vmem:[%s975 + $0x6f0] sm:$0xff] %v1420
                  %v1422 = vld [vmem:[%s974 + $0xdf0] sm:$0xff]
                  %1423 = vst [vmem:[%s975 + $0x6f8] sm:$0xff] %v1422
                  %v1424 = vld [vmem:[%s974 + $0xe00] sm:$0xff]
                  %1425 = vst [vmem:[%s975 + $0x700] sm:$0xff] %v1424
                  %v1426 = vld [vmem:[%s974 + $0xe10] sm:$0xff]
                  %1427 = vst [vmem:[%s975 + $0x708] sm:$0xff] %v1426
                  %v1428 = vld [vmem:[%s974 + $0xe20] sm:$0xff]
                  %1429 = vst [vmem:[%s975 + $0x710] sm:$0xff] %v1428
                  %v1430 = vld [vmem:[%s974 + $0xe30] sm:$0xff]
                  %1431 = vst [vmem:[%s975 + $0x718] sm:$0xff] %v1430
                  %v1432 = vld [vmem:[%s974 + $0xe40] sm:$0xff]
                  %1433 = vst [vmem:[%s975 + $0x720] sm:$0xff] %v1432
                  %v1434 = vld [vmem:[%s974 + $0xe50] sm:$0xff]
                  %1435 = vst [vmem:[%s975 + $0x728] sm:$0xff] %v1434
                  %v1436 = vld [vmem:[%s974 + $0xe60] sm:$0xff]
                  %1437 = vst [vmem:[%s975 + $0x730] sm:$0xff] %v1436
                  %v1438 = vld [vmem:[%s974 + $0xe70] sm:$0xff]
                  %1439 = vst [vmem:[%s975 + $0x738] sm:$0xff] %v1438
                  %v1440 = vld [vmem:[%s974 + $0xe80] sm:$0xff]
                  %1441 = vst [vmem:[%s975 + $0x740] sm:$0xff] %v1440
                  %v1442 = vld [vmem:[%s974 + $0xe90] sm:$0xff]
                  %1443 = vst [vmem:[%s975 + $0x748] sm:$0xff] %v1442
                  %v1444 = vld [vmem:[%s974 + $0xea0] sm:$0xff]
                  %1445 = vst [vmem:[%s975 + $0x750] sm:$0xff] %v1444
                  %v1446 = vld [vmem:[%s974 + $0xeb0] sm:$0xff]
                  %1447 = vst [vmem:[%s975 + $0x758] sm:$0xff] %v1446
                  %v1448 = vld [vmem:[%s974 + $0xec0] sm:$0xff]
                  %1449 = vst [vmem:[%s975 + $0x760] sm:$0xff] %v1448
                  %v1450 = vld [vmem:[%s974 + $0xed0] sm:$0xff]
                  %1451 = vst [vmem:[%s975 + $0x768] sm:$0xff] %v1450
                  %v1452 = vld [vmem:[%s974 + $0xee0] sm:$0xff]
                  %1453 = vst [vmem:[%s975 + $0x770] sm:$0xff] %v1452
                  %v1454 = vld [vmem:[%s974 + $0xef0] sm:$0xff]
                  %1455 = vst [vmem:[%s975 + $0x778] sm:$0xff] %v1454
                  %v1456 = vld [vmem:[%s974 + $0xf00] sm:$0xff]
                  %1457 = vst [vmem:[%s975 + $0x780] sm:$0xff] %v1456
                  %v1458 = vld [vmem:[%s974 + $0xf10] sm:$0xff]
                  %1459 = vst [vmem:[%s975 + $0x788] sm:$0xff] %v1458
                  %v1460 = vld [vmem:[%s974 + $0xf20] sm:$0xff]
                  %1461 = vst [vmem:[%s975 + $0x790] sm:$0xff] %v1460
                  %v1462 = vld [vmem:[%s974 + $0xf30] sm:$0xff]
                  %1463 = vst [vmem:[%s975 + $0x798] sm:$0xff] %v1462
                  %v1464 = vld [vmem:[%s974 + $0xf40] sm:$0xff]
                  %1465 = vst [vmem:[%s975 + $0x7a0] sm:$0xff] %v1464
                  %v1466 = vld [vmem:[%s974 + $0xf50] sm:$0xff]
                  %1467 = vst [vmem:[%s975 + $0x7a8] sm:$0xff] %v1466
                  %v1468 = vld [vmem:[%s974 + $0xf60] sm:$0xff]
                  %1469 = vst [vmem:[%s975 + $0x7b0] sm:$0xff] %v1468
                  %v1470 = vld [vmem:[%s974 + $0xf70] sm:$0xff]
                  %1471 = vst [vmem:[%s975 + $0x7b8] sm:$0xff] %v1470
                  %v1472 = vld [vmem:[%s974 + $0xf80] sm:$0xff]
                  %1473 = vst [vmem:[%s975 + $0x7c0] sm:$0xff] %v1472
                  %v1474 = vld [vmem:[%s974 + $0xf90] sm:$0xff]
                  %1475 = vst [vmem:[%s975 + $0x7c8] sm:$0xff] %v1474
                  %v1476 = vld [vmem:[%s974 + $0xfa0] sm:$0xff]
                  %1477 = vst [vmem:[%s975 + $0x7d0] sm:$0xff] %v1476
                  %v1478 = vld [vmem:[%s974 + $0xfb0] sm:$0xff]
                  %1479 = vst [vmem:[%s975 + $0x7d8] sm:$0xff] %v1478
                  %v1480 = vld [vmem:[%s974 + $0xfc0] sm:$0xff]
                  %1481 = vst [vmem:[%s975 + $0x7e0] sm:$0xff] %v1480
                  %v1482 = vld [vmem:[%s974 + $0xfd0] sm:$0xff]
                  %1483 = vst [vmem:[%s975 + $0x7e8] sm:$0xff] %v1482
                  %v1484 = vld [vmem:[%s974 + $0xfe0] sm:$0xff]
                  %1485 = vst [vmem:[%s975 + $0x7f0] sm:$0xff] %v1484
                  %v1486 = vld [vmem:[%s974 + $0xff0] sm:$0xff]
                  %1487 = vst [vmem:[%s975 + $0x7f8] sm:$0xff] %v1486
                  %v1488 = vld [vmem:[%s974 + $0x1000] sm:$0xff]
                  %1489 = vst [vmem:[%s975 + $0x800] sm:$0xff] %v1488
                  %v1490 = vld [vmem:[%s974 + $0x1010] sm:$0xff]
                  %1491 = vst [vmem:[%s975 + $0x808] sm:$0xff] %v1490
                  %v1492 = vld [vmem:[%s974 + $0x1020] sm:$0xff]
                  %1493 = vst [vmem:[%s975 + $0x810] sm:$0xff] %v1492
                  %v1494 = vld [vmem:[%s974 + $0x1030] sm:$0xff]
                  %1495 = vst [vmem:[%s975 + $0x818] sm:$0xff] %v1494
                  %v1496 = vld [vmem:[%s974 + $0x1040] sm:$0xff]
                  %1497 = vst [vmem:[%s975 + $0x820] sm:$0xff] %v1496
                  %v1498 = vld [vmem:[%s974 + $0x1050] sm:$0xff]
                  %1499 = vst [vmem:[%s975 + $0x828] sm:$0xff] %v1498
                  %v1500 = vld [vmem:[%s974 + $0x1060] sm:$0xff]
                  %1501 = vst [vmem:[%s975 + $0x830] sm:$0xff] %v1500
                  %v1502 = vld [vmem:[%s974 + $0x1070] sm:$0xff]
                  %1503 = vst [vmem:[%s975 + $0x838] sm:$0xff] %v1502
                  %v1504 = vld [vmem:[%s974 + $0x1080] sm:$0xff]
                  %1505 = vst [vmem:[%s975 + $0x840] sm:$0xff] %v1504
                  %v1506 = vld [vmem:[%s974 + $0x1090] sm:$0xff]
                  %1507 = vst [vmem:[%s975 + $0x848] sm:$0xff] %v1506
                  %v1508 = vld [vmem:[%s974 + $0x10a0] sm:$0xff]
                  %1509 = vst [vmem:[%s975 + $0x850] sm:$0xff] %v1508
                  %v1510 = vld [vmem:[%s974 + $0x10b0] sm:$0xff]
                  %1511 = vst [vmem:[%s975 + $0x858] sm:$0xff] %v1510
                  %v1512 = vld [vmem:[%s974 + $0x10c0] sm:$0xff]
                  %1513 = vst [vmem:[%s975 + $0x860] sm:$0xff] %v1512
                  %v1514 = vld [vmem:[%s974 + $0x10d0] sm:$0xff]
                  %1515 = vst [vmem:[%s975 + $0x868] sm:$0xff] %v1514
                  %v1516 = vld [vmem:[%s974 + $0x10e0] sm:$0xff]
                  %1517 = vst [vmem:[%s975 + $0x870] sm:$0xff] %v1516
                  %v1518 = vld [vmem:[%s974 + $0x10f0] sm:$0xff]
                  %1519 = vst [vmem:[%s975 + $0x878] sm:$0xff] %v1518
                  %v1520 = vld [vmem:[%s974 + $0x1100] sm:$0xff]
                  %1521 = vst [vmem:[%s975 + $0x880] sm:$0xff] %v1520
                  %v1522 = vld [vmem:[%s974 + $0x1110] sm:$0xff]
                  %1523 = vst [vmem:[%s975 + $0x888] sm:$0xff] %v1522
                  %v1524 = vld [vmem:[%s974 + $0x1120] sm:$0xff]
                  %1525 = vst [vmem:[%s975 + $0x890] sm:$0xff] %v1524
                  %v1526 = vld [vmem:[%s974 + $0x1130] sm:$0xff]
                  %1527 = vst [vmem:[%s975 + $0x898] sm:$0xff] %v1526
                  %v1528 = vld [vmem:[%s974 + $0x1140] sm:$0xff]
                  %1529 = vst [vmem:[%s975 + $0x8a0] sm:$0xff] %v1528
                  %v1530 = vld [vmem:[%s974 + $0x1150] sm:$0xff]
                  %1531 = vst [vmem:[%s975 + $0x8a8] sm:$0xff] %v1530
                  %v1532 = vld [vmem:[%s974 + $0x1160] sm:$0xff]
                  %1533 = vst [vmem:[%s975 + $0x8b0] sm:$0xff] %v1532
                  %v1534 = vld [vmem:[%s974 + $0x1170] sm:$0xff]
                  %1535 = vst [vmem:[%s975 + $0x8b8] sm:$0xff] %v1534
                  %v1536 = vld [vmem:[%s974 + $0x1180] sm:$0xff]
                  %1537 = vst [vmem:[%s975 + $0x8c0] sm:$0xff] %v1536
                  %v1538 = vld [vmem:[%s974 + $0x1190] sm:$0xff]
                  %1539 = vst [vmem:[%s975 + $0x8c8] sm:$0xff] %v1538
                  %v1540 = vld [vmem:[%s974 + $0x11a0] sm:$0xff]
                  %1541 = vst [vmem:[%s975 + $0x8d0] sm:$0xff] %v1540
                  %v1542 = vld [vmem:[%s974 + $0x11b0] sm:$0xff]
                  %1543 = vst [vmem:[%s975 + $0x8d8] sm:$0xff] %v1542
                  %v1544 = vld [vmem:[%s974 + $0x11c0] sm:$0xff]
                  %1545 = vst [vmem:[%s975 + $0x8e0] sm:$0xff] %v1544
                  %v1546 = vld [vmem:[%s974 + $0x11d0] sm:$0xff]
                  %1547 = vst [vmem:[%s975 + $0x8e8] sm:$0xff] %v1546
                  %v1548 = vld [vmem:[%s974 + $0x11e0] sm:$0xff]
                  %1549 = vst [vmem:[%s975 + $0x8f0] sm:$0xff] %v1548
                  %v1550 = vld [vmem:[%s974 + $0x11f0] sm:$0xff]
                  %1551 = vst [vmem:[%s975 + $0x8f8] sm:$0xff] %v1550
                  %v1552 = vld [vmem:[%s974 + $0x1200] sm:$0xff]
                  %1553 = vst [vmem:[%s975 + $0x900] sm:$0xff] %v1552
                  %v1554 = vld [vmem:[%s974 + $0x1210] sm:$0xff]
                  %1555 = vst [vmem:[%s975 + $0x908] sm:$0xff] %v1554
                  %v1556 = vld [vmem:[%s974 + $0x1220] sm:$0xff]
                  %1557 = vst [vmem:[%s975 + $0x910] sm:$0xff] %v1556
                  %v1558 = vld [vmem:[%s974 + $0x1230] sm:$0xff]
                  %1559 = vst [vmem:[%s975 + $0x918] sm:$0xff] %v1558
                  %v1560 = vld [vmem:[%s974 + $0x1240] sm:$0xff]
                  %1561 = vst [vmem:[%s975 + $0x920] sm:$0xff] %v1560
                  %v1562 = vld [vmem:[%s974 + $0x1250] sm:$0xff]
                  %1563 = vst [vmem:[%s975 + $0x928] sm:$0xff] %v1562
                  %v1564 = vld [vmem:[%s974 + $0x1260] sm:$0xff]
                  %1565 = vst [vmem:[%s975 + $0x930] sm:$0xff] %v1564
                  %v1566 = vld [vmem:[%s974 + $0x1270] sm:$0xff]
                  %1567 = vst [vmem:[%s975 + $0x938] sm:$0xff] %v1566
                  %v1568 = vld [vmem:[%s974 + $0x1280] sm:$0xff]
                  %1569 = vst [vmem:[%s975 + $0x940] sm:$0xff] %v1568
                  %v1570 = vld [vmem:[%s974 + $0x1290] sm:$0xff]
                  %1571 = vst [vmem:[%s975 + $0x948] sm:$0xff] %v1570
                  %v1572 = vld [vmem:[%s974 + $0x12a0] sm:$0xff]
                  %1573 = vst [vmem:[%s975 + $0x950] sm:$0xff] %v1572
                  %v1574 = vld [vmem:[%s974 + $0x12b0] sm:$0xff]
                  %1575 = vst [vmem:[%s975 + $0x958] sm:$0xff] %v1574
                  %v1576 = vld [vmem:[%s974 + $0x12c0] sm:$0xff]
                  %1577 = vst [vmem:[%s975 + $0x960] sm:$0xff] %v1576
                  %v1578 = vld [vmem:[%s974 + $0x12d0] sm:$0xff]
                  %1579 = vst [vmem:[%s975 + $0x968] sm:$0xff] %v1578
                  %v1580 = vld [vmem:[%s974 + $0x12e0] sm:$0xff]
                  %1581 = vst [vmem:[%s975 + $0x970] sm:$0xff] %v1580
                  %v1582 = vld [vmem:[%s974 + $0x12f0] sm:$0xff]
                  %1583 = vst [vmem:[%s975 + $0x978] sm:$0xff] %v1582
                  %v1584 = vld [vmem:[%s974 + $0x1300] sm:$0xff]
                  %1585 = vst [vmem:[%s975 + $0x980] sm:$0xff] %v1584
                  %v1586 = vld [vmem:[%s974 + $0x1310] sm:$0xff]
                  %1587 = vst [vmem:[%s975 + $0x988] sm:$0xff] %v1586
                  %v1588 = vld [vmem:[%s974 + $0x1320] sm:$0xff]
                  %1589 = vst [vmem:[%s975 + $0x990] sm:$0xff] %v1588
                  %v1590 = vld [vmem:[%s974 + $0x1330] sm:$0xff]
                  %1591 = vst [vmem:[%s975 + $0x998] sm:$0xff] %v1590
                  %v1592 = vld [vmem:[%s974 + $0x1340] sm:$0xff]
                  %1593 = vst [vmem:[%s975 + $0x9a0] sm:$0xff] %v1592
                  %v1594 = vld [vmem:[%s974 + $0x1350] sm:$0xff]
                  %1595 = vst [vmem:[%s975 + $0x9a8] sm:$0xff] %v1594
                  %v1596 = vld [vmem:[%s974 + $0x1360] sm:$0xff]
                  %1597 = vst [vmem:[%s975 + $0x9b0] sm:$0xff] %v1596
                  %v1598 = vld [vmem:[%s974 + $0x1370] sm:$0xff]
                  %1599 = vst [vmem:[%s975 + $0x9b8] sm:$0xff] %v1598
                  %v1600 = vld [vmem:[%s974 + $0x1380] sm:$0xff]
                  %1601 = vst [vmem:[%s975 + $0x9c0] sm:$0xff] %v1600
                  %v1602 = vld [vmem:[%s974 + $0x1390] sm:$0xff]
                  %1603 = vst [vmem:[%s975 + $0x9c8] sm:$0xff] %v1602
                  %v1604 = vld [vmem:[%s974 + $0x13a0] sm:$0xff]
                  %1605 = vst [vmem:[%s975 + $0x9d0] sm:$0xff] %v1604
                  %v1606 = vld [vmem:[%s974 + $0x13b0] sm:$0xff]
                  %1607 = vst [vmem:[%s975 + $0x9d8] sm:$0xff] %v1606
                  %v1608 = vld [vmem:[%s974 + $0x13c0] sm:$0xff]
                  %1609 = vst [vmem:[%s975 + $0x9e0] sm:$0xff] %v1608
                  %v1610 = vld [vmem:[%s974 + $0x13d0] sm:$0xff]
                  %1611 = vst [vmem:[%s975 + $0x9e8] sm:$0xff] %v1610
                  %v1612 = vld [vmem:[%s974 + $0x13e0] sm:$0xff]
                  %1613 = vst [vmem:[%s975 + $0x9f0] sm:$0xff] %v1612
                  %v1614 = vld [vmem:[%s974 + $0x13f0] sm:$0xff]
                  %1615 = vst [vmem:[%s975 + $0x9f8] sm:$0xff] %v1614
                  %v1616 = vld [vmem:[%s974 + $0x1400] sm:$0xff]
                  %1617 = vst [vmem:[%s975 + $0xa00] sm:$0xff] %v1616
                  %v1618 = vld [vmem:[%s974 + $0x1410] sm:$0xff]
                  %1619 = vst [vmem:[%s975 + $0xa08] sm:$0xff] %v1618
                  %v1620 = vld [vmem:[%s974 + $0x1420] sm:$0xff]
                  %1621 = vst [vmem:[%s975 + $0xa10] sm:$0xff] %v1620
                  %v1622 = vld [vmem:[%s974 + $0x1430] sm:$0xff]
                  %1623 = vst [vmem:[%s975 + $0xa18] sm:$0xff] %v1622
                  %v1624 = vld [vmem:[%s974 + $0x1440] sm:$0xff]
                  %1625 = vst [vmem:[%s975 + $0xa20] sm:$0xff] %v1624
                  %v1626 = vld [vmem:[%s974 + $0x1450] sm:$0xff]
                  %1627 = vst [vmem:[%s975 + $0xa28] sm:$0xff] %v1626
                  %v1628 = vld [vmem:[%s974 + $0x1460] sm:$0xff]
                  %1629 = vst [vmem:[%s975 + $0xa30] sm:$0xff] %v1628
                  %v1630 = vld [vmem:[%s974 + $0x1470] sm:$0xff]
                  %1631 = vst [vmem:[%s975 + $0xa38] sm:$0xff] %v1630
                  %v1632 = vld [vmem:[%s974 + $0x1480] sm:$0xff]
                  %1633 = vst [vmem:[%s975 + $0xa40] sm:$0xff] %v1632
                  %v1634 = vld [vmem:[%s974 + $0x1490] sm:$0xff]
                  %1635 = vst [vmem:[%s975 + $0xa48] sm:$0xff] %v1634
                  %v1636 = vld [vmem:[%s974 + $0x14a0] sm:$0xff]
                  %1637 = vst [vmem:[%s975 + $0xa50] sm:$0xff] %v1636
                  %v1638 = vld [vmem:[%s974 + $0x14b0] sm:$0xff]
                  %1639 = vst [vmem:[%s975 + $0xa58] sm:$0xff] %v1638
                  %v1640 = vld [vmem:[%s974 + $0x14c0] sm:$0xff]
                  %1641 = vst [vmem:[%s975 + $0xa60] sm:$0xff] %v1640
                  %v1642 = vld [vmem:[%s974 + $0x14d0] sm:$0xff]
                  %1643 = vst [vmem:[%s975 + $0xa68] sm:$0xff] %v1642
                  %v1644 = vld [vmem:[%s974 + $0x14e0] sm:$0xff]
                  %1645 = vst [vmem:[%s975 + $0xa70] sm:$0xff] %v1644
                  %v1646 = vld [vmem:[%s974 + $0x14f0] sm:$0xff]
                  %1647 = vst [vmem:[%s975 + $0xa78] sm:$0xff] %v1646
                  %v1648 = vld [vmem:[%s974 + $0x1500] sm:$0xff]
                  %1649 = vst [vmem:[%s975 + $0xa80] sm:$0xff] %v1648
                  %v1650 = vld [vmem:[%s974 + $0x1510] sm:$0xff]
                  %1651 = vst [vmem:[%s975 + $0xa88] sm:$0xff] %v1650
                  %v1652 = vld [vmem:[%s974 + $0x1520] sm:$0xff]
                  %1653 = vst [vmem:[%s975 + $0xa90] sm:$0xff] %v1652
                  %v1654 = vld [vmem:[%s974 + $0x1530] sm:$0xff]
                  %1655 = vst [vmem:[%s975 + $0xa98] sm:$0xff] %v1654
                  %v1656 = vld [vmem:[%s974 + $0x1540] sm:$0xff]
                  %1657 = vst [vmem:[%s975 + $0xaa0] sm:$0xff] %v1656
                  %v1658 = vld [vmem:[%s974 + $0x1550] sm:$0xff]
                  %1659 = vst [vmem:[%s975 + $0xaa8] sm:$0xff] %v1658
                  %v1660 = vld [vmem:[%s974 + $0x1560] sm:$0xff]
                  %1661 = vst [vmem:[%s975 + $0xab0] sm:$0xff] %v1660
                  %v1662 = vld [vmem:[%s974 + $0x1570] sm:$0xff]
                  %1663 = vst [vmem:[%s975 + $0xab8] sm:$0xff] %v1662
                  %v1664 = vld [vmem:[%s974 + $0x1580] sm:$0xff]
                  %1665 = vst [vmem:[%s975 + $0xac0] sm:$0xff] %v1664
                  %v1666 = vld [vmem:[%s974 + $0x1590] sm:$0xff]
                  %1667 = vst [vmem:[%s975 + $0xac8] sm:$0xff] %v1666
                  %v1668 = vld [vmem:[%s974 + $0x15a0] sm:$0xff]
                  %1669 = vst [vmem:[%s975 + $0xad0] sm:$0xff] %v1668
                  %v1670 = vld [vmem:[%s974 + $0x15b0] sm:$0xff]
                  %1671 = vst [vmem:[%s975 + $0xad8] sm:$0xff] %v1670
                  %v1672 = vld [vmem:[%s974 + $0x15c0] sm:$0xff]
                  %1673 = vst [vmem:[%s975 + $0xae0] sm:$0xff] %v1672
                  %v1674 = vld [vmem:[%s974 + $0x15d0] sm:$0xff]
                  %1675 = vst [vmem:[%s975 + $0xae8] sm:$0xff] %v1674
                  %v1676 = vld [vmem:[%s974 + $0x15e0] sm:$0xff]
                  %1677 = vst [vmem:[%s975 + $0xaf0] sm:$0xff] %v1676
                  %v1678 = vld [vmem:[%s974 + $0x15f0] sm:$0xff]
                  %1679 = vst [vmem:[%s975 + $0xaf8] sm:$0xff] %v1678
                  %v1680 = vld [vmem:[%s974 + $0x1600] sm:$0xff]
                  %1681 = vst [vmem:[%s975 + $0xb00] sm:$0xff] %v1680
                  %v1682 = vld [vmem:[%s974 + $0x1610] sm:$0xff]
                  %1683 = vst [vmem:[%s975 + $0xb08] sm:$0xff] %v1682
                  %v1684 = vld [vmem:[%s974 + $0x1620] sm:$0xff]
                  %1685 = vst [vmem:[%s975 + $0xb10] sm:$0xff] %v1684
                  %v1686 = vld [vmem:[%s974 + $0x1630] sm:$0xff]
                  %1687 = vst [vmem:[%s975 + $0xb18] sm:$0xff] %v1686
                  %v1688 = vld [vmem:[%s974 + $0x1640] sm:$0xff]
                  %1689 = vst [vmem:[%s975 + $0xb20] sm:$0xff] %v1688
                  %v1690 = vld [vmem:[%s974 + $0x1650] sm:$0xff]
                  %1691 = vst [vmem:[%s975 + $0xb28] sm:$0xff] %v1690
                  %v1692 = vld [vmem:[%s974 + $0x1660] sm:$0xff]
                  %1693 = vst [vmem:[%s975 + $0xb30] sm:$0xff] %v1692
                  %v1694 = vld [vmem:[%s974 + $0x1670] sm:$0xff]
                  %1695 = vst [vmem:[%s975 + $0xb38] sm:$0xff] %v1694
                  %v1696 = vld [vmem:[%s974 + $0x1680] sm:$0xff]
                  %1697 = vst [vmem:[%s975 + $0xb40] sm:$0xff] %v1696
                  %v1698 = vld [vmem:[%s974 + $0x1690] sm:$0xff]
                  %1699 = vst [vmem:[%s975 + $0xb48] sm:$0xff] %v1698
                  %v1700 = vld [vmem:[%s974 + $0x16a0] sm:$0xff]
                  %1701 = vst [vmem:[%s975 + $0xb50] sm:$0xff] %v1700
                  %v1702 = vld [vmem:[%s974 + $0x16b0] sm:$0xff]
                  %1703 = vst [vmem:[%s975 + $0xb58] sm:$0xff] %v1702
                  %v1704 = vld [vmem:[%s974 + $0x16c0] sm:$0xff]
                  %1705 = vst [vmem:[%s975 + $0xb60] sm:$0xff] %v1704
                  %v1706 = vld [vmem:[%s974 + $0x16d0] sm:$0xff]
                  %1707 = vst [vmem:[%s975 + $0xb68] sm:$0xff] %v1706
                  %v1708 = vld [vmem:[%s974 + $0x16e0] sm:$0xff]
                  %1709 = vst [vmem:[%s975 + $0xb70] sm:$0xff] %v1708
                  %v1710 = vld [vmem:[%s974 + $0x16f0] sm:$0xff]
                  %1711 = vst [vmem:[%s975 + $0xb78] sm:$0xff] %v1710
                  %v1712 = vld [vmem:[%s974 + $0x1700] sm:$0xff]
                  %1713 = vst [vmem:[%s975 + $0xb80] sm:$0xff] %v1712
                  %v1714 = vld [vmem:[%s974 + $0x1710] sm:$0xff]
                  %1715 = vst [vmem:[%s975 + $0xb88] sm:$0xff] %v1714
                  %v1716 = vld [vmem:[%s974 + $0x1720] sm:$0xff]
                  %1717 = vst [vmem:[%s975 + $0xb90] sm:$0xff] %v1716
                  %v1718 = vld [vmem:[%s974 + $0x1730] sm:$0xff]
                  %1719 = vst [vmem:[%s975 + $0xb98] sm:$0xff] %v1718
                  %v1720 = vld [vmem:[%s974 + $0x1740] sm:$0xff]
                  %1721 = vst [vmem:[%s975 + $0xba0] sm:$0xff] %v1720
                  %v1722 = vld [vmem:[%s974 + $0x1750] sm:$0xff]
                  %1723 = vst [vmem:[%s975 + $0xba8] sm:$0xff] %v1722
                  %v1724 = vld [vmem:[%s974 + $0x1760] sm:$0xff]
                  %1725 = vst [vmem:[%s975 + $0xbb0] sm:$0xff] %v1724
                  %v1726 = vld [vmem:[%s974 + $0x1770] sm:$0xff]
                  %1727 = vst [vmem:[%s975 + $0xbb8] sm:$0xff] %v1726
                  %v1728 = vld [vmem:[%s974 + $0x1780] sm:$0xff]
                  %1729 = vst [vmem:[%s975 + $0xbc0] sm:$0xff] %v1728
                  %v1730 = vld [vmem:[%s974 + $0x1790] sm:$0xff]
                  %1731 = vst [vmem:[%s975 + $0xbc8] sm:$0xff] %v1730
                  %v1732 = vld [vmem:[%s974 + $0x17a0] sm:$0xff]
                  %1733 = vst [vmem:[%s975 + $0xbd0] sm:$0xff] %v1732
                  %v1734 = vld [vmem:[%s974 + $0x17b0] sm:$0xff]
                  %1735 = vst [vmem:[%s975 + $0xbd8] sm:$0xff] %v1734
                  %v1736 = vld [vmem:[%s974 + $0x17c0] sm:$0xff]
                  %1737 = vst [vmem:[%s975 + $0xbe0] sm:$0xff] %v1736
                  %v1738 = vld [vmem:[%s974 + $0x17d0] sm:$0xff]
                  %1739 = vst [vmem:[%s975 + $0xbe8] sm:$0xff] %v1738
                  %v1740 = vld [vmem:[%s974 + $0x17e0] sm:$0xff]
                  %1741 = vst [vmem:[%s975 + $0xbf0] sm:$0xff] %v1740
                  %v1742 = vld [vmem:[%s974 + $0x17f0] sm:$0xff]
                  %1743 = vst [vmem:[%s975 + $0xbf8] sm:$0xff] %v1742
                  %v1744 = vld [vmem:[%s974 + $0x1800] sm:$0xff]
                  %1745 = vst [vmem:[%s975 + $0xc00] sm:$0xff] %v1744
                  %v1746 = vld [vmem:[%s974 + $0x1810] sm:$0xff]
                  %1747 = vst [vmem:[%s975 + $0xc08] sm:$0xff] %v1746
                  %v1748 = vld [vmem:[%s974 + $0x1820] sm:$0xff]
                  %1749 = vst [vmem:[%s975 + $0xc10] sm:$0xff] %v1748
                  %v1750 = vld [vmem:[%s974 + $0x1830] sm:$0xff]
                  %1751 = vst [vmem:[%s975 + $0xc18] sm:$0xff] %v1750
                  %v1752 = vld [vmem:[%s974 + $0x1840] sm:$0xff]
                  %1753 = vst [vmem:[%s975 + $0xc20] sm:$0xff] %v1752
                  %v1754 = vld [vmem:[%s974 + $0x1850] sm:$0xff]
                  %1755 = vst [vmem:[%s975 + $0xc28] sm:$0xff] %v1754
                  %v1756 = vld [vmem:[%s974 + $0x1860] sm:$0xff]
                  %1757 = vst [vmem:[%s975 + $0xc30] sm:$0xff] %v1756
                  %v1758 = vld [vmem:[%s974 + $0x1870] sm:$0xff]
                  %1759 = vst [vmem:[%s975 + $0xc38] sm:$0xff] %v1758
                $region52: #{dqn_forward.7} parent=46 // loop_footer
                  %s973 = sadd.s32 1, %s969
                $region53: #{dqn_forward.7} parent=46 // loop_footer_branch
                  %968 = sbr.rel target = $region49
                $region54: #{dqn_forward.7} parent=46 // loop_exit
                  _
              $region47: #{dqn_forward.7} parent=31 // pred_fallthru
                _
              // Predicated region
              $region55: #{dqn_forward.7} parent=31 // pred_check
                _
              $region56: #{dqn_forward.7} parent=31 // pred_check_branch
                %1761 = sbr.rel target = $region58
              $region57: #{dqn_forward.7} parent=31 // pred_region
                _
              $region58: #{dqn_forward.7} parent=31 // pred_fallthru
                _
            $region32: #{dqn_forward.7} parent=27 // pred_fallthru
              _
            // Predicated region
            $region33: #{dqn_forward.7} parent=27 // pred_check
              _
            $region34: #{dqn_forward.7} parent=27 // pred_check_branch
              %172 = sbr.rel target = $region36
            $region35: #{dqn_forward.7} parent=27 // pred_region
              loop: start=0, step=1, limit=1
              $region37: #{dqn_forward.7} parent=35 // loop_pre_header
                _
              $region38: #{dqn_forward.7} parent=35 // loop_header
                %s175 = sphi 0, %s179
                %p176 = scmp.ge.s32.totalorder %s175, 1
                %s180 = sphi %s166, %s166
                %s181 = sphi %s163, %s163
              $region39: #{dqn_forward.7} parent=35 // loop_header_branch
                %178 = sbr.rel (%p176) target = $region43
              $region40: #{dqn_forward.7} parent=35 // loop_body
                %v182 = vld [vmem:[%s180] sm:$0xff]
                %183 = vst [vmem:[%s181] sm:$0xff] %v182
                %v184 = vld [vmem:[%s180 + $0x10] sm:$0xff]
                %185 = vst [vmem:[%s181 + $0x8] sm:$0xff] %v184
                %v186 = vld [vmem:[%s180 + $0x20] sm:$0xff]
                %187 = vst [vmem:[%s181 + $0x10] sm:$0xff] %v186
                %v188 = vld [vmem:[%s180 + $0x30] sm:$0xff]
                %189 = vst [vmem:[%s181 + $0x18] sm:$0xff] %v188
                %v190 = vld [vmem:[%s180 + $0x40] sm:$0xff]
                %191 = vst [vmem:[%s181 + $0x20] sm:$0xff] %v190
                %v192 = vld [vmem:[%s180 + $0x50] sm:$0xff]
                %193 = vst [vmem:[%s181 + $0x28] sm:$0xff] %v192
                %v194 = vld [vmem:[%s180 + $0x60] sm:$0xff]
                %195 = vst [vmem:[%s181 + $0x30] sm:$0xff] %v194
                %v196 = vld [vmem:[%s180 + $0x70] sm:$0xff]
                %197 = vst [vmem:[%s181 + $0x38] sm:$0xff] %v196
                %v198 = vld [vmem:[%s180 + $0x80] sm:$0xff]
                %199 = vst [vmem:[%s181 + $0x40] sm:$0xff] %v198
                %v200 = vld [vmem:[%s180 + $0x90] sm:$0xff]
                %201 = vst [vmem:[%s181 + $0x48] sm:$0xff] %v200
                %v202 = vld [vmem:[%s180 + $0xa0] sm:$0xff]
                %203 = vst [vmem:[%s181 + $0x50] sm:$0xff] %v202
                %v204 = vld [vmem:[%s180 + $0xb0] sm:$0xff]
                %205 = vst [vmem:[%s181 + $0x58] sm:$0xff] %v204
                %v206 = vld [vmem:[%s180 + $0xc0] sm:$0xff]
                %207 = vst [vmem:[%s181 + $0x60] sm:$0xff] %v206
                %v208 = vld [vmem:[%s180 + $0xd0] sm:$0xff]
                %209 = vst [vmem:[%s181 + $0x68] sm:$0xff] %v208
                %v210 = vld [vmem:[%s180 + $0xe0] sm:$0xff]
                %211 = vst [vmem:[%s181 + $0x70] sm:$0xff] %v210
                %v212 = vld [vmem:[%s180 + $0xf0] sm:$0xff]
                %213 = vst [vmem:[%s181 + $0x78] sm:$0xff] %v212
                %v214 = vld [vmem:[%s180 + $0x100] sm:$0xff]
                %215 = vst [vmem:[%s181 + $0x80] sm:$0xff] %v214
                %v216 = vld [vmem:[%s180 + $0x110] sm:$0xff]
                %217 = vst [vmem:[%s181 + $0x88] sm:$0xff] %v216
                %v218 = vld [vmem:[%s180 + $0x120] sm:$0xff]
                %219 = vst [vmem:[%s181 + $0x90] sm:$0xff] %v218
                %v220 = vld [vmem:[%s180 + $0x130] sm:$0xff]
                %221 = vst [vmem:[%s181 + $0x98] sm:$0xff] %v220
                %v222 = vld [vmem:[%s180 + $0x140] sm:$0xff]
                %223 = vst [vmem:[%s181 + $0xa0] sm:$0xff] %v222
                %v224 = vld [vmem:[%s180 + $0x150] sm:$0xff]
                %225 = vst [vmem:[%s181 + $0xa8] sm:$0xff] %v224
                %v226 = vld [vmem:[%s180 + $0x160] sm:$0xff]
                %227 = vst [vmem:[%s181 + $0xb0] sm:$0xff] %v226
                %v228 = vld [vmem:[%s180 + $0x170] sm:$0xff]
                %229 = vst [vmem:[%s181 + $0xb8] sm:$0xff] %v228
                %v230 = vld [vmem:[%s180 + $0x180] sm:$0xff]
                %231 = vst [vmem:[%s181 + $0xc0] sm:$0xff] %v230
                %v232 = vld [vmem:[%s180 + $0x190] sm:$0xff]
                %233 = vst [vmem:[%s181 + $0xc8] sm:$0xff] %v232
                %v234 = vld [vmem:[%s180 + $0x1a0] sm:$0xff]
                %235 = vst [vmem:[%s181 + $0xd0] sm:$0xff] %v234
                %v236 = vld [vmem:[%s180 + $0x1b0] sm:$0xff]
                %237 = vst [vmem:[%s181 + $0xd8] sm:$0xff] %v236
                %v238 = vld [vmem:[%s180 + $0x1c0] sm:$0xff]
                %239 = vst [vmem:[%s181 + $0xe0] sm:$0xff] %v238
                %v240 = vld [vmem:[%s180 + $0x1d0] sm:$0xff]
                %241 = vst [vmem:[%s181 + $0xe8] sm:$0xff] %v240
                %v242 = vld [vmem:[%s180 + $0x1e0] sm:$0xff]
                %243 = vst [vmem:[%s181 + $0xf0] sm:$0xff] %v242
                %v244 = vld [vmem:[%s180 + $0x1f0] sm:$0xff]
                %245 = vst [vmem:[%s181 + $0xf8] sm:$0xff] %v244
                %v246 = vld [vmem:[%s180 + $0x200] sm:$0xff]
                %247 = vst [vmem:[%s181 + $0x100] sm:$0xff] %v246
                %v248 = vld [vmem:[%s180 + $0x210] sm:$0xff]
                %249 = vst [vmem:[%s181 + $0x108] sm:$0xff] %v248
                %v250 = vld [vmem:[%s180 + $0x220] sm:$0xff]
                %251 = vst [vmem:[%s181 + $0x110] sm:$0xff] %v250
                %v252 = vld [vmem:[%s180 + $0x230] sm:$0xff]
                %253 = vst [vmem:[%s181 + $0x118] sm:$0xff] %v252
                %v254 = vld [vmem:[%s180 + $0x240] sm:$0xff]
                %255 = vst [vmem:[%s181 + $0x120] sm:$0xff] %v254
                %v256 = vld [vmem:[%s180 + $0x250] sm:$0xff]
                %257 = vst [vmem:[%s181 + $0x128] sm:$0xff] %v256
                %v258 = vld [vmem:[%s180 + $0x260] sm:$0xff]
                %259 = vst [vmem:[%s181 + $0x130] sm:$0xff] %v258
                %v260 = vld [vmem:[%s180 + $0x270] sm:$0xff]
                %261 = vst [vmem:[%s181 + $0x138] sm:$0xff] %v260
                %v262 = vld [vmem:[%s180 + $0x280] sm:$0xff]
                %263 = vst [vmem:[%s181 + $0x140] sm:$0xff] %v262
                %v264 = vld [vmem:[%s180 + $0x290] sm:$0xff]
                %265 = vst [vmem:[%s181 + $0x148] sm:$0xff] %v264
                %v266 = vld [vmem:[%s180 + $0x2a0] sm:$0xff]
                %267 = vst [vmem:[%s181 + $0x150] sm:$0xff] %v266
                %v268 = vld [vmem:[%s180 + $0x2b0] sm:$0xff]
                %269 = vst [vmem:[%s181 + $0x158] sm:$0xff] %v268
                %v270 = vld [vmem:[%s180 + $0x2c0] sm:$0xff]
                %271 = vst [vmem:[%s181 + $0x160] sm:$0xff] %v270
                %v272 = vld [vmem:[%s180 + $0x2d0] sm:$0xff]
                %273 = vst [vmem:[%s181 + $0x168] sm:$0xff] %v272
                %v274 = vld [vmem:[%s180 + $0x2e0] sm:$0xff]
                %275 = vst [vmem:[%s181 + $0x170] sm:$0xff] %v274
                %v276 = vld [vmem:[%s180 + $0x2f0] sm:$0xff]
                %277 = vst [vmem:[%s181 + $0x178] sm:$0xff] %v276
                %v278 = vld [vmem:[%s180 + $0x300] sm:$0xff]
                %279 = vst [vmem:[%s181 + $0x180] sm:$0xff] %v278
                %v280 = vld [vmem:[%s180 + $0x310] sm:$0xff]
                %281 = vst [vmem:[%s181 + $0x188] sm:$0xff] %v280
                %v282 = vld [vmem:[%s180 + $0x320] sm:$0xff]
                %283 = vst [vmem:[%s181 + $0x190] sm:$0xff] %v282
                %v284 = vld [vmem:[%s180 + $0x330] sm:$0xff]
                %285 = vst [vmem:[%s181 + $0x198] sm:$0xff] %v284
                %v286 = vld [vmem:[%s180 + $0x340] sm:$0xff]
                %287 = vst [vmem:[%s181 + $0x1a0] sm:$0xff] %v286
                %v288 = vld [vmem:[%s180 + $0x350] sm:$0xff]
                %289 = vst [vmem:[%s181 + $0x1a8] sm:$0xff] %v288
                %v290 = vld [vmem:[%s180 + $0x360] sm:$0xff]
                %291 = vst [vmem:[%s181 + $0x1b0] sm:$0xff] %v290
                %v292 = vld [vmem:[%s180 + $0x370] sm:$0xff]
                %293 = vst [vmem:[%s181 + $0x1b8] sm:$0xff] %v292
                %v294 = vld [vmem:[%s180 + $0x380] sm:$0xff]
                %295 = vst [vmem:[%s181 + $0x1c0] sm:$0xff] %v294
                %v296 = vld [vmem:[%s180 + $0x390] sm:$0xff]
                %297 = vst [vmem:[%s181 + $0x1c8] sm:$0xff] %v296
                %v298 = vld [vmem:[%s180 + $0x3a0] sm:$0xff]
                %299 = vst [vmem:[%s181 + $0x1d0] sm:$0xff] %v298
                %v300 = vld [vmem:[%s180 + $0x3b0] sm:$0xff]
                %301 = vst [vmem:[%s181 + $0x1d8] sm:$0xff] %v300
                %v302 = vld [vmem:[%s180 + $0x3c0] sm:$0xff]
                %303 = vst [vmem:[%s181 + $0x1e0] sm:$0xff] %v302
                %v304 = vld [vmem:[%s180 + $0x3d0] sm:$0xff]
                %305 = vst [vmem:[%s181 + $0x1e8] sm:$0xff] %v304
                %v306 = vld [vmem:[%s180 + $0x3e0] sm:$0xff]
                %307 = vst [vmem:[%s181 + $0x1f0] sm:$0xff] %v306
                %v308 = vld [vmem:[%s180 + $0x3f0] sm:$0xff]
                %309 = vst [vmem:[%s181 + $0x1f8] sm:$0xff] %v308
                %v310 = vld [vmem:[%s180 + $0x400] sm:$0xff]
                %311 = vst [vmem:[%s181 + $0x200] sm:$0xff] %v310
                %v312 = vld [vmem:[%s180 + $0x410] sm:$0xff]
                %313 = vst [vmem:[%s181 + $0x208] sm:$0xff] %v312
                %v314 = vld [vmem:[%s180 + $0x420] sm:$0xff]
                %315 = vst [vmem:[%s181 + $0x210] sm:$0xff] %v314
                %v316 = vld [vmem:[%s180 + $0x430] sm:$0xff]
                %317 = vst [vmem:[%s181 + $0x218] sm:$0xff] %v316
                %v318 = vld [vmem:[%s180 + $0x440] sm:$0xff]
                %319 = vst [vmem:[%s181 + $0x220] sm:$0xff] %v318
                %v320 = vld [vmem:[%s180 + $0x450] sm:$0xff]
                %321 = vst [vmem:[%s181 + $0x228] sm:$0xff] %v320
                %v322 = vld [vmem:[%s180 + $0x460] sm:$0xff]
                %323 = vst [vmem:[%s181 + $0x230] sm:$0xff] %v322
                %v324 = vld [vmem:[%s180 + $0x470] sm:$0xff]
                %325 = vst [vmem:[%s181 + $0x238] sm:$0xff] %v324
                %v326 = vld [vmem:[%s180 + $0x480] sm:$0xff]
                %327 = vst [vmem:[%s181 + $0x240] sm:$0xff] %v326
                %v328 = vld [vmem:[%s180 + $0x490] sm:$0xff]
                %329 = vst [vmem:[%s181 + $0x248] sm:$0xff] %v328
                %v330 = vld [vmem:[%s180 + $0x4a0] sm:$0xff]
                %331 = vst [vmem:[%s181 + $0x250] sm:$0xff] %v330
                %v332 = vld [vmem:[%s180 + $0x4b0] sm:$0xff]
                %333 = vst [vmem:[%s181 + $0x258] sm:$0xff] %v332
                %v334 = vld [vmem:[%s180 + $0x4c0] sm:$0xff]
                %335 = vst [vmem:[%s181 + $0x260] sm:$0xff] %v334
                %v336 = vld [vmem:[%s180 + $0x4d0] sm:$0xff]
                %337 = vst [vmem:[%s181 + $0x268] sm:$0xff] %v336
                %v338 = vld [vmem:[%s180 + $0x4e0] sm:$0xff]
                %339 = vst [vmem:[%s181 + $0x270] sm:$0xff] %v338
                %v340 = vld [vmem:[%s180 + $0x4f0] sm:$0xff]
                %341 = vst [vmem:[%s181 + $0x278] sm:$0xff] %v340
                %v342 = vld [vmem:[%s180 + $0x500] sm:$0xff]
                %343 = vst [vmem:[%s181 + $0x280] sm:$0xff] %v342
                %v344 = vld [vmem:[%s180 + $0x510] sm:$0xff]
                %345 = vst [vmem:[%s181 + $0x288] sm:$0xff] %v344
                %v346 = vld [vmem:[%s180 + $0x520] sm:$0xff]
                %347 = vst [vmem:[%s181 + $0x290] sm:$0xff] %v346
                %v348 = vld [vmem:[%s180 + $0x530] sm:$0xff]
                %349 = vst [vmem:[%s181 + $0x298] sm:$0xff] %v348
                %v350 = vld [vmem:[%s180 + $0x540] sm:$0xff]
                %351 = vst [vmem:[%s181 + $0x2a0] sm:$0xff] %v350
                %v352 = vld [vmem:[%s180 + $0x550] sm:$0xff]
                %353 = vst [vmem:[%s181 + $0x2a8] sm:$0xff] %v352
                %v354 = vld [vmem:[%s180 + $0x560] sm:$0xff]
                %355 = vst [vmem:[%s181 + $0x2b0] sm:$0xff] %v354
                %v356 = vld [vmem:[%s180 + $0x570] sm:$0xff]
                %357 = vst [vmem:[%s181 + $0x2b8] sm:$0xff] %v356
                %v358 = vld [vmem:[%s180 + $0x580] sm:$0xff]
                %359 = vst [vmem:[%s181 + $0x2c0] sm:$0xff] %v358
                %v360 = vld [vmem:[%s180 + $0x590] sm:$0xff]
                %361 = vst [vmem:[%s181 + $0x2c8] sm:$0xff] %v360
                %v362 = vld [vmem:[%s180 + $0x5a0] sm:$0xff]
                %363 = vst [vmem:[%s181 + $0x2d0] sm:$0xff] %v362
                %v364 = vld [vmem:[%s180 + $0x5b0] sm:$0xff]
                %365 = vst [vmem:[%s181 + $0x2d8] sm:$0xff] %v364
                %v366 = vld [vmem:[%s180 + $0x5c0] sm:$0xff]
                %367 = vst [vmem:[%s181 + $0x2e0] sm:$0xff] %v366
                %v368 = vld [vmem:[%s180 + $0x5d0] sm:$0xff]
                %369 = vst [vmem:[%s181 + $0x2e8] sm:$0xff] %v368
                %v370 = vld [vmem:[%s180 + $0x5e0] sm:$0xff]
                %371 = vst [vmem:[%s181 + $0x2f0] sm:$0xff] %v370
                %v372 = vld [vmem:[%s180 + $0x5f0] sm:$0xff]
                %373 = vst [vmem:[%s181 + $0x2f8] sm:$0xff] %v372
                %v374 = vld [vmem:[%s180 + $0x600] sm:$0xff]
                %375 = vst [vmem:[%s181 + $0x300] sm:$0xff] %v374
                %v376 = vld [vmem:[%s180 + $0x610] sm:$0xff]
                %377 = vst [vmem:[%s181 + $0x308] sm:$0xff] %v376
                %v378 = vld [vmem:[%s180 + $0x620] sm:$0xff]
                %379 = vst [vmem:[%s181 + $0x310] sm:$0xff] %v378
                %v380 = vld [vmem:[%s180 + $0x630] sm:$0xff]
                %381 = vst [vmem:[%s181 + $0x318] sm:$0xff] %v380
                %v382 = vld [vmem:[%s180 + $0x640] sm:$0xff]
                %383 = vst [vmem:[%s181 + $0x320] sm:$0xff] %v382
                %v384 = vld [vmem:[%s180 + $0x650] sm:$0xff]
                %385 = vst [vmem:[%s181 + $0x328] sm:$0xff] %v384
                %v386 = vld [vmem:[%s180 + $0x660] sm:$0xff]
                %387 = vst [vmem:[%s181 + $0x330] sm:$0xff] %v386
                %v388 = vld [vmem:[%s180 + $0x670] sm:$0xff]
                %389 = vst [vmem:[%s181 + $0x338] sm:$0xff] %v388
                %v390 = vld [vmem:[%s180 + $0x680] sm:$0xff]
                %391 = vst [vmem:[%s181 + $0x340] sm:$0xff] %v390
                %v392 = vld [vmem:[%s180 + $0x690] sm:$0xff]
                %393 = vst [vmem:[%s181 + $0x348] sm:$0xff] %v392
                %v394 = vld [vmem:[%s180 + $0x6a0] sm:$0xff]
                %395 = vst [vmem:[%s181 + $0x350] sm:$0xff] %v394
                %v396 = vld [vmem:[%s180 + $0x6b0] sm:$0xff]
                %397 = vst [vmem:[%s181 + $0x358] sm:$0xff] %v396
                %v398 = vld [vmem:[%s180 + $0x6c0] sm:$0xff]
                %399 = vst [vmem:[%s181 + $0x360] sm:$0xff] %v398
                %v400 = vld [vmem:[%s180 + $0x6d0] sm:$0xff]
                %401 = vst [vmem:[%s181 + $0x368] sm:$0xff] %v400
                %v402 = vld [vmem:[%s180 + $0x6e0] sm:$0xff]
                %403 = vst [vmem:[%s181 + $0x370] sm:$0xff] %v402
                %v404 = vld [vmem:[%s180 + $0x6f0] sm:$0xff]
                %405 = vst [vmem:[%s181 + $0x378] sm:$0xff] %v404
                %v406 = vld [vmem:[%s180 + $0x700] sm:$0xff]
                %407 = vst [vmem:[%s181 + $0x380] sm:$0xff] %v406
                %v408 = vld [vmem:[%s180 + $0x710] sm:$0xff]
                %409 = vst [vmem:[%s181 + $0x388] sm:$0xff] %v408
                %v410 = vld [vmem:[%s180 + $0x720] sm:$0xff]
                %411 = vst [vmem:[%s181 + $0x390] sm:$0xff] %v410
                %v412 = vld [vmem:[%s180 + $0x730] sm:$0xff]
                %413 = vst [vmem:[%s181 + $0x398] sm:$0xff] %v412
                %v414 = vld [vmem:[%s180 + $0x740] sm:$0xff]
                %415 = vst [vmem:[%s181 + $0x3a0] sm:$0xff] %v414
                %v416 = vld [vmem:[%s180 + $0x750] sm:$0xff]
                %417 = vst [vmem:[%s181 + $0x3a8] sm:$0xff] %v416
                %v418 = vld [vmem:[%s180 + $0x760] sm:$0xff]
                %419 = vst [vmem:[%s181 + $0x3b0] sm:$0xff] %v418
                %v420 = vld [vmem:[%s180 + $0x770] sm:$0xff]
                %421 = vst [vmem:[%s181 + $0x3b8] sm:$0xff] %v420
                %v422 = vld [vmem:[%s180 + $0x780] sm:$0xff]
                %423 = vst [vmem:[%s181 + $0x3c0] sm:$0xff] %v422
                %v424 = vld [vmem:[%s180 + $0x790] sm:$0xff]
                %425 = vst [vmem:[%s181 + $0x3c8] sm:$0xff] %v424
                %v426 = vld [vmem:[%s180 + $0x7a0] sm:$0xff]
                %427 = vst [vmem:[%s181 + $0x3d0] sm:$0xff] %v426
                %v428 = vld [vmem:[%s180 + $0x7b0] sm:$0xff]
                %429 = vst [vmem:[%s181 + $0x3d8] sm:$0xff] %v428
                %v430 = vld [vmem:[%s180 + $0x7c0] sm:$0xff]
                %431 = vst [vmem:[%s181 + $0x3e0] sm:$0xff] %v430
                %v432 = vld [vmem:[%s180 + $0x7d0] sm:$0xff]
                %433 = vst [vmem:[%s181 + $0x3e8] sm:$0xff] %v432
                %v434 = vld [vmem:[%s180 + $0x7e0] sm:$0xff]
                %435 = vst [vmem:[%s181 + $0x3f0] sm:$0xff] %v434
                %v436 = vld [vmem:[%s180 + $0x7f0] sm:$0xff]
                %437 = vst [vmem:[%s181 + $0x3f8] sm:$0xff] %v436
                %v438 = vld [vmem:[%s180 + $0x800] sm:$0xff]
                %439 = vst [vmem:[%s181 + $0x400] sm:$0xff] %v438
                %v440 = vld [vmem:[%s180 + $0x810] sm:$0xff]
                %441 = vst [vmem:[%s181 + $0x408] sm:$0xff] %v440
                %v442 = vld [vmem:[%s180 + $0x820] sm:$0xff]
                %443 = vst [vmem:[%s181 + $0x410] sm:$0xff] %v442
                %v444 = vld [vmem:[%s180 + $0x830] sm:$0xff]
                %445 = vst [vmem:[%s181 + $0x418] sm:$0xff] %v444
                %v446 = vld [vmem:[%s180 + $0x840] sm:$0xff]
                %447 = vst [vmem:[%s181 + $0x420] sm:$0xff] %v446
                %v448 = vld [vmem:[%s180 + $0x850] sm:$0xff]
                %449 = vst [vmem:[%s181 + $0x428] sm:$0xff] %v448
                %v450 = vld [vmem:[%s180 + $0x860] sm:$0xff]
                %451 = vst [vmem:[%s181 + $0x430] sm:$0xff] %v450
                %v452 = vld [vmem:[%s180 + $0x870] sm:$0xff]
                %453 = vst [vmem:[%s181 + $0x438] sm:$0xff] %v452
                %v454 = vld [vmem:[%s180 + $0x880] sm:$0xff]
                %455 = vst [vmem:[%s181 + $0x440] sm:$0xff] %v454
                %v456 = vld [vmem:[%s180 + $0x890] sm:$0xff]
                %457 = vst [vmem:[%s181 + $0x448] sm:$0xff] %v456
                %v458 = vld [vmem:[%s180 + $0x8a0] sm:$0xff]
                %459 = vst [vmem:[%s181 + $0x450] sm:$0xff] %v458
                %v460 = vld [vmem:[%s180 + $0x8b0] sm:$0xff]
                %461 = vst [vmem:[%s181 + $0x458] sm:$0xff] %v460
                %v462 = vld [vmem:[%s180 + $0x8c0] sm:$0xff]
                %463 = vst [vmem:[%s181 + $0x460] sm:$0xff] %v462
                %v464 = vld [vmem:[%s180 + $0x8d0] sm:$0xff]
                %465 = vst [vmem:[%s181 + $0x468] sm:$0xff] %v464
                %v466 = vld [vmem:[%s180 + $0x8e0] sm:$0xff]
                %467 = vst [vmem:[%s181 + $0x470] sm:$0xff] %v466
                %v468 = vld [vmem:[%s180 + $0x8f0] sm:$0xff]
                %469 = vst [vmem:[%s181 + $0x478] sm:$0xff] %v468
                %v470 = vld [vmem:[%s180 + $0x900] sm:$0xff]
                %471 = vst [vmem:[%s181 + $0x480] sm:$0xff] %v470
                %v472 = vld [vmem:[%s180 + $0x910] sm:$0xff]
                %473 = vst [vmem:[%s181 + $0x488] sm:$0xff] %v472
                %v474 = vld [vmem:[%s180 + $0x920] sm:$0xff]
                %475 = vst [vmem:[%s181 + $0x490] sm:$0xff] %v474
                %v476 = vld [vmem:[%s180 + $0x930] sm:$0xff]
                %477 = vst [vmem:[%s181 + $0x498] sm:$0xff] %v476
                %v478 = vld [vmem:[%s180 + $0x940] sm:$0xff]
                %479 = vst [vmem:[%s181 + $0x4a0] sm:$0xff] %v478
                %v480 = vld [vmem:[%s180 + $0x950] sm:$0xff]
                %481 = vst [vmem:[%s181 + $0x4a8] sm:$0xff] %v480
                %v482 = vld [vmem:[%s180 + $0x960] sm:$0xff]
                %483 = vst [vmem:[%s181 + $0x4b0] sm:$0xff] %v482
                %v484 = vld [vmem:[%s180 + $0x970] sm:$0xff]
                %485 = vst [vmem:[%s181 + $0x4b8] sm:$0xff] %v484
                %v486 = vld [vmem:[%s180 + $0x980] sm:$0xff]
                %487 = vst [vmem:[%s181 + $0x4c0] sm:$0xff] %v486
                %v488 = vld [vmem:[%s180 + $0x990] sm:$0xff]
                %489 = vst [vmem:[%s181 + $0x4c8] sm:$0xff] %v488
                %v490 = vld [vmem:[%s180 + $0x9a0] sm:$0xff]
                %491 = vst [vmem:[%s181 + $0x4d0] sm:$0xff] %v490
                %v492 = vld [vmem:[%s180 + $0x9b0] sm:$0xff]
                %493 = vst [vmem:[%s181 + $0x4d8] sm:$0xff] %v492
                %v494 = vld [vmem:[%s180 + $0x9c0] sm:$0xff]
                %495 = vst [vmem:[%s181 + $0x4e0] sm:$0xff] %v494
                %v496 = vld [vmem:[%s180 + $0x9d0] sm:$0xff]
                %497 = vst [vmem:[%s181 + $0x4e8] sm:$0xff] %v496
                %v498 = vld [vmem:[%s180 + $0x9e0] sm:$0xff]
                %499 = vst [vmem:[%s181 + $0x4f0] sm:$0xff] %v498
                %v500 = vld [vmem:[%s180 + $0x9f0] sm:$0xff]
                %501 = vst [vmem:[%s181 + $0x4f8] sm:$0xff] %v500
                %v502 = vld [vmem:[%s180 + $0xa00] sm:$0xff]
                %503 = vst [vmem:[%s181 + $0x500] sm:$0xff] %v502
                %v504 = vld [vmem:[%s180 + $0xa10] sm:$0xff]
                %505 = vst [vmem:[%s181 + $0x508] sm:$0xff] %v504
                %v506 = vld [vmem:[%s180 + $0xa20] sm:$0xff]
                %507 = vst [vmem:[%s181 + $0x510] sm:$0xff] %v506
                %v508 = vld [vmem:[%s180 + $0xa30] sm:$0xff]
                %509 = vst [vmem:[%s181 + $0x518] sm:$0xff] %v508
                %v510 = vld [vmem:[%s180 + $0xa40] sm:$0xff]
                %511 = vst [vmem:[%s181 + $0x520] sm:$0xff] %v510
                %v512 = vld [vmem:[%s180 + $0xa50] sm:$0xff]
                %513 = vst [vmem:[%s181 + $0x528] sm:$0xff] %v512
                %v514 = vld [vmem:[%s180 + $0xa60] sm:$0xff]
                %515 = vst [vmem:[%s181 + $0x530] sm:$0xff] %v514
                %v516 = vld [vmem:[%s180 + $0xa70] sm:$0xff]
                %517 = vst [vmem:[%s181 + $0x538] sm:$0xff] %v516
                %v518 = vld [vmem:[%s180 + $0xa80] sm:$0xff]
                %519 = vst [vmem:[%s181 + $0x540] sm:$0xff] %v518
                %v520 = vld [vmem:[%s180 + $0xa90] sm:$0xff]
                %521 = vst [vmem:[%s181 + $0x548] sm:$0xff] %v520
                %v522 = vld [vmem:[%s180 + $0xaa0] sm:$0xff]
                %523 = vst [vmem:[%s181 + $0x550] sm:$0xff] %v522
                %v524 = vld [vmem:[%s180 + $0xab0] sm:$0xff]
                %525 = vst [vmem:[%s181 + $0x558] sm:$0xff] %v524
                %v526 = vld [vmem:[%s180 + $0xac0] sm:$0xff]
                %527 = vst [vmem:[%s181 + $0x560] sm:$0xff] %v526
                %v528 = vld [vmem:[%s180 + $0xad0] sm:$0xff]
                %529 = vst [vmem:[%s181 + $0x568] sm:$0xff] %v528
                %v530 = vld [vmem:[%s180 + $0xae0] sm:$0xff]
                %531 = vst [vmem:[%s181 + $0x570] sm:$0xff] %v530
                %v532 = vld [vmem:[%s180 + $0xaf0] sm:$0xff]
                %533 = vst [vmem:[%s181 + $0x578] sm:$0xff] %v532
                %v534 = vld [vmem:[%s180 + $0xb00] sm:$0xff]
                %535 = vst [vmem:[%s181 + $0x580] sm:$0xff] %v534
                %v536 = vld [vmem:[%s180 + $0xb10] sm:$0xff]
                %537 = vst [vmem:[%s181 + $0x588] sm:$0xff] %v536
                %v538 = vld [vmem:[%s180 + $0xb20] sm:$0xff]
                %539 = vst [vmem:[%s181 + $0x590] sm:$0xff] %v538
                %v540 = vld [vmem:[%s180 + $0xb30] sm:$0xff]
                %541 = vst [vmem:[%s181 + $0x598] sm:$0xff] %v540
                %v542 = vld [vmem:[%s180 + $0xb40] sm:$0xff]
                %543 = vst [vmem:[%s181 + $0x5a0] sm:$0xff] %v542
                %v544 = vld [vmem:[%s180 + $0xb50] sm:$0xff]
                %545 = vst [vmem:[%s181 + $0x5a8] sm:$0xff] %v544
                %v546 = vld [vmem:[%s180 + $0xb60] sm:$0xff]
                %547 = vst [vmem:[%s181 + $0x5b0] sm:$0xff] %v546
                %v548 = vld [vmem:[%s180 + $0xb70] sm:$0xff]
                %549 = vst [vmem:[%s181 + $0x5b8] sm:$0xff] %v548
                %v550 = vld [vmem:[%s180 + $0xb80] sm:$0xff]
                %551 = vst [vmem:[%s181 + $0x5c0] sm:$0xff] %v550
                %v552 = vld [vmem:[%s180 + $0xb90] sm:$0xff]
                %553 = vst [vmem:[%s181 + $0x5c8] sm:$0xff] %v552
                %v554 = vld [vmem:[%s180 + $0xba0] sm:$0xff]
                %555 = vst [vmem:[%s181 + $0x5d0] sm:$0xff] %v554
                %v556 = vld [vmem:[%s180 + $0xbb0] sm:$0xff]
                %557 = vst [vmem:[%s181 + $0x5d8] sm:$0xff] %v556
                %v558 = vld [vmem:[%s180 + $0xbc0] sm:$0xff]
                %559 = vst [vmem:[%s181 + $0x5e0] sm:$0xff] %v558
                %v560 = vld [vmem:[%s180 + $0xbd0] sm:$0xff]
                %561 = vst [vmem:[%s181 + $0x5e8] sm:$0xff] %v560
                %v562 = vld [vmem:[%s180 + $0xbe0] sm:$0xff]
                %563 = vst [vmem:[%s181 + $0x5f0] sm:$0xff] %v562
                %v564 = vld [vmem:[%s180 + $0xbf0] sm:$0xff]
                %565 = vst [vmem:[%s181 + $0x5f8] sm:$0xff] %v564
                %v566 = vld [vmem:[%s180 + $0xc00] sm:$0xff]
                %567 = vst [vmem:[%s181 + $0x600] sm:$0xff] %v566
                %v568 = vld [vmem:[%s180 + $0xc10] sm:$0xff]
                %569 = vst [vmem:[%s181 + $0x608] sm:$0xff] %v568
                %v570 = vld [vmem:[%s180 + $0xc20] sm:$0xff]
                %571 = vst [vmem:[%s181 + $0x610] sm:$0xff] %v570
                %v572 = vld [vmem:[%s180 + $0xc30] sm:$0xff]
                %573 = vst [vmem:[%s181 + $0x618] sm:$0xff] %v572
                %v574 = vld [vmem:[%s180 + $0xc40] sm:$0xff]
                %575 = vst [vmem:[%s181 + $0x620] sm:$0xff] %v574
                %v576 = vld [vmem:[%s180 + $0xc50] sm:$0xff]
                %577 = vst [vmem:[%s181 + $0x628] sm:$0xff] %v576
                %v578 = vld [vmem:[%s180 + $0xc60] sm:$0xff]
                %579 = vst [vmem:[%s181 + $0x630] sm:$0xff] %v578
                %v580 = vld [vmem:[%s180 + $0xc70] sm:$0xff]
                %581 = vst [vmem:[%s181 + $0x638] sm:$0xff] %v580
                %v582 = vld [vmem:[%s180 + $0xc80] sm:$0xff]
                %583 = vst [vmem:[%s181 + $0x640] sm:$0xff] %v582
                %v584 = vld [vmem:[%s180 + $0xc90] sm:$0xff]
                %585 = vst [vmem:[%s181 + $0x648] sm:$0xff] %v584
                %v586 = vld [vmem:[%s180 + $0xca0] sm:$0xff]
                %587 = vst [vmem:[%s181 + $0x650] sm:$0xff] %v586
                %v588 = vld [vmem:[%s180 + $0xcb0] sm:$0xff]
                %589 = vst [vmem:[%s181 + $0x658] sm:$0xff] %v588
                %v590 = vld [vmem:[%s180 + $0xcc0] sm:$0xff]
                %591 = vst [vmem:[%s181 + $0x660] sm:$0xff] %v590
                %v592 = vld [vmem:[%s180 + $0xcd0] sm:$0xff]
                %593 = vst [vmem:[%s181 + $0x668] sm:$0xff] %v592
                %v594 = vld [vmem:[%s180 + $0xce0] sm:$0xff]
                %595 = vst [vmem:[%s181 + $0x670] sm:$0xff] %v594
                %v596 = vld [vmem:[%s180 + $0xcf0] sm:$0xff]
                %597 = vst [vmem:[%s181 + $0x678] sm:$0xff] %v596
                %v598 = vld [vmem:[%s180 + $0xd00] sm:$0xff]
                %599 = vst [vmem:[%s181 + $0x680] sm:$0xff] %v598
                %v600 = vld [vmem:[%s180 + $0xd10] sm:$0xff]
                %601 = vst [vmem:[%s181 + $0x688] sm:$0xff] %v600
                %v602 = vld [vmem:[%s180 + $0xd20] sm:$0xff]
                %603 = vst [vmem:[%s181 + $0x690] sm:$0xff] %v602
                %v604 = vld [vmem:[%s180 + $0xd30] sm:$0xff]
                %605 = vst [vmem:[%s181 + $0x698] sm:$0xff] %v604
                %v606 = vld [vmem:[%s180 + $0xd40] sm:$0xff]
                %607 = vst [vmem:[%s181 + $0x6a0] sm:$0xff] %v606
                %v608 = vld [vmem:[%s180 + $0xd50] sm:$0xff]
                %609 = vst [vmem:[%s181 + $0x6a8] sm:$0xff] %v608
                %v610 = vld [vmem:[%s180 + $0xd60] sm:$0xff]
                %611 = vst [vmem:[%s181 + $0x6b0] sm:$0xff] %v610
                %v612 = vld [vmem:[%s180 + $0xd70] sm:$0xff]
                %613 = vst [vmem:[%s181 + $0x6b8] sm:$0xff] %v612
                %v614 = vld [vmem:[%s180 + $0xd80] sm:$0xff]
                %615 = vst [vmem:[%s181 + $0x6c0] sm:$0xff] %v614
                %v616 = vld [vmem:[%s180 + $0xd90] sm:$0xff]
                %617 = vst [vmem:[%s181 + $0x6c8] sm:$0xff] %v616
                %v618 = vld [vmem:[%s180 + $0xda0] sm:$0xff]
                %619 = vst [vmem:[%s181 + $0x6d0] sm:$0xff] %v618
                %v620 = vld [vmem:[%s180 + $0xdb0] sm:$0xff]
                %621 = vst [vmem:[%s181 + $0x6d8] sm:$0xff] %v620
                %v622 = vld [vmem:[%s180 + $0xdc0] sm:$0xff]
                %623 = vst [vmem:[%s181 + $0x6e0] sm:$0xff] %v622
                %v624 = vld [vmem:[%s180 + $0xdd0] sm:$0xff]
                %625 = vst [vmem:[%s181 + $0x6e8] sm:$0xff] %v624
                %v626 = vld [vmem:[%s180 + $0xde0] sm:$0xff]
                %627 = vst [vmem:[%s181 + $0x6f0] sm:$0xff] %v626
                %v628 = vld [vmem:[%s180 + $0xdf0] sm:$0xff]
                %629 = vst [vmem:[%s181 + $0x6f8] sm:$0xff] %v628
                %v630 = vld [vmem:[%s180 + $0xe00] sm:$0xff]
                %631 = vst [vmem:[%s181 + $0x700] sm:$0xff] %v630
                %v632 = vld [vmem:[%s180 + $0xe10] sm:$0xff]
                %633 = vst [vmem:[%s181 + $0x708] sm:$0xff] %v632
                %v634 = vld [vmem:[%s180 + $0xe20] sm:$0xff]
                %635 = vst [vmem:[%s181 + $0x710] sm:$0xff] %v634
                %v636 = vld [vmem:[%s180 + $0xe30] sm:$0xff]
                %637 = vst [vmem:[%s181 + $0x718] sm:$0xff] %v636
                %v638 = vld [vmem:[%s180 + $0xe40] sm:$0xff]
                %639 = vst [vmem:[%s181 + $0x720] sm:$0xff] %v638
                %v640 = vld [vmem:[%s180 + $0xe50] sm:$0xff]
                %641 = vst [vmem:[%s181 + $0x728] sm:$0xff] %v640
                %v642 = vld [vmem:[%s180 + $0xe60] sm:$0xff]
                %643 = vst [vmem:[%s181 + $0x730] sm:$0xff] %v642
                %v644 = vld [vmem:[%s180 + $0xe70] sm:$0xff]
                %645 = vst [vmem:[%s181 + $0x738] sm:$0xff] %v644
                %v646 = vld [vmem:[%s180 + $0xe80] sm:$0xff]
                %647 = vst [vmem:[%s181 + $0x740] sm:$0xff] %v646
                %v648 = vld [vmem:[%s180 + $0xe90] sm:$0xff]
                %649 = vst [vmem:[%s181 + $0x748] sm:$0xff] %v648
                %v650 = vld [vmem:[%s180 + $0xea0] sm:$0xff]
                %651 = vst [vmem:[%s181 + $0x750] sm:$0xff] %v650
                %v652 = vld [vmem:[%s180 + $0xeb0] sm:$0xff]
                %653 = vst [vmem:[%s181 + $0x758] sm:$0xff] %v652
                %v654 = vld [vmem:[%s180 + $0xec0] sm:$0xff]
                %655 = vst [vmem:[%s181 + $0x760] sm:$0xff] %v654
                %v656 = vld [vmem:[%s180 + $0xed0] sm:$0xff]
                %657 = vst [vmem:[%s181 + $0x768] sm:$0xff] %v656
                %v658 = vld [vmem:[%s180 + $0xee0] sm:$0xff]
                %659 = vst [vmem:[%s181 + $0x770] sm:$0xff] %v658
                %v660 = vld [vmem:[%s180 + $0xef0] sm:$0xff]
                %661 = vst [vmem:[%s181 + $0x778] sm:$0xff] %v660
                %v662 = vld [vmem:[%s180 + $0xf00] sm:$0xff]
                %663 = vst [vmem:[%s181 + $0x780] sm:$0xff] %v662
                %v664 = vld [vmem:[%s180 + $0xf10] sm:$0xff]
                %665 = vst [vmem:[%s181 + $0x788] sm:$0xff] %v664
                %v666 = vld [vmem:[%s180 + $0xf20] sm:$0xff]
                %667 = vst [vmem:[%s181 + $0x790] sm:$0xff] %v666
                %v668 = vld [vmem:[%s180 + $0xf30] sm:$0xff]
                %669 = vst [vmem:[%s181 + $0x798] sm:$0xff] %v668
                %v670 = vld [vmem:[%s180 + $0xf40] sm:$0xff]
                %671 = vst [vmem:[%s181 + $0x7a0] sm:$0xff] %v670
                %v672 = vld [vmem:[%s180 + $0xf50] sm:$0xff]
                %673 = vst [vmem:[%s181 + $0x7a8] sm:$0xff] %v672
                %v674 = vld [vmem:[%s180 + $0xf60] sm:$0xff]
                %675 = vst [vmem:[%s181 + $0x7b0] sm:$0xff] %v674
                %v676 = vld [vmem:[%s180 + $0xf70] sm:$0xff]
                %677 = vst [vmem:[%s181 + $0x7b8] sm:$0xff] %v676
                %v678 = vld [vmem:[%s180 + $0xf80] sm:$0xff]
                %679 = vst [vmem:[%s181 + $0x7c0] sm:$0xff] %v678
                %v680 = vld [vmem:[%s180 + $0xf90] sm:$0xff]
                %681 = vst [vmem:[%s181 + $0x7c8] sm:$0xff] %v680
                %v682 = vld [vmem:[%s180 + $0xfa0] sm:$0xff]
                %683 = vst [vmem:[%s181 + $0x7d0] sm:$0xff] %v682
                %v684 = vld [vmem:[%s180 + $0xfb0] sm:$0xff]
                %685 = vst [vmem:[%s181 + $0x7d8] sm:$0xff] %v684
                %v686 = vld [vmem:[%s180 + $0xfc0] sm:$0xff]
                %687 = vst [vmem:[%s181 + $0x7e0] sm:$0xff] %v686
                %v688 = vld [vmem:[%s180 + $0xfd0] sm:$0xff]
                %689 = vst [vmem:[%s181 + $0x7e8] sm:$0xff] %v688
                %v690 = vld [vmem:[%s180 + $0xfe0] sm:$0xff]
                %691 = vst [vmem:[%s181 + $0x7f0] sm:$0xff] %v690
                %v692 = vld [vmem:[%s180 + $0xff0] sm:$0xff]
                %693 = vst [vmem:[%s181 + $0x7f8] sm:$0xff] %v692
                %v694 = vld [vmem:[%s180 + $0x1000] sm:$0xff]
                %695 = vst [vmem:[%s181 + $0x800] sm:$0xff] %v694
                %v696 = vld [vmem:[%s180 + $0x1010] sm:$0xff]
                %697 = vst [vmem:[%s181 + $0x808] sm:$0xff] %v696
                %v698 = vld [vmem:[%s180 + $0x1020] sm:$0xff]
                %699 = vst [vmem:[%s181 + $0x810] sm:$0xff] %v698
                %v700 = vld [vmem:[%s180 + $0x1030] sm:$0xff]
                %701 = vst [vmem:[%s181 + $0x818] sm:$0xff] %v700
                %v702 = vld [vmem:[%s180 + $0x1040] sm:$0xff]
                %703 = vst [vmem:[%s181 + $0x820] sm:$0xff] %v702
                %v704 = vld [vmem:[%s180 + $0x1050] sm:$0xff]
                %705 = vst [vmem:[%s181 + $0x828] sm:$0xff] %v704
                %v706 = vld [vmem:[%s180 + $0x1060] sm:$0xff]
                %707 = vst [vmem:[%s181 + $0x830] sm:$0xff] %v706
                %v708 = vld [vmem:[%s180 + $0x1070] sm:$0xff]
                %709 = vst [vmem:[%s181 + $0x838] sm:$0xff] %v708
                %v710 = vld [vmem:[%s180 + $0x1080] sm:$0xff]
                %711 = vst [vmem:[%s181 + $0x840] sm:$0xff] %v710
                %v712 = vld [vmem:[%s180 + $0x1090] sm:$0xff]
                %713 = vst [vmem:[%s181 + $0x848] sm:$0xff] %v712
                %v714 = vld [vmem:[%s180 + $0x10a0] sm:$0xff]
                %715 = vst [vmem:[%s181 + $0x850] sm:$0xff] %v714
                %v716 = vld [vmem:[%s180 + $0x10b0] sm:$0xff]
                %717 = vst [vmem:[%s181 + $0x858] sm:$0xff] %v716
                %v718 = vld [vmem:[%s180 + $0x10c0] sm:$0xff]
                %719 = vst [vmem:[%s181 + $0x860] sm:$0xff] %v718
                %v720 = vld [vmem:[%s180 + $0x10d0] sm:$0xff]
                %721 = vst [vmem:[%s181 + $0x868] sm:$0xff] %v720
                %v722 = vld [vmem:[%s180 + $0x10e0] sm:$0xff]
                %723 = vst [vmem:[%s181 + $0x870] sm:$0xff] %v722
                %v724 = vld [vmem:[%s180 + $0x10f0] sm:$0xff]
                %725 = vst [vmem:[%s181 + $0x878] sm:$0xff] %v724
                %v726 = vld [vmem:[%s180 + $0x1100] sm:$0xff]
                %727 = vst [vmem:[%s181 + $0x880] sm:$0xff] %v726
                %v728 = vld [vmem:[%s180 + $0x1110] sm:$0xff]
                %729 = vst [vmem:[%s181 + $0x888] sm:$0xff] %v728
                %v730 = vld [vmem:[%s180 + $0x1120] sm:$0xff]
                %731 = vst [vmem:[%s181 + $0x890] sm:$0xff] %v730
                %v732 = vld [vmem:[%s180 + $0x1130] sm:$0xff]
                %733 = vst [vmem:[%s181 + $0x898] sm:$0xff] %v732
                %v734 = vld [vmem:[%s180 + $0x1140] sm:$0xff]
                %735 = vst [vmem:[%s181 + $0x8a0] sm:$0xff] %v734
                %v736 = vld [vmem:[%s180 + $0x1150] sm:$0xff]
                %737 = vst [vmem:[%s181 + $0x8a8] sm:$0xff] %v736
                %v738 = vld [vmem:[%s180 + $0x1160] sm:$0xff]
                %739 = vst [vmem:[%s181 + $0x8b0] sm:$0xff] %v738
                %v740 = vld [vmem:[%s180 + $0x1170] sm:$0xff]
                %741 = vst [vmem:[%s181 + $0x8b8] sm:$0xff] %v740
                %v742 = vld [vmem:[%s180 + $0x1180] sm:$0xff]
                %743 = vst [vmem:[%s181 + $0x8c0] sm:$0xff] %v742
                %v744 = vld [vmem:[%s180 + $0x1190] sm:$0xff]
                %745 = vst [vmem:[%s181 + $0x8c8] sm:$0xff] %v744
                %v746 = vld [vmem:[%s180 + $0x11a0] sm:$0xff]
                %747 = vst [vmem:[%s181 + $0x8d0] sm:$0xff] %v746
                %v748 = vld [vmem:[%s180 + $0x11b0] sm:$0xff]
                %749 = vst [vmem:[%s181 + $0x8d8] sm:$0xff] %v748
                %v750 = vld [vmem:[%s180 + $0x11c0] sm:$0xff]
                %751 = vst [vmem:[%s181 + $0x8e0] sm:$0xff] %v750
                %v752 = vld [vmem:[%s180 + $0x11d0] sm:$0xff]
                %753 = vst [vmem:[%s181 + $0x8e8] sm:$0xff] %v752
                %v754 = vld [vmem:[%s180 + $0x11e0] sm:$0xff]
                %755 = vst [vmem:[%s181 + $0x8f0] sm:$0xff] %v754
                %v756 = vld [vmem:[%s180 + $0x11f0] sm:$0xff]
                %757 = vst [vmem:[%s181 + $0x8f8] sm:$0xff] %v756
                %v758 = vld [vmem:[%s180 + $0x1200] sm:$0xff]
                %759 = vst [vmem:[%s181 + $0x900] sm:$0xff] %v758
                %v760 = vld [vmem:[%s180 + $0x1210] sm:$0xff]
                %761 = vst [vmem:[%s181 + $0x908] sm:$0xff] %v760
                %v762 = vld [vmem:[%s180 + $0x1220] sm:$0xff]
                %763 = vst [vmem:[%s181 + $0x910] sm:$0xff] %v762
                %v764 = vld [vmem:[%s180 + $0x1230] sm:$0xff]
                %765 = vst [vmem:[%s181 + $0x918] sm:$0xff] %v764
                %v766 = vld [vmem:[%s180 + $0x1240] sm:$0xff]
                %767 = vst [vmem:[%s181 + $0x920] sm:$0xff] %v766
                %v768 = vld [vmem:[%s180 + $0x1250] sm:$0xff]
                %769 = vst [vmem:[%s181 + $0x928] sm:$0xff] %v768
                %v770 = vld [vmem:[%s180 + $0x1260] sm:$0xff]
                %771 = vst [vmem:[%s181 + $0x930] sm:$0xff] %v770
                %v772 = vld [vmem:[%s180 + $0x1270] sm:$0xff]
                %773 = vst [vmem:[%s181 + $0x938] sm:$0xff] %v772
                %v774 = vld [vmem:[%s180 + $0x1280] sm:$0xff]
                %775 = vst [vmem:[%s181 + $0x940] sm:$0xff] %v774
                %v776 = vld [vmem:[%s180 + $0x1290] sm:$0xff]
                %777 = vst [vmem:[%s181 + $0x948] sm:$0xff] %v776
                %v778 = vld [vmem:[%s180 + $0x12a0] sm:$0xff]
                %779 = vst [vmem:[%s181 + $0x950] sm:$0xff] %v778
                %v780 = vld [vmem:[%s180 + $0x12b0] sm:$0xff]
                %781 = vst [vmem:[%s181 + $0x958] sm:$0xff] %v780
                %v782 = vld [vmem:[%s180 + $0x12c0] sm:$0xff]
                %783 = vst [vmem:[%s181 + $0x960] sm:$0xff] %v782
                %v784 = vld [vmem:[%s180 + $0x12d0] sm:$0xff]
                %785 = vst [vmem:[%s181 + $0x968] sm:$0xff] %v784
                %v786 = vld [vmem:[%s180 + $0x12e0] sm:$0xff]
                %787 = vst [vmem:[%s181 + $0x970] sm:$0xff] %v786
                %v788 = vld [vmem:[%s180 + $0x12f0] sm:$0xff]
                %789 = vst [vmem:[%s181 + $0x978] sm:$0xff] %v788
                %v790 = vld [vmem:[%s180 + $0x1300] sm:$0xff]
                %791 = vst [vmem:[%s181 + $0x980] sm:$0xff] %v790
                %v792 = vld [vmem:[%s180 + $0x1310] sm:$0xff]
                %793 = vst [vmem:[%s181 + $0x988] sm:$0xff] %v792
                %v794 = vld [vmem:[%s180 + $0x1320] sm:$0xff]
                %795 = vst [vmem:[%s181 + $0x990] sm:$0xff] %v794
                %v796 = vld [vmem:[%s180 + $0x1330] sm:$0xff]
                %797 = vst [vmem:[%s181 + $0x998] sm:$0xff] %v796
                %v798 = vld [vmem:[%s180 + $0x1340] sm:$0xff]
                %799 = vst [vmem:[%s181 + $0x9a0] sm:$0xff] %v798
                %v800 = vld [vmem:[%s180 + $0x1350] sm:$0xff]
                %801 = vst [vmem:[%s181 + $0x9a8] sm:$0xff] %v800
                %v802 = vld [vmem:[%s180 + $0x1360] sm:$0xff]
                %803 = vst [vmem:[%s181 + $0x9b0] sm:$0xff] %v802
                %v804 = vld [vmem:[%s180 + $0x1370] sm:$0xff]
                %805 = vst [vmem:[%s181 + $0x9b8] sm:$0xff] %v804
                %v806 = vld [vmem:[%s180 + $0x1380] sm:$0xff]
                %807 = vst [vmem:[%s181 + $0x9c0] sm:$0xff] %v806
                %v808 = vld [vmem:[%s180 + $0x1390] sm:$0xff]
                %809 = vst [vmem:[%s181 + $0x9c8] sm:$0xff] %v808
                %v810 = vld [vmem:[%s180 + $0x13a0] sm:$0xff]
                %811 = vst [vmem:[%s181 + $0x9d0] sm:$0xff] %v810
                %v812 = vld [vmem:[%s180 + $0x13b0] sm:$0xff]
                %813 = vst [vmem:[%s181 + $0x9d8] sm:$0xff] %v812
                %v814 = vld [vmem:[%s180 + $0x13c0] sm:$0xff]
                %815 = vst [vmem:[%s181 + $0x9e0] sm:$0xff] %v814
                %v816 = vld [vmem:[%s180 + $0x13d0] sm:$0xff]
                %817 = vst [vmem:[%s181 + $0x9e8] sm:$0xff] %v816
                %v818 = vld [vmem:[%s180 + $0x13e0] sm:$0xff]
                %819 = vst [vmem:[%s181 + $0x9f0] sm:$0xff] %v818
                %v820 = vld [vmem:[%s180 + $0x13f0] sm:$0xff]
                %821 = vst [vmem:[%s181 + $0x9f8] sm:$0xff] %v820
                %v822 = vld [vmem:[%s180 + $0x1400] sm:$0xff]
                %823 = vst [vmem:[%s181 + $0xa00] sm:$0xff] %v822
                %v824 = vld [vmem:[%s180 + $0x1410] sm:$0xff]
                %825 = vst [vmem:[%s181 + $0xa08] sm:$0xff] %v824
                %v826 = vld [vmem:[%s180 + $0x1420] sm:$0xff]
                %827 = vst [vmem:[%s181 + $0xa10] sm:$0xff] %v826
                %v828 = vld [vmem:[%s180 + $0x1430] sm:$0xff]
                %829 = vst [vmem:[%s181 + $0xa18] sm:$0xff] %v828
                %v830 = vld [vmem:[%s180 + $0x1440] sm:$0xff]
                %831 = vst [vmem:[%s181 + $0xa20] sm:$0xff] %v830
                %v832 = vld [vmem:[%s180 + $0x1450] sm:$0xff]
                %833 = vst [vmem:[%s181 + $0xa28] sm:$0xff] %v832
                %v834 = vld [vmem:[%s180 + $0x1460] sm:$0xff]
                %835 = vst [vmem:[%s181 + $0xa30] sm:$0xff] %v834
                %v836 = vld [vmem:[%s180 + $0x1470] sm:$0xff]
                %837 = vst [vmem:[%s181 + $0xa38] sm:$0xff] %v836
                %v838 = vld [vmem:[%s180 + $0x1480] sm:$0xff]
                %839 = vst [vmem:[%s181 + $0xa40] sm:$0xff] %v838
                %v840 = vld [vmem:[%s180 + $0x1490] sm:$0xff]
                %841 = vst [vmem:[%s181 + $0xa48] sm:$0xff] %v840
                %v842 = vld [vmem:[%s180 + $0x14a0] sm:$0xff]
                %843 = vst [vmem:[%s181 + $0xa50] sm:$0xff] %v842
                %v844 = vld [vmem:[%s180 + $0x14b0] sm:$0xff]
                %845 = vst [vmem:[%s181 + $0xa58] sm:$0xff] %v844
                %v846 = vld [vmem:[%s180 + $0x14c0] sm:$0xff]
                %847 = vst [vmem:[%s181 + $0xa60] sm:$0xff] %v846
                %v848 = vld [vmem:[%s180 + $0x14d0] sm:$0xff]
                %849 = vst [vmem:[%s181 + $0xa68] sm:$0xff] %v848
                %v850 = vld [vmem:[%s180 + $0x14e0] sm:$0xff]
                %851 = vst [vmem:[%s181 + $0xa70] sm:$0xff] %v850
                %v852 = vld [vmem:[%s180 + $0x14f0] sm:$0xff]
                %853 = vst [vmem:[%s181 + $0xa78] sm:$0xff] %v852
                %v854 = vld [vmem:[%s180 + $0x1500] sm:$0xff]
                %855 = vst [vmem:[%s181 + $0xa80] sm:$0xff] %v854
                %v856 = vld [vmem:[%s180 + $0x1510] sm:$0xff]
                %857 = vst [vmem:[%s181 + $0xa88] sm:$0xff] %v856
                %v858 = vld [vmem:[%s180 + $0x1520] sm:$0xff]
                %859 = vst [vmem:[%s181 + $0xa90] sm:$0xff] %v858
                %v860 = vld [vmem:[%s180 + $0x1530] sm:$0xff]
                %861 = vst [vmem:[%s181 + $0xa98] sm:$0xff] %v860
                %v862 = vld [vmem:[%s180 + $0x1540] sm:$0xff]
                %863 = vst [vmem:[%s181 + $0xaa0] sm:$0xff] %v862
                %v864 = vld [vmem:[%s180 + $0x1550] sm:$0xff]
                %865 = vst [vmem:[%s181 + $0xaa8] sm:$0xff] %v864
                %v866 = vld [vmem:[%s180 + $0x1560] sm:$0xff]
                %867 = vst [vmem:[%s181 + $0xab0] sm:$0xff] %v866
                %v868 = vld [vmem:[%s180 + $0x1570] sm:$0xff]
                %869 = vst [vmem:[%s181 + $0xab8] sm:$0xff] %v868
                %v870 = vld [vmem:[%s180 + $0x1580] sm:$0xff]
                %871 = vst [vmem:[%s181 + $0xac0] sm:$0xff] %v870
                %v872 = vld [vmem:[%s180 + $0x1590] sm:$0xff]
                %873 = vst [vmem:[%s181 + $0xac8] sm:$0xff] %v872
                %v874 = vld [vmem:[%s180 + $0x15a0] sm:$0xff]
                %875 = vst [vmem:[%s181 + $0xad0] sm:$0xff] %v874
                %v876 = vld [vmem:[%s180 + $0x15b0] sm:$0xff]
                %877 = vst [vmem:[%s181 + $0xad8] sm:$0xff] %v876
                %v878 = vld [vmem:[%s180 + $0x15c0] sm:$0xff]
                %879 = vst [vmem:[%s181 + $0xae0] sm:$0xff] %v878
                %v880 = vld [vmem:[%s180 + $0x15d0] sm:$0xff]
                %881 = vst [vmem:[%s181 + $0xae8] sm:$0xff] %v880
                %v882 = vld [vmem:[%s180 + $0x15e0] sm:$0xff]
                %883 = vst [vmem:[%s181 + $0xaf0] sm:$0xff] %v882
                %v884 = vld [vmem:[%s180 + $0x15f0] sm:$0xff]
                %885 = vst [vmem:[%s181 + $0xaf8] sm:$0xff] %v884
                %v886 = vld [vmem:[%s180 + $0x1600] sm:$0xff]
                %887 = vst [vmem:[%s181 + $0xb00] sm:$0xff] %v886
                %v888 = vld [vmem:[%s180 + $0x1610] sm:$0xff]
                %889 = vst [vmem:[%s181 + $0xb08] sm:$0xff] %v888
                %v890 = vld [vmem:[%s180 + $0x1620] sm:$0xff]
                %891 = vst [vmem:[%s181 + $0xb10] sm:$0xff] %v890
                %v892 = vld [vmem:[%s180 + $0x1630] sm:$0xff]
                %893 = vst [vmem:[%s181 + $0xb18] sm:$0xff] %v892
                %v894 = vld [vmem:[%s180 + $0x1640] sm:$0xff]
                %895 = vst [vmem:[%s181 + $0xb20] sm:$0xff] %v894
                %v896 = vld [vmem:[%s180 + $0x1650] sm:$0xff]
                %897 = vst [vmem:[%s181 + $0xb28] sm:$0xff] %v896
                %v898 = vld [vmem:[%s180 + $0x1660] sm:$0xff]
                %899 = vst [vmem:[%s181 + $0xb30] sm:$0xff] %v898
                %v900 = vld [vmem:[%s180 + $0x1670] sm:$0xff]
                %901 = vst [vmem:[%s181 + $0xb38] sm:$0xff] %v900
                %v902 = vld [vmem:[%s180 + $0x1680] sm:$0xff]
                %903 = vst [vmem:[%s181 + $0xb40] sm:$0xff] %v902
                %v904 = vld [vmem:[%s180 + $0x1690] sm:$0xff]
                %905 = vst [vmem:[%s181 + $0xb48] sm:$0xff] %v904
                %v906 = vld [vmem:[%s180 + $0x16a0] sm:$0xff]
                %907 = vst [vmem:[%s181 + $0xb50] sm:$0xff] %v906
                %v908 = vld [vmem:[%s180 + $0x16b0] sm:$0xff]
                %909 = vst [vmem:[%s181 + $0xb58] sm:$0xff] %v908
                %v910 = vld [vmem:[%s180 + $0x16c0] sm:$0xff]
                %911 = vst [vmem:[%s181 + $0xb60] sm:$0xff] %v910
                %v912 = vld [vmem:[%s180 + $0x16d0] sm:$0xff]
                %913 = vst [vmem:[%s181 + $0xb68] sm:$0xff] %v912
                %v914 = vld [vmem:[%s180 + $0x16e0] sm:$0xff]
                %915 = vst [vmem:[%s181 + $0xb70] sm:$0xff] %v914
                %v916 = vld [vmem:[%s180 + $0x16f0] sm:$0xff]
                %917 = vst [vmem:[%s181 + $0xb78] sm:$0xff] %v916
                %v918 = vld [vmem:[%s180 + $0x1700] sm:$0xff]
                %919 = vst [vmem:[%s181 + $0xb80] sm:$0xff] %v918
                %v920 = vld [vmem:[%s180 + $0x1710] sm:$0xff]
                %921 = vst [vmem:[%s181 + $0xb88] sm:$0xff] %v920
                %v922 = vld [vmem:[%s180 + $0x1720] sm:$0xff]
                %923 = vst [vmem:[%s181 + $0xb90] sm:$0xff] %v922
                %v924 = vld [vmem:[%s180 + $0x1730] sm:$0xff]
                %925 = vst [vmem:[%s181 + $0xb98] sm:$0xff] %v924
                %v926 = vld [vmem:[%s180 + $0x1740] sm:$0xff]
                %927 = vst [vmem:[%s181 + $0xba0] sm:$0xff] %v926
                %v928 = vld [vmem:[%s180 + $0x1750] sm:$0xff]
                %929 = vst [vmem:[%s181 + $0xba8] sm:$0xff] %v928
                %v930 = vld [vmem:[%s180 + $0x1760] sm:$0xff]
                %931 = vst [vmem:[%s181 + $0xbb0] sm:$0xff] %v930
                %v932 = vld [vmem:[%s180 + $0x1770] sm:$0xff]
                %933 = vst [vmem:[%s181 + $0xbb8] sm:$0xff] %v932
                %v934 = vld [vmem:[%s180 + $0x1780] sm:$0xff]
                %935 = vst [vmem:[%s181 + $0xbc0] sm:$0xff] %v934
                %v936 = vld [vmem:[%s180 + $0x1790] sm:$0xff]
                %937 = vst [vmem:[%s181 + $0xbc8] sm:$0xff] %v936
                %v938 = vld [vmem:[%s180 + $0x17a0] sm:$0xff]
                %939 = vst [vmem:[%s181 + $0xbd0] sm:$0xff] %v938
                %v940 = vld [vmem:[%s180 + $0x17b0] sm:$0xff]
                %941 = vst [vmem:[%s181 + $0xbd8] sm:$0xff] %v940
                %v942 = vld [vmem:[%s180 + $0x17c0] sm:$0xff]
                %943 = vst [vmem:[%s181 + $0xbe0] sm:$0xff] %v942
                %v944 = vld [vmem:[%s180 + $0x17d0] sm:$0xff]
                %945 = vst [vmem:[%s181 + $0xbe8] sm:$0xff] %v944
                %v946 = vld [vmem:[%s180 + $0x17e0] sm:$0xff]
                %947 = vst [vmem:[%s181 + $0xbf0] sm:$0xff] %v946
                %v948 = vld [vmem:[%s180 + $0x17f0] sm:$0xff]
                %949 = vst [vmem:[%s181 + $0xbf8] sm:$0xff] %v948
                %v950 = vld [vmem:[%s180 + $0x1800] sm:$0xff]
                %951 = vst [vmem:[%s181 + $0xc00] sm:$0xff] %v950
                %v952 = vld [vmem:[%s180 + $0x1810] sm:$0xff]
                %953 = vst [vmem:[%s181 + $0xc08] sm:$0xff] %v952
                %v954 = vld [vmem:[%s180 + $0x1820] sm:$0xff]
                %955 = vst [vmem:[%s181 + $0xc10] sm:$0xff] %v954
                %v956 = vld [vmem:[%s180 + $0x1830] sm:$0xff]
                %957 = vst [vmem:[%s181 + $0xc18] sm:$0xff] %v956
                %v958 = vld [vmem:[%s180 + $0x1840] sm:$0xff]
                %959 = vst [vmem:[%s181 + $0xc20] sm:$0xff] %v958
                %v960 = vld [vmem:[%s180 + $0x1850] sm:$0xff]
                %961 = vst [vmem:[%s181 + $0xc28] sm:$0xff] %v960
                %v962 = vld [vmem:[%s180 + $0x1860] sm:$0xff]
                %963 = vst [vmem:[%s181 + $0xc30] sm:$0xff] %v962
                %v964 = vld [vmem:[%s180 + $0x1870] sm:$0xff]
                %965 = vst [vmem:[%s181 + $0xc38] sm:$0xff] %v964
              $region41: #{dqn_forward.7} parent=35 // loop_footer
                %s179 = sadd.s32 1, %s175
              $region42: #{dqn_forward.7} parent=35 // loop_footer_branch
                %174 = sbr.rel target = $region38
              $region43: #{dqn_forward.7} parent=35 // loop_exit
                _
            $region36: #{dqn_forward.7} parent=27 // pred_fallthru
              _
          $region28: #{dqn_forward.7} parent=23 // pred_fallthru
            _
          %1762 = vnop
        $region24: #{dqn_forward.7} parent=19 // pred_fallthru
          _
        // Predicated region
        $region59: #{dqn_forward.7} parent=19 // pred_check
          %p1763 = pneg %p77
        $region60: #{dqn_forward.7} parent=19 // pred_check_branch
          %1765 = sbr.rel (%p1763) target = $region62
        $region61: #{dqn_forward.7} parent=19 // pred_region
          %s1766 = smul.u32 2, %s10
          %p1767 = scmp.lt.s32.totalorder %s1766, 3
          %s1768 = scalar_select %p1767, %s1766, 3
          %s1769 = scalar_lea.vmem %s2, %s1768
          %s1770 = smul.u32 2, %s10
        $region62: #{dqn_forward.7} parent=19 // pred_fallthru
          _
        // Predicated region
        $region63: #{dqn_forward.7} parent=19 // pred_check
          %p1771 = pneg %p103
        $region64: #{dqn_forward.7} parent=19 // pred_check_branch
          %1773 = sbr.rel (%p1771) target = $region66
        $region65: #{dqn_forward.7} parent=19 // pred_region
          %s1774 = smul.u32 32, %s10
          %p1775 = scmp.lt.s32.totalorder %s1774, 63
          %s1776 = scalar_select %p1775, %s1774, 63
          %s1777 = smul.addr %s1776, 4
          %s1778 = scalar_lea.vmem %s3, %s1777
          %s1779 = smul.u32 32, %s10
        $region66: #{dqn_forward.7} parent=19 // pred_fallthru
          _
      $region20: #{dqn_forward.7} parent=5 // pred_fallthru
        _
      %p1780 = scmp.le.s32.totalorder 1, %s10
      %p1781 = scmp.lt.s32.totalorder %s10, 3
      %p1782 = pnand %p1780, %p1781
      %p1783 = pneg %p1782
      // Predicated region
      $region67: #{dqn_forward.7} parent=5 // pred_check
        _
      $region68: #{dqn_forward.7} parent=5 // pred_check_branch
        %1785 = sbr.rel (%p1782) target = $region70
      $region69: #{dqn_forward.7} parent=5 // pred_region
        %s1786 = ssub.s32 %s10, 1
        %s1787 = sand.u32 %s44, 1
        %s1788 = sand.u32 %s44, 1
        %s1789 = smul.addr %s1788, 3136
        %s1790 = scalar_lea.vmem [#allocation2], %s1789
        // Predicated region
        $region71: #{dqn_forward.7} parent=69 // pred_check
          %p1791 = pneg %p57
        $region72: #{dqn_forward.7} parent=69 // pred_check_branch
          %1793 = sbr.rel (%p1791) target = $region74
        $region73: #{dqn_forward.7} parent=69 // pred_region
          _
        $region74: #{dqn_forward.7} parent=69 // pred_fallthru
          _
        %p1794 = pneg %p31
        %p1795 = pneg %p28
        %s1796 = sand.u32 %s44, 1
        %s1797 = sand.u32 %s44, 1
        %s1798 = smul.addr %s1797, 3136
        %s1799 = scalar_lea.vmem [#allocation2], %s1798
        %p1800 = pneg %p57
        %p1801 = pneg %p54
        %s1802 = smul.u32 2, %s15
        %p1803 = scmp.lt.s32.totalorder %s1802, 3
        %s1804 = scalar_select %p1803, %s1802, 3
        %s1805 = scalar_lea.vmem %s2, %s1804
        %p1806 = pneg %p83
        %p1807 = pneg %p80
        %s1808 = smul.u32 32, %s15
        %p1809 = scmp.lt.s32.totalorder %s1808, 63
        %s1810 = scalar_select %p1809, %s1808, 63
        %s1811 = smul.addr %s1810, 4
        %s1812 = scalar_lea.vmem %s3, %s1811
        %p1813 = pneg %p109
        %p1814 = pneg %p106
        %p1815 = pneg %p135
        %p1816 = pneg %p132
        %p1817 = scmp.lt.s32.totalorder %s15, 1
        %s1818 = scalar_select %p1817, %s15, 1
        %s1819 = smul.addr %s1818, 2
        %s1820 = scalar_lea.vmem %s4, %s1819
        %s1821 = smul.u32 2, %s15
        %s1822 = smul.u32 2, %s15
        %p1823 = scmp.lt.s32.totalorder %s1822, 3
        %s1824 = scalar_select %p1823, %s1822, 3
        %s1825 = scalar_lea.vmem %s2, %s1824
        %s1826 = smul.u32 2, %s15
        %s1827 = smul.u32 32, %s15
        %p1828 = scmp.lt.s32.totalorder %s1827, 63
        %s1829 = scalar_select %p1828, %s1827, 63
        %s1830 = smul.addr %s1829, 4
        %s1831 = scalar_lea.vmem %s3, %s1830
        %s1832 = smul.u32 32, %s15
        %p1833 = scmp.lt.s32.totalorder %s15, 1
        %s1834 = scalar_select %p1833, %s15, 1
        %s1835 = smul.addr %s1834, 2
        %s1836 = scalar_lea.vmem %s4, %s1835
        %v1838 = vld [vmem:[%s0] sm:$0xff]
        %v1839 = vld [vmem:[%s0 + $0x8] sm:$0xff]
        %v1840 = vld [vmem:[%s0 + $0x10] sm:$0xff]
        %v1841 = vld [vmem:[%s0 + $0x18] sm:$0x1]
        %v1842 = vld [vmem:[%s1790] sm:$0xff]
        %v1843 = vld [vmem:[%s1790 + $0x8] sm:$0xff]
        %v1844 = vld [vmem:[%s1790 + $0x10] sm:$0xff]
        %v1845 = vld [vmem:[%s1790 + $0x18] sm:$0xff]
        %v1846 = vld [vmem:[%s1790 + $0x20] sm:$0xff]
        %v1847 = vld [vmem:[%s1790 + $0x28] sm:$0xff]
        %v1848 = vld [vmem:[%s1790 + $0x30] sm:$0xff]
        %v1849 = vld [vmem:[%s1790 + $0x38] sm:$0xff]
        %v1850 = vld [vmem:[%s1790 + $0x40] sm:$0xff]
        %v1851 = vld [vmem:[%s1790 + $0x48] sm:$0xff]
        %v1852 = vld [vmem:[%s1790 + $0x50] sm:$0xff]
        %v1853 = vld [vmem:[%s1790 + $0x58] sm:$0xff]
        %v1854 = vld [vmem:[%s1790 + $0x60] sm:$0xff]
        %v1855 = vld [vmem:[%s1790 + $0x68] sm:$0xff]
        %v1856 = vld [vmem:[%s1790 + $0x70] sm:$0xff]
        %v1857 = vld [vmem:[%s1790 + $0x78] sm:$0xff]
        %v1858 = vld [vmem:[%s1790 + $0x80] sm:$0xff]
        %v1859 = vld [vmem:[%s1790 + $0x88] sm:$0xff]
        %v1860 = vld [vmem:[%s1790 + $0x90] sm:$0xff]
        %v1861 = vld [vmem:[%s1790 + $0x98] sm:$0xff]
        %v1862 = vld [vmem:[%s1790 + $0xa0] sm:$0xff]
        %v1863 = vld [vmem:[%s1790 + $0xa8] sm:$0xff]
        %v1864 = vld [vmem:[%s1790 + $0xb0] sm:$0xff]
        %v1865 = vld [vmem:[%s1790 + $0xb8] sm:$0xff]
        %v1866 = vld [vmem:[%s1790 + $0xc0] sm:$0xff]
        %v1867 = vld [vmem:[%s1790 + $0xc8] sm:$0xff]
        %v1868 = vld [vmem:[%s1790 + $0xd0] sm:$0xff]
        %v1869 = vld [vmem:[%s1790 + $0xd8] sm:$0xff]
        %v1870 = vld [vmem:[%s1790 + $0xe0] sm:$0xff]
        %v1871 = vld [vmem:[%s1790 + $0xe8] sm:$0xff]
        %v1872 = vld [vmem:[%s1790 + $0xf0] sm:$0xff]
        %v1873 = vld [vmem:[%s1790 + $0xf8] sm:$0xff]
        %v1874 = vld [vmem:[%s1790 + $0x100] sm:$0xff]
        %v1875 = vld [vmem:[%s1790 + $0x108] sm:$0xff]
        %v1876 = vld [vmem:[%s1790 + $0x110] sm:$0xff]
        %v1877 = vld [vmem:[%s1790 + $0x118] sm:$0xff]
        %v1878 = vld [vmem:[%s1790 + $0x120] sm:$0xff]
        %v1879 = vld [vmem:[%s1790 + $0x128] sm:$0xff]
        %v1880 = vld [vmem:[%s1790 + $0x130] sm:$0xff]
        %v1881 = vld [vmem:[%s1790 + $0x138] sm:$0xff]
        %v1882 = vld [vmem:[%s1790 + $0x140] sm:$0xff]
        %v1883 = vld [vmem:[%s1790 + $0x148] sm:$0xff]
        %v1884 = vld [vmem:[%s1790 + $0x150] sm:$0xff]
        %v1885 = vld [vmem:[%s1790 + $0x158] sm:$0xff]
        %v1886 = vld [vmem:[%s1790 + $0x160] sm:$0xff]
        %v1887 = vld [vmem:[%s1790 + $0x168] sm:$0xff]
        %v1888 = vld [vmem:[%s1790 + $0x170] sm:$0xff]
        %v1889 = vld [vmem:[%s1790 + $0x178] sm:$0xff]
        %v1890 = vld [vmem:[%s1790 + $0x180] sm:$0xff]
        %v1891 = vld [vmem:[%s1790 + $0x188] sm:$0xff]
        %v1892 = vld [vmem:[%s1790 + $0x190] sm:$0xff]
        %v1893 = vld [vmem:[%s1790 + $0x198] sm:$0xff]
        %v1894 = vld [vmem:[%s1790 + $0x1a0] sm:$0xff]
        %v1895 = vld [vmem:[%s1790 + $0x1a8] sm:$0xff]
        %v1896 = vld [vmem:[%s1790 + $0x1b0] sm:$0xff]
        %v1897 = vld [vmem:[%s1790 + $0x1b8] sm:$0xff]
        %v1898 = vld [vmem:[%s1790 + $0x1c0] sm:$0xff]
        %v1899 = vld [vmem:[%s1790 + $0x1c8] sm:$0xff]
        %v1900 = vld [vmem:[%s1790 + $0x1d0] sm:$0xff]
        %v1901 = vld [vmem:[%s1790 + $0x1d8] sm:$0xff]
        %v1902 = vld [vmem:[%s1790 + $0x1e0] sm:$0xff]
        %v1903 = vld [vmem:[%s1790 + $0x1e8] sm:$0xff]
        %v1904 = vld [vmem:[%s1790 + $0x1f0] sm:$0xff]
        %v1905 = vld [vmem:[%s1790 + $0x1f8] sm:$0xff]
        %v1906 = vld [vmem:[%s1790 + $0x200] sm:$0xff]
        %v1907 = vld [vmem:[%s1790 + $0x208] sm:$0xff]
        %v1908 = vld [vmem:[%s1790 + $0x210] sm:$0xff]
        %v1909 = vld [vmem:[%s1790 + $0x218] sm:$0xff]
        %v1910 = vld [vmem:[%s1790 + $0x220] sm:$0xff]
        %v1911 = vld [vmem:[%s1790 + $0x228] sm:$0xff]
        %v1912 = vld [vmem:[%s1790 + $0x230] sm:$0xff]
        %v1913 = vld [vmem:[%s1790 + $0x238] sm:$0xff]
        %v1914 = vld [vmem:[%s1790 + $0x240] sm:$0xff]
        %v1915 = vld [vmem:[%s1790 + $0x248] sm:$0xff]
        %v1916 = vld [vmem:[%s1790 + $0x250] sm:$0xff]
        %v1917 = vld [vmem:[%s1790 + $0x258] sm:$0xff]
        %v1918 = vld [vmem:[%s1790 + $0x260] sm:$0xff]
        %v1919 = vld [vmem:[%s1790 + $0x268] sm:$0xff]
        %v1920 = vld [vmem:[%s1790 + $0x270] sm:$0xff]
        %v1921 = vld [vmem:[%s1790 + $0x278] sm:$0xff]
        %v1922 = vld [vmem:[%s1790 + $0x280] sm:$0xff]
        %v1923 = vld [vmem:[%s1790 + $0x288] sm:$0xff]
        %v1924 = vld [vmem:[%s1790 + $0x290] sm:$0xff]
        %v1925 = vld [vmem:[%s1790 + $0x298] sm:$0xff]
        %v1926 = vld [vmem:[%s1790 + $0x2a0] sm:$0xff]
        %v1927 = vld [vmem:[%s1790 + $0x2a8] sm:$0xff]
        %v1928 = vld [vmem:[%s1790 + $0x2b0] sm:$0xff]
        %v1929 = vld [vmem:[%s1790 + $0x2b8] sm:$0xff]
        %v1930 = vld [vmem:[%s1790 + $0x2c0] sm:$0xff]
        %v1931 = vld [vmem:[%s1790 + $0x2c8] sm:$0xff]
        %v1932 = vld [vmem:[%s1790 + $0x2d0] sm:$0xff]
        %v1933 = vld [vmem:[%s1790 + $0x2d8] sm:$0xff]
        %v1934 = vld [vmem:[%s1790 + $0x2e0] sm:$0xff]
        %v1935 = vld [vmem:[%s1790 + $0x2e8] sm:$0xff]
        %v1936 = vld [vmem:[%s1790 + $0x2f0] sm:$0xff]
        %v1937 = vld [vmem:[%s1790 + $0x2f8] sm:$0xff]
        %v1938 = vld [vmem:[%s1790 + $0x300] sm:$0xff]
        %v1939 = vld [vmem:[%s1790 + $0x308] sm:$0xff]
        %v1940 = vld [vmem:[%s1790 + $0x310] sm:$0xff]
        %v1941 = vld [vmem:[%s1790 + $0x318] sm:$0xff]
        %v1942 = vld [vmem:[%s1790 + $0x320] sm:$0xff]
        %v1943 = vld [vmem:[%s1790 + $0x328] sm:$0xff]
        %v1944 = vld [vmem:[%s1790 + $0x330] sm:$0xff]
        %v1945 = vld [vmem:[%s1790 + $0x338] sm:$0xff]
        %v1946 = vld [vmem:[%s1790 + $0x340] sm:$0xff]
        %v1947 = vld [vmem:[%s1790 + $0x348] sm:$0xff]
        %v1948 = vld [vmem:[%s1790 + $0x350] sm:$0xff]
        %v1949 = vld [vmem:[%s1790 + $0x358] sm:$0xff]
        %v1950 = vld [vmem:[%s1790 + $0x360] sm:$0xff]
        %v1951 = vld [vmem:[%s1790 + $0x368] sm:$0xff]
        %v1952 = vld [vmem:[%s1790 + $0x370] sm:$0xff]
        %v1953 = vld [vmem:[%s1790 + $0x378] sm:$0xff]
        %v1954 = vld [vmem:[%s1790 + $0x380] sm:$0xff]
        %v1955 = vld [vmem:[%s1790 + $0x388] sm:$0xff]
        %v1956 = vld [vmem:[%s1790 + $0x390] sm:$0xff]
        %v1957 = vld [vmem:[%s1790 + $0x398] sm:$0xff]
        %v1958 = vld [vmem:[%s1790 + $0x3a0] sm:$0xff]
        %v1959 = vld [vmem:[%s1790 + $0x3a8] sm:$0xff]
        %v1960 = vld [vmem:[%s1790 + $0x3b0] sm:$0xff]
        %v1961 = vld [vmem:[%s1790 + $0x3b8] sm:$0xff]
        %v1962 = vld [vmem:[%s1790 + $0x3c0] sm:$0xff]
        %v1963 = vld [vmem:[%s1790 + $0x3c8] sm:$0xff]
        %v1964 = vld [vmem:[%s1790 + $0x3d0] sm:$0xff]
        %v1965 = vld [vmem:[%s1790 + $0x3d8] sm:$0xff]
        %v1966 = vld [vmem:[%s1790 + $0x3e0] sm:$0xff]
        %v1967 = vld [vmem:[%s1790 + $0x3e8] sm:$0xff]
        %v1968 = vld [vmem:[%s1790 + $0x3f0] sm:$0xff]
        %v1969 = vld [vmem:[%s1790 + $0x3f8] sm:$0xff]
        %v1970 = vld [vmem:[%s1790 + $0x400] sm:$0xff]
        %v1971 = vld [vmem:[%s1790 + $0x408] sm:$0xff]
        %v1972 = vld [vmem:[%s1790 + $0x410] sm:$0xff]
        %v1973 = vld [vmem:[%s1790 + $0x418] sm:$0xff]
        %v1974 = vld [vmem:[%s1790 + $0x420] sm:$0xff]
        %v1975 = vld [vmem:[%s1790 + $0x428] sm:$0xff]
        %v1976 = vld [vmem:[%s1790 + $0x430] sm:$0xff]
        %v1977 = vld [vmem:[%s1790 + $0x438] sm:$0xff]
        %v1978 = vld [vmem:[%s1790 + $0x440] sm:$0xff]
        %v1979 = vld [vmem:[%s1790 + $0x448] sm:$0xff]
        %v1980 = vld [vmem:[%s1790 + $0x450] sm:$0xff]
        %v1981 = vld [vmem:[%s1790 + $0x458] sm:$0xff]
        %v1982 = vld [vmem:[%s1790 + $0x460] sm:$0xff]
        %v1983 = vld [vmem:[%s1790 + $0x468] sm:$0xff]
        %v1984 = vld [vmem:[%s1790 + $0x470] sm:$0xff]
        %v1985 = vld [vmem:[%s1790 + $0x478] sm:$0xff]
        %v1986 = vld [vmem:[%s1790 + $0x480] sm:$0xff]
        %v1987 = vld [vmem:[%s1790 + $0x488] sm:$0xff]
        %v1988 = vld [vmem:[%s1790 + $0x490] sm:$0xff]
        %v1989 = vld [vmem:[%s1790 + $0x498] sm:$0xff]
        %v1990 = vld [vmem:[%s1790 + $0x4a0] sm:$0xff]
        %v1991 = vld [vmem:[%s1790 + $0x4a8] sm:$0xff]
        %v1992 = vld [vmem:[%s1790 + $0x4b0] sm:$0xff]
        %v1993 = vld [vmem:[%s1790 + $0x4b8] sm:$0xff]
        %v1994 = vld [vmem:[%s1790 + $0x4c0] sm:$0xff]
        %v1995 = vld [vmem:[%s1790 + $0x4c8] sm:$0xff]
        %v1996 = vld [vmem:[%s1790 + $0x4d0] sm:$0xff]
        %v1997 = vld [vmem:[%s1790 + $0x4d8] sm:$0xff]
        %v1998 = vld [vmem:[%s1790 + $0x4e0] sm:$0xff]
        %v1999 = vld [vmem:[%s1790 + $0x4e8] sm:$0xff]
        %v2000 = vld [vmem:[%s1790 + $0x4f0] sm:$0xff]
        %v2001 = vld [vmem:[%s1790 + $0x4f8] sm:$0xff]
        %v2002 = vld [vmem:[%s1790 + $0x500] sm:$0xff]
        %v2003 = vld [vmem:[%s1790 + $0x508] sm:$0xff]
        %v2004 = vld [vmem:[%s1790 + $0x510] sm:$0xff]
        %v2005 = vld [vmem:[%s1790 + $0x518] sm:$0xff]
        %v2006 = vld [vmem:[%s1790 + $0x520] sm:$0xff]
        %v2007 = vld [vmem:[%s1790 + $0x528] sm:$0xff]
        %v2008 = vld [vmem:[%s1790 + $0x530] sm:$0xff]
        %v2009 = vld [vmem:[%s1790 + $0x538] sm:$0xff]
        %v2010 = vld [vmem:[%s1790 + $0x540] sm:$0xff]
        %v2011 = vld [vmem:[%s1790 + $0x548] sm:$0xff]
        %v2012 = vld [vmem:[%s1790 + $0x550] sm:$0xff]
        %v2013 = vld [vmem:[%s1790 + $0x558] sm:$0xff]
        %v2014 = vld [vmem:[%s1790 + $0x560] sm:$0xff]
        %v2015 = vld [vmem:[%s1790 + $0x568] sm:$0xff]
        %v2016 = vld [vmem:[%s1790 + $0x570] sm:$0xff]
        %v2017 = vld [vmem:[%s1790 + $0x578] sm:$0xff]
        %v2018 = vld [vmem:[%s1790 + $0x580] sm:$0xff]
        %v2019 = vld [vmem:[%s1790 + $0x588] sm:$0xff]
        %v2020 = vld [vmem:[%s1790 + $0x590] sm:$0xff]
        %v2021 = vld [vmem:[%s1790 + $0x598] sm:$0xff]
        %v2022 = vld [vmem:[%s1790 + $0x5a0] sm:$0xff]
        %v2023 = vld [vmem:[%s1790 + $0x5a8] sm:$0xff]
        %v2024 = vld [vmem:[%s1790 + $0x5b0] sm:$0xff]
        %v2025 = vld [vmem:[%s1790 + $0x5b8] sm:$0xff]
        %v2026 = vld [vmem:[%s1790 + $0x5c0] sm:$0xff]
        %v2027 = vld [vmem:[%s1790 + $0x5c8] sm:$0xff]
        %v2028 = vld [vmem:[%s1790 + $0x5d0] sm:$0xff]
        %v2029 = vld [vmem:[%s1790 + $0x5d8] sm:$0xff]
        %v2030 = vld [vmem:[%s1790 + $0x5e0] sm:$0xff]
        %v2031 = vld [vmem:[%s1790 + $0x5e8] sm:$0xff]
        %v2032 = vld [vmem:[%s1790 + $0x5f0] sm:$0xff]
        %v2033 = vld [vmem:[%s1790 + $0x5f8] sm:$0xff]
        %v2034 = vld [vmem:[%s1790 + $0x600] sm:$0xff]
        %v2035 = vld [vmem:[%s1790 + $0x608] sm:$0xff]
        %v2036 = vld [vmem:[%s1790 + $0x610] sm:$0xff]
        %v2037 = vld [vmem:[%s1790 + $0x618] sm:$0xff]
        %v2038 = vld [vmem:[%s1790 + $0x620] sm:$0xff]
        %v2039 = vld [vmem:[%s1790 + $0x628] sm:$0xff]
        %v2040 = vld [vmem:[%s1790 + $0x630] sm:$0xff]
        %v2041 = vld [vmem:[%s1790 + $0x638] sm:$0xff]
        %v2042 = vld [vmem:[%s1790 + $0x640] sm:$0xff]
        %v2043 = vld [vmem:[%s1790 + $0x648] sm:$0xff]
        %v2044 = vld [vmem:[%s1790 + $0x650] sm:$0xff]
        %v2045 = vld [vmem:[%s1790 + $0x658] sm:$0xff]
        %v2046 = vld [vmem:[%s1790 + $0x660] sm:$0xff]
        %v2047 = vld [vmem:[%s1790 + $0x668] sm:$0xff]
        %v2048 = vld [vmem:[%s1790 + $0x670] sm:$0xff]
        %v2049 = vld [vmem:[%s1790 + $0x678] sm:$0xff]
        %v2050 = vld [vmem:[%s1790 + $0x680] sm:$0xff]
        %v2051 = vld [vmem:[%s1790 + $0x688] sm:$0xff]
        %v2052 = vld [vmem:[%s1790 + $0x690] sm:$0xff]
        %v2053 = vld [vmem:[%s1790 + $0x698] sm:$0xff]
        %v2054 = vld [vmem:[%s1790 + $0x6a0] sm:$0xff]
        %v2055 = vld [vmem:[%s1790 + $0x6a8] sm:$0xff]
        %v2056 = vld [vmem:[%s1790 + $0x6b0] sm:$0xff]
        %v2057 = vld [vmem:[%s1790 + $0x6b8] sm:$0xff]
        %v2058 = vld [vmem:[%s1790 + $0x6c0] sm:$0xff]
        %v2059 = vld [vmem:[%s1790 + $0x6c8] sm:$0xff]
        %v2060 = vld [vmem:[%s1790 + $0x6d0] sm:$0xff]
        %v2061 = vld [vmem:[%s1790 + $0x6d8] sm:$0xff]
        %v2062 = vld [vmem:[%s1790 + $0x6e0] sm:$0xff]
        %v2063 = vld [vmem:[%s1790 + $0x6e8] sm:$0xff]
        %v2064 = vld [vmem:[%s1790 + $0x6f0] sm:$0xff]
        %v2065 = vld [vmem:[%s1790 + $0x6f8] sm:$0xff]
        %v2066 = vld [vmem:[%s1790 + $0x700] sm:$0xff]
        %v2067 = vld [vmem:[%s1790 + $0x708] sm:$0xff]
        %v2068 = vld [vmem:[%s1790 + $0x710] sm:$0xff]
        %v2069 = vld [vmem:[%s1790 + $0x718] sm:$0xff]
        %v2070 = vld [vmem:[%s1790 + $0x720] sm:$0xff]
        %v2071 = vld [vmem:[%s1790 + $0x728] sm:$0xff]
        %v2072 = vld [vmem:[%s1790 + $0x730] sm:$0xff]
        %v2073 = vld [vmem:[%s1790 + $0x738] sm:$0xff]
        %v2074 = vld [vmem:[%s1790 + $0x740] sm:$0xff]
        %v2075 = vld [vmem:[%s1790 + $0x748] sm:$0xff]
        %v2076 = vld [vmem:[%s1790 + $0x750] sm:$0xff]
        %v2077 = vld [vmem:[%s1790 + $0x758] sm:$0xff]
        %v2078 = vld [vmem:[%s1790 + $0x760] sm:$0xff]
        %v2079 = vld [vmem:[%s1790 + $0x768] sm:$0xff]
        %v2080 = vld [vmem:[%s1790 + $0x770] sm:$0xff]
        %v2081 = vld [vmem:[%s1790 + $0x778] sm:$0xff]
        %v2082 = vld [vmem:[%s1790 + $0x780] sm:$0xff]
        %v2083 = vld [vmem:[%s1790 + $0x788] sm:$0xff]
        %v2084 = vld [vmem:[%s1790 + $0x790] sm:$0xff]
        %v2085 = vld [vmem:[%s1790 + $0x798] sm:$0xff]
        %v2086 = vld [vmem:[%s1790 + $0x7a0] sm:$0xff]
        %v2087 = vld [vmem:[%s1790 + $0x7a8] sm:$0xff]
        %v2088 = vld [vmem:[%s1790 + $0x7b0] sm:$0xff]
        %v2089 = vld [vmem:[%s1790 + $0x7b8] sm:$0xff]
        %v2090 = vld [vmem:[%s1790 + $0x7c0] sm:$0xff]
        %v2091 = vld [vmem:[%s1790 + $0x7c8] sm:$0xff]
        %v2092 = vld [vmem:[%s1790 + $0x7d0] sm:$0xff]
        %v2093 = vld [vmem:[%s1790 + $0x7d8] sm:$0xff]
        %v2094 = vld [vmem:[%s1790 + $0x7e0] sm:$0xff]
        %v2095 = vld [vmem:[%s1790 + $0x7e8] sm:$0xff]
        %v2096 = vld [vmem:[%s1790 + $0x7f0] sm:$0xff]
        %v2097 = vld [vmem:[%s1790 + $0x7f8] sm:$0xff]
        %v2098 = vld [vmem:[%s1790 + $0x800] sm:$0xff]
        %v2099 = vld [vmem:[%s1790 + $0x808] sm:$0xff]
        %v2100 = vld [vmem:[%s1790 + $0x810] sm:$0xff]
        %v2101 = vld [vmem:[%s1790 + $0x818] sm:$0xff]
        %v2102 = vld [vmem:[%s1790 + $0x820] sm:$0xff]
        %v2103 = vld [vmem:[%s1790 + $0x828] sm:$0xff]
        %v2104 = vld [vmem:[%s1790 + $0x830] sm:$0xff]
        %v2105 = vld [vmem:[%s1790 + $0x838] sm:$0xff]
        %v2106 = vld [vmem:[%s1790 + $0x840] sm:$0xff]
        %v2107 = vld [vmem:[%s1790 + $0x848] sm:$0xff]
        %v2108 = vld [vmem:[%s1790 + $0x850] sm:$0xff]
        %v2109 = vld [vmem:[%s1790 + $0x858] sm:$0xff]
        %v2110 = vld [vmem:[%s1790 + $0x860] sm:$0xff]
        %v2111 = vld [vmem:[%s1790 + $0x868] sm:$0xff]
        %v2112 = vld [vmem:[%s1790 + $0x870] sm:$0xff]
        %v2113 = vld [vmem:[%s1790 + $0x878] sm:$0xff]
        %v2114 = vld [vmem:[%s1790 + $0x880] sm:$0xff]
        %v2115 = vld [vmem:[%s1790 + $0x888] sm:$0xff]
        %v2116 = vld [vmem:[%s1790 + $0x890] sm:$0xff]
        %v2117 = vld [vmem:[%s1790 + $0x898] sm:$0xff]
        %v2118 = vld [vmem:[%s1790 + $0x8a0] sm:$0xff]
        %v2119 = vld [vmem:[%s1790 + $0x8a8] sm:$0xff]
        %v2120 = vld [vmem:[%s1790 + $0x8b0] sm:$0xff]
        %v2121 = vld [vmem:[%s1790 + $0x8b8] sm:$0xff]
        %v2122 = vld [vmem:[%s1790 + $0x8c0] sm:$0xff]
        %v2123 = vld [vmem:[%s1790 + $0x8c8] sm:$0xff]
        %v2124 = vld [vmem:[%s1790 + $0x8d0] sm:$0xff]
        %v2125 = vld [vmem:[%s1790 + $0x8d8] sm:$0xff]
        %v2126 = vld [vmem:[%s1790 + $0x8e0] sm:$0xff]
        %v2127 = vld [vmem:[%s1790 + $0x8e8] sm:$0xff]
        %v2128 = vld [vmem:[%s1790 + $0x8f0] sm:$0xff]
        %v2129 = vld [vmem:[%s1790 + $0x8f8] sm:$0xff]
        %v2130 = vld [vmem:[%s1790 + $0x900] sm:$0xff]
        %v2131 = vld [vmem:[%s1790 + $0x908] sm:$0xff]
        %v2132 = vld [vmem:[%s1790 + $0x910] sm:$0xff]
        %v2133 = vld [vmem:[%s1790 + $0x918] sm:$0xff]
        %v2134 = vld [vmem:[%s1790 + $0x920] sm:$0xff]
        %v2135 = vld [vmem:[%s1790 + $0x928] sm:$0xff]
        %v2136 = vld [vmem:[%s1790 + $0x930] sm:$0xff]
        %v2137 = vld [vmem:[%s1790 + $0x938] sm:$0xff]
        %v2138 = vld [vmem:[%s1790 + $0x940] sm:$0xff]
        %v2139 = vld [vmem:[%s1790 + $0x948] sm:$0xff]
        %v2140 = vld [vmem:[%s1790 + $0x950] sm:$0xff]
        %v2141 = vld [vmem:[%s1790 + $0x958] sm:$0xff]
        %v2142 = vld [vmem:[%s1790 + $0x960] sm:$0xff]
        %v2143 = vld [vmem:[%s1790 + $0x968] sm:$0xff]
        %v2144 = vld [vmem:[%s1790 + $0x970] sm:$0xff]
        %v2145 = vld [vmem:[%s1790 + $0x978] sm:$0xff]
        %v2146 = vld [vmem:[%s1790 + $0x980] sm:$0xff]
        %v2147 = vld [vmem:[%s1790 + $0x988] sm:$0xff]
        %v2148 = vld [vmem:[%s1790 + $0x990] sm:$0xff]
        %v2149 = vld [vmem:[%s1790 + $0x998] sm:$0xff]
        %v2150 = vld [vmem:[%s1790 + $0x9a0] sm:$0xff]
        %v2151 = vld [vmem:[%s1790 + $0x9a8] sm:$0xff]
        %v2152 = vld [vmem:[%s1790 + $0x9b0] sm:$0xff]
        %v2153 = vld [vmem:[%s1790 + $0x9b8] sm:$0xff]
        %v2154 = vld [vmem:[%s1790 + $0x9c0] sm:$0xff]
        %v2155 = vld [vmem:[%s1790 + $0x9c8] sm:$0xff]
        %v2156 = vld [vmem:[%s1790 + $0x9d0] sm:$0xff]
        %v2157 = vld [vmem:[%s1790 + $0x9d8] sm:$0xff]
        %v2158 = vld [vmem:[%s1790 + $0x9e0] sm:$0xff]
        %v2159 = vld [vmem:[%s1790 + $0x9e8] sm:$0xff]
        %v2160 = vld [vmem:[%s1790 + $0x9f0] sm:$0xff]
        %v2161 = vld [vmem:[%s1790 + $0x9f8] sm:$0xff]
        %v2162 = vld [vmem:[%s1790 + $0xa00] sm:$0xff]
        %v2163 = vld [vmem:[%s1790 + $0xa08] sm:$0xff]
        %v2164 = vld [vmem:[%s1790 + $0xa10] sm:$0xff]
        %v2165 = vld [vmem:[%s1790 + $0xa18] sm:$0xff]
        %v2166 = vld [vmem:[%s1790 + $0xa20] sm:$0xff]
        %v2167 = vld [vmem:[%s1790 + $0xa28] sm:$0xff]
        %v2168 = vld [vmem:[%s1790 + $0xa30] sm:$0xff]
        %v2169 = vld [vmem:[%s1790 + $0xa38] sm:$0xff]
        %v2170 = vld [vmem:[%s1790 + $0xa40] sm:$0xff]
        %v2171 = vld [vmem:[%s1790 + $0xa48] sm:$0xff]
        %v2172 = vld [vmem:[%s1790 + $0xa50] sm:$0xff]
        %v2173 = vld [vmem:[%s1790 + $0xa58] sm:$0xff]
        %v2174 = vld [vmem:[%s1790 + $0xa60] sm:$0xff]
        %v2175 = vld [vmem:[%s1790 + $0xa68] sm:$0xff]
        %v2176 = vld [vmem:[%s1790 + $0xa70] sm:$0xff]
        %v2177 = vld [vmem:[%s1790 + $0xa78] sm:$0xff]
        %v2178 = vld [vmem:[%s1790 + $0xa80] sm:$0xff]
        %v2179 = vld [vmem:[%s1790 + $0xa88] sm:$0xff]
        %v2180 = vld [vmem:[%s1790 + $0xa90] sm:$0xff]
        %v2181 = vld [vmem:[%s1790 + $0xa98] sm:$0xff]
        %v2182 = vld [vmem:[%s1790 + $0xaa0] sm:$0xff]
        %v2183 = vld [vmem:[%s1790 + $0xaa8] sm:$0xff]
        %v2184 = vld [vmem:[%s1790 + $0xab0] sm:$0xff]
        %v2185 = vld [vmem:[%s1790 + $0xab8] sm:$0xff]
        %v2186 = vld [vmem:[%s1790 + $0xac0] sm:$0xff]
        %v2187 = vld [vmem:[%s1790 + $0xac8] sm:$0xff]
        %v2188 = vld [vmem:[%s1790 + $0xad0] sm:$0xff]
        %v2189 = vld [vmem:[%s1790 + $0xad8] sm:$0xff]
        %v2190 = vld [vmem:[%s1790 + $0xae0] sm:$0xff]
        %v2191 = vld [vmem:[%s1790 + $0xae8] sm:$0xff]
        %v2192 = vld [vmem:[%s1790 + $0xaf0] sm:$0xff]
        %v2193 = vld [vmem:[%s1790 + $0xaf8] sm:$0xff]
        %v2194 = vld [vmem:[%s1790 + $0xb00] sm:$0xff]
        %v2195 = vld [vmem:[%s1790 + $0xb08] sm:$0xff]
        %v2196 = vld [vmem:[%s1790 + $0xb10] sm:$0xff]
        %v2197 = vld [vmem:[%s1790 + $0xb18] sm:$0xff]
        %v2198 = vld [vmem:[%s1790 + $0xb20] sm:$0xff]
        %v2199 = vld [vmem:[%s1790 + $0xb28] sm:$0xff]
        %v2200 = vld [vmem:[%s1790 + $0xb30] sm:$0xff]
        %v2201 = vld [vmem:[%s1790 + $0xb38] sm:$0xff]
        %v2202 = vld [vmem:[%s1790 + $0xb40] sm:$0xff]
        %v2203 = vld [vmem:[%s1790 + $0xb48] sm:$0xff]
        %v2204 = vld [vmem:[%s1790 + $0xb50] sm:$0xff]
        %v2205 = vld [vmem:[%s1790 + $0xb58] sm:$0xff]
        %v2206 = vld [vmem:[%s1790 + $0xb60] sm:$0xff]
        %v2207 = vld [vmem:[%s1790 + $0xb68] sm:$0xff]
        %v2208 = vld [vmem:[%s1790 + $0xb70] sm:$0xff]
        %v2209 = vld [vmem:[%s1790 + $0xb78] sm:$0xff]
        %v2210 = vld [vmem:[%s1790 + $0xb80] sm:$0xff]
        %v2211 = vld [vmem:[%s1790 + $0xb88] sm:$0xff]
        %v2212 = vld [vmem:[%s1790 + $0xb90] sm:$0xff]
        %v2213 = vld [vmem:[%s1790 + $0xb98] sm:$0xff]
        %v2214 = vld [vmem:[%s1790 + $0xba0] sm:$0xff]
        %v2215 = vld [vmem:[%s1790 + $0xba8] sm:$0xff]
        %v2216 = vld [vmem:[%s1790 + $0xbb0] sm:$0xff]
        %v2217 = vld [vmem:[%s1790 + $0xbb8] sm:$0xff]
        %v2218 = vld [vmem:[%s1790 + $0xbc0] sm:$0xff]
        %v2219 = vld [vmem:[%s1790 + $0xbc8] sm:$0xff]
        %v2220 = vld [vmem:[%s1790 + $0xbd0] sm:$0xff]
        %v2221 = vld [vmem:[%s1790 + $0xbd8] sm:$0xff]
        %v2222 = vld [vmem:[%s1790 + $0xbe0] sm:$0xff]
        %v2223 = vld [vmem:[%s1790 + $0xbe8] sm:$0xff]
        %v2224 = vld [vmem:[%s1790 + $0xbf0] sm:$0xff]
        %v2225 = vld [vmem:[%s1790 + $0xbf8] sm:$0xff]
        %v2226 = vld [vmem:[%s1790 + $0xc00] sm:$0xff]
        %v2227 = vld [vmem:[%s1790 + $0xc08] sm:$0xff]
        %v2228 = vld [vmem:[%s1790 + $0xc10] sm:$0xff]
        %v2229 = vld [vmem:[%s1790 + $0xc18] sm:$0xff]
        %v2230 = vld [vmem:[%s1790 + $0xc20] sm:$0xff]
        %v2231 = vld [vmem:[%s1790 + $0xc28] sm:$0xff]
        %v2232 = vld [vmem:[%s1790 + $0xc30] sm:$0xff]
        %v2233 = vld [vmem:[%s1790 + $0xc38] sm:$0xff]
        %v2234 = vld [vmem:[%s1825] sm:$0x3]
        %v2236 = vlaneseq
        %v2237 = vshrl.u32 %v2236, 7
        %v2238 = vsub.s32 0, %v2237
        %v2239 = vrot.slane %v2234, %v2238
        %v2240 = vlaneseq
        %v2241 = vshrl.u32 %v2240, 7
        %v2242 = vsub.s32 1, %v2241
        %v2243 = vrot.slane %v2234, %v2242
        %v2250 = vcombine.high %v1838, %v1838
        %v2252 = vunpack.c.l.s4 1966171168
        %v2253 = vunpack.c.0.s8 %v2252
        %v2254 = vlaneseq
        %v2255 = vshrl.u32 %v2254, 7
        %v2256 = vsub.s32 %v2253, %v2255
        %v2257 = vrot.slane %v1838, %v2256
        %v2259 = vunpack.c.l.s4 1966171168
        %v2260 = vunpack.c.0.s8 %v2259
        %v2261 = vlaneseq
        %v2262 = vshrl.u32 %v2261, 7
        %v2263 = vsub.s32 %v2260, %v2262
        %v2264 = vrot.slane %v2250, %v2263
        %v2265 = vcombine.high %v2257, %v2257
        %v2266 = vcombine.high %v2264, %v2264
        %v2268 = vunpack.c.l.s4 1966171168
        %v2269 = vunpack.c.0.s8 %v2268
        %v2270 = vlaneseq
        %v2271 = vshrl.u32 %v2270, 7
        %v2272 = vsub.s32 %v2269, %v2271
        %v2273 = vrot.slane %v2257, %v2272
        %v2275 = vunpack.c.l.s4 1966171168
        %v2276 = vunpack.c.0.s8 %v2275
        %v2277 = vlaneseq
        %v2278 = vshrl.u32 %v2277, 7
        %v2279 = vsub.s32 %v2276, %v2278
        %v2280 = vrot.slane %v2264, %v2279
        %v2282 = vunpack.c.l.s4 1966171168
        %v2283 = vunpack.c.0.s8 %v2282
        %v2284 = vlaneseq
        %v2285 = vshrl.u32 %v2284, 7
        %v2286 = vsub.s32 %v2283, %v2285
        %v2287 = vrot.slane %v2265, %v2286
        %v2289 = vunpack.c.l.s4 1966171168
        %v2290 = vunpack.c.0.s8 %v2289
        %v2291 = vlaneseq
        %v2292 = vshrl.u32 %v2291, 7
        %v2293 = vsub.s32 %v2290, %v2292
        %v2294 = vrot.slane %v2266, %v2293
        %v2295 = vcombine.high %v2273, %v2273
        %v2296 = vcombine.high %v2280, %v2280
        %v2297 = vcombine.high %v2287, %v2287
        %v2298 = vcombine.high %v2294, %v2294
        %v2299 = vcombine.high %v1839, %v1839
        %v2301 = vunpack.c.l.s4 1966171168
        %v2302 = vunpack.c.0.s8 %v2301
        %v2303 = vlaneseq
        %v2304 = vshrl.u32 %v2303, 7
        %v2305 = vsub.s32 %v2302, %v2304
        %v2306 = vrot.slane %v1839, %v2305
        %v2308 = vunpack.c.l.s4 1966171168
        %v2309 = vunpack.c.0.s8 %v2308
        %v2310 = vlaneseq
        %v2311 = vshrl.u32 %v2310, 7
        %v2312 = vsub.s32 %v2309, %v2311
        %v2313 = vrot.slane %v2299, %v2312
        %v2314 = vcombine.high %v2306, %v2306
        %v2315 = vcombine.high %v2313, %v2313
        %v2317 = vunpack.c.l.s4 1966171168
        %v2318 = vunpack.c.0.s8 %v2317
        %v2319 = vlaneseq
        %v2320 = vshrl.u32 %v2319, 7
        %v2321 = vsub.s32 %v2318, %v2320
        %v2322 = vrot.slane %v2306, %v2321
        %v2324 = vunpack.c.l.s4 1966171168
        %v2325 = vunpack.c.0.s8 %v2324
        %v2326 = vlaneseq
        %v2327 = vshrl.u32 %v2326, 7
        %v2328 = vsub.s32 %v2325, %v2327
        %v2329 = vrot.slane %v2313, %v2328
        %v2331 = vunpack.c.l.s4 1966171168
        %v2332 = vunpack.c.0.s8 %v2331
        %v2333 = vlaneseq
        %v2334 = vshrl.u32 %v2333, 7
        %v2335 = vsub.s32 %v2332, %v2334
        %v2336 = vrot.slane %v2314, %v2335
        %v2338 = vunpack.c.l.s4 1966171168
        %v2339 = vunpack.c.0.s8 %v2338
        %v2340 = vlaneseq
        %v2341 = vshrl.u32 %v2340, 7
        %v2342 = vsub.s32 %v2339, %v2341
        %v2343 = vrot.slane %v2315, %v2342
        %v2344 = vcombine.high %v2322, %v2322
        %v2345 = vcombine.high %v2329, %v2329
        %v2346 = vcombine.high %v2336, %v2336
        %v2347 = vcombine.high %v2343, %v2343
        %v2348 = vcombine.high %v1840, %v1840
        %v2350 = vunpack.c.l.s4 1966171168
        %v2351 = vunpack.c.0.s8 %v2350
        %v2352 = vlaneseq
        %v2353 = vshrl.u32 %v2352, 7
        %v2354 = vsub.s32 %v2351, %v2353
        %v2355 = vrot.slane %v1840, %v2354
        %v2357 = vunpack.c.l.s4 1966171168
        %v2358 = vunpack.c.0.s8 %v2357
        %v2359 = vlaneseq
        %v2360 = vshrl.u32 %v2359, 7
        %v2361 = vsub.s32 %v2358, %v2360
        %v2362 = vrot.slane %v2348, %v2361
        %v2363 = vcombine.high %v2355, %v2355
        %v2364 = vcombine.high %v2362, %v2362
        %v2366 = vunpack.c.l.s4 1966171168
        %v2367 = vunpack.c.0.s8 %v2366
        %v2368 = vlaneseq
        %v2369 = vshrl.u32 %v2368, 7
        %v2370 = vsub.s32 %v2367, %v2369
        %v2371 = vrot.slane %v2355, %v2370
        %v2373 = vunpack.c.l.s4 1966171168
        %v2374 = vunpack.c.0.s8 %v2373
        %v2375 = vlaneseq
        %v2376 = vshrl.u32 %v2375, 7
        %v2377 = vsub.s32 %v2374, %v2376
        %v2378 = vrot.slane %v2362, %v2377
        %v2380 = vunpack.c.l.s4 1966171168
        %v2381 = vunpack.c.0.s8 %v2380
        %v2382 = vlaneseq
        %v2383 = vshrl.u32 %v2382, 7
        %v2384 = vsub.s32 %v2381, %v2383
        %v2385 = vrot.slane %v2363, %v2384
        %v2387 = vunpack.c.l.s4 1966171168
        %v2388 = vunpack.c.0.s8 %v2387
        %v2389 = vlaneseq
        %v2390 = vshrl.u32 %v2389, 7
        %v2391 = vsub.s32 %v2388, %v2390
        %v2392 = vrot.slane %v2364, %v2391
        %v2393 = vcombine.high %v2371, %v2371
        %v2394 = vcombine.high %v2378, %v2378
        %v2395 = vcombine.high %v2385, %v2385
        %v2396 = vcombine.high %v2392, %v2392
        %v2398 = vunpack.c.l.s4 1966171168
        %v2399 = vunpack.c.0.s8 %v2398
        %v2400 = vlaneseq
        %v2401 = vshrl.u32 %v2400, 7
        %v2402 = vsub.s32 %v2399, %v2401
        %v2403 = vrot.slane %v1841, %v2402
        %v2405 = vunpack.c.l.s4 1966171168
        %v2406 = vunpack.c.0.s8 %v2405
        %v2407 = vlaneseq
        %v2408 = vshrl.u32 %v2407, 7
        %v2409 = vsub.s32 %v2406, %v2408
        %v2410 = vrot.slane %v2403, %v2409
        %v2827 = vunpack.c.l.b16 %v1842
        %v2828 = vunpack.c.h.b16 %v1842
        %v2829 = vunpack.c.l.b16 %v1843
        %v2830 = vunpack.c.h.b16 %v1843
        %v2831 = vunpack.c.l.b16 %v1844
        %v2832 = vunpack.c.h.b16 %v1844
        %v2833 = vunpack.c.l.b16 %v1845
        %v2834 = vunpack.c.h.b16 %v1845
        %v2835 = vunpack.c.l.b16 %v1846
        %v2836 = vunpack.c.h.b16 %v1846
        %v2837 = vunpack.c.l.b16 %v1847
        %v2838 = vunpack.c.h.b16 %v1847
        %v2839 = vunpack.c.l.b16 %v1848
        %v2840 = vunpack.c.h.b16 %v1848
        %v2841 = vunpack.c.l.b16 %v1849
        %v2842 = vunpack.c.h.b16 %v1849
        %v2843 = vunpack.c.l.b16 %v1850
        %v2844 = vunpack.c.h.b16 %v1850
        %v2845 = vunpack.c.l.b16 %v1851
        %v2846 = vunpack.c.h.b16 %v1851
        %v2847 = vunpack.c.l.b16 %v1852
        %v2848 = vunpack.c.h.b16 %v1852
        %v2849 = vunpack.c.l.b16 %v1853
        %v2850 = vunpack.c.h.b16 %v1853
        %v2851 = vunpack.c.l.b16 %v1854
        %v2852 = vunpack.c.h.b16 %v1854
        %v2853 = vunpack.c.l.b16 %v1855
        %v2854 = vunpack.c.h.b16 %v1855
        %v2855 = vunpack.c.l.b16 %v1856
        %v2856 = vunpack.c.h.b16 %v1856
        %v2857 = vunpack.c.l.b16 %v1857
        %v2858 = vunpack.c.h.b16 %v1857
        %v2859 = vunpack.c.l.b16 %v1858
        %v2860 = vunpack.c.h.b16 %v1858
        %v2861 = vunpack.c.l.b16 %v1859
        %v2862 = vunpack.c.h.b16 %v1859
        %v2863 = vunpack.c.l.b16 %v1860
        %v2864 = vunpack.c.h.b16 %v1860
        %v2865 = vunpack.c.l.b16 %v1861
        %v2866 = vunpack.c.h.b16 %v1861
        %v2867 = vunpack.c.l.b16 %v1862
        %v2868 = vunpack.c.h.b16 %v1862
        %v2869 = vunpack.c.l.b16 %v1863
        %v2870 = vunpack.c.h.b16 %v1863
        %v2871 = vunpack.c.l.b16 %v1864
        %v2872 = vunpack.c.h.b16 %v1864
        %v2873 = vunpack.c.l.b16 %v1865
        %v2874 = vunpack.c.h.b16 %v1865
        %v2875 = vunpack.c.l.b16 %v1866
        %v2876 = vunpack.c.h.b16 %v1866
        %v2877 = vunpack.c.l.b16 %v1867
        %v2878 = vunpack.c.h.b16 %v1867
        %v2879 = vunpack.c.l.b16 %v1868
        %v2880 = vunpack.c.h.b16 %v1868
        %v2881 = vunpack.c.l.b16 %v1869
        %v2882 = vunpack.c.h.b16 %v1869
        %v2883 = vunpack.c.l.b16 %v1870
        %v2884 = vunpack.c.h.b16 %v1870
        %v2885 = vunpack.c.l.b16 %v1871
        %v2886 = vunpack.c.h.b16 %v1871
        %v2887 = vunpack.c.l.b16 %v1872
        %v2888 = vunpack.c.h.b16 %v1872
        %v2889 = vunpack.c.l.b16 %v1873
        %v2890 = vunpack.c.h.b16 %v1873
        %v2891 = vunpack.c.l.b16 %v1874
        %v2892 = vunpack.c.h.b16 %v1874
        %v2893 = vunpack.c.l.b16 %v1875
        %v2894 = vunpack.c.h.b16 %v1875
        %v2895 = vunpack.c.l.b16 %v1876
        %v2896 = vunpack.c.h.b16 %v1876
        %v2897 = vunpack.c.l.b16 %v1877
        %v2898 = vunpack.c.h.b16 %v1877
        %v2899 = vunpack.c.l.b16 %v1878
        %v2900 = vunpack.c.h.b16 %v1878
        %v2901 = vunpack.c.l.b16 %v1879
        %v2902 = vunpack.c.h.b16 %v1879
        %v2903 = vunpack.c.l.b16 %v1880
        %v2904 = vunpack.c.h.b16 %v1880
        %v2905 = vunpack.c.l.b16 %v1881
        %v2906 = vunpack.c.h.b16 %v1881
        %v2907 = vunpack.c.l.b16 %v1882
        %v2908 = vunpack.c.h.b16 %v1882
        %v2909 = vunpack.c.l.b16 %v1883
        %v2910 = vunpack.c.h.b16 %v1883
        %v2911 = vunpack.c.l.b16 %v1884
        %v2912 = vunpack.c.h.b16 %v1884
        %v2913 = vunpack.c.l.b16 %v1885
        %v2914 = vunpack.c.h.b16 %v1885
        %v2915 = vunpack.c.l.b16 %v1886
        %v2916 = vunpack.c.h.b16 %v1886
        %v2917 = vunpack.c.l.b16 %v1887
        %v2918 = vunpack.c.h.b16 %v1887
        %v2919 = vunpack.c.l.b16 %v1888
        %v2920 = vunpack.c.h.b16 %v1888
        %v2921 = vunpack.c.l.b16 %v1889
        %v2922 = vunpack.c.h.b16 %v1889
        %v2923 = vunpack.c.l.b16 %v1890
        %v2924 = vunpack.c.h.b16 %v1890
        %v2925 = vunpack.c.l.b16 %v1891
        %v2926 = vunpack.c.h.b16 %v1891
        %v2927 = vunpack.c.l.b16 %v1892
        %v2928 = vunpack.c.h.b16 %v1892
        %v2929 = vunpack.c.l.b16 %v1893
        %v2930 = vunpack.c.h.b16 %v1893
        %v2931 = vunpack.c.l.b16 %v1894
        %v2932 = vunpack.c.h.b16 %v1894
        %v2933 = vunpack.c.l.b16 %v1895
        %v2934 = vunpack.c.h.b16 %v1895
        %v2935 = vunpack.c.l.b16 %v1896
        %v2936 = vunpack.c.h.b16 %v1896
        %v2937 = vunpack.c.l.b16 %v1897
        %v2938 = vunpack.c.h.b16 %v1897
        %v2939 = vunpack.c.l.b16 %v1898
        %v2940 = vunpack.c.h.b16 %v1898
        %v2941 = vunpack.c.l.b16 %v1899
        %v2942 = vunpack.c.h.b16 %v1899
        %v2943 = vunpack.c.l.b16 %v1900
        %v2944 = vunpack.c.h.b16 %v1900
        %v2945 = vunpack.c.l.b16 %v1901
        %v2946 = vunpack.c.h.b16 %v1901
        %v2947 = vunpack.c.l.b16 %v1902
        %v2948 = vunpack.c.h.b16 %v1902
        %v2949 = vunpack.c.l.b16 %v1903
        %v2950 = vunpack.c.h.b16 %v1903
        %v2951 = vunpack.c.l.b16 %v1904
        %v2952 = vunpack.c.h.b16 %v1904
        %v2953 = vunpack.c.l.b16 %v1905
        %v2954 = vunpack.c.h.b16 %v1905
        %v2955 = vunpack.c.l.b16 %v1906
        %v2956 = vunpack.c.h.b16 %v1906
        %v2957 = vunpack.c.l.b16 %v1907
        %v2958 = vunpack.c.h.b16 %v1907
        %v2959 = vunpack.c.l.b16 %v1908
        %v2960 = vunpack.c.h.b16 %v1908
        %v2961 = vunpack.c.l.b16 %v1909
        %v2962 = vunpack.c.h.b16 %v1909
        %v2963 = vunpack.c.l.b16 %v1910
        %v2964 = vunpack.c.h.b16 %v1910
        %v2965 = vunpack.c.l.b16 %v1911
        %v2966 = vunpack.c.h.b16 %v1911
        %v2967 = vunpack.c.l.b16 %v1912
        %v2968 = vunpack.c.h.b16 %v1912
        %v2969 = vunpack.c.l.b16 %v1913
        %v2970 = vunpack.c.h.b16 %v1913
        %v2971 = vunpack.c.l.b16 %v1914
        %v2972 = vunpack.c.h.b16 %v1914
        %v2973 = vunpack.c.l.b16 %v1915
        %v2974 = vunpack.c.h.b16 %v1915
        %v2975 = vunpack.c.l.b16 %v1916
        %v2976 = vunpack.c.h.b16 %v1916
        %v2977 = vunpack.c.l.b16 %v1917
        %v2978 = vunpack.c.h.b16 %v1917
        %v2979 = vunpack.c.l.b16 %v1918
        %v2980 = vunpack.c.h.b16 %v1918
        %v2981 = vunpack.c.l.b16 %v1919
        %v2982 = vunpack.c.h.b16 %v1919
        %v2983 = vunpack.c.l.b16 %v1920
        %v2984 = vunpack.c.h.b16 %v1920
        %v2985 = vunpack.c.l.b16 %v1921
        %v2986 = vunpack.c.h.b16 %v1921
        %v2987 = vunpack.c.l.b16 %v1922
        %v2988 = vunpack.c.h.b16 %v1922
        %v2989 = vunpack.c.l.b16 %v1923
        %v2990 = vunpack.c.h.b16 %v1923
        %v2991 = vunpack.c.l.b16 %v1924
        %v2992 = vunpack.c.h.b16 %v1924
        %v2993 = vunpack.c.l.b16 %v1925
        %v2994 = vunpack.c.h.b16 %v1925
        %v2995 = vunpack.c.l.b16 %v1926
        %v2996 = vunpack.c.h.b16 %v1926
        %v2997 = vunpack.c.l.b16 %v1927
        %v2998 = vunpack.c.h.b16 %v1927
        %v2999 = vunpack.c.l.b16 %v1928
        %v3000 = vunpack.c.h.b16 %v1928
        %v3001 = vunpack.c.l.b16 %v1929
        %v3002 = vunpack.c.h.b16 %v1929
        %v3003 = vunpack.c.l.b16 %v1930
        %v3004 = vunpack.c.h.b16 %v1930
        %v3005 = vunpack.c.l.b16 %v1931
        %v3006 = vunpack.c.h.b16 %v1931
        %v3007 = vunpack.c.l.b16 %v1932
        %v3008 = vunpack.c.h.b16 %v1932
        %v3009 = vunpack.c.l.b16 %v1933
        %v3010 = vunpack.c.h.b16 %v1933
        %v3011 = vunpack.c.l.b16 %v1934
        %v3012 = vunpack.c.h.b16 %v1934
        %v3013 = vunpack.c.l.b16 %v1935
        %v3014 = vunpack.c.h.b16 %v1935
        %v3015 = vunpack.c.l.b16 %v1936
        %v3016 = vunpack.c.h.b16 %v1936
        %v3017 = vunpack.c.l.b16 %v1937
        %v3018 = vunpack.c.h.b16 %v1937
        %v3019 = vunpack.c.l.b16 %v1938
        %v3020 = vunpack.c.h.b16 %v1938
        %v3021 = vunpack.c.l.b16 %v1939
        %v3022 = vunpack.c.h.b16 %v1939
        %v3023 = vunpack.c.l.b16 %v1940
        %v3024 = vunpack.c.h.b16 %v1940
        %v3025 = vunpack.c.l.b16 %v1941
        %v3026 = vunpack.c.h.b16 %v1941
        %v3027 = vunpack.c.l.b16 %v1942
        %v3028 = vunpack.c.h.b16 %v1942
        %v3029 = vunpack.c.l.b16 %v1943
        %v3030 = vunpack.c.h.b16 %v1943
        %v3031 = vunpack.c.l.b16 %v1944
        %v3032 = vunpack.c.h.b16 %v1944
        %v3033 = vunpack.c.l.b16 %v1945
        %v3034 = vunpack.c.h.b16 %v1945
        %v3035 = vunpack.c.l.b16 %v1946
        %v3036 = vunpack.c.h.b16 %v1946
        %v3037 = vunpack.c.l.b16 %v1947
        %v3038 = vunpack.c.h.b16 %v1947
        %v3039 = vunpack.c.l.b16 %v1948
        %v3040 = vunpack.c.h.b16 %v1948
        %v3041 = vunpack.c.l.b16 %v1949
        %v3042 = vunpack.c.h.b16 %v1949
        %v3043 = vunpack.c.l.b16 %v1950
        %v3044 = vunpack.c.h.b16 %v1950
        %v3045 = vunpack.c.l.b16 %v1951
        %v3046 = vunpack.c.h.b16 %v1951
        %v3047 = vunpack.c.l.b16 %v1952
        %v3048 = vunpack.c.h.b16 %v1952
        %v3049 = vunpack.c.l.b16 %v1953
        %v3050 = vunpack.c.h.b16 %v1953
        %v3051 = vunpack.c.l.b16 %v1954
        %v3052 = vunpack.c.h.b16 %v1954
        %v3053 = vunpack.c.l.b16 %v1955
        %v3054 = vunpack.c.h.b16 %v1955
        %v3055 = vunpack.c.l.b16 %v1956
        %v3056 = vunpack.c.h.b16 %v1956
        %v3057 = vunpack.c.l.b16 %v1957
        %v3058 = vunpack.c.h.b16 %v1957
        %v3059 = vunpack.c.l.b16 %v1958
        %v3060 = vunpack.c.h.b16 %v1958
        %v3061 = vunpack.c.l.b16 %v1959
        %v3062 = vunpack.c.h.b16 %v1959
        %v3063 = vunpack.c.l.b16 %v1960
        %v3064 = vunpack.c.h.b16 %v1960
        %v3065 = vunpack.c.l.b16 %v1961
        %v3066 = vunpack.c.h.b16 %v1961
        %v3067 = vunpack.c.l.b16 %v1962
        %v3068 = vunpack.c.h.b16 %v1962
        %v3069 = vunpack.c.l.b16 %v1963
        %v3070 = vunpack.c.h.b16 %v1963
        %v3071 = vunpack.c.l.b16 %v1964
        %v3072 = vunpack.c.h.b16 %v1964
        %v3073 = vunpack.c.l.b16 %v1965
        %v3074 = vunpack.c.h.b16 %v1965
        %v3075 = vunpack.c.l.b16 %v1966
        %v3076 = vunpack.c.h.b16 %v1966
        %v3077 = vunpack.c.l.b16 %v1967
        %v3078 = vunpack.c.h.b16 %v1967
        %v3079 = vunpack.c.l.b16 %v1968
        %v3080 = vunpack.c.h.b16 %v1968
        %v3081 = vunpack.c.l.b16 %v1969
        %v3082 = vunpack.c.h.b16 %v1969
        %v3083 = vunpack.c.l.b16 %v1970
        %v3084 = vunpack.c.h.b16 %v1970
        %v3085 = vunpack.c.l.b16 %v1971
        %v3086 = vunpack.c.h.b16 %v1971
        %v3087 = vunpack.c.l.b16 %v1972
        %v3088 = vunpack.c.h.b16 %v1972
        %v3089 = vunpack.c.l.b16 %v1973
        %v3090 = vunpack.c.h.b16 %v1973
        %v3091 = vunpack.c.l.b16 %v1974
        %v3092 = vunpack.c.h.b16 %v1974
        %v3093 = vunpack.c.l.b16 %v1975
        %v3094 = vunpack.c.h.b16 %v1975
        %v3095 = vunpack.c.l.b16 %v1976
        %v3096 = vunpack.c.h.b16 %v1976
        %v3097 = vunpack.c.l.b16 %v1977
        %v3098 = vunpack.c.h.b16 %v1977
        %v3099 = vunpack.c.l.b16 %v1978
        %v3100 = vunpack.c.h.b16 %v1978
        %v3101 = vunpack.c.l.b16 %v1979
        %v3102 = vunpack.c.h.b16 %v1979
        %v3103 = vunpack.c.l.b16 %v1980
        %v3104 = vunpack.c.h.b16 %v1980
        %v3105 = vunpack.c.l.b16 %v1981
        %v3106 = vunpack.c.h.b16 %v1981
        %v3107 = vunpack.c.l.b16 %v1982
        %v3108 = vunpack.c.h.b16 %v1982
        %v3109 = vunpack.c.l.b16 %v1983
        %v3110 = vunpack.c.h.b16 %v1983
        %v3111 = vunpack.c.l.b16 %v1984
        %v3112 = vunpack.c.h.b16 %v1984
        %v3113 = vunpack.c.l.b16 %v1985
        %v3114 = vunpack.c.h.b16 %v1985
        %v3115 = vunpack.c.l.b16 %v1986
        %v3116 = vunpack.c.h.b16 %v1986
        %v3117 = vunpack.c.l.b16 %v1987
        %v3118 = vunpack.c.h.b16 %v1987
        %v3119 = vunpack.c.l.b16 %v1988
        %v3120 = vunpack.c.h.b16 %v1988
        %v3121 = vunpack.c.l.b16 %v1989
        %v3122 = vunpack.c.h.b16 %v1989
        %v3123 = vunpack.c.l.b16 %v1990
        %v3124 = vunpack.c.h.b16 %v1990
        %v3125 = vunpack.c.l.b16 %v1991
        %v3126 = vunpack.c.h.b16 %v1991
        %v3127 = vunpack.c.l.b16 %v1992
        %v3128 = vunpack.c.h.b16 %v1992
        %v3129 = vunpack.c.l.b16 %v1993
        %v3130 = vunpack.c.h.b16 %v1993
        %v3131 = vunpack.c.l.b16 %v1994
        %v3132 = vunpack.c.h.b16 %v1994
        %v3133 = vunpack.c.l.b16 %v1995
        %v3134 = vunpack.c.h.b16 %v1995
        %v3135 = vunpack.c.l.b16 %v1996
        %v3136 = vunpack.c.h.b16 %v1996
        %v3137 = vunpack.c.l.b16 %v1997
        %v3138 = vunpack.c.h.b16 %v1997
        %v3139 = vunpack.c.l.b16 %v1998
        %v3140 = vunpack.c.h.b16 %v1998
        %v3141 = vunpack.c.l.b16 %v1999
        %v3142 = vunpack.c.h.b16 %v1999
        %v3143 = vunpack.c.l.b16 %v2000
        %v3144 = vunpack.c.h.b16 %v2000
        %v3145 = vunpack.c.l.b16 %v2001
        %v3146 = vunpack.c.h.b16 %v2001
        %v3147 = vunpack.c.l.b16 %v2002
        %v3148 = vunpack.c.h.b16 %v2002
        %v3149 = vunpack.c.l.b16 %v2003
        %v3150 = vunpack.c.h.b16 %v2003
        %v3151 = vunpack.c.l.b16 %v2004
        %v3152 = vunpack.c.h.b16 %v2004
        %v3153 = vunpack.c.l.b16 %v2005
        %v3154 = vunpack.c.h.b16 %v2005
        %v3155 = vunpack.c.l.b16 %v2006
        %v3156 = vunpack.c.h.b16 %v2006
        %v3157 = vunpack.c.l.b16 %v2007
        %v3158 = vunpack.c.h.b16 %v2007
        %v3159 = vunpack.c.l.b16 %v2008
        %v3160 = vunpack.c.h.b16 %v2008
        %v3161 = vunpack.c.l.b16 %v2009
        %v3162 = vunpack.c.h.b16 %v2009
        %v3163 = vunpack.c.l.b16 %v2010
        %v3164 = vunpack.c.h.b16 %v2010
        %v3165 = vunpack.c.l.b16 %v2011
        %v3166 = vunpack.c.h.b16 %v2011
        %v3167 = vunpack.c.l.b16 %v2012
        %v3168 = vunpack.c.h.b16 %v2012
        %v3169 = vunpack.c.l.b16 %v2013
        %v3170 = vunpack.c.h.b16 %v2013
        %v3171 = vunpack.c.l.b16 %v2014
        %v3172 = vunpack.c.h.b16 %v2014
        %v3173 = vunpack.c.l.b16 %v2015
        %v3174 = vunpack.c.h.b16 %v2015
        %v3175 = vunpack.c.l.b16 %v2016
        %v3176 = vunpack.c.h.b16 %v2016
        %v3177 = vunpack.c.l.b16 %v2017
        %v3178 = vunpack.c.h.b16 %v2017
        %v3179 = vunpack.c.l.b16 %v2018
        %v3180 = vunpack.c.h.b16 %v2018
        %v3181 = vunpack.c.l.b16 %v2019
        %v3182 = vunpack.c.h.b16 %v2019
        %v3183 = vunpack.c.l.b16 %v2020
        %v3184 = vunpack.c.h.b16 %v2020
        %v3185 = vunpack.c.l.b16 %v2021
        %v3186 = vunpack.c.h.b16 %v2021
        %v3187 = vunpack.c.l.b16 %v2022
        %v3188 = vunpack.c.h.b16 %v2022
        %v3189 = vunpack.c.l.b16 %v2023
        %v3190 = vunpack.c.h.b16 %v2023
        %v3191 = vunpack.c.l.b16 %v2024
        %v3192 = vunpack.c.h.b16 %v2024
        %v3193 = vunpack.c.l.b16 %v2025
        %v3194 = vunpack.c.h.b16 %v2025
        %v3195 = vunpack.c.l.b16 %v2026
        %v3196 = vunpack.c.h.b16 %v2026
        %v3197 = vunpack.c.l.b16 %v2027
        %v3198 = vunpack.c.h.b16 %v2027
        %v3199 = vunpack.c.l.b16 %v2028
        %v3200 = vunpack.c.h.b16 %v2028
        %v3201 = vunpack.c.l.b16 %v2029
        %v3202 = vunpack.c.h.b16 %v2029
        %v3203 = vunpack.c.l.b16 %v2030
        %v3204 = vunpack.c.h.b16 %v2030
        %v3205 = vunpack.c.l.b16 %v2031
        %v3206 = vunpack.c.h.b16 %v2031
        %v3207 = vunpack.c.l.b16 %v2032
        %v3208 = vunpack.c.h.b16 %v2032
        %v3209 = vunpack.c.l.b16 %v2033
        %v3210 = vunpack.c.h.b16 %v2033
        %v3211 = vunpack.c.l.b16 %v2034
        %v3212 = vunpack.c.h.b16 %v2034
        %v3213 = vunpack.c.l.b16 %v2035
        %v3214 = vunpack.c.h.b16 %v2035
        %v3215 = vunpack.c.l.b16 %v2036
        %v3216 = vunpack.c.h.b16 %v2036
        %v3217 = vunpack.c.l.b16 %v2037
        %v3218 = vunpack.c.h.b16 %v2037
        %v3219 = vunpack.c.l.b16 %v2038
        %v3220 = vunpack.c.h.b16 %v2038
        %v3221 = vunpack.c.l.b16 %v2039
        %v3222 = vunpack.c.h.b16 %v2039
        %v3223 = vunpack.c.l.b16 %v2040
        %v3224 = vunpack.c.h.b16 %v2040
        %v3225 = vunpack.c.l.b16 %v2041
        %v3226 = vunpack.c.h.b16 %v2041
        %v3227 = vunpack.c.l.b16 %v2042
        %v3228 = vunpack.c.h.b16 %v2042
        %v3229 = vunpack.c.l.b16 %v2043
        %v3230 = vunpack.c.h.b16 %v2043
        %v3231 = vunpack.c.l.b16 %v2044
        %v3232 = vunpack.c.h.b16 %v2044
        %v3233 = vunpack.c.l.b16 %v2045
        %v3234 = vunpack.c.h.b16 %v2045
        %v3235 = vunpack.c.l.b16 %v2046
        %v3236 = vunpack.c.h.b16 %v2046
        %v3237 = vunpack.c.l.b16 %v2047
        %v3238 = vunpack.c.h.b16 %v2047
        %v3239 = vunpack.c.l.b16 %v2048
        %v3240 = vunpack.c.h.b16 %v2048
        %v3241 = vunpack.c.l.b16 %v2049
        %v3242 = vunpack.c.h.b16 %v2049
        %v3243 = vunpack.c.l.b16 %v2050
        %v3244 = vunpack.c.h.b16 %v2050
        %v3245 = vunpack.c.l.b16 %v2051
        %v3246 = vunpack.c.h.b16 %v2051
        %v3247 = vunpack.c.l.b16 %v2052
        %v3248 = vunpack.c.h.b16 %v2052
        %v3249 = vunpack.c.l.b16 %v2053
        %v3250 = vunpack.c.h.b16 %v2053
        %v3251 = vunpack.c.l.b16 %v2054
        %v3252 = vunpack.c.h.b16 %v2054
        %v3253 = vunpack.c.l.b16 %v2055
        %v3254 = vunpack.c.h.b16 %v2055
        %v3255 = vunpack.c.l.b16 %v2056
        %v3256 = vunpack.c.h.b16 %v2056
        %v3257 = vunpack.c.l.b16 %v2057
        %v3258 = vunpack.c.h.b16 %v2057
        %v3259 = vunpack.c.l.b16 %v2058
        %v3260 = vunpack.c.h.b16 %v2058
        %v3261 = vunpack.c.l.b16 %v2059
        %v3262 = vunpack.c.h.b16 %v2059
        %v3263 = vunpack.c.l.b16 %v2060
        %v3264 = vunpack.c.h.b16 %v2060
        %v3265 = vunpack.c.l.b16 %v2061
        %v3266 = vunpack.c.h.b16 %v2061
        %v3267 = vunpack.c.l.b16 %v2062
        %v3268 = vunpack.c.h.b16 %v2062
        %v3269 = vunpack.c.l.b16 %v2063
        %v3270 = vunpack.c.h.b16 %v2063
        %v3271 = vunpack.c.l.b16 %v2064
        %v3272 = vunpack.c.h.b16 %v2064
        %v3273 = vunpack.c.l.b16 %v2065
        %v3274 = vunpack.c.h.b16 %v2065
        %v3275 = vunpack.c.l.b16 %v2066
        %v3276 = vunpack.c.h.b16 %v2066
        %v3277 = vunpack.c.l.b16 %v2067
        %v3278 = vunpack.c.h.b16 %v2067
        %v3279 = vunpack.c.l.b16 %v2068
        %v3280 = vunpack.c.h.b16 %v2068
        %v3281 = vunpack.c.l.b16 %v2069
        %v3282 = vunpack.c.h.b16 %v2069
        %v3283 = vunpack.c.l.b16 %v2070
        %v3284 = vunpack.c.h.b16 %v2070
        %v3285 = vunpack.c.l.b16 %v2071
        %v3286 = vunpack.c.h.b16 %v2071
        %v3287 = vunpack.c.l.b16 %v2072
        %v3288 = vunpack.c.h.b16 %v2072
        %v3289 = vunpack.c.l.b16 %v2073
        %v3290 = vunpack.c.h.b16 %v2073
        %v3291 = vunpack.c.l.b16 %v2074
        %v3292 = vunpack.c.h.b16 %v2074
        %v3293 = vunpack.c.l.b16 %v2075
        %v3294 = vunpack.c.h.b16 %v2075
        %v3295 = vunpack.c.l.b16 %v2076
        %v3296 = vunpack.c.h.b16 %v2076
        %v3297 = vunpack.c.l.b16 %v2077
        %v3298 = vunpack.c.h.b16 %v2077
        %v3299 = vunpack.c.l.b16 %v2078
        %v3300 = vunpack.c.h.b16 %v2078
        %v3301 = vunpack.c.l.b16 %v2079
        %v3302 = vunpack.c.h.b16 %v2079
        %v3303 = vunpack.c.l.b16 %v2080
        %v3304 = vunpack.c.h.b16 %v2080
        %v3305 = vunpack.c.l.b16 %v2081
        %v3306 = vunpack.c.h.b16 %v2081
        %v3307 = vunpack.c.l.b16 %v2082
        %v3308 = vunpack.c.h.b16 %v2082
        %v3309 = vunpack.c.l.b16 %v2083
        %v3310 = vunpack.c.h.b16 %v2083
        %v3311 = vunpack.c.l.b16 %v2084
        %v3312 = vunpack.c.h.b16 %v2084
        %v3313 = vunpack.c.l.b16 %v2085
        %v3314 = vunpack.c.h.b16 %v2085
        %v3315 = vunpack.c.l.b16 %v2086
        %v3316 = vunpack.c.h.b16 %v2086
        %v3317 = vunpack.c.l.b16 %v2087
        %v3318 = vunpack.c.h.b16 %v2087
        %v3319 = vunpack.c.l.b16 %v2088
        %v3320 = vunpack.c.h.b16 %v2088
        %v3321 = vunpack.c.l.b16 %v2089
        %v3322 = vunpack.c.h.b16 %v2089
        %v3323 = vunpack.c.l.b16 %v2090
        %v3324 = vunpack.c.h.b16 %v2090
        %v3325 = vunpack.c.l.b16 %v2091
        %v3326 = vunpack.c.h.b16 %v2091
        %v3327 = vunpack.c.l.b16 %v2092
        %v3328 = vunpack.c.h.b16 %v2092
        %v3329 = vunpack.c.l.b16 %v2093
        %v3330 = vunpack.c.h.b16 %v2093
        %v3331 = vunpack.c.l.b16 %v2094
        %v3332 = vunpack.c.h.b16 %v2094
        %v3333 = vunpack.c.l.b16 %v2095
        %v3334 = vunpack.c.h.b16 %v2095
        %v3335 = vunpack.c.l.b16 %v2096
        %v3336 = vunpack.c.h.b16 %v2096
        %v3337 = vunpack.c.l.b16 %v2097
        %v3338 = vunpack.c.h.b16 %v2097
        %v3339 = vunpack.c.l.b16 %v2098
        %v3340 = vunpack.c.h.b16 %v2098
        %v3341 = vunpack.c.l.b16 %v2099
        %v3342 = vunpack.c.h.b16 %v2099
        %v3343 = vunpack.c.l.b16 %v2100
        %v3344 = vunpack.c.h.b16 %v2100
        %v3345 = vunpack.c.l.b16 %v2101
        %v3346 = vunpack.c.h.b16 %v2101
        %v3347 = vunpack.c.l.b16 %v2102
        %v3348 = vunpack.c.h.b16 %v2102
        %v3349 = vunpack.c.l.b16 %v2103
        %v3350 = vunpack.c.h.b16 %v2103
        %v3351 = vunpack.c.l.b16 %v2104
        %v3352 = vunpack.c.h.b16 %v2104
        %v3353 = vunpack.c.l.b16 %v2105
        %v3354 = vunpack.c.h.b16 %v2105
        %v3355 = vunpack.c.l.b16 %v2106
        %v3356 = vunpack.c.h.b16 %v2106
        %v3357 = vunpack.c.l.b16 %v2107
        %v3358 = vunpack.c.h.b16 %v2107
        %v3359 = vunpack.c.l.b16 %v2108
        %v3360 = vunpack.c.h.b16 %v2108
        %v3361 = vunpack.c.l.b16 %v2109
        %v3362 = vunpack.c.h.b16 %v2109
        %v3363 = vunpack.c.l.b16 %v2110
        %v3364 = vunpack.c.h.b16 %v2110
        %v3365 = vunpack.c.l.b16 %v2111
        %v3366 = vunpack.c.h.b16 %v2111
        %v3367 = vunpack.c.l.b16 %v2112
        %v3368 = vunpack.c.h.b16 %v2112
        %v3369 = vunpack.c.l.b16 %v2113
        %v3370 = vunpack.c.h.b16 %v2113
        %v3371 = vunpack.c.l.b16 %v2114
        %v3372 = vunpack.c.h.b16 %v2114
        %v3373 = vunpack.c.l.b16 %v2115
        %v3374 = vunpack.c.h.b16 %v2115
        %v3375 = vunpack.c.l.b16 %v2116
        %v3376 = vunpack.c.h.b16 %v2116
        %v3377 = vunpack.c.l.b16 %v2117
        %v3378 = vunpack.c.h.b16 %v2117
        %v3379 = vunpack.c.l.b16 %v2118
        %v3380 = vunpack.c.h.b16 %v2118
        %v3381 = vunpack.c.l.b16 %v2119
        %v3382 = vunpack.c.h.b16 %v2119
        %v3383 = vunpack.c.l.b16 %v2120
        %v3384 = vunpack.c.h.b16 %v2120
        %v3385 = vunpack.c.l.b16 %v2121
        %v3386 = vunpack.c.h.b16 %v2121
        %v3387 = vunpack.c.l.b16 %v2122
        %v3388 = vunpack.c.h.b16 %v2122
        %v3389 = vunpack.c.l.b16 %v2123
        %v3390 = vunpack.c.h.b16 %v2123
        %v3391 = vunpack.c.l.b16 %v2124
        %v3392 = vunpack.c.h.b16 %v2124
        %v3393 = vunpack.c.l.b16 %v2125
        %v3394 = vunpack.c.h.b16 %v2125
        %v3395 = vunpack.c.l.b16 %v2126
        %v3396 = vunpack.c.h.b16 %v2126
        %v3397 = vunpack.c.l.b16 %v2127
        %v3398 = vunpack.c.h.b16 %v2127
        %v3399 = vunpack.c.l.b16 %v2128
        %v3400 = vunpack.c.h.b16 %v2128
        %v3401 = vunpack.c.l.b16 %v2129
        %v3402 = vunpack.c.h.b16 %v2129
        %v3403 = vunpack.c.l.b16 %v2130
        %v3404 = vunpack.c.h.b16 %v2130
        %v3405 = vunpack.c.l.b16 %v2131
        %v3406 = vunpack.c.h.b16 %v2131
        %v3407 = vunpack.c.l.b16 %v2132
        %v3408 = vunpack.c.h.b16 %v2132
        %v3409 = vunpack.c.l.b16 %v2133
        %v3410 = vunpack.c.h.b16 %v2133
        %v3411 = vunpack.c.l.b16 %v2134
        %v3412 = vunpack.c.h.b16 %v2134
        %v3413 = vunpack.c.l.b16 %v2135
        %v3414 = vunpack.c.h.b16 %v2135
        %v3415 = vunpack.c.l.b16 %v2136
        %v3416 = vunpack.c.h.b16 %v2136
        %v3417 = vunpack.c.l.b16 %v2137
        %v3418 = vunpack.c.h.b16 %v2137
        %v3419 = vunpack.c.l.b16 %v2138
        %v3420 = vunpack.c.h.b16 %v2138
        %v3421 = vunpack.c.l.b16 %v2139
        %v3422 = vunpack.c.h.b16 %v2139
        %v3423 = vunpack.c.l.b16 %v2140
        %v3424 = vunpack.c.h.b16 %v2140
        %v3425 = vunpack.c.l.b16 %v2141
        %v3426 = vunpack.c.h.b16 %v2141
        %v3427 = vunpack.c.l.b16 %v2142
        %v3428 = vunpack.c.h.b16 %v2142
        %v3429 = vunpack.c.l.b16 %v2143
        %v3430 = vunpack.c.h.b16 %v2143
        %v3431 = vunpack.c.l.b16 %v2144
        %v3432 = vunpack.c.h.b16 %v2144
        %v3433 = vunpack.c.l.b16 %v2145
        %v3434 = vunpack.c.h.b16 %v2145
        %v3435 = vunpack.c.l.b16 %v2146
        %v3436 = vunpack.c.h.b16 %v2146
        %v3437 = vunpack.c.l.b16 %v2147
        %v3438 = vunpack.c.h.b16 %v2147
        %v3439 = vunpack.c.l.b16 %v2148
        %v3440 = vunpack.c.h.b16 %v2148
        %v3441 = vunpack.c.l.b16 %v2149
        %v3442 = vunpack.c.h.b16 %v2149
        %v3443 = vunpack.c.l.b16 %v2150
        %v3444 = vunpack.c.h.b16 %v2150
        %v3445 = vunpack.c.l.b16 %v2151
        %v3446 = vunpack.c.h.b16 %v2151
        %v3447 = vunpack.c.l.b16 %v2152
        %v3448 = vunpack.c.h.b16 %v2152
        %v3449 = vunpack.c.l.b16 %v2153
        %v3450 = vunpack.c.h.b16 %v2153
        %v3451 = vunpack.c.l.b16 %v2154
        %v3452 = vunpack.c.h.b16 %v2154
        %v3453 = vunpack.c.l.b16 %v2155
        %v3454 = vunpack.c.h.b16 %v2155
        %v3455 = vunpack.c.l.b16 %v2156
        %v3456 = vunpack.c.h.b16 %v2156
        %v3457 = vunpack.c.l.b16 %v2157
        %v3458 = vunpack.c.h.b16 %v2157
        %v3459 = vunpack.c.l.b16 %v2158
        %v3460 = vunpack.c.h.b16 %v2158
        %v3461 = vunpack.c.l.b16 %v2159
        %v3462 = vunpack.c.h.b16 %v2159
        %v3463 = vunpack.c.l.b16 %v2160
        %v3464 = vunpack.c.h.b16 %v2160
        %v3465 = vunpack.c.l.b16 %v2161
        %v3466 = vunpack.c.h.b16 %v2161
        %v3467 = vunpack.c.l.b16 %v2162
        %v3468 = vunpack.c.h.b16 %v2162
        %v3469 = vunpack.c.l.b16 %v2163
        %v3470 = vunpack.c.h.b16 %v2163
        %v3471 = vunpack.c.l.b16 %v2164
        %v3472 = vunpack.c.h.b16 %v2164
        %v3473 = vunpack.c.l.b16 %v2165
        %v3474 = vunpack.c.h.b16 %v2165
        %v3475 = vunpack.c.l.b16 %v2166
        %v3476 = vunpack.c.h.b16 %v2166
        %v3477 = vunpack.c.l.b16 %v2167
        %v3478 = vunpack.c.h.b16 %v2167
        %v3479 = vunpack.c.l.b16 %v2168
        %v3480 = vunpack.c.h.b16 %v2168
        %v3481 = vunpack.c.l.b16 %v2169
        %v3482 = vunpack.c.h.b16 %v2169
        %v3483 = vunpack.c.l.b16 %v2170
        %v3484 = vunpack.c.h.b16 %v2170
        %v3485 = vunpack.c.l.b16 %v2171
        %v3486 = vunpack.c.h.b16 %v2171
        %v3487 = vunpack.c.l.b16 %v2172
        %v3488 = vunpack.c.h.b16 %v2172
        %v3489 = vunpack.c.l.b16 %v2173
        %v3490 = vunpack.c.h.b16 %v2173
        %v3491 = vunpack.c.l.b16 %v2174
        %v3492 = vunpack.c.h.b16 %v2174
        %v3493 = vunpack.c.l.b16 %v2175
        %v3494 = vunpack.c.h.b16 %v2175
        %v3495 = vunpack.c.l.b16 %v2176
        %v3496 = vunpack.c.h.b16 %v2176
        %v3497 = vunpack.c.l.b16 %v2177
        %v3498 = vunpack.c.h.b16 %v2177
        %v3499 = vunpack.c.l.b16 %v2178
        %v3500 = vunpack.c.h.b16 %v2178
        %v3501 = vunpack.c.l.b16 %v2179
        %v3502 = vunpack.c.h.b16 %v2179
        %v3503 = vunpack.c.l.b16 %v2180
        %v3504 = vunpack.c.h.b16 %v2180
        %v3505 = vunpack.c.l.b16 %v2181
        %v3506 = vunpack.c.h.b16 %v2181
        %v3507 = vunpack.c.l.b16 %v2182
        %v3508 = vunpack.c.h.b16 %v2182
        %v3509 = vunpack.c.l.b16 %v2183
        %v3510 = vunpack.c.h.b16 %v2183
        %v3511 = vunpack.c.l.b16 %v2184
        %v3512 = vunpack.c.h.b16 %v2184
        %v3513 = vunpack.c.l.b16 %v2185
        %v3514 = vunpack.c.h.b16 %v2185
        %v3515 = vunpack.c.l.b16 %v2186
        %v3516 = vunpack.c.h.b16 %v2186
        %v3517 = vunpack.c.l.b16 %v2187
        %v3518 = vunpack.c.h.b16 %v2187
        %v3519 = vunpack.c.l.b16 %v2188
        %v3520 = vunpack.c.h.b16 %v2188
        %v3521 = vunpack.c.l.b16 %v2189
        %v3522 = vunpack.c.h.b16 %v2189
        %v3523 = vunpack.c.l.b16 %v2190
        %v3524 = vunpack.c.h.b16 %v2190
        %v3525 = vunpack.c.l.b16 %v2191
        %v3526 = vunpack.c.h.b16 %v2191
        %v3527 = vunpack.c.l.b16 %v2192
        %v3528 = vunpack.c.h.b16 %v2192
        %v3529 = vunpack.c.l.b16 %v2193
        %v3530 = vunpack.c.h.b16 %v2193
        %v3531 = vunpack.c.l.b16 %v2194
        %v3532 = vunpack.c.h.b16 %v2194
        %v3533 = vunpack.c.l.b16 %v2195
        %v3534 = vunpack.c.h.b16 %v2195
        %v3535 = vunpack.c.l.b16 %v2196
        %v3536 = vunpack.c.h.b16 %v2196
        %v3537 = vunpack.c.l.b16 %v2197
        %v3538 = vunpack.c.h.b16 %v2197
        %v3539 = vunpack.c.l.b16 %v2198
        %v3540 = vunpack.c.h.b16 %v2198
        %v3541 = vunpack.c.l.b16 %v2199
        %v3542 = vunpack.c.h.b16 %v2199
        %v3543 = vunpack.c.l.b16 %v2200
        %v3544 = vunpack.c.h.b16 %v2200
        %v3545 = vunpack.c.l.b16 %v2201
        %v3546 = vunpack.c.h.b16 %v2201
        %v3547 = vunpack.c.l.b16 %v2202
        %v3548 = vunpack.c.h.b16 %v2202
        %v3549 = vunpack.c.l.b16 %v2203
        %v3550 = vunpack.c.h.b16 %v2203
        %v3551 = vunpack.c.l.b16 %v2204
        %v3552 = vunpack.c.h.b16 %v2204
        %v3553 = vunpack.c.l.b16 %v2205
        %v3554 = vunpack.c.h.b16 %v2205
        %v3555 = vunpack.c.l.b16 %v2206
        %v3556 = vunpack.c.h.b16 %v2206
        %v3557 = vunpack.c.l.b16 %v2207
        %v3558 = vunpack.c.h.b16 %v2207
        %v3559 = vunpack.c.l.b16 %v2208
        %v3560 = vunpack.c.h.b16 %v2208
        %v3561 = vunpack.c.l.b16 %v2209
        %v3562 = vunpack.c.h.b16 %v2209
        %v3563 = vunpack.c.l.b16 %v2210
        %v3564 = vunpack.c.h.b16 %v2210
        %v3565 = vunpack.c.l.b16 %v2211
        %v3566 = vunpack.c.h.b16 %v2211
        %v3567 = vunpack.c.l.b16 %v2212
        %v3568 = vunpack.c.h.b16 %v2212
        %v3569 = vunpack.c.l.b16 %v2213
        %v3570 = vunpack.c.h.b16 %v2213
        %v3571 = vunpack.c.l.b16 %v2214
        %v3572 = vunpack.c.h.b16 %v2214
        %v3573 = vunpack.c.l.b16 %v2215
        %v3574 = vunpack.c.h.b16 %v2215
        %v3575 = vunpack.c.l.b16 %v2216
        %v3576 = vunpack.c.h.b16 %v2216
        %v3577 = vunpack.c.l.b16 %v2217
        %v3578 = vunpack.c.h.b16 %v2217
        %v3579 = vunpack.c.l.b16 %v2218
        %v3580 = vunpack.c.h.b16 %v2218
        %v3581 = vunpack.c.l.b16 %v2219
        %v3582 = vunpack.c.h.b16 %v2219
        %v3583 = vunpack.c.l.b16 %v2220
        %v3584 = vunpack.c.h.b16 %v2220
        %v3585 = vunpack.c.l.b16 %v2221
        %v3586 = vunpack.c.h.b16 %v2221
        %v3587 = vunpack.c.l.b16 %v2222
        %v3588 = vunpack.c.h.b16 %v2222
        %v3589 = vunpack.c.l.b16 %v2223
        %v3590 = vunpack.c.h.b16 %v2223
        %v3591 = vunpack.c.l.b16 %v2224
        %v3592 = vunpack.c.h.b16 %v2224
        %v3593 = vunpack.c.l.b16 %v2225
        %v3594 = vunpack.c.h.b16 %v2225
        %v3595 = vunpack.c.l.b16 %v2226
        %v3596 = vunpack.c.h.b16 %v2226
        %v3597 = vunpack.c.l.b16 %v2227
        %v3598 = vunpack.c.h.b16 %v2227
        %v3599 = vunpack.c.l.b16 %v2228
        %v3600 = vunpack.c.h.b16 %v2228
        %v3601 = vunpack.c.l.b16 %v2229
        %v3602 = vunpack.c.h.b16 %v2229
        %v3603 = vunpack.c.l.b16 %v2230
        %v3604 = vunpack.c.h.b16 %v2230
        %v3605 = vunpack.c.l.b16 %v2231
        %v3606 = vunpack.c.h.b16 %v2231
        %v3607 = vunpack.c.l.b16 %v2232
        %v3608 = vunpack.c.h.b16 %v2232
        %v3609 = vunpack.c.l.b16 %v2233
        %v3610 = vunpack.c.h.b16 %v2233
        %v3611 = vpack.c.b16 %v2829, %v2827
        %v3612 = vpack.c.b16 %v2830, %v2828
        %v3613 = vpack.c.b16 %v2833, %v2831
        %v3614 = vpack.c.b16 %v2834, %v2832
        %v3615 = vpack.c.b16 %v2837, %v2835
        %v3616 = vpack.c.b16 %v2838, %v2836
        %v3617 = vpack.c.b16 %v2841, %v2839
        %v3618 = vpack.c.b16 %v2842, %v2840
        %v3619 = vpack.c.b16 %v2845, %v2843
        %v3620 = vpack.c.b16 %v2846, %v2844
        %v3621 = vpack.c.b16 %v2849, %v2847
        %v3622 = vpack.c.b16 %v2850, %v2848
        %v3623 = vpack.c.b16 %v2853, %v2851
        %v3624 = vpack.c.b16 %v2854, %v2852
        %v3625 = vpack.c.b16 %v2857, %v2855
        %v3626 = vpack.c.b16 %v2858, %v2856
        %v3627 = vpack.c.b16 %v2861, %v2859
        %v3628 = vpack.c.b16 %v2862, %v2860
        %v3629 = vpack.c.b16 %v2865, %v2863
        %v3630 = vpack.c.b16 %v2866, %v2864
        %v3631 = vpack.c.b16 %v2869, %v2867
        %v3632 = vpack.c.b16 %v2870, %v2868
        %v3633 = vpack.c.b16 %v2873, %v2871
        %v3634 = vpack.c.b16 %v2874, %v2872
        %v3635 = vpack.c.b16 %v2877, %v2875
        %v3636 = vpack.c.b16 %v2878, %v2876
        %v3637 = vpack.c.b16 %v2881, %v2879
        %v3638 = vpack.c.b16 %v2882, %v2880
        %v3639 = vpack.c.b16 %v2885, %v2883
        %v3640 = vpack.c.b16 %v2886, %v2884
        %v3641 = vpack.c.b16 %v2889, %v2887
        %v3642 = vpack.c.b16 %v2890, %v2888
        %v3643 = vpack.c.b16 %v2893, %v2891
        %v3644 = vpack.c.b16 %v2894, %v2892
        %v3645 = vpack.c.b16 %v2897, %v2895
        %v3646 = vpack.c.b16 %v2898, %v2896
        %v3647 = vpack.c.b16 %v2901, %v2899
        %v3648 = vpack.c.b16 %v2902, %v2900
        %v3649 = vpack.c.b16 %v2905, %v2903
        %v3650 = vpack.c.b16 %v2906, %v2904
        %v3651 = vpack.c.b16 %v2909, %v2907
        %v3652 = vpack.c.b16 %v2910, %v2908
        %v3653 = vpack.c.b16 %v2913, %v2911
        %v3654 = vpack.c.b16 %v2914, %v2912
        %v3655 = vpack.c.b16 %v2917, %v2915
        %v3656 = vpack.c.b16 %v2918, %v2916
        %v3657 = vpack.c.b16 %v2921, %v2919
        %v3658 = vpack.c.b16 %v2922, %v2920
        %v3659 = vpack.c.b16 %v2925, %v2923
        %v3660 = vpack.c.b16 %v2926, %v2924
        %v3661 = vpack.c.b16 %v2929, %v2927
        %v3662 = vpack.c.b16 %v2930, %v2928
        %v3663 = vpack.c.b16 %v2933, %v2931
        %v3664 = vpack.c.b16 %v2934, %v2932
        %v3665 = vpack.c.b16 %v2937, %v2935
        %v3666 = vpack.c.b16 %v2938, %v2936
        %v3667 = vpack.c.b16 %v2941, %v2939
        %v3668 = vpack.c.b16 %v2942, %v2940
        %v3669 = vpack.c.b16 %v2945, %v2943
        %v3670 = vpack.c.b16 %v2946, %v2944
        %v3671 = vpack.c.b16 %v2949, %v2947
        %v3672 = vpack.c.b16 %v2950, %v2948
        %v3673 = vpack.c.b16 %v2953, %v2951
        %v3674 = vpack.c.b16 %v2954, %v2952
        %v3675 = vpack.c.b16 %v2957, %v2955
        %v3676 = vpack.c.b16 %v2958, %v2956
        %v3677 = vpack.c.b16 %v2961, %v2959
        %v3678 = vpack.c.b16 %v2962, %v2960
        %v3679 = vpack.c.b16 %v2965, %v2963
        %v3680 = vpack.c.b16 %v2966, %v2964
        %v3681 = vpack.c.b16 %v2969, %v2967
        %v3682 = vpack.c.b16 %v2970, %v2968
        %v3683 = vpack.c.b16 %v2973, %v2971
        %v3684 = vpack.c.b16 %v2974, %v2972
        %v3685 = vpack.c.b16 %v2977, %v2975
        %v3686 = vpack.c.b16 %v2978, %v2976
        %v3687 = vpack.c.b16 %v2981, %v2979
        %v3688 = vpack.c.b16 %v2982, %v2980
        %v3689 = vpack.c.b16 %v2985, %v2983
        %v3690 = vpack.c.b16 %v2986, %v2984
        %v3691 = vpack.c.b16 %v2989, %v2987
        %v3692 = vpack.c.b16 %v2990, %v2988
        %v3693 = vpack.c.b16 %v2993, %v2991
        %v3694 = vpack.c.b16 %v2994, %v2992
        %v3695 = vpack.c.b16 %v2997, %v2995
        %v3696 = vpack.c.b16 %v2998, %v2996
        %v3697 = vpack.c.b16 %v3001, %v2999
        %v3698 = vpack.c.b16 %v3002, %v3000
        %v3699 = vpack.c.b16 %v3005, %v3003
        %v3700 = vpack.c.b16 %v3006, %v3004
        %v3701 = vpack.c.b16 %v3009, %v3007
        %v3702 = vpack.c.b16 %v3010, %v3008
        %v3703 = vpack.c.b16 %v3013, %v3011
        %v3704 = vpack.c.b16 %v3014, %v3012
        %v3705 = vpack.c.b16 %v3017, %v3015
        %v3706 = vpack.c.b16 %v3018, %v3016
        %v3707 = vpack.c.b16 %v3021, %v3019
        %v3708 = vpack.c.b16 %v3022, %v3020
        %v3709 = vpack.c.b16 %v3025, %v3023
        %v3710 = vpack.c.b16 %v3026, %v3024
        %v3711 = vpack.c.b16 %v3029, %v3027
        %v3712 = vpack.c.b16 %v3030, %v3028
        %v3713 = vpack.c.b16 %v3033, %v3031
        %v3714 = vpack.c.b16 %v3034, %v3032
        %v3715 = vpack.c.b16 %v3037, %v3035
        %v3716 = vpack.c.b16 %v3038, %v3036
        %v3717 = vpack.c.b16 %v3041, %v3039
        %v3718 = vpack.c.b16 %v3042, %v3040
        %v3719 = vpack.c.b16 %v3045, %v3043
        %v3720 = vpack.c.b16 %v3046, %v3044
        %v3721 = vpack.c.b16 %v3049, %v3047
        %v3722 = vpack.c.b16 %v3050, %v3048
        %v3723 = vpack.c.b16 %v3053, %v3051
        %v3724 = vpack.c.b16 %v3054, %v3052
        %v3725 = vpack.c.b16 %v3057, %v3055
        %v3726 = vpack.c.b16 %v3058, %v3056
        %v3727 = vpack.c.b16 %v3061, %v3059
        %v3728 = vpack.c.b16 %v3062, %v3060
        %v3729 = vpack.c.b16 %v3065, %v3063
        %v3730 = vpack.c.b16 %v3066, %v3064
        %v3731 = vpack.c.b16 %v3069, %v3067
        %v3732 = vpack.c.b16 %v3070, %v3068
        %v3733 = vpack.c.b16 %v3073, %v3071
        %v3734 = vpack.c.b16 %v3074, %v3072
        %v3735 = vpack.c.b16 %v3077, %v3075
        %v3736 = vpack.c.b16 %v3078, %v3076
        %v3737 = vpack.c.b16 %v3081, %v3079
        %v3738 = vpack.c.b16 %v3082, %v3080
        %v3739 = vpack.c.b16 %v3085, %v3083
        %v3740 = vpack.c.b16 %v3086, %v3084
        %v3741 = vpack.c.b16 %v3089, %v3087
        %v3742 = vpack.c.b16 %v3090, %v3088
        %v3743 = vpack.c.b16 %v3093, %v3091
        %v3744 = vpack.c.b16 %v3094, %v3092
        %v3745 = vpack.c.b16 %v3097, %v3095
        %v3746 = vpack.c.b16 %v3098, %v3096
        %v3747 = vpack.c.b16 %v3101, %v3099
        %v3748 = vpack.c.b16 %v3102, %v3100
        %v3749 = vpack.c.b16 %v3105, %v3103
        %v3750 = vpack.c.b16 %v3106, %v3104
        %v3751 = vpack.c.b16 %v3109, %v3107
        %v3752 = vpack.c.b16 %v3110, %v3108
        %v3753 = vpack.c.b16 %v3113, %v3111
        %v3754 = vpack.c.b16 %v3114, %v3112
        %v3755 = vpack.c.b16 %v3117, %v3115
        %v3756 = vpack.c.b16 %v3118, %v3116
        %v3757 = vpack.c.b16 %v3121, %v3119
        %v3758 = vpack.c.b16 %v3122, %v3120
        %v3759 = vpack.c.b16 %v3125, %v3123
        %v3760 = vpack.c.b16 %v3126, %v3124
        %v3761 = vpack.c.b16 %v3129, %v3127
        %v3762 = vpack.c.b16 %v3130, %v3128
        %v3763 = vpack.c.b16 %v3133, %v3131
        %v3764 = vpack.c.b16 %v3134, %v3132
        %v3765 = vpack.c.b16 %v3137, %v3135
        %v3766 = vpack.c.b16 %v3138, %v3136
        %v3767 = vpack.c.b16 %v3141, %v3139
        %v3768 = vpack.c.b16 %v3142, %v3140
        %v3769 = vpack.c.b16 %v3145, %v3143
        %v3770 = vpack.c.b16 %v3146, %v3144
        %v3771 = vpack.c.b16 %v3149, %v3147
        %v3772 = vpack.c.b16 %v3150, %v3148
        %v3773 = vpack.c.b16 %v3153, %v3151
        %v3774 = vpack.c.b16 %v3154, %v3152
        %v3775 = vpack.c.b16 %v3157, %v3155
        %v3776 = vpack.c.b16 %v3158, %v3156
        %v3777 = vpack.c.b16 %v3161, %v3159
        %v3778 = vpack.c.b16 %v3162, %v3160
        %v3779 = vpack.c.b16 %v3165, %v3163
        %v3780 = vpack.c.b16 %v3166, %v3164
        %v3781 = vpack.c.b16 %v3169, %v3167
        %v3782 = vpack.c.b16 %v3170, %v3168
        %v3783 = vpack.c.b16 %v3173, %v3171
        %v3784 = vpack.c.b16 %v3174, %v3172
        %v3785 = vpack.c.b16 %v3177, %v3175
        %v3786 = vpack.c.b16 %v3178, %v3176
        %v3787 = vpack.c.b16 %v3181, %v3179
        %v3788 = vpack.c.b16 %v3182, %v3180
        %v3789 = vpack.c.b16 %v3185, %v3183
        %v3790 = vpack.c.b16 %v3186, %v3184
        %v3791 = vpack.c.b16 %v3189, %v3187
        %v3792 = vpack.c.b16 %v3190, %v3188
        %v3793 = vpack.c.b16 %v3193, %v3191
        %v3794 = vpack.c.b16 %v3194, %v3192
        %v3795 = vpack.c.b16 %v3197, %v3195
        %v3796 = vpack.c.b16 %v3198, %v3196
        %v3797 = vpack.c.b16 %v3201, %v3199
        %v3798 = vpack.c.b16 %v3202, %v3200
        %v3799 = vpack.c.b16 %v3205, %v3203
        %v3800 = vpack.c.b16 %v3206, %v3204
        %v3801 = vpack.c.b16 %v3209, %v3207
        %v3802 = vpack.c.b16 %v3210, %v3208
        %v3803 = vpack.c.b16 %v3213, %v3211
        %v3804 = vpack.c.b16 %v3214, %v3212
        %v3805 = vpack.c.b16 %v3217, %v3215
        %v3806 = vpack.c.b16 %v3218, %v3216
        %v3807 = vpack.c.b16 %v3221, %v3219
        %v3808 = vpack.c.b16 %v3222, %v3220
        %v3809 = vpack.c.b16 %v3225, %v3223
        %v3810 = vpack.c.b16 %v3226, %v3224
        %v3811 = vpack.c.b16 %v3229, %v3227
        %v3812 = vpack.c.b16 %v3230, %v3228
        %v3813 = vpack.c.b16 %v3233, %v3231
        %v3814 = vpack.c.b16 %v3234, %v3232
        %v3815 = vpack.c.b16 %v3237, %v3235
        %v3816 = vpack.c.b16 %v3238, %v3236
        %v3817 = vpack.c.b16 %v3241, %v3239
        %v3818 = vpack.c.b16 %v3242, %v3240
        %v3819 = vpack.c.b16 %v3245, %v3243
        %v3820 = vpack.c.b16 %v3246, %v3244
        %v3821 = vpack.c.b16 %v3249, %v3247
        %v3822 = vpack.c.b16 %v3250, %v3248
        %v3823 = vpack.c.b16 %v3253, %v3251
        %v3824 = vpack.c.b16 %v3254, %v3252
        %v3825 = vpack.c.b16 %v3257, %v3255
        %v3826 = vpack.c.b16 %v3258, %v3256
        %v3827 = vpack.c.b16 %v3261, %v3259
        %v3828 = vpack.c.b16 %v3262, %v3260
        %v3829 = vpack.c.b16 %v3265, %v3263
        %v3830 = vpack.c.b16 %v3266, %v3264
        %v3831 = vpack.c.b16 %v3269, %v3267
        %v3832 = vpack.c.b16 %v3270, %v3268
        %v3833 = vpack.c.b16 %v3273, %v3271
        %v3834 = vpack.c.b16 %v3274, %v3272
        %v3835 = vpack.c.b16 %v3277, %v3275
        %v3836 = vpack.c.b16 %v3278, %v3276
        %v3837 = vpack.c.b16 %v3281, %v3279
        %v3838 = vpack.c.b16 %v3282, %v3280
        %v3839 = vpack.c.b16 %v3285, %v3283
        %v3840 = vpack.c.b16 %v3286, %v3284
        %v3841 = vpack.c.b16 %v3289, %v3287
        %v3842 = vpack.c.b16 %v3290, %v3288
        %v3843 = vpack.c.b16 %v3293, %v3291
        %v3844 = vpack.c.b16 %v3294, %v3292
        %v3845 = vpack.c.b16 %v3297, %v3295
        %v3846 = vpack.c.b16 %v3298, %v3296
        %v3847 = vpack.c.b16 %v3301, %v3299
        %v3848 = vpack.c.b16 %v3302, %v3300
        %v3849 = vpack.c.b16 %v3305, %v3303
        %v3850 = vpack.c.b16 %v3306, %v3304
        %v3851 = vpack.c.b16 %v3309, %v3307
        %v3852 = vpack.c.b16 %v3310, %v3308
        %v3853 = vpack.c.b16 %v3313, %v3311
        %v3854 = vpack.c.b16 %v3314, %v3312
        %v3855 = vpack.c.b16 %v3317, %v3315
        %v3856 = vpack.c.b16 %v3318, %v3316
        %v3857 = vpack.c.b16 %v3321, %v3319
        %v3858 = vpack.c.b16 %v3322, %v3320
        %v3859 = vpack.c.b16 %v3325, %v3323
        %v3860 = vpack.c.b16 %v3326, %v3324
        %v3861 = vpack.c.b16 %v3329, %v3327
        %v3862 = vpack.c.b16 %v3330, %v3328
        %v3863 = vpack.c.b16 %v3333, %v3331
        %v3864 = vpack.c.b16 %v3334, %v3332
        %v3865 = vpack.c.b16 %v3337, %v3335
        %v3866 = vpack.c.b16 %v3338, %v3336
        %v3867 = vpack.c.b16 %v3341, %v3339
        %v3868 = vpack.c.b16 %v3342, %v3340
        %v3869 = vpack.c.b16 %v3345, %v3343
        %v3870 = vpack.c.b16 %v3346, %v3344
        %v3871 = vpack.c.b16 %v3349, %v3347
        %v3872 = vpack.c.b16 %v3350, %v3348
        %v3873 = vpack.c.b16 %v3353, %v3351
        %v3874 = vpack.c.b16 %v3354, %v3352
        %v3875 = vpack.c.b16 %v3357, %v3355
        %v3876 = vpack.c.b16 %v3358, %v3356
        %v3877 = vpack.c.b16 %v3361, %v3359
        %v3878 = vpack.c.b16 %v3362, %v3360
        %v3879 = vpack.c.b16 %v3365, %v3363
        %v3880 = vpack.c.b16 %v3366, %v3364
        %v3881 = vpack.c.b16 %v3369, %v3367
        %v3882 = vpack.c.b16 %v3370, %v3368
        %v3883 = vpack.c.b16 %v3373, %v3371
        %v3884 = vpack.c.b16 %v3374, %v3372
        %v3885 = vpack.c.b16 %v3377, %v3375
        %v3886 = vpack.c.b16 %v3378, %v3376
        %v3887 = vpack.c.b16 %v3381, %v3379
        %v3888 = vpack.c.b16 %v3382, %v3380
        %v3889 = vpack.c.b16 %v3385, %v3383
        %v3890 = vpack.c.b16 %v3386, %v3384
        %v3891 = vpack.c.b16 %v3389, %v3387
        %v3892 = vpack.c.b16 %v3390, %v3388
        %v3893 = vpack.c.b16 %v3393, %v3391
        %v3894 = vpack.c.b16 %v3394, %v3392
        %v3895 = vpack.c.b16 %v3397, %v3395
        %v3896 = vpack.c.b16 %v3398, %v3396
        %v3897 = vpack.c.b16 %v3401, %v3399
        %v3898 = vpack.c.b16 %v3402, %v3400
        %v3899 = vpack.c.b16 %v3405, %v3403
        %v3900 = vpack.c.b16 %v3406, %v3404
        %v3901 = vpack.c.b16 %v3409, %v3407
        %v3902 = vpack.c.b16 %v3410, %v3408
        %v3903 = vpack.c.b16 %v3413, %v3411
        %v3904 = vpack.c.b16 %v3414, %v3412
        %v3905 = vpack.c.b16 %v3417, %v3415
        %v3906 = vpack.c.b16 %v3418, %v3416
        %v3907 = vpack.c.b16 %v3421, %v3419
        %v3908 = vpack.c.b16 %v3422, %v3420
        %v3909 = vpack.c.b16 %v3425, %v3423
        %v3910 = vpack.c.b16 %v3426, %v3424
        %v3911 = vpack.c.b16 %v3429, %v3427
        %v3912 = vpack.c.b16 %v3430, %v3428
        %v3913 = vpack.c.b16 %v3433, %v3431
        %v3914 = vpack.c.b16 %v3434, %v3432
        %v3915 = vpack.c.b16 %v3437, %v3435
        %v3916 = vpack.c.b16 %v3438, %v3436
        %v3917 = vpack.c.b16 %v3441, %v3439
        %v3918 = vpack.c.b16 %v3442, %v3440
        %v3919 = vpack.c.b16 %v3445, %v3443
        %v3920 = vpack.c.b16 %v3446, %v3444
        %v3921 = vpack.c.b16 %v3449, %v3447
        %v3922 = vpack.c.b16 %v3450, %v3448
        %v3923 = vpack.c.b16 %v3453, %v3451
        %v3924 = vpack.c.b16 %v3454, %v3452
        %v3925 = vpack.c.b16 %v3457, %v3455
        %v3926 = vpack.c.b16 %v3458, %v3456
        %v3927 = vpack.c.b16 %v3461, %v3459
        %v3928 = vpack.c.b16 %v3462, %v3460
        %v3929 = vpack.c.b16 %v3465, %v3463
        %v3930 = vpack.c.b16 %v3466, %v3464
        %v3931 = vpack.c.b16 %v3469, %v3467
        %v3932 = vpack.c.b16 %v3470, %v3468
        %v3933 = vpack.c.b16 %v3473, %v3471
        %v3934 = vpack.c.b16 %v3474, %v3472
        %v3935 = vpack.c.b16 %v3477, %v3475
        %v3936 = vpack.c.b16 %v3478, %v3476
        %v3937 = vpack.c.b16 %v3481, %v3479
        %v3938 = vpack.c.b16 %v3482, %v3480
        %v3939 = vpack.c.b16 %v3485, %v3483
        %v3940 = vpack.c.b16 %v3486, %v3484
        %v3941 = vpack.c.b16 %v3489, %v3487
        %v3942 = vpack.c.b16 %v3490, %v3488
        %v3943 = vpack.c.b16 %v3493, %v3491
        %v3944 = vpack.c.b16 %v3494, %v3492
        %v3945 = vpack.c.b16 %v3497, %v3495
        %v3946 = vpack.c.b16 %v3498, %v3496
        %v3947 = vpack.c.b16 %v3501, %v3499
        %v3948 = vpack.c.b16 %v3502, %v3500
        %v3949 = vpack.c.b16 %v3505, %v3503
        %v3950 = vpack.c.b16 %v3506, %v3504
        %v3951 = vpack.c.b16 %v3509, %v3507
        %v3952 = vpack.c.b16 %v3510, %v3508
        %v3953 = vpack.c.b16 %v3513, %v3511
        %v3954 = vpack.c.b16 %v3514, %v3512
        %v3955 = vpack.c.b16 %v3517, %v3515
        %v3956 = vpack.c.b16 %v3518, %v3516
        %v3957 = vpack.c.b16 %v3521, %v3519
        %v3958 = vpack.c.b16 %v3522, %v3520
        %v3959 = vpack.c.b16 %v3525, %v3523
        %v3960 = vpack.c.b16 %v3526, %v3524
        %v3961 = vpack.c.b16 %v3529, %v3527
        %v3962 = vpack.c.b16 %v3530, %v3528
        %v3963 = vpack.c.b16 %v3533, %v3531
        %v3964 = vpack.c.b16 %v3534, %v3532
        %v3965 = vpack.c.b16 %v3537, %v3535
        %v3966 = vpack.c.b16 %v3538, %v3536
        %v3967 = vpack.c.b16 %v3541, %v3539
        %v3968 = vpack.c.b16 %v3542, %v3540
        %v3969 = vpack.c.b16 %v3545, %v3543
        %v3970 = vpack.c.b16 %v3546, %v3544
        %v3971 = vpack.c.b16 %v3549, %v3547
        %v3972 = vpack.c.b16 %v3550, %v3548
        %v3973 = vpack.c.b16 %v3553, %v3551
        %v3974 = vpack.c.b16 %v3554, %v3552
        %v3975 = vpack.c.b16 %v3557, %v3555
        %v3976 = vpack.c.b16 %v3558, %v3556
        %v3977 = vpack.c.b16 %v3561, %v3559
        %v3978 = vpack.c.b16 %v3562, %v3560
        %v3979 = vpack.c.b16 %v3565, %v3563
        %v3980 = vpack.c.b16 %v3566, %v3564
        %v3981 = vpack.c.b16 %v3569, %v3567
        %v3982 = vpack.c.b16 %v3570, %v3568
        %v3983 = vpack.c.b16 %v3573, %v3571
        %v3984 = vpack.c.b16 %v3574, %v3572
        %v3985 = vpack.c.b16 %v3577, %v3575
        %v3986 = vpack.c.b16 %v3578, %v3576
        %v3987 = vpack.c.b16 %v3581, %v3579
        %v3988 = vpack.c.b16 %v3582, %v3580
        %v3989 = vpack.c.b16 %v3585, %v3583
        %v3990 = vpack.c.b16 %v3586, %v3584
        %v3991 = vpack.c.b16 %v3589, %v3587
        %v3992 = vpack.c.b16 %v3590, %v3588
        %v3993 = vpack.c.b16 %v3593, %v3591
        %v3994 = vpack.c.b16 %v3594, %v3592
        %v3995 = vpack.c.b16 %v3597, %v3595
        %v3996 = vpack.c.b16 %v3598, %v3596
        %v3997 = vpack.c.b16 %v3601, %v3599
        %v3998 = vpack.c.b16 %v3602, %v3600
        %v3999 = vpack.c.b16 %v3605, %v3603
        %v4000 = vpack.c.b16 %v3606, %v3604
        %v4001 = vpack.c.b16 %v3609, %v3607
        %v4002 = vpack.c.b16 %v3610, %v3608
        %vm4395 = vcmask 523264
        %v4397 = vsel %vm4395, %v2410, 0
        %4399 = vmatprep.subr.bf16.mxu0 %v3612
        %4400 = vmatpush1.bf16.msra.mxu0 %v3611
        %4401 = vmatprep.subr.bf16.mxu0 %v3614
        %4402 = vmatpush1.bf16.msra.mxu0 %v3613
        %4403 = vmatprep.subr.bf16.mxu0 %v3616
        %4404 = vmatpush1.bf16.msra.mxu0 %v3615
        %4405 = vmatprep.subr.bf16.mxu0 %v3618
        %4406 = vmatpush1.bf16.msra.mxu0 %v3617
        %4407 = vmatprep.subr.bf16.mxu0 %v3620
        %4408 = vmatpush1.bf16.msra.mxu0 %v3619
        %4409 = vmatprep.subr.bf16.mxu0 %v3622
        %4410 = vmatpush1.bf16.msra.mxu0 %v3621
        %4411 = vmatprep.subr.bf16.mxu0 %v3624
        %4412 = vmatpush1.bf16.msra.mxu0 %v3623
        %4413 = vmatprep.subr.bf16.mxu0 %v3626
        %4414 = vmatpush1.bf16.msra.mxu0 %v3625
        %4415 = vmatprep.subr.bf16.mxu0 %v3628
        %4416 = vmatpush1.bf16.msra.mxu0 %v3627
        %4417 = vmatprep.subr.bf16.mxu0 %v3630
        %4418 = vmatpush1.bf16.msra.mxu0 %v3629
        %4419 = vmatprep.subr.bf16.mxu0 %v3632
        %4420 = vmatpush1.bf16.msra.mxu0 %v3631
        %4421 = vmatprep.subr.bf16.mxu0 %v3634
        %4422 = vmatpush1.bf16.msra.mxu0 %v3633
        %4423 = vmatprep.subr.bf16.mxu0 %v3636
        %4424 = vmatpush1.bf16.msra.mxu0 %v3635
        %4425 = vmatprep.subr.bf16.mxu0 %v3638
        %4426 = vmatpush1.bf16.msra.mxu0 %v3637
        %4427 = vmatprep.subr.bf16.mxu0 %v3640
        %4428 = vmatpush1.bf16.msra.mxu0 %v3639
        %4429 = vmatprep.subr.bf16.mxu0 %v3642
        %4430 = vmatpush1.bf16.msra.mxu0 %v3641
        %4431 = vmatprep.mubr.bf16.mxu0 %v2287
        %4432 = vmatmul.mubr.bf16.gmra.mrb[0].mxu0 %v2273
        %v4433 = vpop.f32.mrb[0].mxu0
        %v4434 = vadd.f32 %v2239, %v4433
        %v4435 = vpop.f32.mrb[0].mxu0
        %v4436 = vadd.f32 %v2243, %v4435
        %v4437 = vpop.f32.mrb[0].mxu0
        %v4438 = vpop.f32.mrb[0].mxu0
        %4439 = vdwg.mxu0
        %4440 = vmatprep.subr.bf16.mxu0 %v3644
        %4441 = vmatpush1.bf16.msra.mxu0 %v3643
        %4442 = vmatprep.subr.bf16.mxu0 %v3646
        %4443 = vmatpush1.bf16.msra.mxu0 %v3645
        %4444 = vmatprep.subr.bf16.mxu0 %v3648
        %4445 = vmatpush1.bf16.msra.mxu0 %v3647
        %4446 = vmatprep.subr.bf16.mxu0 %v3650
        %4447 = vmatpush1.bf16.msra.mxu0 %v3649
        %4448 = vmatprep.subr.bf16.mxu0 %v3652
        %4449 = vmatpush1.bf16.msra.mxu0 %v3651
        %4450 = vmatprep.subr.bf16.mxu0 %v3654
        %4451 = vmatpush1.bf16.msra.mxu0 %v3653
        %4452 = vmatprep.subr.bf16.mxu0 %v3656
        %4453 = vmatpush1.bf16.msra.mxu0 %v3655
        %4454 = vmatprep.subr.bf16.mxu0 %v3658
        %4455 = vmatpush1.bf16.msra.mxu0 %v3657
        %4456 = vmatprep.subr.bf16.mxu0 %v3660
        %4457 = vmatpush1.bf16.msra.mxu0 %v3659
        %4458 = vmatprep.subr.bf16.mxu0 %v3662
        %4459 = vmatpush1.bf16.msra.mxu0 %v3661
        %4460 = vmatprep.subr.bf16.mxu0 %v3664
        %4461 = vmatpush1.bf16.msra.mxu0 %v3663
        %4462 = vmatprep.subr.bf16.mxu0 %v3666
        %4463 = vmatpush1.bf16.msra.mxu0 %v3665
        %4464 = vmatprep.subr.bf16.mxu0 %v3668
        %4465 = vmatpush1.bf16.msra.mxu0 %v3667
        %4466 = vmatprep.subr.bf16.mxu0 %v3670
        %4467 = vmatpush1.bf16.msra.mxu0 %v3669
        %4468 = vmatprep.subr.bf16.mxu0 %v3672
        %4469 = vmatpush1.bf16.msra.mxu0 %v3671
        %4470 = vmatprep.subr.bf16.mxu0 %v3674
        %4471 = vmatpush1.bf16.msra.mxu0 %v3673
        %4472 = vmatprep.mubr.bf16.mxu0 %v2297
        %4473 = vmatmul.mubr.bf16.gmra.mrb[0].mxu0 %v2295
        %v4474 = vpop.f32.mrb[0].mxu0
        %v4475 = vadd.f32 %v4434, %v4474
        %v4476 = vpop.f32.mrb[0].mxu0
        %v4477 = vadd.f32 %v4436, %v4476
        %v4478 = vpop.f32.mrb[0].mxu0
        %v4479 = vpop.f32.mrb[0].mxu0
        %4480 = vdwg.mxu0
        %4481 = vmatprep.subr.bf16.mxu0 %v3676
        %4482 = vmatpush1.bf16.msra.mxu0 %v3675
        %4483 = vmatprep.subr.bf16.mxu0 %v3678
        %4484 = vmatpush1.bf16.msra.mxu0 %v3677
        %4485 = vmatprep.subr.bf16.mxu0 %v3680
        %4486 = vmatpush1.bf16.msra.mxu0 %v3679
        %4487 = vmatprep.subr.bf16.mxu0 %v3682
        %4488 = vmatpush1.bf16.msra.mxu0 %v3681
        %4489 = vmatprep.subr.bf16.mxu0 %v3684
        %4490 = vmatpush1.bf16.msra.mxu0 %v3683
        %4491 = vmatprep.subr.bf16.mxu0 %v3686
        %4492 = vmatpush1.bf16.msra.mxu0 %v3685
        %4493 = vmatprep.subr.bf16.mxu0 %v3688
        %4494 = vmatpush1.bf16.msra.mxu0 %v3687
        %4495 = vmatprep.subr.bf16.mxu0 %v3690
        %4496 = vmatpush1.bf16.msra.mxu0 %v3689
        %4497 = vmatprep.subr.bf16.mxu0 %v3692
        %4498 = vmatpush1.bf16.msra.mxu0 %v3691
        %4499 = vmatprep.subr.bf16.mxu0 %v3694
        %4500 = vmatpush1.bf16.msra.mxu0 %v3693
        %4501 = vmatprep.subr.bf16.mxu0 %v3696
        %4502 = vmatpush1.bf16.msra.mxu0 %v3695
        %4503 = vmatprep.subr.bf16.mxu0 %v3698
        %4504 = vmatpush1.bf16.msra.mxu0 %v3697
        %4505 = vmatprep.subr.bf16.mxu0 %v3700
        %4506 = vmatpush1.bf16.msra.mxu0 %v3699
        %4507 = vmatprep.subr.bf16.mxu0 %v3702
        %4508 = vmatpush1.bf16.msra.mxu0 %v3701
        %4509 = vmatprep.subr.bf16.mxu0 %v3704
        %4510 = vmatpush1.bf16.msra.mxu0 %v3703
        %4511 = vmatprep.subr.bf16.mxu0 %v3706
        %4512 = vmatpush1.bf16.msra.mxu0 %v3705
        %4513 = vmatprep.mubr.bf16.mxu0 %v2294
        %4514 = vmatmul.mubr.bf16.gmra.mrb[0].mxu0 %v2280
        %v4515 = vpop.f32.mrb[0].mxu0
        %v4516 = vadd.f32 %v4475, %v4515
        %v4517 = vpop.f32.mrb[0].mxu0
        %v4518 = vadd.f32 %v4477, %v4517
        %v4519 = vpop.f32.mrb[0].mxu0
        %v4520 = vpop.f32.mrb[0].mxu0
        %4521 = vdwg.mxu0
        %4522 = vmatprep.subr.bf16.mxu0 %v3708
        %4523 = vmatpush1.bf16.msra.mxu0 %v3707
        %4524 = vmatprep.subr.bf16.mxu0 %v3710
        %4525 = vmatpush1.bf16.msra.mxu0 %v3709
        %4526 = vmatprep.subr.bf16.mxu0 %v3712
        %4527 = vmatpush1.bf16.msra.mxu0 %v3711
        %4528 = vmatprep.subr.bf16.mxu0 %v3714
        %4529 = vmatpush1.bf16.msra.mxu0 %v3713
        %4530 = vmatprep.subr.bf16.mxu0 %v3716
        %4531 = vmatpush1.bf16.msra.mxu0 %v3715
        %4532 = vmatprep.subr.bf16.mxu0 %v3718
        %4533 = vmatpush1.bf16.msra.mxu0 %v3717
        %4534 = vmatprep.subr.bf16.mxu0 %v3720
        %4535 = vmatpush1.bf16.msra.mxu0 %v3719
        %4536 = vmatprep.subr.bf16.mxu0 %v3722
        %4537 = vmatpush1.bf16.msra.mxu0 %v3721
        %4538 = vmatprep.subr.bf16.mxu0 %v3724
        %4539 = vmatpush1.bf16.msra.mxu0 %v3723
        %4540 = vmatprep.subr.bf16.mxu0 %v3726
        %4541 = vmatpush1.bf16.msra.mxu0 %v3725
        %4542 = vmatprep.subr.bf16.mxu0 %v3728
        %4543 = vmatpush1.bf16.msra.mxu0 %v3727
        %4544 = vmatprep.subr.bf16.mxu0 %v3730
        %4545 = vmatpush1.bf16.msra.mxu0 %v3729
        %4546 = vmatprep.subr.bf16.mxu0 %v3732
        %4547 = vmatpush1.bf16.msra.mxu0 %v3731
        %4548 = vmatprep.subr.bf16.mxu0 %v3734
        %4549 = vmatpush1.bf16.msra.mxu0 %v3733
        %4550 = vmatprep.subr.bf16.mxu0 %v3736
        %4551 = vmatpush1.bf16.msra.mxu0 %v3735
        %4552 = vmatprep.subr.bf16.mxu0 %v3738
        %4553 = vmatpush1.bf16.msra.mxu0 %v3737
        %4554 = vmatprep.mubr.bf16.mxu0 %v2298
        %4555 = vmatmul.mubr.bf16.gmra.mrb[0].mxu0 %v2296
        %v4556 = vpop.f32.mrb[0].mxu0
        %v4557 = vadd.f32 %v4516, %v4556
        %v4558 = vpop.f32.mrb[0].mxu0
        %v4559 = vadd.f32 %v4518, %v4558
        %v4560 = vpop.f32.mrb[0].mxu0
        %v4561 = vpop.f32.mrb[0].mxu0
        %4562 = vdwg.mxu0
        %4563 = vmatprep.subr.bf16.mxu0 %v3740
        %4564 = vmatpush1.bf16.msra.mxu0 %v3739
        %4565 = vmatprep.subr.bf16.mxu0 %v3742
        %4566 = vmatpush1.bf16.msra.mxu0 %v3741
        %4567 = vmatprep.subr.bf16.mxu0 %v3744
        %4568 = vmatpush1.bf16.msra.mxu0 %v3743
        %4569 = vmatprep.subr.bf16.mxu0 %v3746
        %4570 = vmatpush1.bf16.msra.mxu0 %v3745
        %4571 = vmatprep.subr.bf16.mxu0 %v3748
        %4572 = vmatpush1.bf16.msra.mxu0 %v3747
        %4573 = vmatprep.subr.bf16.mxu0 %v3750
        %4574 = vmatpush1.bf16.msra.mxu0 %v3749
        %4575 = vmatprep.subr.bf16.mxu0 %v3752
        %4576 = vmatpush1.bf16.msra.mxu0 %v3751
        %4577 = vmatprep.subr.bf16.mxu0 %v3754
        %4578 = vmatpush1.bf16.msra.mxu0 %v3753
        %4579 = vmatprep.subr.bf16.mxu0 %v3756
        %4580 = vmatpush1.bf16.msra.mxu0 %v3755
        %4581 = vmatprep.subr.bf16.mxu0 %v3758
        %4582 = vmatpush1.bf16.msra.mxu0 %v3757
        %4583 = vmatprep.subr.bf16.mxu0 %v3760
        %4584 = vmatpush1.bf16.msra.mxu0 %v3759
        %4585 = vmatprep.subr.bf16.mxu0 %v3762
        %4586 = vmatpush1.bf16.msra.mxu0 %v3761
        %4587 = vmatprep.subr.bf16.mxu0 %v3764
        %4588 = vmatpush1.bf16.msra.mxu0 %v3763
        %4589 = vmatprep.subr.bf16.mxu0 %v3766
        %4590 = vmatpush1.bf16.msra.mxu0 %v3765
        %4591 = vmatprep.subr.bf16.mxu0 %v3768
        %4592 = vmatpush1.bf16.msra.mxu0 %v3767
        %4593 = vmatprep.subr.bf16.mxu0 %v3770
        %4594 = vmatpush1.bf16.msra.mxu0 %v3769
        %4595 = vmatprep.mubr.bf16.mxu0 %v2336
        %4596 = vmatmul.mubr.bf16.gmra.mrb[0].mxu0 %v2322
        %v4597 = vpop.f32.mrb[0].mxu0
        %v4598 = vadd.f32 %v4557, %v4597
        %v4599 = vpop.f32.mrb[0].mxu0
        %v4600 = vadd.f32 %v4559, %v4599
        %v4601 = vpop.f32.mrb[0].mxu0
        %v4602 = vpop.f32.mrb[0].mxu0
        %4603 = vdwg.mxu0
        %4604 = vmatprep.subr.bf16.mxu0 %v3772
        %4605 = vmatpush1.bf16.msra.mxu0 %v3771
        %4606 = vmatprep.subr.bf16.mxu0 %v3774
        %4607 = vmatpush1.bf16.msra.mxu0 %v3773
        %4608 = vmatprep.subr.bf16.mxu0 %v3776
        %4609 = vmatpush1.bf16.msra.mxu0 %v3775
        %4610 = vmatprep.subr.bf16.mxu0 %v3778
        %4611 = vmatpush1.bf16.msra.mxu0 %v3777
        %4612 = vmatprep.subr.bf16.mxu0 %v3780
        %4613 = vmatpush1.bf16.msra.mxu0 %v3779
        %4614 = vmatprep.subr.bf16.mxu0 %v3782
        %4615 = vmatpush1.bf16.msra.mxu0 %v3781
        %4616 = vmatprep.subr.bf16.mxu0 %v3784
        %4617 = vmatpush1.bf16.msra.mxu0 %v3783
        %4618 = vmatprep.subr.bf16.mxu0 %v3786
        %4619 = vmatpush1.bf16.msra.mxu0 %v3785
        %4620 = vmatprep.subr.bf16.mxu0 %v3788
        %4621 = vmatpush1.bf16.msra.mxu0 %v3787
        %4622 = vmatprep.subr.bf16.mxu0 %v3790
        %4623 = vmatpush1.bf16.msra.mxu0 %v3789
        %4624 = vmatprep.subr.bf16.mxu0 %v3792
        %4625 = vmatpush1.bf16.msra.mxu0 %v3791
        %4626 = vmatprep.subr.bf16.mxu0 %v3794
        %4627 = vmatpush1.bf16.msra.mxu0 %v3793
        %4628 = vmatprep.subr.bf16.mxu0 %v3796
        %4629 = vmatpush1.bf16.msra.mxu0 %v3795
        %4630 = vmatprep.subr.bf16.mxu0 %v3798
        %4631 = vmatpush1.bf16.msra.mxu0 %v3797
        %4632 = vmatprep.subr.bf16.mxu0 %v3800
        %4633 = vmatpush1.bf16.msra.mxu0 %v3799
        %4634 = vmatprep.subr.bf16.mxu0 %v3802
        %4635 = vmatpush1.bf16.msra.mxu0 %v3801
        %4636 = vmatprep.mubr.bf16.mxu0 %v2346
        %4637 = vmatmul.mubr.bf16.gmra.mrb[0].mxu0 %v2344
        %v4638 = vpop.f32.mrb[0].mxu0
        %v4639 = vadd.f32 %v4598, %v4638
        %v4640 = vpop.f32.mrb[0].mxu0
        %v4641 = vadd.f32 %v4600, %v4640
        %v4642 = vpop.f32.mrb[0].mxu0
        %v4643 = vpop.f32.mrb[0].mxu0
        %4644 = vdwg.mxu0
        %4645 = vmatprep.subr.bf16.mxu0 %v3804
        %4646 = vmatpush1.bf16.msra.mxu0 %v3803
        %4647 = vmatprep.subr.bf16.mxu0 %v3806
        %4648 = vmatpush1.bf16.msra.mxu0 %v3805
        %4649 = vmatprep.subr.bf16.mxu0 %v3808
        %4650 = vmatpush1.bf16.msra.mxu0 %v3807
        %4651 = vmatprep.subr.bf16.mxu0 %v3810
        %4652 = vmatpush1.bf16.msra.mxu0 %v3809
        %4653 = vmatprep.subr.bf16.mxu0 %v3812
        %4654 = vmatpush1.bf16.msra.mxu0 %v3811
        %4655 = vmatprep.subr.bf16.mxu0 %v3814
        %4656 = vmatpush1.bf16.msra.mxu0 %v3813
        %4657 = vmatprep.subr.bf16.mxu0 %v3816
        %4658 = vmatpush1.bf16.msra.mxu0 %v3815
        %4659 = vmatprep.subr.bf16.mxu0 %v3818
        %4660 = vmatpush1.bf16.msra.mxu0 %v3817
        %4661 = vmatprep.subr.bf16.mxu0 %v3820
        %4662 = vmatpush1.bf16.msra.mxu0 %v3819
        %4663 = vmatprep.subr.bf16.mxu0 %v3822
        %4664 = vmatpush1.bf16.msra.mxu0 %v3821
        %4665 = vmatprep.subr.bf16.mxu0 %v3824
        %4666 = vmatpush1.bf16.msra.mxu0 %v3823
        %4667 = vmatprep.subr.bf16.mxu0 %v3826
        %4668 = vmatpush1.bf16.msra.mxu0 %v3825
        %4669 = vmatprep.subr.bf16.mxu0 %v3828
        %4670 = vmatpush1.bf16.msra.mxu0 %v3827
        %4671 = vmatprep.subr.bf16.mxu0 %v3830
        %4672 = vmatpush1.bf16.msra.mxu0 %v3829
        %4673 = vmatprep.subr.bf16.mxu0 %v3832
        %4674 = vmatpush1.bf16.msra.mxu0 %v3831
        %4675 = vmatprep.subr.bf16.mxu0 %v3834
        %4676 = vmatpush1.bf16.msra.mxu0 %v3833
        %4677 = vmatprep.mubr.bf16.mxu0 %v2343
        %4678 = vmatmul.mubr.bf16.gmra.mrb[0].mxu0 %v2329
        %v4679 = vpop.f32.mrb[0].mxu0
        %v4680 = vadd.f32 %v4639, %v4679
        %v4681 = vpop.f32.mrb[0].mxu0
        %v4682 = vadd.f32 %v4641, %v4681
        %v4683 = vpop.f32.mrb[0].mxu0
        %v4684 = vpop.f32.mrb[0].mxu0
        %4685 = vdwg.mxu0
        %4686 = vmatprep.subr.bf16.mxu0 %v3836
        %4687 = vmatpush1.bf16.msra.mxu0 %v3835
        %4688 = vmatprep.subr.bf16.mxu0 %v3838
        %4689 = vmatpush1.bf16.msra.mxu0 %v3837
        %4690 = vmatprep.subr.bf16.mxu0 %v3840
        %4691 = vmatpush1.bf16.msra.mxu0 %v3839
        %4692 = vmatprep.subr.bf16.mxu0 %v3842
        %4693 = vmatpush1.bf16.msra.mxu0 %v3841
        %4694 = vmatprep.subr.bf16.mxu0 %v3844
        %4695 = vmatpush1.bf16.msra.mxu0 %v3843
        %4696 = vmatprep.subr.bf16.mxu0 %v3846
        %4697 = vmatpush1.bf16.msra.mxu0 %v3845
        %4698 = vmatprep.subr.bf16.mxu0 %v3848
        %4699 = vmatpush1.bf16.msra.mxu0 %v3847
        %4700 = vmatprep.subr.bf16.mxu0 %v3850
        %4701 = vmatpush1.bf16.msra.mxu0 %v3849
        %4702 = vmatprep.subr.bf16.mxu0 %v3852
        %4703 = vmatpush1.bf16.msra.mxu0 %v3851
        %4704 = vmatprep.subr.bf16.mxu0 %v3854
        %4705 = vmatpush1.bf16.msra.mxu0 %v3853
        %4706 = vmatprep.subr.bf16.mxu0 %v3856
        %4707 = vmatpush1.bf16.msra.mxu0 %v3855
        %4708 = vmatprep.subr.bf16.mxu0 %v3858
        %4709 = vmatpush1.bf16.msra.mxu0 %v3857
        %4710 = vmatprep.subr.bf16.mxu0 %v3860
        %4711 = vmatpush1.bf16.msra.mxu0 %v3859
        %4712 = vmatprep.subr.bf16.mxu0 %v3862
        %4713 = vmatpush1.bf16.msra.mxu0 %v3861
        %4714 = vmatprep.subr.bf16.mxu0 %v3864
        %4715 = vmatpush1.bf16.msra.mxu0 %v3863
        %4716 = vmatprep.subr.bf16.mxu0 %v3866
        %4717 = vmatpush1.bf16.msra.mxu0 %v3865
        %4718 = vmatprep.mubr.bf16.mxu0 %v2347
        %4719 = vmatmul.mubr.bf16.gmra.mrb[0].mxu0 %v2345
        %v4720 = vpop.f32.mrb[0].mxu0
        %v4721 = vadd.f32 %v4680, %v4720
        %v4722 = vpop.f32.mrb[0].mxu0
        %v4723 = vadd.f32 %v4682, %v4722
        %v4724 = vpop.f32.mrb[0].mxu0
        %v4725 = vpop.f32.mrb[0].mxu0
        %4726 = vdwg.mxu0
        %4727 = vmatprep.subr.bf16.mxu0 %v3868
        %4728 = vmatpush1.bf16.msra.mxu0 %v3867
        %4729 = vmatprep.subr.bf16.mxu0 %v3870
        %4730 = vmatpush1.bf16.msra.mxu0 %v3869
        %4731 = vmatprep.subr.bf16.mxu0 %v3872
        %4732 = vmatpush1.bf16.msra.mxu0 %v3871
        %4733 = vmatprep.subr.bf16.mxu0 %v3874
        %4734 = vmatpush1.bf16.msra.mxu0 %v3873
        %4735 = vmatprep.subr.bf16.mxu0 %v3876
        %4736 = vmatpush1.bf16.msra.mxu0 %v3875
        %4737 = vmatprep.subr.bf16.mxu0 %v3878
        %4738 = vmatpush1.bf16.msra.mxu0 %v3877
        %4739 = vmatprep.subr.bf16.mxu0 %v3880
        %4740 = vmatpush1.bf16.msra.mxu0 %v3879
        %4741 = vmatprep.subr.bf16.mxu0 %v3882
        %4742 = vmatpush1.bf16.msra.mxu0 %v3881
        %4743 = vmatprep.subr.bf16.mxu0 %v3884
        %4744 = vmatpush1.bf16.msra.mxu0 %v3883
        %4745 = vmatprep.subr.bf16.mxu0 %v3886
        %4746 = vmatpush1.bf16.msra.mxu0 %v3885
        %4747 = vmatprep.subr.bf16.mxu0 %v3888
        %4748 = vmatpush1.bf16.msra.mxu0 %v3887
        %4749 = vmatprep.subr.bf16.mxu0 %v3890
        %4750 = vmatpush1.bf16.msra.mxu0 %v3889
        %4751 = vmatprep.subr.bf16.mxu0 %v3892
        %4752 = vmatpush1.bf16.msra.mxu0 %v3891
        %4753 = vmatprep.subr.bf16.mxu0 %v3894
        %4754 = vmatpush1.bf16.msra.mxu0 %v3893
        %4755 = vmatprep.subr.bf16.mxu0 %v3896
        %4756 = vmatpush1.bf16.msra.mxu0 %v3895
        %4757 = vmatprep.subr.bf16.mxu0 %v3898
        %4758 = vmatpush1.bf16.msra.mxu0 %v3897
        %4759 = vmatprep.mubr.bf16.mxu0 %v2385
        %4760 = vmatmul.mubr.bf16.gmra.mrb[0].mxu0 %v2371
        %v4761 = vpop.f32.mrb[0].mxu0
        %v4762 = vadd.f32 %v4721, %v4761
        %v4763 = vpop.f32.mrb[0].mxu0
        %v4764 = vadd.f32 %v4723, %v4763
        %v4765 = vpop.f32.mrb[0].mxu0
        %v4766 = vpop.f32.mrb[0].mxu0
        %4767 = vdwg.mxu0
        %4768 = vmatprep.subr.bf16.mxu0 %v3900
        %4769 = vmatpush1.bf16.msra.mxu0 %v3899
        %4770 = vmatprep.subr.bf16.mxu0 %v3902
        %4771 = vmatpush1.bf16.msra.mxu0 %v3901
        %4772 = vmatprep.subr.bf16.mxu0 %v3904
        %4773 = vmatpush1.bf16.msra.mxu0 %v3903
        %4774 = vmatprep.subr.bf16.mxu0 %v3906
        %4775 = vmatpush1.bf16.msra.mxu0 %v3905
        %4776 = vmatprep.subr.bf16.mxu0 %v3908
        %4777 = vmatpush1.bf16.msra.mxu0 %v3907
        %4778 = vmatprep.subr.bf16.mxu0 %v3910
        %4779 = vmatpush1.bf16.msra.mxu0 %v3909
        %4780 = vmatprep.subr.bf16.mxu0 %v3912
        %4781 = vmatpush1.bf16.msra.mxu0 %v3911
        %4782 = vmatprep.subr.bf16.mxu0 %v3914
        %4783 = vmatpush1.bf16.msra.mxu0 %v3913
        %4784 = vmatprep.subr.bf16.mxu0 %v3916
        %4785 = vmatpush1.bf16.msra.mxu0 %v3915
        %4786 = vmatprep.subr.bf16.mxu0 %v3918
        %4787 = vmatpush1.bf16.msra.mxu0 %v3917
        %4788 = vmatprep.subr.bf16.mxu0 %v3920
        %4789 = vmatpush1.bf16.msra.mxu0 %v3919
        %4790 = vmatprep.subr.bf16.mxu0 %v3922
        %4791 = vmatpush1.bf16.msra.mxu0 %v3921
        %4792 = vmatprep.subr.bf16.mxu0 %v3924
        %4793 = vmatpush1.bf16.msra.mxu0 %v3923
        %4794 = vmatprep.subr.bf16.mxu0 %v3926
        %4795 = vmatpush1.bf16.msra.mxu0 %v3925
        %4796 = vmatprep.subr.bf16.mxu0 %v3928
        %4797 = vmatpush1.bf16.msra.mxu0 %v3927
        %4798 = vmatprep.subr.bf16.mxu0 %v3930
        %4799 = vmatpush1.bf16.msra.mxu0 %v3929
        %4800 = vmatprep.mubr.bf16.mxu0 %v2395
        %4801 = vmatmul.mubr.bf16.gmra.mrb[0].mxu0 %v2393
        %v4802 = vpop.f32.mrb[0].mxu0
        %v4803 = vadd.f32 %v4762, %v4802
        %v4804 = vpop.f32.mrb[0].mxu0
        %v4805 = vadd.f32 %v4764, %v4804
        %v4806 = vpop.f32.mrb[0].mxu0
        %v4807 = vpop.f32.mrb[0].mxu0
        %4808 = vdwg.mxu0
        %4809 = vmatprep.subr.bf16.mxu0 %v3932
        %4810 = vmatpush1.bf16.msra.mxu0 %v3931
        %4811 = vmatprep.subr.bf16.mxu0 %v3934
        %4812 = vmatpush1.bf16.msra.mxu0 %v3933
        %4813 = vmatprep.subr.bf16.mxu0 %v3936
        %4814 = vmatpush1.bf16.msra.mxu0 %v3935
        %4815 = vmatprep.subr.bf16.mxu0 %v3938
        %4816 = vmatpush1.bf16.msra.mxu0 %v3937
        %4817 = vmatprep.subr.bf16.mxu0 %v3940
        %4818 = vmatpush1.bf16.msra.mxu0 %v3939
        %4819 = vmatprep.subr.bf16.mxu0 %v3942
        %4820 = vmatpush1.bf16.msra.mxu0 %v3941
        %4821 = vmatprep.subr.bf16.mxu0 %v3944
        %4822 = vmatpush1.bf16.msra.mxu0 %v3943
        %4823 = vmatprep.subr.bf16.mxu0 %v3946
        %4824 = vmatpush1.bf16.msra.mxu0 %v3945
        %4825 = vmatprep.subr.bf16.mxu0 %v3948
        %4826 = vmatpush1.bf16.msra.mxu0 %v3947
        %4827 = vmatprep.subr.bf16.mxu0 %v3950
        %4828 = vmatpush1.bf16.msra.mxu0 %v3949
        %4829 = vmatprep.subr.bf16.mxu0 %v3952
        %4830 = vmatpush1.bf16.msra.mxu0 %v3951
        %4831 = vmatprep.subr.bf16.mxu0 %v3954
        %4832 = vmatpush1.bf16.msra.mxu0 %v3953
        %4833 = vmatprep.subr.bf16.mxu0 %v3956
        %4834 = vmatpush1.bf16.msra.mxu0 %v3955
        %4835 = vmatprep.subr.bf16.mxu0 %v3958
        %4836 = vmatpush1.bf16.msra.mxu0 %v3957
        %4837 = vmatprep.subr.bf16.mxu0 %v3960
        %4838 = vmatpush1.bf16.msra.mxu0 %v3959
        %4839 = vmatprep.subr.bf16.mxu0 %v3962
        %4840 = vmatpush1.bf16.msra.mxu0 %v3961
        %4841 = vmatprep.mubr.bf16.mxu0 %v2392
        %4842 = vmatmul.mubr.bf16.gmra.mrb[0].mxu0 %v2378
        %v4843 = vpop.f32.mrb[0].mxu0
        %v4844 = vadd.f32 %v4803, %v4843
        %v4845 = vpop.f32.mrb[0].mxu0
        %v4846 = vadd.f32 %v4805, %v4845
        %v4847 = vpop.f32.mrb[0].mxu0
        %v4848 = vpop.f32.mrb[0].mxu0
        %4849 = vdwg.mxu0
        %4850 = vmatprep.subr.bf16.mxu0 %v3964
        %4851 = vmatpush1.bf16.msra.mxu0 %v3963
        %4852 = vmatprep.subr.bf16.mxu0 %v3966
        %4853 = vmatpush1.bf16.msra.mxu0 %v3965
        %4854 = vmatprep.subr.bf16.mxu0 %v3968
        %4855 = vmatpush1.bf16.msra.mxu0 %v3967
        %4856 = vmatprep.subr.bf16.mxu0 %v3970
        %4857 = vmatpush1.bf16.msra.mxu0 %v3969
        %4858 = vmatprep.subr.bf16.mxu0 %v3972
        %4859 = vmatpush1.bf16.msra.mxu0 %v3971
        %4860 = vmatprep.subr.bf16.mxu0 %v3974
        %4861 = vmatpush1.bf16.msra.mxu0 %v3973
        %4862 = vmatprep.subr.bf16.mxu0 %v3976
        %4863 = vmatpush1.bf16.msra.mxu0 %v3975
        %4864 = vmatprep.subr.bf16.mxu0 %v3978
        %4865 = vmatpush1.bf16.msra.mxu0 %v3977
        %4866 = vmatprep.subr.bf16.mxu0 %v3980
        %4867 = vmatpush1.bf16.msra.mxu0 %v3979
        %4868 = vmatprep.subr.bf16.mxu0 %v3982
        %4869 = vmatpush1.bf16.msra.mxu0 %v3981
        %4870 = vmatprep.subr.bf16.mxu0 %v3984
        %4871 = vmatpush1.bf16.msra.mxu0 %v3983
        %4872 = vmatprep.subr.bf16.mxu0 %v3986
        %4873 = vmatpush1.bf16.msra.mxu0 %v3985
        %4874 = vmatprep.subr.bf16.mxu0 %v3988
        %4875 = vmatpush1.bf16.msra.mxu0 %v3987
        %4876 = vmatprep.subr.bf16.mxu0 %v3990
        %4877 = vmatpush1.bf16.msra.mxu0 %v3989
        %4878 = vmatprep.subr.bf16.mxu0 %v3992
        %4879 = vmatpush1.bf16.msra.mxu0 %v3991
        %4880 = vmatprep.subr.bf16.mxu0 %v3994
        %4881 = vmatpush1.bf16.msra.mxu0 %v3993
        %4882 = vmatprep.mubr.bf16.mxu0 %v2396
        %4883 = vmatmul.mubr.bf16.gmra.mrb[0].mxu0 %v2394
        %v4884 = vpop.f32.mrb[0].mxu0
        %v4885 = vadd.f32 %v4844, %v4884
        %v4886 = vpop.f32.mrb[0].mxu0
        %v4887 = vadd.f32 %v4846, %v4886
        %v4888 = vpop.f32.mrb[0].mxu0
        %v4889 = vpop.f32.mrb[0].mxu0
        %4890 = vdwg.mxu0
        %4891 = vmatprep.subr.bf16.mxu0 %v3996
        %4892 = vmatpush1.bf16.msra.mxu0 %v3995
        %4893 = vmatprep.subr.bf16.mxu0 %v3998
        %4894 = vmatpush1.bf16.msra.mxu0 %v3997
        %4895 = vmatprep.subr.bf16.mxu0 %v4000
        %4896 = vmatpush1.bf16.msra.mxu0 %v3999
        %4897 = vmatprep.subr.bf16.mxu0 %v4002
        %4898 = vmatpush1.bf16.msra.mxu0 %v4001
        %4899 = vmatprep.subr.bf16.mxu0 0
        %4900 = vmatpush1.bf16.msra.mxu0 0
        %4901 = vmatprep.subr.bf16.mxu0 0
        %4902 = vmatpush1.bf16.msra.mxu0 0
        %4903 = vmatprep.subr.bf16.mxu0 0
        %4904 = vmatpush1.bf16.msra.mxu0 0
        %4905 = vmatprep.subr.bf16.mxu0 0
        %4906 = vmatpush1.bf16.msra.mxu0 0
        %4907 = vmatprep.subr.bf16.mxu0 0
        %4908 = vmatpush1.bf16.msra.mxu0 0
        %4909 = vmatprep.subr.bf16.mxu0 0
        %4910 = vmatpush1.bf16.msra.mxu0 0
        %4911 = vmatprep.subr.bf16.mxu0 0
        %4912 = vmatpush1.bf16.msra.mxu0 0
        %4913 = vmatprep.subr.bf16.mxu0 0
        %4914 = vmatpush1.bf16.msra.mxu0 0
        %4915 = vmatprep.subr.bf16.mxu0 0
        %4916 = vmatpush1.bf16.msra.mxu0 0
        %4917 = vmatprep.subr.bf16.mxu0 0
        %4918 = vmatpush1.bf16.msra.mxu0 0
        %4919 = vmatprep.subr.bf16.mxu0 0
        %4920 = vmatpush1.bf16.msra.mxu0 0
        %4921 = vmatprep.subr.bf16.mxu0 0
        %4922 = vmatpush1.bf16.msra.mxu0 0
        %4923 = vmatprep.mubr.bf16.mxu0 0
        %4924 = vmatmul.mubr.bf16.gmra.mrb[0].mxu0 %v4397
        %v4925 = vpop.f32.mrb[0].mxu0
        %v4926 = vadd.f32 %v4885, %v4925
        %v4927 = vpop.f32.mrb[0].mxu0
        %v4928 = vadd.f32 %v4887, %v4927
        %v4929 = vpop.f32.mrb[0].mxu0
        %v4930 = vpop.f32.mrb[0].mxu0
        %4931 = vdwg.mxu0
        %v4932 = vmax.f32 %v4926, 0.0
        %v4933 = vmax.f32 %v4928, 0.0
        %v4934 = vpack.c.bf16 %v4932, %v4932
        %v4935 = vpack.c.bf16 %v4933, %v4933
        %v4936 = vld [vmem:[%s1831] sm:$0xf]
        %v4937 = vld [vmem:[%s1831 + $0x4] sm:$0xf]
        %v4938 = vld [vmem:[%s1831 + $0x8] sm:$0xf]
        %v4939 = vld [vmem:[%s1831 + $0xc] sm:$0xf]
        %v4940 = vld [vmem:[%s1831 + $0x10] sm:$0xf]
        %v4941 = vld [vmem:[%s1831 + $0x14] sm:$0xf]
        %v4942 = vld [vmem:[%s1831 + $0x18] sm:$0xf]
        %v4943 = vld [vmem:[%s1831 + $0x1c] sm:$0xf]
        %v4944 = vld [vmem:[%s1831 + $0x20] sm:$0xf]
        %v4945 = vld [vmem:[%s1831 + $0x24] sm:$0xf]
        %v4946 = vld [vmem:[%s1831 + $0x28] sm:$0xf]
        %v4947 = vld [vmem:[%s1831 + $0x2c] sm:$0xf]
        %v4948 = vld [vmem:[%s1831 + $0x30] sm:$0xf]
        %v4949 = vld [vmem:[%s1831 + $0x34] sm:$0xf]
        %v4950 = vld [vmem:[%s1831 + $0x38] sm:$0xf]
        %v4951 = vld [vmem:[%s1831 + $0x3c] sm:$0xf]
        %v4952 = vld [vmem:[%s1831 + $0x40] sm:$0xf]
        %v4953 = vld [vmem:[%s1831 + $0x44] sm:$0xf]
        %v4954 = vld [vmem:[%s1831 + $0x48] sm:$0xf]
        %v4955 = vld [vmem:[%s1831 + $0x4c] sm:$0xf]
        %v4956 = vld [vmem:[%s1831 + $0x50] sm:$0xf]
        %v4957 = vld [vmem:[%s1831 + $0x54] sm:$0xf]
        %v4958 = vld [vmem:[%s1831 + $0x58] sm:$0xf]
        %v4959 = vld [vmem:[%s1831 + $0x5c] sm:$0xf]
        %v4960 = vld [vmem:[%s1831 + $0x60] sm:$0xf]
        %v4961 = vld [vmem:[%s1831 + $0x64] sm:$0xf]
        %v4962 = vld [vmem:[%s1831 + $0x68] sm:$0xf]
        %v4963 = vld [vmem:[%s1831 + $0x6c] sm:$0xf]
        %v4964 = vld [vmem:[%s1831 + $0x70] sm:$0xf]
        %v4965 = vld [vmem:[%s1831 + $0x74] sm:$0xf]
        %v4966 = vld [vmem:[%s1831 + $0x78] sm:$0xf]
        %v4967 = vld [vmem:[%s1831 + $0x7c] sm:$0xf]
        %v5000 = vunpack.c.l.b16 %v4936
        %v5001 = vunpack.c.l.b16 %v4937
        %v5002 = vunpack.c.l.b16 %v4938
        %v5003 = vunpack.c.l.b16 %v4939
        %v5004 = vunpack.c.l.b16 %v4940
        %v5005 = vunpack.c.l.b16 %v4941
        %v5006 = vunpack.c.l.b16 %v4942
        %v5007 = vunpack.c.l.b16 %v4943
        %v5008 = vunpack.c.l.b16 %v4944
        %v5009 = vunpack.c.l.b16 %v4945
        %v5010 = vunpack.c.l.b16 %v4946
        %v5011 = vunpack.c.l.b16 %v4947
        %v5012 = vunpack.c.l.b16 %v4948
        %v5013 = vunpack.c.l.b16 %v4949
        %v5014 = vunpack.c.l.b16 %v4950
        %v5015 = vunpack.c.l.b16 %v4951
        %v5016 = vunpack.c.l.b16 %v4952
        %v5017 = vunpack.c.l.b16 %v4953
        %v5018 = vunpack.c.l.b16 %v4954
        %v5019 = vunpack.c.l.b16 %v4955
        %v5020 = vunpack.c.l.b16 %v4956
        %v5021 = vunpack.c.l.b16 %v4957
        %v5022 = vunpack.c.l.b16 %v4958
        %v5023 = vunpack.c.l.b16 %v4959
        %v5024 = vunpack.c.l.b16 %v4960
        %v5025 = vunpack.c.l.b16 %v4961
        %v5026 = vunpack.c.l.b16 %v4962
        %v5027 = vunpack.c.l.b16 %v4963
        %v5028 = vunpack.c.l.b16 %v4964
        %v5029 = vunpack.c.l.b16 %v4965
        %v5030 = vunpack.c.l.b16 %v4966
        %v5031 = vunpack.c.l.b16 %v4967
        %v5032 = vpack.c.b16 %v5001, %v5000
        %v5033 = vpack.c.b16 %v5003, %v5002
        %v5034 = vpack.c.b16 %v5005, %v5004
        %v5035 = vpack.c.b16 %v5007, %v5006
        %v5036 = vpack.c.b16 %v5009, %v5008
        %v5037 = vpack.c.b16 %v5011, %v5010
        %v5038 = vpack.c.b16 %v5013, %v5012
        %v5039 = vpack.c.b16 %v5015, %v5014
        %v5040 = vpack.c.b16 %v5017, %v5016
        %v5041 = vpack.c.b16 %v5019, %v5018
        %v5042 = vpack.c.b16 %v5021, %v5020
        %v5043 = vpack.c.b16 %v5023, %v5022
        %v5044 = vpack.c.b16 %v5025, %v5024
        %v5045 = vpack.c.b16 %v5027, %v5026
        %v5046 = vpack.c.b16 %v5029, %v5028
        %v5047 = vpack.c.b16 %v5031, %v5030
        %5064 = vmatprep.subr.bf16.mxu0 0
        %5065 = vmatpush1.bf16.msra.mxu0 %v5032
        %5066 = vmatprep.subr.bf16.mxu0 0
        %5067 = vmatpush1.bf16.msra.mxu0 %v5033
        %5068 = vmatprep.subr.bf16.mxu0 0
        %5069 = vmatpush1.bf16.msra.mxu0 %v5034
        %5070 = vmatprep.subr.bf16.mxu0 0
        %5071 = vmatpush1.bf16.msra.mxu0 %v5035
        %5072 = vmatprep.subr.bf16.mxu0 0
        %5073 = vmatpush1.bf16.msra.mxu0 %v5036
        %5074 = vmatprep.subr.bf16.mxu0 0
        %5075 = vmatpush1.bf16.msra.mxu0 %v5037
        %5076 = vmatprep.subr.bf16.mxu0 0
        %5077 = vmatpush1.bf16.msra.mxu0 %v5038
        %5078 = vmatprep.subr.bf16.mxu0 0
        %5079 = vmatpush1.bf16.msra.mxu0 %v5039
        %5080 = vmatprep.subr.bf16.mxu0 0
        %5081 = vmatpush1.bf16.msra.mxu0 %v5040
        %5082 = vmatprep.subr.bf16.mxu0 0
        %5083 = vmatpush1.bf16.msra.mxu0 %v5041
        %5084 = vmatprep.subr.bf16.mxu0 0
        %5085 = vmatpush1.bf16.msra.mxu0 %v5042
        %5086 = vmatprep.subr.bf16.mxu0 0
        %5087 = vmatpush1.bf16.msra.mxu0 %v5043
        %5088 = vmatprep.subr.bf16.mxu0 0
        %5089 = vmatpush1.bf16.msra.mxu0 %v5044
        %5090 = vmatprep.subr.bf16.mxu0 0
        %5091 = vmatpush1.bf16.msra.mxu0 %v5045
        %5092 = vmatprep.subr.bf16.mxu0 0
        %5093 = vmatpush1.bf16.msra.mxu0 %v5046
        %5094 = vmatprep.subr.bf16.mxu0 0
        %5095 = vmatpush1.bf16.msra.mxu0 %v5047
        %5096 = vmatprep.mubr.bf16.mxu0 %v4935
        %5097 = vmatmul.mubr.bf16.gmra.mrb[0].mxu0 %v4934
        %v5098 = vpop.f32.mrb[0].mxu0
        %v5099 = vadd.f32 0.0, %v5098
        %v5100 = vpop.f32.mrb[0].mxu0
        %v5101 = vpop.f32.mrb[0].mxu0
        %v5102 = vpop.f32.mrb[0].mxu0
        %5103 = vdwg.mxu0
        %vm5104 = vcmask 17408
        %5105 = vst.msk [vmem:[%s1836] sm:$0x3] %vm5104, %v5099
        %p5106 = scmp.lt.s32.totalorder %s15, 1
        %s5107 = scalar_select %p5106, %s15, 1
        %s5108 = smul.addr %s5107, 2
        %s5109 = scalar_lea.vmem %s4, %s5108
        // Predicated region
        $region75: #{dqn_forward.7} parent=69 // pred_check
          %p5110 = pneg %p132
        $region76: #{dqn_forward.7} parent=69 // pred_check_branch
          %5112 = sbr.rel (%p5110) target = $region78
        $region77: #{dqn_forward.7} parent=69 // pred_region
          _
        $region78: #{dqn_forward.7} parent=69 // pred_fallthru
          _
      $region70: #{dqn_forward.7} parent=5 // pred_fallthru
        _
      %p5113 = scmp.le.s32.totalorder 2, %s10
      // Predicated region
      $region79: #{dqn_forward.7} parent=5 // pred_check
        %p5114 = pneg %p5113
      $region80: #{dqn_forward.7} parent=5 // pred_check_branch
        %5116 = sbr.rel (%p5114) target = $region82
      $region81: #{dqn_forward.7} parent=5 // pred_region
        %s5117 = ssub.s32 %s10, 2
        // Predicated region
        $region83: #{dqn_forward.7} parent=81 // pred_check
          %p5118 = pneg %p138
        $region84: #{dqn_forward.7} parent=81 // pred_check_branch
          %5120 = sbr.rel (%p5118) target = $region86
        $region85: #{dqn_forward.7} parent=81 // pred_region
          %p5121 = scmp.lt.s32.totalorder %s16, 1
          %s5122 = scalar_select %p5121, %s16, 1
          %s5123 = smul.addr %s5122, 2
          %s5124 = scalar_lea.vmem %s4, %s5123
        $region86: #{dqn_forward.7} parent=81 // pred_fallthru
          _
      $region82: #{dqn_forward.7} parent=5 // pred_fallthru
        _
    $region6: #{dqn_forward.7} parent=1 // loop_footer
      %s14 = sadd.s32 1, %s10
    $region7: #{dqn_forward.7} parent=1 // loop_footer_branch
      %9 = sbr.rel target = $region3
    $region8: #{dqn_forward.7} parent=1 // loop_exit
      _

</llo_original>
